<compile_context>
chip_gen: v6e
topology: v6e:2x2x1
jax: 0.10.0
libtpu: 0.0.40
codegen_flags: <defaults>
</compile_context>

<pallas_src>
import math
import jax
import jax.numpy as jnp
from jax.experimental import pallas as pl
from jax.experimental.pallas import tpu as pltpu

# ----- small, module-consistent shapes -----
B, T = 2, 8            # batch, seq_len
FEAT = 32              # feature_dim (use_pretrained_features=True)
H = 16                 # hidden_dim
D = 2 * H              # d_model = hidden_dim * 2 (bidirectional LSTM output)
NH = 4                 # num_heads
HD = D // NH           # head dim
FF = 4 * H             # dim_feedforward = hidden_dim * 4
L = 2                  # num_transformer_layers
G = 8 * H              # fused bidirectional gate width (= 128 lanes)
LN_EPS = 1e-5
SLAB_W = 128           # parameter-slab lane width


def _layer_norm(v, g, b):
    mu = jnp.mean(v, axis=-1, keepdims=True)
    var = jnp.mean((v - mu) ** 2, axis=-1, keepdims=True)
    return (v - mu) * jax.lax.rsqrt(var + LN_EPS) * g + b


def _softmax_last(s):
    s = s - jnp.max(s, axis=-1, keepdims=True)
    e = jnp.exp(s)
    return e * pl.reciprocal(jnp.sum(e, axis=-1, keepdims=True), approx=True)


def make_positional_encoding(seq_len, d_model, max_seq_length=32):
    position = jnp.arange(max_seq_length, dtype=jnp.float32)[:, None]
    div_term = jnp.exp(jnp.arange(0, d_model, 2, dtype=jnp.float32)
                       * (-math.log(10000.0) / d_model))
    pe = jnp.zeros((max_seq_length, d_model), jnp.float32)
    pe = pe.at[:, 0::2].set(jnp.sin(position * div_term))
    pe = pe.at[:, 1::2].set(jnp.cos(position * div_term))
    return pe[:seq_len]                                                    # (T, D)


class _ParamSlab:
    """Packs many small f32 params into one (rows, 128) slab (one DMA)."""

    def __init__(self, width=SLAB_W):
        self.width = width
        self.chunks = []
        self.index = {}     # name -> (row_start, rows, cols)  (static python ints)
        self.nrows = 0

    def add(self, name, arr):
        arr = jnp.asarray(arr, jnp.float32)
        if arr.ndim == 1:
            arr = arr[None, :]
        r, c = arr.shape
        assert c <= self.width, (name, arr.shape)
        rp = ((r + 7) // 8) * 8                       # sublane-align every entry
        buf = jnp.zeros((rp, self.width), jnp.float32).at[:r, :c].set(arr)
        self.chunks.append(buf)
        self.index[name] = (self.nrows, r, c)
        self.nrows += rp

    def pack(self):
        return jnp.concatenate(self.chunks, axis=0)


def build_params(key):
    """Deterministic synthetic parameters, pre-packed into one slab.

    Matrices are stored pre-transposed so the kernel computes x @ W_t + b
    (== PyTorch x @ W^T + b). LSTM weights are stored in the fused layout:
    gate columns [i_f i_b f_f f_b g_f g_b o_f o_b] (each width H)."""
    ks = iter(jax.random.split(key, 64))
    nrm = lambda shape, s=0.1: (s * jax.random.normal(next(ks), shape)).astype(jnp.float32)

    slab = _ParamSlab()

    # positional encoding
    slab.add('pe', make_positional_encoding(T, D))

    # ----- LSTM (PyTorch shapes: W_ih (4H,FEAT), W_hh (4H,H), b = b_ih+b_hh) -----
    def lstm_dir():
        wih = nrm((4 * H, FEAT)).T                    # (FEAT, 4H) cols = [i f g o]
        whh = nrm((4 * H, H)).T                       # (H, 4H)
        b = nrm((4 * H,), 0.01) + nrm((4 * H,), 0.01)
        return wih, whh, b
    wih_f, whh_f, b_f = lstm_dir()
    wih_b, whh_b, b_b = lstm_dir()

    wih_f_pad = jnp.zeros((FEAT, G), jnp.float32)     # fwd weights in fwd col blocks
    wih_b_pad = jnp.zeros((FEAT, G), jnp.float32)     # bwd weights in bwd col blocks
    whh_bd = jnp.zeros((2 * H, G), jnp.float32)       # block-diagonal hidden weights
    bias_all = jnp.zeros((1, G), jnp.float32)
    for g in range(4):                                # gate order i, f, g, o
        fcol = (2 * g) * H
        bcol = (2 * g + 1) * H
        wih_f_pad = wih_f_pad.at[:, fcol:fcol + H].set(wih_f[:, g * H:(g + 1) * H])
        wih_b_pad = wih_b_pad.at[:, bcol:bcol + H].set(wih_b[:, g * H:(g + 1) * H])
        whh_bd = whh_bd.at[0:H, fcol:fcol + H].set(whh_f[:, g * H:(g + 1) * H])
        whh_bd = whh_bd.at[H:2 * H, bcol:bcol + H].set(whh_b[:, g * H:(g + 1) * H])
        bias_all = bias_all.at[0, fcol:fcol + H].set(b_f[g * H:(g + 1) * H])
        bias_all = bias_all.at[0, bcol:bcol + H].set(b_b[g * H:(g + 1) * H])
    slab.add('wih_f', wih_f_pad)
    slab.add('wih_b', wih_b_pad)
    slab.add('whh_bd', whh_bd)
    slab.add('lstm_bias', bias_all)

    # ----- transformer encoder layers (post-norm, ReLU FFN) -----
    scale = 1.0 / math.sqrt(HD)
    for l in range(L):
        inp_w = nrm((3 * D, D)).T                     # (D, 3D), cols = [q | k | v]
        inp_b = nrm((3 * D,), 0.01)
        inp_w = inp_w.at[:, 0:D].multiply(scale)      # fold 1/sqrt(HD) into Q
        inp_b = inp_b.at[0:D].multiply(scale)
        slab.add(f'inp_w{l}', inp_w)
        slab.add(f'inp_b{l}', inp_b)
        slab.add(f'outp_w{l}', nrm((D, D)).T)
        slab.add(f'outp_b{l}', nrm((D,), 0.01))
        slab.add(f'ln1_g{l}', jnp.ones((D,), jnp.float32))
        slab.add(f'ln1_b{l}', jnp.zeros((D,), jnp.float32))
        slab.add(f'lin1_w{l}', nrm((FF, D)).T)        # (D, FF)
        slab.add(f'lin1_b{l}', nrm((FF,), 0.01))
        slab.add(f'lin2_w{l}', nrm((D, FF)).T)        # (FF, D)
        slab.add(f'lin2_b{l}', nrm((D,), 0.01))
        slab.add(f'ln2_g{l}', jnp.ones((D,), jnp.float32))
        slab.add(f'ln2_b{l}', jnp.zeros((D,), jnp.float32))

    # ----- classifier head -----
    slab.add('wc1', nrm((H, D)).T)                    # (D, H)
    slab.add('bc1', nrm((H,), 0.01))
    slab.add('ln_g', jnp.ones((H,), jnp.float32))
    slab.add('ln_b', jnp.zeros((H,), jnp.float32))
    slab.add('wc2', nrm((1, H)).T)                    # (H, 1)
    slab.add('bc2', nrm((1,), 0.01))

    return slab.pack(), slab.index


def make_kernel(index):
    def getp(slab_ref, name):
        r0, r, c = index[name]
        return slab_ref[r0:r0 + r, 0:c]               # static slice of the VMEM slab

    def kernel(feat_ref, slab_ref, out_ref):
        feat2 = feat_ref[...].reshape(B * T, FEAT)    # (B*T, FEAT)

        # ---- LSTM input projections, hoisted out of the recurrence ----
        # Forward/backward weights live in disjoint (zero-padded) gate columns,
        # so the fused (B,8H) gate vector needs only an add per step.
        gx_f = (jnp.dot(feat2, getp(slab_ref, 'wih_f'),
                        preferred_element_type=jnp.float32)
                + getp(slab_ref, 'lstm_bias')).reshape(B, T, G)
        gx_b = jnp.dot(feat2, getp(slab_ref, 'wih_b'),
                       preferred_element_type=jnp.float32).reshape(B, T, G)
        # per-step precombined x-gates (fwd uses t, bwd uses T-1-t); off critical chain
        gx_steps = [gx_f[:, t, :] + gx_b[:, T - 1 - t, :] for t in range(T)]

        whh = getp(slab_ref, 'whh_bd')                # (2H, 8H) block-diagonal

        # ---- fused bidirectional recurrence: one 128-lane matmul per step ----
        h = jnp.zeros((B, 2 * H), jnp.float32)        # [h_fwd | h_bwd]
        c = jnp.zeros((B, 2 * H), jnp.float32)
        h_fwd = [None] * T
        h_bwd = [None] * T
        for t in range(T):                            # static unrolled loop
            gates = gx_steps[t] + jnp.dot(h, whh, preferred_element_type=jnp.float32)
            i_g = jax.nn.sigmoid(gates[:, 0:2 * H])   # [i_f | i_b]
            f_g = jax.nn.sigmoid(gates[:, 2 * H:4 * H])
            g_g = jnp.tanh(gates[:, 4 * H:6 * H])
            o_g = jax.nn.sigmoid(gates[:, 6 * H:8 * H])
            c = f_g * c + i_g * g_g
            h = o_g * jnp.tanh(c)
            h_fwd[t] = h[:, 0:H]                      # fwd output at input time t
            h_bwd[T - 1 - t] = h[:, H:2 * H]          # bwd output at input time T-1-t

        lstm_out = jnp.stack(
            [jnp.concatenate([h_fwd[t], h_bwd[t]], axis=-1) for t in range(T)],
            axis=1)                                   # (B, T, D), single materialization

        # ---- positional encoding; keep canonical (B*T, D) layout afterwards ----
        pe = getp(slab_ref, 'pe')                     # (T, D)
        x2 = (lstm_out + pe[None, :, :]).reshape(B * T, D)

        # ---- post-norm transformer encoder layers (ReLU FFN, eval mode) ----
        for l in range(L):
            qkv = (jnp.dot(x2, getp(slab_ref, f'inp_w{l}'),
                           preferred_element_type=jnp.float32)
                   + getp(slab_ref, f'inp_b{l}'))     # (B*T, 3D); 1/sqrt(HD) pre-folded
            q3 = qkv[:, 0:D].reshape(B, T, D)
            k3 = qkv[:, D:2 * D].reshape(B, T, D)
            v3 = qkv[:, 2 * D:3 * D].reshape(B, T, D)
            # batch all heads into one leading axis -> 2 einsums per layer
            qh = jnp.stack([q3[:, :, hh * HD:(hh + 1) * HD] for hh in range(NH)],
                           axis=0).reshape(NH * B, T, HD)
            kh = jnp.stack([k3[:, :, hh * HD:(hh + 1) * HD] for hh in range(NH)],
                           axis=0).reshape(NH * B, T, HD)
            vh = jnp.stack([v3[:, :, hh * HD:(hh + 1) * HD] for hh in range(NH)],
                           axis=0).reshape(NH * B, T, HD)
            s = jnp.einsum('bqd,bkd->bqk', qh, kh,
                           preferred_element_type=jnp.float32)        # (NH*B, T, T)
            p = _softmax_last(s)
            ctx = jnp.einsum('bqk,bkd->bqd', p, vh,
                             preferred_element_type=jnp.float32)      # (NH*B, T, HD)
            ctx = ctx.reshape(NH, B, T, HD)
            attn = jnp.concatenate([ctx[hh] for hh in range(NH)],
                                   axis=-1).reshape(B * T, D)
            attn = (jnp.dot(attn, getp(slab_ref, f'outp_w{l}'),
                            preferred_element_type=jnp.float32)
                    + getp(slab_ref, f'outp_b{l}'))
            y = _layer_norm(x2 + attn,
                            getp(slab_ref, f'ln1_g{l}'), getp(slab_ref, f'ln1_b{l}'))
            ff = jnp.maximum(
                jnp.dot(y, getp(slab_ref, f'lin1_w{l}'),
                        preferred_element_type=jnp.float32)
                + getp(slab_ref, f'lin1_b{l}'), 0.0)
            ff = (jnp.dot(ff, getp(slab_ref, f'lin2_w{l}'),
                          preferred_element_type=jnp.float32)
                  + getp(slab_ref, f'lin2_b{l}'))
            x2 = _layer_norm(y + ff,
                             getp(slab_ref, f'ln2_g{l}'), getp(slab_ref, f'ln2_b{l}'))

        # ---- self-similarity attention pooling ----
        # Only row T-1 of the (B,T,T) attention map feeds the classifier, and the
        # softmax is per-row, so compute just that row (VPU mul + reductions).
        x3 = x2.reshape(B, T, D)
        x_last = x3[:, T - 1:T, :]                                    # (B, 1, D)
        s_last = jnp.sum(x_last * x3, axis=-1)                        # (B, T)
        p_last = _softmax_last(s_last)
        final = jnp.sum(p_last[:, :, None] * x3, axis=1)              # (B, D)

        # ---- classifier: Linear -> LayerNorm -> ReLU -> Linear -> Sigmoid ----
        z = (jnp.dot(final, getp(slab_ref, 'wc1'),
                     preferred_element_type=jnp.float32) + getp(slab_ref, 'bc1'))
        z = jnp.maximum(_layer_norm(z, getp(slab_ref, 'ln_g'),
                                    getp(slab_ref, 'ln_b')), 0.0)
        z = (jnp.dot(z, getp(slab_ref, 'wc2'),
                     preferred_element_type=jnp.float32) + getp(slab_ref, 'bc2'))
        out_ref[...] = jax.nn.sigmoid(z)                              # (B, 1)

    return kernel


def lstm_transformer_forward(features, param_slab, param_index):
    # Grid-less call: whole problem fits in a fraction of VMEM on v5e/v6e/v7x.
    # (At realistic batch sizes a 'parallel' batch grid axis would be added to
    # exploit the 2 TensorCores on v7x.)
    return pl.pallas_call(
        make_kernel(param_index),
        out_shape=jax.ShapeDtypeStruct((B, 1), jnp.float32),
        in_specs=[pl.BlockSpec(memory_space=pltpu.MemorySpace.VMEM),
                  pl.BlockSpec(memory_space=pltpu.MemorySpace.VMEM)],
        out_specs=pl.BlockSpec(memory_space=pltpu.MemorySpace.VMEM),
    )(features, param_slab)


if __name__ == "__main__":
    key = jax.random.PRNGKey(0)
    k_x, k_p = jax.random.split(key)
    x = jax.random.normal(k_x, (B, T, FEAT), dtype=jnp.float32)  # [batch, seq, feature]
    param_slab, param_index = build_params(k_p)
    out = lstm_transformer_forward(x, param_slab, param_index)
    out = jax.block_until_ready(out)
    assert out.shape == (B, 1)
    assert bool(jnp.all(jnp.isfinite(out)))
    print("KERNEL_OK")
</pallas_src>

<mosaic_0001>
module attributes {stable_mosaic.version = 11 : i64} {
  func.func @kernel(%arg0: memref<2x8x32xf32, #tpu.memory_space<vmem>>, %arg1: memref<640x128xf32, #tpu.memory_space<vmem>>, %arg2: memref<2x1xf32, #tpu.memory_space<vmem>>) attributes {dimension_semantics = [], scalar_prefetch = 0 : i64, scratch_operands = 0 : i64, tpu.core_type = #tpu.core_type<tc>} {
    %c0 = arith.constant 0 : index
    %c0_0 = arith.constant 0 : index
    %c0_1 = arith.constant 0 : index
    %0 = vector.load %arg0[%c0, %c0_0, %c0_1] : memref<2x8x32xf32, #tpu.memory_space<vmem>>, vector<2x8x32xf32>
    %1 = vector.shape_cast %0 : vector<2x8x32xf32> to vector<16x32xf32>
    %c8 = arith.constant 8 : index
    %c0_2 = arith.constant 0 : index
    %2 = vector.load %arg1[%c8, %c0_2] : memref<640x128xf32, #tpu.memory_space<vmem>>, vector<32x128xf32>
    %cst = arith.constant dense<0.000000e+00> : vector<16x128xf32>
    %3 = tpu.matmul %1, %2, %cst {dimension_numbers = #tpu.dot_dimension_numbers<[1], [0], [0], [1], [0, 0, 1, 1], [], []>} : vector<16x32xf32>, vector<32x128xf32>, vector<16x128xf32> -> vector<16x128xf32>
    %c104 = arith.constant 104 : index
    %c0_3 = arith.constant 0 : index
    %4 = vector.load %arg1[%c104, %c0_3] : memref<640x128xf32, #tpu.memory_space<vmem>>, vector<1x128xf32>
    %5 = vector.broadcast %4 : vector<1x128xf32> to vector<16x128xf32>
    %6 = arith.addf %3, %5 : vector<16x128xf32>
    %7 = vector.shape_cast %6 : vector<16x128xf32> to vector<2x8x128xf32>
    %c40 = arith.constant 40 : index
    %c0_4 = arith.constant 0 : index
    %8 = vector.load %arg1[%c40, %c0_4] : memref<640x128xf32, #tpu.memory_space<vmem>>, vector<32x128xf32>
    %cst_5 = arith.constant dense<0.000000e+00> : vector<16x128xf32>
    %9 = tpu.matmul %1, %8, %cst_5 {dimension_numbers = #tpu.dot_dimension_numbers<[1], [0], [0], [1], [0, 0, 1, 1], [], []>} : vector<16x32xf32>, vector<32x128xf32>, vector<16x128xf32> -> vector<16x128xf32>
    %10 = vector.shape_cast %9 : vector<16x128xf32> to vector<2x8x128xf32>
    %11 = vector.extract_strided_slice %7 {offsets = [0, 0, 0], sizes = [2, 1, 128], strides = [1, 1, 1]} : vector<2x8x128xf32> to vector<2x1x128xf32>
    %12 = vector.shape_cast %11 : vector<2x1x128xf32> to vector<2x128xf32>
    %13 = vector.extract_strided_slice %10 {offsets = [0, 7, 0], sizes = [2, 1, 128], strides = [1, 1, 1]} : vector<2x8x128xf32> to vector<2x1x128xf32>
    %14 = vector.shape_cast %13 : vector<2x1x128xf32> to vector<2x128xf32>
    %15 = arith.addf %12, %14 : vector<2x128xf32>
    %16 = vector.extract_strided_slice %7 {offsets = [0, 1, 0], sizes = [2, 1, 128], strides = [1, 1, 1]} : vector<2x8x128xf32> to vector<2x1x128xf32>
    %17 = vector.shape_cast %16 : vector<2x1x128xf32> to vector<2x128xf32>
    %18 = vector.extract_strided_slice %10 {offsets = [0, 6, 0], sizes = [2, 1, 128], strides = [1, 1, 1]} : vector<2x8x128xf32> to vector<2x1x128xf32>
    %19 = vector.shape_cast %18 : vector<2x1x128xf32> to vector<2x128xf32>
    %20 = arith.addf %17, %19 : vector<2x128xf32>
    %21 = vector.extract_strided_slice %7 {offsets = [0, 2, 0], sizes = [2, 1, 128], strides = [1, 1, 1]} : vector<2x8x128xf32> to vector<2x1x128xf32>
    %22 = vector.shape_cast %21 : vector<2x1x128xf32> to vector<2x128xf32>
    %23 = vector.extract_strided_slice %10 {offsets = [0, 5, 0], sizes = [2, 1, 128], strides = [1, 1, 1]} : vector<2x8x128xf32> to vector<2x1x128xf32>
    %24 = vector.shape_cast %23 : vector<2x1x128xf32> to vector<2x128xf32>
    %25 = arith.addf %22, %24 : vector<2x128xf32>
    %26 = vector.extract_strided_slice %7 {offsets = [0, 3, 0], sizes = [2, 1, 128], strides = [1, 1, 1]} : vector<2x8x128xf32> to vector<2x1x128xf32>
    %27 = vector.shape_cast %26 : vector<2x1x128xf32> to vector<2x128xf32>
    %28 = vector.extract_strided_slice %10 {offsets = [0, 4, 0], sizes = [2, 1, 128], strides = [1, 1, 1]} : vector<2x8x128xf32> to vector<2x1x128xf32>
    %29 = vector.shape_cast %28 : vector<2x1x128xf32> to vector<2x128xf32>
    %30 = arith.addf %27, %29 : vector<2x128xf32>
    %31 = vector.extract_strided_slice %7 {offsets = [0, 4, 0], sizes = [2, 1, 128], strides = [1, 1, 1]} : vector<2x8x128xf32> to vector<2x1x128xf32>
    %32 = vector.shape_cast %31 : vector<2x1x128xf32> to vector<2x128xf32>
    %33 = vector.extract_strided_slice %10 {offsets = [0, 3, 0], sizes = [2, 1, 128], strides = [1, 1, 1]} : vector<2x8x128xf32> to vector<2x1x128xf32>
    %34 = vector.shape_cast %33 : vector<2x1x128xf32> to vector<2x128xf32>
    %35 = arith.addf %32, %34 : vector<2x128xf32>
    %36 = vector.extract_strided_slice %7 {offsets = [0, 5, 0], sizes = [2, 1, 128], strides = [1, 1, 1]} : vector<2x8x128xf32> to vector<2x1x128xf32>
    %37 = vector.shape_cast %36 : vector<2x1x128xf32> to vector<2x128xf32>
    %38 = vector.extract_strided_slice %10 {offsets = [0, 2, 0], sizes = [2, 1, 128], strides = [1, 1, 1]} : vector<2x8x128xf32> to vector<2x1x128xf32>
    %39 = vector.shape_cast %38 : vector<2x1x128xf32> to vector<2x128xf32>
    %40 = arith.addf %37, %39 : vector<2x128xf32>
    %41 = vector.extract_strided_slice %7 {offsets = [0, 6, 0], sizes = [2, 1, 128], strides = [1, 1, 1]} : vector<2x8x128xf32> to vector<2x1x128xf32>
    %42 = vector.shape_cast %41 : vector<2x1x128xf32> to vector<2x128xf32>
    %43 = vector.extract_strided_slice %10 {offsets = [0, 1, 0], sizes = [2, 1, 128], strides = [1, 1, 1]} : vector<2x8x128xf32> to vector<2x1x128xf32>
    %44 = vector.shape_cast %43 : vector<2x1x128xf32> to vector<2x128xf32>
    %45 = arith.addf %42, %44 : vector<2x128xf32>
    %46 = vector.extract_strided_slice %7 {offsets = [0, 7, 0], sizes = [2, 1, 128], strides = [1, 1, 1]} : vector<2x8x128xf32> to vector<2x1x128xf32>
    %47 = vector.shape_cast %46 : vector<2x1x128xf32> to vector<2x128xf32>
    %48 = vector.extract_strided_slice %10 {offsets = [0, 0, 0], sizes = [2, 1, 128], strides = [1, 1, 1]} : vector<2x8x128xf32> to vector<2x1x128xf32>
    %49 = vector.shape_cast %48 : vector<2x1x128xf32> to vector<2x128xf32>
    %50 = arith.addf %47, %49 : vector<2x128xf32>
    %c72 = arith.constant 72 : index
    %c0_6 = arith.constant 0 : index
    %51 = vector.load %arg1[%c72, %c0_6] : memref<640x128xf32, #tpu.memory_space<vmem>>, vector<32x128xf32>
    %cst_7 = arith.constant 0.000000e+00 : f32
    %52 = vector.broadcast %cst_7 : f32 to vector<2x32xf32>
    %cst_8 = arith.constant 0.000000e+00 : f32
    %53 = vector.broadcast %cst_8 : f32 to vector<2x32xf32>
    %cst_9 = arith.constant dense<0.000000e+00> : vector<2x128xf32>
    %54 = tpu.matmul %52, %51, %cst_9 {dimension_numbers = #tpu.dot_dimension_numbers<[1], [0], [0], [1], [0, 0, 1, 1], [], []>} : vector<2x32xf32>, vector<32x128xf32>, vector<2x128xf32> -> vector<2x128xf32>
    %55 = arith.addf %15, %54 : vector<2x128xf32>
    %56 = vector.extract_strided_slice %55 {offsets = [0, 0], sizes = [2, 32], strides = [1, 1]} : vector<2x128xf32> to vector<2x32xf32>
    %57 = arith.negf %56 : vector<2x32xf32>
    %58 = math.exp %57 : vector<2x32xf32>
    %cst_10 = arith.constant 1.000000e+00 : f32
    %59 = vector.broadcast %cst_10 : f32 to vector<2x32xf32>
    %60 = arith.addf %59, %58 : vector<2x32xf32>
    %61 = arith.divf %59, %60 : vector<2x32xf32>
    %62 = vector.extract_strided_slice %55 {offsets = [0, 32], sizes = [2, 32], strides = [1, 1]} : vector<2x128xf32> to vector<2x32xf32>
    %63 = arith.negf %62 : vector<2x32xf32>
    %64 = math.exp %63 : vector<2x32xf32>
    %cst_11 = arith.constant 1.000000e+00 : f32
    %65 = vector.broadcast %cst_11 : f32 to vector<2x32xf32>
    %66 = arith.addf %65, %64 : vector<2x32xf32>
    %67 = arith.divf %65, %66 : vector<2x32xf32>
    %68 = vector.extract_strided_slice %55 {offsets = [0, 64], sizes = [2, 32], strides = [1, 1]} : vector<2x128xf32> to vector<2x32xf32>
    %69 = math.tanh %68 : vector<2x32xf32>
    %70 = vector.extract_strided_slice %55 {offsets = [0, 96], sizes = [2, 32], strides = [1, 1]} : vector<2x128xf32> to vector<2x32xf32>
    %71 = arith.negf %70 : vector<2x32xf32>
    %72 = math.exp %71 : vector<2x32xf32>
    %cst_12 = arith.constant 1.000000e+00 : f32
    %73 = vector.broadcast %cst_12 : f32 to vector<2x32xf32>
    %74 = arith.addf %73, %72 : vector<2x32xf32>
    %75 = arith.divf %73, %74 : vector<2x32xf32>
    %76 = arith.mulf %67, %53 : vector<2x32xf32>
    %77 = arith.mulf %61, %69 : vector<2x32xf32>
    %78 = arith.addf %76, %77 : vector<2x32xf32>
    %79 = math.tanh %78 : vector<2x32xf32>
    %80 = arith.mulf %75, %79 : vector<2x32xf32>
    %81 = vector.extract_strided_slice %80 {offsets = [0, 0], sizes = [2, 16], strides = [1, 1]} : vector<2x32xf32> to vector<2x16xf32>
    %82 = vector.extract_strided_slice %80 {offsets = [0, 16], sizes = [2, 16], strides = [1, 1]} : vector<2x32xf32> to vector<2x16xf32>
    %cst_13 = arith.constant dense<0.000000e+00> : vector<2x128xf32>
    %83 = tpu.matmul %80, %51, %cst_13 {dimension_numbers = #tpu.dot_dimension_numbers<[1], [0], [0], [1], [0, 0, 1, 1], [], []>} : vector<2x32xf32>, vector<32x128xf32>, vector<2x128xf32> -> vector<2x128xf32>
    %84 = arith.addf %20, %83 : vector<2x128xf32>
    %85 = vector.extract_strided_slice %84 {offsets = [0, 0], sizes = [2, 32], strides = [1, 1]} : vector<2x128xf32> to vector<2x32xf32>
    %86 = arith.negf %85 : vector<2x32xf32>
    %87 = math.exp %86 : vector<2x32xf32>
    %cst_14 = arith.constant 1.000000e+00 : f32
    %88 = vector.broadcast %cst_14 : f32 to vector<2x32xf32>
    %89 = arith.addf %88, %87 : vector<2x32xf32>
    %90 = arith.divf %88, %89 : vector<2x32xf32>
    %91 = vector.extract_strided_slice %84 {offsets = [0, 32], sizes = [2, 32], strides = [1, 1]} : vector<2x128xf32> to vector<2x32xf32>
    %92 = arith.negf %91 : vector<2x32xf32>
    %93 = math.exp %92 : vector<2x32xf32>
    %cst_15 = arith.constant 1.000000e+00 : f32
    %94 = vector.broadcast %cst_15 : f32 to vector<2x32xf32>
    %95 = arith.addf %94, %93 : vector<2x32xf32>
    %96 = arith.divf %94, %95 : vector<2x32xf32>
    %97 = vector.extract_strided_slice %84 {offsets = [0, 64], sizes = [2, 32], strides = [1, 1]} : vector<2x128xf32> to vector<2x32xf32>
    %98 = math.tanh %97 : vector<2x32xf32>
    %99 = vector.extract_strided_slice %84 {offsets = [0, 96], sizes = [2, 32], strides = [1, 1]} : vector<2x128xf32> to vector<2x32xf32>
    %100 = arith.negf %99 : vector<2x32xf32>
    %101 = math.exp %100 : vector<2x32xf32>
    %cst_16 = arith.constant 1.000000e+00 : f32
    %102 = vector.broadcast %cst_16 : f32 to vector<2x32xf32>
    %103 = arith.addf %102, %101 : vector<2x32xf32>
    %104 = arith.divf %102, %103 : vector<2x32xf32>
    %105 = arith.mulf %96, %78 : vector<2x32xf32>
    %106 = arith.mulf %90, %98 : vector<2x32xf32>
    %107 = arith.addf %105, %106 : vector<2x32xf32>
    %108 = math.tanh %107 : vector<2x32xf32>
    %109 = arith.mulf %104, %108 : vector<2x32xf32>
    %110 = vector.extract_strided_slice %109 {offsets = [0, 0], sizes = [2, 16], strides = [1, 1]} : vector<2x32xf32> to vector<2x16xf32>
    %111 = vector.extract_strided_slice %109 {offsets = [0, 16], sizes = [2, 16], strides = [1, 1]} : vector<2x32xf32> to vector<2x16xf32>
    %cst_17 = arith.constant dense<0.000000e+00> : vector<2x128xf32>
    %112 = tpu.matmul %109, %51, %cst_17 {dimension_numbers = #tpu.dot_dimension_numbers<[1], [0], [0], [1], [0, 0, 1, 1], [], []>} : vector<2x32xf32>, vector<32x128xf32>, vector<2x128xf32> -> vector<2x128xf32>
    %113 = arith.addf %25, %112 : vector<2x128xf32>
    %114 = vector.extract_strided_slice %113 {offsets = [0, 0], sizes = [2, 32], strides = [1, 1]} : vector<2x128xf32> to vector<2x32xf32>
    %115 = arith.negf %114 : vector<2x32xf32>
    %116 = math.exp %115 : vector<2x32xf32>
    %cst_18 = arith.constant 1.000000e+00 : f32
    %117 = vector.broadcast %cst_18 : f32 to vector<2x32xf32>
    %118 = arith.addf %117, %116 : vector<2x32xf32>
    %119 = arith.divf %117, %118 : vector<2x32xf32>
    %120 = vector.extract_strided_slice %113 {offsets = [0, 32], sizes = [2, 32], strides = [1, 1]} : vector<2x128xf32> to vector<2x32xf32>
    %121 = arith.negf %120 : vector<2x32xf32>
    %122 = math.exp %121 : vector<2x32xf32>
    %cst_19 = arith.constant 1.000000e+00 : f32
    %123 = vector.broadcast %cst_19 : f32 to vector<2x32xf32>
    %124 = arith.addf %123, %122 : vector<2x32xf32>
    %125 = arith.divf %123, %124 : vector<2x32xf32>
    %126 = vector.extract_strided_slice %113 {offsets = [0, 64], sizes = [2, 32], strides = [1, 1]} : vector<2x128xf32> to vector<2x32xf32>
    %127 = math.tanh %126 : vector<2x32xf32>
    %128 = vector.extract_strided_slice %113 {offsets = [0, 96], sizes = [2, 32], strides = [1, 1]} : vector<2x128xf32> to vector<2x32xf32>
    %129 = arith.negf %128 : vector<2x32xf32>
    %130 = math.exp %129 : vector<2x32xf32>
    %cst_20 = arith.constant 1.000000e+00 : f32
    %131 = vector.broadcast %cst_20 : f32 to vector<2x32xf32>
    %132 = arith.addf %131, %130 : vector<2x32xf32>
    %133 = arith.divf %131, %132 : vector<2x32xf32>
    %134 = arith.mulf %125, %107 : vector<2x32xf32>
    %135 = arith.mulf %119, %127 : vector<2x32xf32>
    %136 = arith.addf %134, %135 : vector<2x32xf32>
    %137 = math.tanh %136 : vector<2x32xf32>
    %138 = arith.mulf %133, %137 : vector<2x32xf32>
    %139 = vector.extract_strided_slice %138 {offsets = [0, 0], sizes = [2, 16], strides = [1, 1]} : vector<2x32xf32> to vector<2x16xf32>
    %140 = vector.extract_strided_slice %138 {offsets = [0, 16], sizes = [2, 16], strides = [1, 1]} : vector<2x32xf32> to vector<2x16xf32>
    %cst_21 = arith.constant dense<0.000000e+00> : vector<2x128xf32>
    %141 = tpu.matmul %138, %51, %cst_21 {dimension_numbers = #tpu.dot_dimension_numbers<[1], [0], [0], [1], [0, 0, 1, 1], [], []>} : vector<2x32xf32>, vector<32x128xf32>, vector<2x128xf32> -> vector<2x128xf32>
    %142 = arith.addf %30, %141 : vector<2x128xf32>
    %143 = vector.extract_strided_slice %142 {offsets = [0, 0], sizes = [2, 32], strides = [1, 1]} : vector<2x128xf32> to vector<2x32xf32>
    %144 = arith.negf %143 : vector<2x32xf32>
    %145 = math.exp %144 : vector<2x32xf32>
    %cst_22 = arith.constant 1.000000e+00 : f32
    %146 = vector.broadcast %cst_22 : f32 to vector<2x32xf32>
    %147 = arith.addf %146, %145 : vector<2x32xf32>
    %148 = arith.divf %146, %147 : vector<2x32xf32>
    %149 = vector.extract_strided_slice %142 {offsets = [0, 32], sizes = [2, 32], strides = [1, 1]} : vector<2x128xf32> to vector<2x32xf32>
    %150 = arith.negf %149 : vector<2x32xf32>
    %151 = math.exp %150 : vector<2x32xf32>
    %cst_23 = arith.constant 1.000000e+00 : f32
    %152 = vector.broadcast %cst_23 : f32 to vector<2x32xf32>
    %153 = arith.addf %152, %151 : vector<2x32xf32>
    %154 = arith.divf %152, %153 : vector<2x32xf32>
    %155 = vector.extract_strided_slice %142 {offsets = [0, 64], sizes = [2, 32], strides = [1, 1]} : vector<2x128xf32> to vector<2x32xf32>
    %156 = math.tanh %155 : vector<2x32xf32>
    %157 = vector.extract_strided_slice %142 {offsets = [0, 96], sizes = [2, 32], strides = [1, 1]} : vector<2x128xf32> to vector<2x32xf32>
    %158 = arith.negf %157 : vector<2x32xf32>
    %159 = math.exp %158 : vector<2x32xf32>
    %cst_24 = arith.constant 1.000000e+00 : f32
    %160 = vector.broadcast %cst_24 : f32 to vector<2x32xf32>
    %161 = arith.addf %160, %159 : vector<2x32xf32>
    %162 = arith.divf %160, %161 : vector<2x32xf32>
    %163 = arith.mulf %154, %136 : vector<2x32xf32>
    %164 = arith.mulf %148, %156 : vector<2x32xf32>
    %165 = arith.addf %163, %164 : vector<2x32xf32>
    %166 = math.tanh %165 : vector<2x32xf32>
    %167 = arith.mulf %162, %166 : vector<2x32xf32>
    %168 = vector.extract_strided_slice %167 {offsets = [0, 0], sizes = [2, 16], strides = [1, 1]} : vector<2x32xf32> to vector<2x16xf32>
    %169 = vector.extract_strided_slice %167 {offsets = [0, 16], sizes = [2, 16], strides = [1, 1]} : vector<2x32xf32> to vector<2x16xf32>
    %cst_25 = arith.constant dense<0.000000e+00> : vector<2x128xf32>
    %170 = tpu.matmul %167, %51, %cst_25 {dimension_numbers = #tpu.dot_dimension_numbers<[1], [0], [0], [1], [0, 0, 1, 1], [], []>} : vector<2x32xf32>, vector<32x128xf32>, vector<2x128xf32> -> vector<2x128xf32>
    %171 = arith.addf %35, %170 : vector<2x128xf32>
    %172 = vector.extract_strided_slice %171 {offsets = [0, 0], sizes = [2, 32], strides = [1, 1]} : vector<2x128xf32> to vector<2x32xf32>
    %173 = arith.negf %172 : vector<2x32xf32>
    %174 = math.exp %173 : vector<2x32xf32>
    %cst_26 = arith.constant 1.000000e+00 : f32
    %175 = vector.broadcast %cst_26 : f32 to vector<2x32xf32>
    %176 = arith.addf %175, %174 : vector<2x32xf32>
    %177 = arith.divf %175, %176 : vector<2x32xf32>
    %178 = vector.extract_strided_slice %171 {offsets = [0, 32], sizes = [2, 32], strides = [1, 1]} : vector<2x128xf32> to vector<2x32xf32>
    %179 = arith.negf %178 : vector<2x32xf32>
    %180 = math.exp %179 : vector<2x32xf32>
    %cst_27 = arith.constant 1.000000e+00 : f32
    %181 = vector.broadcast %cst_27 : f32 to vector<2x32xf32>
    %182 = arith.addf %181, %180 : vector<2x32xf32>
    %183 = arith.divf %181, %182 : vector<2x32xf32>
    %184 = vector.extract_strided_slice %171 {offsets = [0, 64], sizes = [2, 32], strides = [1, 1]} : vector<2x128xf32> to vector<2x32xf32>
    %185 = math.tanh %184 : vector<2x32xf32>
    %186 = vector.extract_strided_slice %171 {offsets = [0, 96], sizes = [2, 32], strides = [1, 1]} : vector<2x128xf32> to vector<2x32xf32>
    %187 = arith.negf %186 : vector<2x32xf32>
    %188 = math.exp %187 : vector<2x32xf32>
    %cst_28 = arith.constant 1.000000e+00 : f32
    %189 = vector.broadcast %cst_28 : f32 to vector<2x32xf32>
    %190 = arith.addf %189, %188 : vector<2x32xf32>
    %191 = arith.divf %189, %190 : vector<2x32xf32>
    %192 = arith.mulf %183, %165 : vector<2x32xf32>
    %193 = arith.mulf %177, %185 : vector<2x32xf32>
    %194 = arith.addf %192, %193 : vector<2x32xf32>
    %195 = math.tanh %194 : vector<2x32xf32>
    %196 = arith.mulf %191, %195 : vector<2x32xf32>
    %197 = vector.extract_strided_slice %196 {offsets = [0, 0], sizes = [2, 16], strides = [1, 1]} : vector<2x32xf32> to vector<2x16xf32>
    %198 = vector.extract_strided_slice %196 {offsets = [0, 16], sizes = [2, 16], strides = [1, 1]} : vector<2x32xf32> to vector<2x16xf32>
    %cst_29 = arith.constant dense<0.000000e+00> : vector<2x128xf32>
    %199 = tpu.matmul %196, %51, %cst_29 {dimension_numbers = #tpu.dot_dimension_numbers<[1], [0], [0], [1], [0, 0, 1, 1], [], []>} : vector<2x32xf32>, vector<32x128xf32>, vector<2x128xf32> -> vector<2x128xf32>
    %200 = arith.addf %40, %199 : vector<2x128xf32>
    %201 = vector.extract_strided_slice %200 {offsets = [0, 0], sizes = [2, 32], strides = [1, 1]} : vector<2x128xf32> to vector<2x32xf32>
    %202 = arith.negf %201 : vector<2x32xf32>
    %203 = math.exp %202 : vector<2x32xf32>
    %cst_30 = arith.constant 1.000000e+00 : f32
    %204 = vector.broadcast %cst_30 : f32 to vector<2x32xf32>
    %205 = arith.addf %204, %203 : vector<2x32xf32>
    %206 = arith.divf %204, %205 : vector<2x32xf32>
    %207 = vector.extract_strided_slice %200 {offsets = [0, 32], sizes = [2, 32], strides = [1, 1]} : vector<2x128xf32> to vector<2x32xf32>
    %208 = arith.negf %207 : vector<2x32xf32>
    %209 = math.exp %208 : vector<2x32xf32>
    %cst_31 = arith.constant 1.000000e+00 : f32
    %210 = vector.broadcast %cst_31 : f32 to vector<2x32xf32>
    %211 = arith.addf %210, %209 : vector<2x32xf32>
    %212 = arith.divf %210, %211 : vector<2x32xf32>
    %213 = vector.extract_strided_slice %200 {offsets = [0, 64], sizes = [2, 32], strides = [1, 1]} : vector<2x128xf32> to vector<2x32xf32>
    %214 = math.tanh %213 : vector<2x32xf32>
    %215 = vector.extract_strided_slice %200 {offsets = [0, 96], sizes = [2, 32], strides = [1, 1]} : vector<2x128xf32> to vector<2x32xf32>
    %216 = arith.negf %215 : vector<2x32xf32>
    %217 = math.exp %216 : vector<2x32xf32>
    %cst_32 = arith.constant 1.000000e+00 : f32
    %218 = vector.broadcast %cst_32 : f32 to vector<2x32xf32>
    %219 = arith.addf %218, %217 : vector<2x32xf32>
    %220 = arith.divf %218, %219 : vector<2x32xf32>
    %221 = arith.mulf %212, %194 : vector<2x32xf32>
    %222 = arith.mulf %206, %214 : vector<2x32xf32>
    %223 = arith.addf %221, %222 : vector<2x32xf32>
    %224 = math.tanh %223 : vector<2x32xf32>
    %225 = arith.mulf %220, %224 : vector<2x32xf32>
    %226 = vector.extract_strided_slice %225 {offsets = [0, 0], sizes = [2, 16], strides = [1, 1]} : vector<2x32xf32> to vector<2x16xf32>
    %227 = vector.extract_strided_slice %225 {offsets = [0, 16], sizes = [2, 16], strides = [1, 1]} : vector<2x32xf32> to vector<2x16xf32>
    %cst_33 = arith.constant dense<0.000000e+00> : vector<2x128xf32>
    %228 = tpu.matmul %225, %51, %cst_33 {dimension_numbers = #tpu.dot_dimension_numbers<[1], [0], [0], [1], [0, 0, 1, 1], [], []>} : vector<2x32xf32>, vector<32x128xf32>, vector<2x128xf32> -> vector<2x128xf32>
    %229 = arith.addf %45, %228 : vector<2x128xf32>
    %230 = vector.extract_strided_slice %229 {offsets = [0, 0], sizes = [2, 32], strides = [1, 1]} : vector<2x128xf32> to vector<2x32xf32>
    %231 = arith.negf %230 : vector<2x32xf32>
    %232 = math.exp %231 : vector<2x32xf32>
    %cst_34 = arith.constant 1.000000e+00 : f32
    %233 = vector.broadcast %cst_34 : f32 to vector<2x32xf32>
    %234 = arith.addf %233, %232 : vector<2x32xf32>
    %235 = arith.divf %233, %234 : vector<2x32xf32>
    %236 = vector.extract_strided_slice %229 {offsets = [0, 32], sizes = [2, 32], strides = [1, 1]} : vector<2x128xf32> to vector<2x32xf32>
    %237 = arith.negf %236 : vector<2x32xf32>
    %238 = math.exp %237 : vector<2x32xf32>
    %cst_35 = arith.constant 1.000000e+00 : f32
    %239 = vector.broadcast %cst_35 : f32 to vector<2x32xf32>
    %240 = arith.addf %239, %238 : vector<2x32xf32>
    %241 = arith.divf %239, %240 : vector<2x32xf32>
    %242 = vector.extract_strided_slice %229 {offsets = [0, 64], sizes = [2, 32], strides = [1, 1]} : vector<2x128xf32> to vector<2x32xf32>
    %243 = math.tanh %242 : vector<2x32xf32>
    %244 = vector.extract_strided_slice %229 {offsets = [0, 96], sizes = [2, 32], strides = [1, 1]} : vector<2x128xf32> to vector<2x32xf32>
    %245 = arith.negf %244 : vector<2x32xf32>
    %246 = math.exp %245 : vector<2x32xf32>
    %cst_36 = arith.constant 1.000000e+00 : f32
    %247 = vector.broadcast %cst_36 : f32 to vector<2x32xf32>
    %248 = arith.addf %247, %246 : vector<2x32xf32>
    %249 = arith.divf %247, %248 : vector<2x32xf32>
    %250 = arith.mulf %241, %223 : vector<2x32xf32>
    %251 = arith.mulf %235, %243 : vector<2x32xf32>
    %252 = arith.addf %250, %251 : vector<2x32xf32>
    %253 = math.tanh %252 : vector<2x32xf32>
    %254 = arith.mulf %249, %253 : vector<2x32xf32>
    %255 = vector.extract_strided_slice %254 {offsets = [0, 0], sizes = [2, 16], strides = [1, 1]} : vector<2x32xf32> to vector<2x16xf32>
    %256 = vector.extract_strided_slice %254 {offsets = [0, 16], sizes = [2, 16], strides = [1, 1]} : vector<2x32xf32> to vector<2x16xf32>
    %cst_37 = arith.constant dense<0.000000e+00> : vector<2x128xf32>
    %257 = tpu.matmul %254, %51, %cst_37 {dimension_numbers = #tpu.dot_dimension_numbers<[1], [0], [0], [1], [0, 0, 1, 1], [], []>} : vector<2x32xf32>, vector<32x128xf32>, vector<2x128xf32> -> vector<2x128xf32>
    %258 = arith.addf %50, %257 : vector<2x128xf32>
    %259 = vector.extract_strided_slice %258 {offsets = [0, 0], sizes = [2, 32], strides = [1, 1]} : vector<2x128xf32> to vector<2x32xf32>
    %260 = arith.negf %259 : vector<2x32xf32>
    %261 = math.exp %260 : vector<2x32xf32>
    %cst_38 = arith.constant 1.000000e+00 : f32
    %262 = vector.broadcast %cst_38 : f32 to vector<2x32xf32>
    %263 = arith.addf %262, %261 : vector<2x32xf32>
    %264 = arith.divf %262, %263 : vector<2x32xf32>
    %265 = vector.extract_strided_slice %258 {offsets = [0, 32], sizes = [2, 32], strides = [1, 1]} : vector<2x128xf32> to vector<2x32xf32>
    %266 = arith.negf %265 : vector<2x32xf32>
    %267 = math.exp %266 : vector<2x32xf32>
    %cst_39 = arith.constant 1.000000e+00 : f32
    %268 = vector.broadcast %cst_39 : f32 to vector<2x32xf32>
    %269 = arith.addf %268, %267 : vector<2x32xf32>
    %270 = arith.divf %268, %269 : vector<2x32xf32>
    %271 = vector.extract_strided_slice %258 {offsets = [0, 64], sizes = [2, 32], strides = [1, 1]} : vector<2x128xf32> to vector<2x32xf32>
    %272 = math.tanh %271 : vector<2x32xf32>
    %273 = vector.extract_strided_slice %258 {offsets = [0, 96], sizes = [2, 32], strides = [1, 1]} : vector<2x128xf32> to vector<2x32xf32>
    %274 = arith.negf %273 : vector<2x32xf32>
    %275 = math.exp %274 : vector<2x32xf32>
    %cst_40 = arith.constant 1.000000e+00 : f32
    %276 = vector.broadcast %cst_40 : f32 to vector<2x32xf32>
    %277 = arith.addf %276, %275 : vector<2x32xf32>
    %278 = arith.divf %276, %277 : vector<2x32xf32>
    %279 = arith.mulf %270, %252 : vector<2x32xf32>
    %280 = arith.mulf %264, %272 : vector<2x32xf32>
    %281 = arith.addf %279, %280 : vector<2x32xf32>
    %282 = math.tanh %281 : vector<2x32xf32>
    %283 = arith.mulf %278, %282 : vector<2x32xf32>
    %284 = vector.extract_strided_slice %283 {offsets = [0, 0], sizes = [2, 16], strides = [1, 1]} : vector<2x32xf32> to vector<2x16xf32>
    %285 = vector.extract_strided_slice %283 {offsets = [0, 16], sizes = [2, 16], strides = [1, 1]} : vector<2x32xf32> to vector<2x16xf32>
    %286 = tpu.concatenate %81, %285 in 1 : vector<2x16xf32>, vector<2x16xf32> -> vector<2x32xf32>
    %287 = tpu.concatenate %110, %256 in 1 : vector<2x16xf32>, vector<2x16xf32> -> vector<2x32xf32>
    %288 = tpu.concatenate %139, %227 in 1 : vector<2x16xf32>, vector<2x16xf32> -> vector<2x32xf32>
    %289 = tpu.concatenate %168, %198 in 1 : vector<2x16xf32>, vector<2x16xf32> -> vector<2x32xf32>
    %290 = tpu.concatenate %197, %169 in 1 : vector<2x16xf32>, vector<2x16xf32> -> vector<2x32xf32>
    %291 = tpu.concatenate %226, %140 in 1 : vector<2x16xf32>, vector<2x16xf32> -> vector<2x32xf32>
    %292 = tpu.concatenate %255, %111 in 1 : vector<2x16xf32>, vector<2x16xf32> -> vector<2x32xf32>
    %293 = tpu.concatenate %284, %82 in 1 : vector<2x16xf32>, vector<2x16xf32> -> vector<2x32xf32>
    %294 = vector.shape_cast %286 : vector<2x32xf32> to vector<2x1x32xf32>
    %295 = vector.shape_cast %287 : vector<2x32xf32> to vector<2x1x32xf32>
    %296 = vector.shape_cast %288 : vector<2x32xf32> to vector<2x1x32xf32>
    %297 = vector.shape_cast %289 : vector<2x32xf32> to vector<2x1x32xf32>
    %298 = vector.shape_cast %290 : vector<2x32xf32> to vector<2x1x32xf32>
    %299 = vector.shape_cast %291 : vector<2x32xf32> to vector<2x1x32xf32>
    %300 = vector.shape_cast %292 : vector<2x32xf32> to vector<2x1x32xf32>
    %301 = vector.shape_cast %293 : vector<2x32xf32> to vector<2x1x32xf32>
    %302 = tpu.concatenate %294, %295, %296, %297, %298, %299, %300, %301 in 1 : vector<2x1x32xf32>, vector<2x1x32xf32>, vector<2x1x32xf32>, vector<2x1x32xf32>, vector<2x1x32xf32>, vector<2x1x32xf32>, vector<2x1x32xf32>, vector<2x1x32xf32> -> vector<2x8x32xf32>
    %c0_41 = arith.constant 0 : index
    %c0_42 = arith.constant 0 : index
    %303 = vector.load %arg1[%c0_41, %c0_42] : memref<640x128xf32, #tpu.memory_space<vmem>>, vector<8x32xf32>
    %304 = vector.shape_cast %303 : vector<8x32xf32> to vector<1x8x32xf32>
    %305 = vector.broadcast %304 : vector<1x8x32xf32> to vector<2x8x32xf32>
    %306 = arith.addf %302, %305 : vector<2x8x32xf32>
    %307 = vector.shape_cast %306 : vector<2x8x32xf32> to vector<16x32xf32>
    %c112 = arith.constant 112 : index
    %c0_43 = arith.constant 0 : index
    %308 = vector.load %arg1[%c112, %c0_43] : memref<640x128xf32, #tpu.memory_space<vmem>>, vector<32x96xf32>
    %cst_44 = arith.constant dense<0.000000e+00> : vector<16x96xf32>
    %309 = tpu.matmul %307, %308, %cst_44 {dimension_numbers = #tpu.dot_dimension_numbers<[1], [0], [0], [1], [0, 0, 1, 1], [], []>} : vector<16x32xf32>, vector<32x96xf32>, vector<16x96xf32> -> vector<16x96xf32>
    %c144 = arith.constant 144 : index
    %c0_45 = arith.constant 0 : index
    %310 = vector.load %arg1[%c144, %c0_45] : memref<640x128xf32, #tpu.memory_space<vmem>>, vector<1x96xf32>
    %311 = vector.broadcast %310 : vector<1x96xf32> to vector<16x96xf32>
    %312 = arith.addf %309, %311 : vector<16x96xf32>
    %313 = vector.extract_strided_slice %312 {offsets = [0, 0], sizes = [16, 32], strides = [1, 1]} : vector<16x96xf32> to vector<16x32xf32>
    %314 = vector.shape_cast %313 : vector<16x32xf32> to vector<2x8x32xf32>
    %315 = vector.extract_strided_slice %312 {offsets = [0, 32], sizes = [16, 32], strides = [1, 1]} : vector<16x96xf32> to vector<16x32xf32>
    %316 = vector.shape_cast %315 : vector<16x32xf32> to vector<2x8x32xf32>
    %317 = vector.extract_strided_slice %312 {offsets = [0, 64], sizes = [16, 32], strides = [1, 1]} : vector<16x96xf32> to vector<16x32xf32>
    %318 = vector.shape_cast %317 : vector<16x32xf32> to vector<2x8x32xf32>
    %319 = vector.extract_strided_slice %314 {offsets = [0, 0, 0], sizes = [2, 8, 8], strides = [1, 1, 1]} : vector<2x8x32xf32> to vector<2x8x8xf32>
    %320 = vector.extract_strided_slice %314 {offsets = [0, 0, 8], sizes = [2, 8, 8], strides = [1, 1, 1]} : vector<2x8x32xf32> to vector<2x8x8xf32>
    %321 = vector.extract_strided_slice %314 {offsets = [0, 0, 16], sizes = [2, 8, 8], strides = [1, 1, 1]} : vector<2x8x32xf32> to vector<2x8x8xf32>
    %322 = vector.extract_strided_slice %314 {offsets = [0, 0, 24], sizes = [2, 8, 8], strides = [1, 1, 1]} : vector<2x8x32xf32> to vector<2x8x8xf32>
    %323 = vector.shape_cast %319 : vector<2x8x8xf32> to vector<1x2x8x8xf32>
    %324 = vector.shape_cast %320 : vector<2x8x8xf32> to vector<1x2x8x8xf32>
    %325 = vector.shape_cast %321 : vector<2x8x8xf32> to vector<1x2x8x8xf32>
    %326 = vector.shape_cast %322 : vector<2x8x8xf32> to vector<1x2x8x8xf32>
    %327 = tpu.concatenate %323, %324, %325, %326 in 0 : vector<1x2x8x8xf32>, vector<1x2x8x8xf32>, vector<1x2x8x8xf32>, vector<1x2x8x8xf32> -> vector<4x2x8x8xf32>
    %328 = vector.shape_cast %327 : vector<4x2x8x8xf32> to vector<8x8x8xf32>
    %329 = vector.extract_strided_slice %316 {offsets = [0, 0, 0], sizes = [2, 8, 8], strides = [1, 1, 1]} : vector<2x8x32xf32> to vector<2x8x8xf32>
    %330 = vector.extract_strided_slice %316 {offsets = [0, 0, 8], sizes = [2, 8, 8], strides = [1, 1, 1]} : vector<2x8x32xf32> to vector<2x8x8xf32>
    %331 = vector.extract_strided_slice %316 {offsets = [0, 0, 16], sizes = [2, 8, 8], strides = [1, 1, 1]} : vector<2x8x32xf32> to vector<2x8x8xf32>
    %332 = vector.extract_strided_slice %316 {offsets = [0, 0, 24], sizes = [2, 8, 8], strides = [1, 1, 1]} : vector<2x8x32xf32> to vector<2x8x8xf32>
    %333 = vector.shape_cast %329 : vector<2x8x8xf32> to vector<1x2x8x8xf32>
    %334 = vector.shape_cast %330 : vector<2x8x8xf32> to vector<1x2x8x8xf32>
    %335 = vector.shape_cast %331 : vector<2x8x8xf32> to vector<1x2x8x8xf32>
    %336 = vector.shape_cast %332 : vector<2x8x8xf32> to vector<1x2x8x8xf32>
    %337 = tpu.concatenate %333, %334, %335, %336 in 0 : vector<1x2x8x8xf32>, vector<1x2x8x8xf32>, vector<1x2x8x8xf32>, vector<1x2x8x8xf32> -> vector<4x2x8x8xf32>
    %338 = vector.shape_cast %337 : vector<4x2x8x8xf32> to vector<8x8x8xf32>
    %339 = vector.extract_strided_slice %318 {offsets = [0, 0, 0], sizes = [2, 8, 8], strides = [1, 1, 1]} : vector<2x8x32xf32> to vector<2x8x8xf32>
    %340 = vector.extract_strided_slice %318 {offsets = [0, 0, 8], sizes = [2, 8, 8], strides = [1, 1, 1]} : vector<2x8x32xf32> to vector<2x8x8xf32>
    %341 = vector.extract_strided_slice %318 {offsets = [0, 0, 16], sizes = [2, 8, 8], strides = [1, 1, 1]} : vector<2x8x32xf32> to vector<2x8x8xf32>
    %342 = vector.extract_strided_slice %318 {offsets = [0, 0, 24], sizes = [2, 8, 8], strides = [1, 1, 1]} : vector<2x8x32xf32> to vector<2x8x8xf32>
    %343 = vector.shape_cast %339 : vector<2x8x8xf32> to vector<1x2x8x8xf32>
    %344 = vector.shape_cast %340 : vector<2x8x8xf32> to vector<1x2x8x8xf32>
    %345 = vector.shape_cast %341 : vector<2x8x8xf32> to vector<1x2x8x8xf32>
    %346 = vector.shape_cast %342 : vector<2x8x8xf32> to vector<1x2x8x8xf32>
    %347 = tpu.concatenate %343, %344, %345, %346 in 0 : vector<1x2x8x8xf32>, vector<1x2x8x8xf32>, vector<1x2x8x8xf32>, vector<1x2x8x8xf32> -> vector<4x2x8x8xf32>
    %348 = vector.shape_cast %347 : vector<4x2x8x8xf32> to vector<8x8x8xf32>
    "tpu.trace_start"() <{level = 10 : i32, message = "bqd,bkd->bqk"}> : () -> ()
    %cst_46 = arith.constant dense<0.000000e+00> : vector<8x8x8xf32>
    %349 = tpu.matmul %328, %338, %cst_46 {dimension_numbers = #tpu.dot_dimension_numbers<[2], [2], [1], [1], [0, 0, 0, 1, 1, 1], [0], [0]>} : vector<8x8x8xf32>, vector<8x8x8xf32>, vector<8x8x8xf32> -> vector<8x8x8xf32>
    "tpu.trace_stop"() : () -> ()
    %cst_47 = arith.constant dense<0xFF800000> : vector<8x8xf32>
    %350 = vector.multi_reduction <maximumf>, %349, %cst_47 [2] : vector<8x8x8xf32> to vector<8x8xf32>
    %351 = vector.shape_cast %350 : vector<8x8xf32> to vector<8x8x1xf32>
    %352 = vector.broadcast %351 : vector<8x8x1xf32> to vector<8x8x8xf32>
    %353 = arith.subf %349, %352 : vector<8x8x8xf32>
    %354 = math.exp %353 : vector<8x8x8xf32>
    %cst_48 = arith.constant dense<0.000000e+00> : vector<8x8xf32>
    %355 = vector.multi_reduction <add>, %354, %cst_48 [2] : vector<8x8x8xf32> to vector<8x8xf32>
    %356 = vector.shape_cast %355 : vector<8x8xf32> to vector<8x8x1xf32>
    %357 = tpu.reciprocal %356 {approx = true} : vector<8x8x1xf32> -> vector<8x8x1xf32>
    %358 = vector.broadcast %357 : vector<8x8x1xf32> to vector<8x8x8xf32>
    %359 = arith.mulf %354, %358 : vector<8x8x8xf32>
    "tpu.trace_start"() <{level = 10 : i32, message = "bqk,bkd->bqd"}> : () -> ()
    %cst_49 = arith.constant dense<0.000000e+00> : vector<8x8x8xf32>
    %360 = tpu.matmul %359, %348, %cst_49 {dimension_numbers = #tpu.dot_dimension_numbers<[2], [1], [1], [2], [0, 0, 0, 1, 1, 2], [0], [0]>} : vector<8x8x8xf32>, vector<8x8x8xf32>, vector<8x8x8xf32> -> vector<8x8x8xf32>
    "tpu.trace_stop"() : () -> ()
    %361 = vector.shape_cast %360 : vector<8x8x8xf32> to vector<4x2x8x8xf32>
    %362 = vector.extract_strided_slice %361 {offsets = [0, 0, 0, 0], sizes = [1, 2, 8, 8], strides = [1, 1, 1, 1]} : vector<4x2x8x8xf32> to vector<1x2x8x8xf32>
    %363 = vector.shape_cast %362 : vector<1x2x8x8xf32> to vector<2x8x8xf32>
    %364 = vector.extract_strided_slice %361 {offsets = [1, 0, 0, 0], sizes = [1, 2, 8, 8], strides = [1, 1, 1, 1]} : vector<4x2x8x8xf32> to vector<1x2x8x8xf32>
    %365 = vector.shape_cast %364 : vector<1x2x8x8xf32> to vector<2x8x8xf32>
    %366 = vector.extract_strided_slice %361 {offsets = [2, 0, 0, 0], sizes = [1, 2, 8, 8], strides = [1, 1, 1, 1]} : vector<4x2x8x8xf32> to vector<1x2x8x8xf32>
    %367 = vector.shape_cast %366 : vector<1x2x8x8xf32> to vector<2x8x8xf32>
    %368 = vector.extract_strided_slice %361 {offsets = [3, 0, 0, 0], sizes = [1, 2, 8, 8], strides = [1, 1, 1, 1]} : vector<4x2x8x8xf32> to vector<1x2x8x8xf32>
    %369 = vector.shape_cast %368 : vector<1x2x8x8xf32> to vector<2x8x8xf32>
    %370 = tpu.concatenate %363, %365, %367, %369 in 2 : vector<2x8x8xf32>, vector<2x8x8xf32>, vector<2x8x8xf32>, vector<2x8x8xf32> -> vector<2x8x32xf32>
    %371 = vector.shape_cast %370 : vector<2x8x32xf32> to vector<16x32xf32>
    %c152 = arith.constant 152 : index
    %c0_50 = arith.constant 0 : index
    %372 = vector.load %arg1[%c152, %c0_50] : memref<640x128xf32, #tpu.memory_space<vmem>>, vector<32x32xf32>
    %cst_51 = arith.constant dense<0.000000e+00> : vector<16x32xf32>
    %373 = tpu.matmul %371, %372, %cst_51 {dimension_numbers = #tpu.dot_dimension_numbers<[1], [0], [0], [1], [0, 0, 1, 1], [], []>} : vector<16x32xf32>, vector<32x32xf32>, vector<16x32xf32> -> vector<16x32xf32>
    %c184 = arith.constant 184 : index
    %c0_52 = arith.constant 0 : index
    %374 = vector.load %arg1[%c184, %c0_52] : memref<640x128xf32, #tpu.memory_space<vmem>>, vector<1x32xf32>
    %375 = vector.broadcast %374 : vector<1x32xf32> to vector<16x32xf32>
    %376 = arith.addf %373, %375 : vector<16x32xf32>
    %377 = arith.addf %307, %376 : vector<16x32xf32>
    %c192 = arith.constant 192 : index
    %c0_53 = arith.constant 0 : index
    %378 = vector.load %arg1[%c192, %c0_53] : memref<640x128xf32, #tpu.memory_space<vmem>>, vector<1x32xf32>
    %c200 = arith.constant 200 : index
    %c0_54 = arith.constant 0 : index
    %379 = vector.load %arg1[%c200, %c0_54] : memref<640x128xf32, #tpu.memory_space<vmem>>, vector<1x32xf32>
    %cst_55 = arith.constant dense<0.000000e+00> : vector<16xf32>
    %380 = vector.multi_reduction <add>, %377, %cst_55 [1] : vector<16x32xf32> to vector<16xf32>
    %381 = vector.shape_cast %380 : vector<16xf32> to vector<16x1xf32>
    %cst_56 = arith.constant 3.200000e+01 : f32
    %382 = vector.broadcast %cst_56 : f32 to vector<16x1xf32>
    %383 = arith.divf %381, %382 : vector<16x1xf32>
    %384 = vector.broadcast %383 : vector<16x1xf32> to vector<16x32xf32>
    %385 = arith.subf %377, %384 : vector<16x32xf32>
    %386 = arith.mulf %385, %385 : vector<16x32xf32>
    %cst_57 = arith.constant dense<0.000000e+00> : vector<16xf32>
    %387 = vector.multi_reduction <add>, %386, %cst_57 [1] : vector<16x32xf32> to vector<16xf32>
    %388 = vector.shape_cast %387 : vector<16xf32> to vector<16x1xf32>
    %cst_58 = arith.constant 3.200000e+01 : f32
    %389 = vector.broadcast %cst_58 : f32 to vector<16x1xf32>
    %390 = arith.divf %388, %389 : vector<16x1xf32>
    %391 = vector.broadcast %383 : vector<16x1xf32> to vector<16x32xf32>
    %392 = arith.subf %377, %391 : vector<16x32xf32>
    %cst_59 = arith.constant 9.99999974E-6 : f32
    %393 = vector.broadcast %cst_59 : f32 to vector<16x1xf32>
    %394 = arith.addf %390, %393 : vector<16x1xf32>
    %395 = math.rsqrt %394 : vector<16x1xf32>
    %396 = vector.broadcast %395 : vector<16x1xf32> to vector<16x32xf32>
    %397 = arith.mulf %392, %396 : vector<16x32xf32>
    %398 = vector.broadcast %378 : vector<1x32xf32> to vector<16x32xf32>
    %399 = arith.mulf %397, %398 : vector<16x32xf32>
    %400 = vector.broadcast %379 : vector<1x32xf32> to vector<16x32xf32>
    %401 = arith.addf %399, %400 : vector<16x32xf32>
    %c208 = arith.constant 208 : index
    %c0_60 = arith.constant 0 : index
    %402 = vector.load %arg1[%c208, %c0_60] : memref<640x128xf32, #tpu.memory_space<vmem>>, vector<32x64xf32>
    %cst_61 = arith.constant dense<0.000000e+00> : vector<16x64xf32>
    %403 = tpu.matmul %401, %402, %cst_61 {dimension_numbers = #tpu.dot_dimension_numbers<[1], [0], [0], [1], [0, 0, 1, 1], [], []>} : vector<16x32xf32>, vector<32x64xf32>, vector<16x64xf32> -> vector<16x64xf32>
    %c240 = arith.constant 240 : index
    %c0_62 = arith.constant 0 : index
    %404 = vector.load %arg1[%c240, %c0_62] : memref<640x128xf32, #tpu.memory_space<vmem>>, vector<1x64xf32>
    %405 = vector.broadcast %404 : vector<1x64xf32> to vector<16x64xf32>
    %406 = arith.addf %403, %405 : vector<16x64xf32>
    %cst_63 = arith.constant 0.000000e+00 : f32
    %407 = vector.broadcast %cst_63 : f32 to vector<16x64xf32>
    %408 = arith.maximumf %406, %407 : vector<16x64xf32>
    %c248 = arith.constant 248 : index
    %c0_64 = arith.constant 0 : index
    %409 = vector.load %arg1[%c248, %c0_64] : memref<640x128xf32, #tpu.memory_space<vmem>>, vector<64x32xf32>
    %cst_65 = arith.constant dense<0.000000e+00> : vector<16x32xf32>
    %410 = tpu.matmul %408, %409, %cst_65 {dimension_numbers = #tpu.dot_dimension_numbers<[1], [0], [0], [1], [0, 0, 1, 1], [], []>} : vector<16x64xf32>, vector<64x32xf32>, vector<16x32xf32> -> vector<16x32xf32>
    %c312 = arith.constant 312 : index
    %c0_66 = arith.constant 0 : index
    %411 = vector.load %arg1[%c312, %c0_66] : memref<640x128xf32, #tpu.memory_space<vmem>>, vector<1x32xf32>
    %412 = vector.broadcast %411 : vector<1x32xf32> to vector<16x32xf32>
    %413 = arith.addf %410, %412 : vector<16x32xf32>
    %414 = arith.addf %401, %413 : vector<16x32xf32>
    %c320 = arith.constant 320 : index
    %c0_67 = arith.constant 0 : index
    %415 = vector.load %arg1[%c320, %c0_67] : memref<640x128xf32, #tpu.memory_space<vmem>>, vector<1x32xf32>
    %c328 = arith.constant 328 : index
    %c0_68 = arith.constant 0 : index
    %416 = vector.load %arg1[%c328, %c0_68] : memref<640x128xf32, #tpu.memory_space<vmem>>, vector<1x32xf32>
    %cst_69 = arith.constant dense<0.000000e+00> : vector<16xf32>
    %417 = vector.multi_reduction <add>, %414, %cst_69 [1] : vector<16x32xf32> to vector<16xf32>
    %418 = vector.shape_cast %417 : vector<16xf32> to vector<16x1xf32>
    %cst_70 = arith.constant 3.200000e+01 : f32
    %419 = vector.broadcast %cst_70 : f32 to vector<16x1xf32>
    %420 = arith.divf %418, %419 : vector<16x1xf32>
    %421 = vector.broadcast %420 : vector<16x1xf32> to vector<16x32xf32>
    %422 = arith.subf %414, %421 : vector<16x32xf32>
    %423 = arith.mulf %422, %422 : vector<16x32xf32>
    %cst_71 = arith.constant dense<0.000000e+00> : vector<16xf32>
    %424 = vector.multi_reduction <add>, %423, %cst_71 [1] : vector<16x32xf32> to vector<16xf32>
    %425 = vector.shape_cast %424 : vector<16xf32> to vector<16x1xf32>
    %cst_72 = arith.constant 3.200000e+01 : f32
    %426 = vector.broadcast %cst_72 : f32 to vector<16x1xf32>
    %427 = arith.divf %425, %426 : vector<16x1xf32>
    %428 = vector.broadcast %420 : vector<16x1xf32> to vector<16x32xf32>
    %429 = arith.subf %414, %428 : vector<16x32xf32>
    %cst_73 = arith.constant 9.99999974E-6 : f32
    %430 = vector.broadcast %cst_73 : f32 to vector<16x1xf32>
    %431 = arith.addf %427, %430 : vector<16x1xf32>
    %432 = math.rsqrt %431 : vector<16x1xf32>
    %433 = vector.broadcast %432 : vector<16x1xf32> to vector<16x32xf32>
    %434 = arith.mulf %429, %433 : vector<16x32xf32>
    %435 = vector.broadcast %415 : vector<1x32xf32> to vector<16x32xf32>
    %436 = arith.mulf %434, %435 : vector<16x32xf32>
    %437 = vector.broadcast %416 : vector<1x32xf32> to vector<16x32xf32>
    %438 = arith.addf %436, %437 : vector<16x32xf32>
    %c336 = arith.constant 336 : index
    %c0_74 = arith.constant 0 : index
    %439 = vector.load %arg1[%c336, %c0_74] : memref<640x128xf32, #tpu.memory_space<vmem>>, vector<32x96xf32>
    %cst_75 = arith.constant dense<0.000000e+00> : vector<16x96xf32>
    %440 = tpu.matmul %438, %439, %cst_75 {dimension_numbers = #tpu.dot_dimension_numbers<[1], [0], [0], [1], [0, 0, 1, 1], [], []>} : vector<16x32xf32>, vector<32x96xf32>, vector<16x96xf32> -> vector<16x96xf32>
    %c368 = arith.constant 368 : index
    %c0_76 = arith.constant 0 : index
    %441 = vector.load %arg1[%c368, %c0_76] : memref<640x128xf32, #tpu.memory_space<vmem>>, vector<1x96xf32>
    %442 = vector.broadcast %441 : vector<1x96xf32> to vector<16x96xf32>
    %443 = arith.addf %440, %442 : vector<16x96xf32>
    %444 = vector.extract_strided_slice %443 {offsets = [0, 0], sizes = [16, 32], strides = [1, 1]} : vector<16x96xf32> to vector<16x32xf32>
    %445 = vector.shape_cast %444 : vector<16x32xf32> to vector<2x8x32xf32>
    %446 = vector.extract_strided_slice %443 {offsets = [0, 32], sizes = [16, 32], strides = [1, 1]} : vector<16x96xf32> to vector<16x32xf32>
    %447 = vector.shape_cast %446 : vector<16x32xf32> to vector<2x8x32xf32>
    %448 = vector.extract_strided_slice %443 {offsets = [0, 64], sizes = [16, 32], strides = [1, 1]} : vector<16x96xf32> to vector<16x32xf32>
    %449 = vector.shape_cast %448 : vector<16x32xf32> to vector<2x8x32xf32>
    %450 = vector.extract_strided_slice %445 {offsets = [0, 0, 0], sizes = [2, 8, 8], strides = [1, 1, 1]} : vector<2x8x32xf32> to vector<2x8x8xf32>
    %451 = vector.extract_strided_slice %445 {offsets = [0, 0, 8], sizes = [2, 8, 8], strides = [1, 1, 1]} : vector<2x8x32xf32> to vector<2x8x8xf32>
    %452 = vector.extract_strided_slice %445 {offsets = [0, 0, 16], sizes = [2, 8, 8], strides = [1, 1, 1]} : vector<2x8x32xf32> to vector<2x8x8xf32>
    %453 = vector.extract_strided_slice %445 {offsets = [0, 0, 24], sizes = [2, 8, 8], strides = [1, 1, 1]} : vector<2x8x32xf32> to vector<2x8x8xf32>
    %454 = vector.shape_cast %450 : vector<2x8x8xf32> to vector<1x2x8x8xf32>
    %455 = vector.shape_cast %451 : vector<2x8x8xf32> to vector<1x2x8x8xf32>
    %456 = vector.shape_cast %452 : vector<2x8x8xf32> to vector<1x2x8x8xf32>
    %457 = vector.shape_cast %453 : vector<2x8x8xf32> to vector<1x2x8x8xf32>
    %458 = tpu.concatenate %454, %455, %456, %457 in 0 : vector<1x2x8x8xf32>, vector<1x2x8x8xf32>, vector<1x2x8x8xf32>, vector<1x2x8x8xf32> -> vector<4x2x8x8xf32>
    %459 = vector.shape_cast %458 : vector<4x2x8x8xf32> to vector<8x8x8xf32>
    %460 = vector.extract_strided_slice %447 {offsets = [0, 0, 0], sizes = [2, 8, 8], strides = [1, 1, 1]} : vector<2x8x32xf32> to vector<2x8x8xf32>
    %461 = vector.extract_strided_slice %447 {offsets = [0, 0, 8], sizes = [2, 8, 8], strides = [1, 1, 1]} : vector<2x8x32xf32> to vector<2x8x8xf32>
    %462 = vector.extract_strided_slice %447 {offsets = [0, 0, 16], sizes = [2, 8, 8], strides = [1, 1, 1]} : vector<2x8x32xf32> to vector<2x8x8xf32>
    %463 = vector.extract_strided_slice %447 {offsets = [0, 0, 24], sizes = [2, 8, 8], strides = [1, 1, 1]} : vector<2x8x32xf32> to vector<2x8x8xf32>
    %464 = vector.shape_cast %460 : vector<2x8x8xf32> to vector<1x2x8x8xf32>
    %465 = vector.shape_cast %461 : vector<2x8x8xf32> to vector<1x2x8x8xf32>
    %466 = vector.shape_cast %462 : vector<2x8x8xf32> to vector<1x2x8x8xf32>
    %467 = vector.shape_cast %463 : vector<2x8x8xf32> to vector<1x2x8x8xf32>
    %468 = tpu.concatenate %464, %465, %466, %467 in 0 : vector<1x2x8x8xf32>, vector<1x2x8x8xf32>, vector<1x2x8x8xf32>, vector<1x2x8x8xf32> -> vector<4x2x8x8xf32>
    %469 = vector.shape_cast %468 : vector<4x2x8x8xf32> to vector<8x8x8xf32>
    %470 = vector.extract_strided_slice %449 {offsets = [0, 0, 0], sizes = [2, 8, 8], strides = [1, 1, 1]} : vector<2x8x32xf32> to vector<2x8x8xf32>
    %471 = vector.extract_strided_slice %449 {offsets = [0, 0, 8], sizes = [2, 8, 8], strides = [1, 1, 1]} : vector<2x8x32xf32> to vector<2x8x8xf32>
    %472 = vector.extract_strided_slice %449 {offsets = [0, 0, 16], sizes = [2, 8, 8], strides = [1, 1, 1]} : vector<2x8x32xf32> to vector<2x8x8xf32>
    %473 = vector.extract_strided_slice %449 {offsets = [0, 0, 24], sizes = [2, 8, 8], strides = [1, 1, 1]} : vector<2x8x32xf32> to vector<2x8x8xf32>
    %474 = vector.shape_cast %470 : vector<2x8x8xf32> to vector<1x2x8x8xf32>
    %475 = vector.shape_cast %471 : vector<2x8x8xf32> to vector<1x2x8x8xf32>
    %476 = vector.shape_cast %472 : vector<2x8x8xf32> to vector<1x2x8x8xf32>
    %477 = vector.shape_cast %473 : vector<2x8x8xf32> to vector<1x2x8x8xf32>
    %478 = tpu.concatenate %474, %475, %476, %477 in 0 : vector<1x2x8x8xf32>, vector<1x2x8x8xf32>, vector<1x2x8x8xf32>, vector<1x2x8x8xf32> -> vector<4x2x8x8xf32>
    %479 = vector.shape_cast %478 : vector<4x2x8x8xf32> to vector<8x8x8xf32>
    "tpu.trace_start"() <{level = 10 : i32, message = "bqd,bkd->bqk"}> : () -> ()
    %cst_77 = arith.constant dense<0.000000e+00> : vector<8x8x8xf32>
    %480 = tpu.matmul %459, %469, %cst_77 {dimension_numbers = #tpu.dot_dimension_numbers<[2], [2], [1], [1], [0, 0, 0, 1, 1, 1], [0], [0]>} : vector<8x8x8xf32>, vector<8x8x8xf32>, vector<8x8x8xf32> -> vector<8x8x8xf32>
    "tpu.trace_stop"() : () -> ()
    %cst_78 = arith.constant dense<0xFF800000> : vector<8x8xf32>
    %481 = vector.multi_reduction <maximumf>, %480, %cst_78 [2] : vector<8x8x8xf32> to vector<8x8xf32>
    %482 = vector.shape_cast %481 : vector<8x8xf32> to vector<8x8x1xf32>
    %483 = vector.broadcast %482 : vector<8x8x1xf32> to vector<8x8x8xf32>
    %484 = arith.subf %480, %483 : vector<8x8x8xf32>
    %485 = math.exp %484 : vector<8x8x8xf32>
    %cst_79 = arith.constant dense<0.000000e+00> : vector<8x8xf32>
    %486 = vector.multi_reduction <add>, %485, %cst_79 [2] : vector<8x8x8xf32> to vector<8x8xf32>
    %487 = vector.shape_cast %486 : vector<8x8xf32> to vector<8x8x1xf32>
    %488 = tpu.reciprocal %487 {approx = true} : vector<8x8x1xf32> -> vector<8x8x1xf32>
    %489 = vector.broadcast %488 : vector<8x8x1xf32> to vector<8x8x8xf32>
    %490 = arith.mulf %485, %489 : vector<8x8x8xf32>
    "tpu.trace_start"() <{level = 10 : i32, message = "bqk,bkd->bqd"}> : () -> ()
    %cst_80 = arith.constant dense<0.000000e+00> : vector<8x8x8xf32>
    %491 = tpu.matmul %490, %479, %cst_80 {dimension_numbers = #tpu.dot_dimension_numbers<[2], [1], [1], [2], [0, 0, 0, 1, 1, 2], [0], [0]>} : vector<8x8x8xf32>, vector<8x8x8xf32>, vector<8x8x8xf32> -> vector<8x8x8xf32>
    "tpu.trace_stop"() : () -> ()
    %492 = vector.shape_cast %491 : vector<8x8x8xf32> to vector<4x2x8x8xf32>
    %493 = vector.extract_strided_slice %492 {offsets = [0, 0, 0, 0], sizes = [1, 2, 8, 8], strides = [1, 1, 1, 1]} : vector<4x2x8x8xf32> to vector<1x2x8x8xf32>
    %494 = vector.shape_cast %493 : vector<1x2x8x8xf32> to vector<2x8x8xf32>
    %495 = vector.extract_strided_slice %492 {offsets = [1, 0, 0, 0], sizes = [1, 2, 8, 8], strides = [1, 1, 1, 1]} : vector<4x2x8x8xf32> to vector<1x2x8x8xf32>
    %496 = vector.shape_cast %495 : vector<1x2x8x8xf32> to vector<2x8x8xf32>
    %497 = vector.extract_strided_slice %492 {offsets = [2, 0, 0, 0], sizes = [1, 2, 8, 8], strides = [1, 1, 1, 1]} : vector<4x2x8x8xf32> to vector<1x2x8x8xf32>
    %498 = vector.shape_cast %497 : vector<1x2x8x8xf32> to vector<2x8x8xf32>
    %499 = vector.extract_strided_slice %492 {offsets = [3, 0, 0, 0], sizes = [1, 2, 8, 8], strides = [1, 1, 1, 1]} : vector<4x2x8x8xf32> to vector<1x2x8x8xf32>
    %500 = vector.shape_cast %499 : vector<1x2x8x8xf32> to vector<2x8x8xf32>
    %501 = tpu.concatenate %494, %496, %498, %500 in 2 : vector<2x8x8xf32>, vector<2x8x8xf32>, vector<2x8x8xf32>, vector<2x8x8xf32> -> vector<2x8x32xf32>
    %502 = vector.shape_cast %501 : vector<2x8x32xf32> to vector<16x32xf32>
    %c376 = arith.constant 376 : index
    %c0_81 = arith.constant 0 : index
    %503 = vector.load %arg1[%c376, %c0_81] : memref<640x128xf32, #tpu.memory_space<vmem>>, vector<32x32xf32>
    %cst_82 = arith.constant dense<0.000000e+00> : vector<16x32xf32>
    %504 = tpu.matmul %502, %503, %cst_82 {dimension_numbers = #tpu.dot_dimension_numbers<[1], [0], [0], [1], [0, 0, 1, 1], [], []>} : vector<16x32xf32>, vector<32x32xf32>, vector<16x32xf32> -> vector<16x32xf32>
    %c408 = arith.constant 408 : index
    %c0_83 = arith.constant 0 : index
    %505 = vector.load %arg1[%c408, %c0_83] : memref<640x128xf32, #tpu.memory_space<vmem>>, vector<1x32xf32>
    %506 = vector.broadcast %505 : vector<1x32xf32> to vector<16x32xf32>
    %507 = arith.addf %504, %506 : vector<16x32xf32>
    %508 = arith.addf %438, %507 : vector<16x32xf32>
    %c416 = arith.constant 416 : index
    %c0_84 = arith.constant 0 : index
    %509 = vector.load %arg1[%c416, %c0_84] : memref<640x128xf32, #tpu.memory_space<vmem>>, vector<1x32xf32>
    %c424 = arith.constant 424 : index
    %c0_85 = arith.constant 0 : index
    %510 = vector.load %arg1[%c424, %c0_85] : memref<640x128xf32, #tpu.memory_space<vmem>>, vector<1x32xf32>
    %cst_86 = arith.constant dense<0.000000e+00> : vector<16xf32>
    %511 = vector.multi_reduction <add>, %508, %cst_86 [1] : vector<16x32xf32> to vector<16xf32>
    %512 = vector.shape_cast %511 : vector<16xf32> to vector<16x1xf32>
    %cst_87 = arith.constant 3.200000e+01 : f32
    %513 = vector.broadcast %cst_87 : f32 to vector<16x1xf32>
    %514 = arith.divf %512, %513 : vector<16x1xf32>
    %515 = vector.broadcast %514 : vector<16x1xf32> to vector<16x32xf32>
    %516 = arith.subf %508, %515 : vector<16x32xf32>
    %517 = arith.mulf %516, %516 : vector<16x32xf32>
    %cst_88 = arith.constant dense<0.000000e+00> : vector<16xf32>
    %518 = vector.multi_reduction <add>, %517, %cst_88 [1] : vector<16x32xf32> to vector<16xf32>
    %519 = vector.shape_cast %518 : vector<16xf32> to vector<16x1xf32>
    %cst_89 = arith.constant 3.200000e+01 : f32
    %520 = vector.broadcast %cst_89 : f32 to vector<16x1xf32>
    %521 = arith.divf %519, %520 : vector<16x1xf32>
    %522 = vector.broadcast %514 : vector<16x1xf32> to vector<16x32xf32>
    %523 = arith.subf %508, %522 : vector<16x32xf32>
    %cst_90 = arith.constant 9.99999974E-6 : f32
    %524 = vector.broadcast %cst_90 : f32 to vector<16x1xf32>
    %525 = arith.addf %521, %524 : vector<16x1xf32>
    %526 = math.rsqrt %525 : vector<16x1xf32>
    %527 = vector.broadcast %526 : vector<16x1xf32> to vector<16x32xf32>
    %528 = arith.mulf %523, %527 : vector<16x32xf32>
    %529 = vector.broadcast %509 : vector<1x32xf32> to vector<16x32xf32>
    %530 = arith.mulf %528, %529 : vector<16x32xf32>
    %531 = vector.broadcast %510 : vector<1x32xf32> to vector<16x32xf32>
    %532 = arith.addf %530, %531 : vector<16x32xf32>
    %c432 = arith.constant 432 : index
    %c0_91 = arith.constant 0 : index
    %533 = vector.load %arg1[%c432, %c0_91] : memref<640x128xf32, #tpu.memory_space<vmem>>, vector<32x64xf32>
    %cst_92 = arith.constant dense<0.000000e+00> : vector<16x64xf32>
    %534 = tpu.matmul %532, %533, %cst_92 {dimension_numbers = #tpu.dot_dimension_numbers<[1], [0], [0], [1], [0, 0, 1, 1], [], []>} : vector<16x32xf32>, vector<32x64xf32>, vector<16x64xf32> -> vector<16x64xf32>
    %c464 = arith.constant 464 : index
    %c0_93 = arith.constant 0 : index
    %535 = vector.load %arg1[%c464, %c0_93] : memref<640x128xf32, #tpu.memory_space<vmem>>, vector<1x64xf32>
    %536 = vector.broadcast %535 : vector<1x64xf32> to vector<16x64xf32>
    %537 = arith.addf %534, %536 : vector<16x64xf32>
    %cst_94 = arith.constant 0.000000e+00 : f32
    %538 = vector.broadcast %cst_94 : f32 to vector<16x64xf32>
    %539 = arith.maximumf %537, %538 : vector<16x64xf32>
    %c472 = arith.constant 472 : index
    %c0_95 = arith.constant 0 : index
    %540 = vector.load %arg1[%c472, %c0_95] : memref<640x128xf32, #tpu.memory_space<vmem>>, vector<64x32xf32>
    %cst_96 = arith.constant dense<0.000000e+00> : vector<16x32xf32>
    %541 = tpu.matmul %539, %540, %cst_96 {dimension_numbers = #tpu.dot_dimension_numbers<[1], [0], [0], [1], [0, 0, 1, 1], [], []>} : vector<16x64xf32>, vector<64x32xf32>, vector<16x32xf32> -> vector<16x32xf32>
    %c536 = arith.constant 536 : index
    %c0_97 = arith.constant 0 : index
    %542 = vector.load %arg1[%c536, %c0_97] : memref<640x128xf32, #tpu.memory_space<vmem>>, vector<1x32xf32>
    %543 = vector.broadcast %542 : vector<1x32xf32> to vector<16x32xf32>
    %544 = arith.addf %541, %543 : vector<16x32xf32>
    %545 = arith.addf %532, %544 : vector<16x32xf32>
    %c544 = arith.constant 544 : index
    %c0_98 = arith.constant 0 : index
    %546 = vector.load %arg1[%c544, %c0_98] : memref<640x128xf32, #tpu.memory_space<vmem>>, vector<1x32xf32>
    %c552 = arith.constant 552 : index
    %c0_99 = arith.constant 0 : index
    %547 = vector.load %arg1[%c552, %c0_99] : memref<640x128xf32, #tpu.memory_space<vmem>>, vector<1x32xf32>
    %cst_100 = arith.constant dense<0.000000e+00> : vector<16xf32>
    %548 = vector.multi_reduction <add>, %545, %cst_100 [1] : vector<16x32xf32> to vector<16xf32>
    %549 = vector.shape_cast %548 : vector<16xf32> to vector<16x1xf32>
    %cst_101 = arith.constant 3.200000e+01 : f32
    %550 = vector.broadcast %cst_101 : f32 to vector<16x1xf32>
    %551 = arith.divf %549, %550 : vector<16x1xf32>
    %552 = vector.broadcast %551 : vector<16x1xf32> to vector<16x32xf32>
    %553 = arith.subf %545, %552 : vector<16x32xf32>
    %554 = arith.mulf %553, %553 : vector<16x32xf32>
    %cst_102 = arith.constant dense<0.000000e+00> : vector<16xf32>
    %555 = vector.multi_reduction <add>, %554, %cst_102 [1] : vector<16x32xf32> to vector<16xf32>
    %556 = vector.shape_cast %555 : vector<16xf32> to vector<16x1xf32>
    %cst_103 = arith.constant 3.200000e+01 : f32
    %557 = vector.broadcast %cst_103 : f32 to vector<16x1xf32>
    %558 = arith.divf %556, %557 : vector<16x1xf32>
    %559 = vector.broadcast %551 : vector<16x1xf32> to vector<16x32xf32>
    %560 = arith.subf %545, %559 : vector<16x32xf32>
    %cst_104 = arith.constant 9.99999974E-6 : f32
    %561 = vector.broadcast %cst_104 : f32 to vector<16x1xf32>
    %562 = arith.addf %558, %561 : vector<16x1xf32>
    %563 = math.rsqrt %562 : vector<16x1xf32>
    %564 = vector.broadcast %563 : vector<16x1xf32> to vector<16x32xf32>
    %565 = arith.mulf %560, %564 : vector<16x32xf32>
    %566 = vector.broadcast %546 : vector<1x32xf32> to vector<16x32xf32>
    %567 = arith.mulf %565, %566 : vector<16x32xf32>
    %568 = vector.broadcast %547 : vector<1x32xf32> to vector<16x32xf32>
    %569 = arith.addf %567, %568 : vector<16x32xf32>
    %570 = vector.shape_cast %569 : vector<16x32xf32> to vector<2x8x32xf32>
    %571 = vector.extract_strided_slice %570 {offsets = [0, 7, 0], sizes = [2, 1, 32], strides = [1, 1, 1]} : vector<2x8x32xf32> to vector<2x1x32xf32>
    %572 = vector.broadcast %571 : vector<2x1x32xf32> to vector<2x8x32xf32>
    %573 = arith.mulf %572, %570 : vector<2x8x32xf32>
    %cst_105 = arith.constant dense<0.000000e+00> : vector<2x8xf32>
    %574 = vector.multi_reduction <add>, %573, %cst_105 [2] : vector<2x8x32xf32> to vector<2x8xf32>
    %cst_106 = arith.constant dense<0xFF800000> : vector<2xf32>
    %575 = vector.multi_reduction <maximumf>, %574, %cst_106 [1] : vector<2x8xf32> to vector<2xf32>
    %576 = vector.shape_cast %575 : vector<2xf32> to vector<2x1xf32>
    %577 = vector.broadcast %576 : vector<2x1xf32> to vector<2x8xf32>
    %578 = arith.subf %574, %577 : vector<2x8xf32>
    %579 = math.exp %578 : vector<2x8xf32>
    %cst_107 = arith.constant dense<0.000000e+00> : vector<2xf32>
    %580 = vector.multi_reduction <add>, %579, %cst_107 [1] : vector<2x8xf32> to vector<2xf32>
    %581 = vector.shape_cast %580 : vector<2xf32> to vector<2x1xf32>
    %582 = tpu.reciprocal %581 {approx = true} : vector<2x1xf32> -> vector<2x1xf32>
    %583 = vector.broadcast %582 : vector<2x1xf32> to vector<2x8xf32>
    %584 = arith.mulf %579, %583 : vector<2x8xf32>
    %585 = vector.shape_cast %584 : vector<2x8xf32> to vector<2x8x1xf32>
    %586 = vector.broadcast %585 : vector<2x8x1xf32> to vector<2x8x32xf32>
    %587 = arith.mulf %586, %570 : vector<2x8x32xf32>
    %cst_108 = arith.constant dense<0.000000e+00> : vector<2x32xf32>
    %588 = vector.multi_reduction <add>, %587, %cst_108 [1] : vector<2x8x32xf32> to vector<2x32xf32>
    %c560 = arith.constant 560 : index
    %c0_109 = arith.constant 0 : index
    %589 = vector.load %arg1[%c560, %c0_109] : memref<640x128xf32, #tpu.memory_space<vmem>>, vector<32x16xf32>
    %cst_110 = arith.constant dense<0.000000e+00> : vector<2x16xf32>
    %590 = tpu.matmul %588, %589, %cst_110 {dimension_numbers = #tpu.dot_dimension_numbers<[1], [0], [0], [1], [0, 0, 1, 1], [], []>} : vector<2x32xf32>, vector<32x16xf32>, vector<2x16xf32> -> vector<2x16xf32>
    %c592 = arith.constant 592 : index
    %c0_111 = arith.constant 0 : index
    %591 = vector.load %arg1[%c592, %c0_111] : memref<640x128xf32, #tpu.memory_space<vmem>>, vector<1x16xf32>
    %592 = vector.broadcast %591 : vector<1x16xf32> to vector<2x16xf32>
    %593 = arith.addf %590, %592 : vector<2x16xf32>
    %c600 = arith.constant 600 : index
    %c0_112 = arith.constant 0 : index
    %594 = vector.load %arg1[%c600, %c0_112] : memref<640x128xf32, #tpu.memory_space<vmem>>, vector<1x16xf32>
    %c608 = arith.constant 608 : index
    %c0_113 = arith.constant 0 : index
    %595 = vector.load %arg1[%c608, %c0_113] : memref<640x128xf32, #tpu.memory_space<vmem>>, vector<1x16xf32>
    %cst_114 = arith.constant dense<0.000000e+00> : vector<2xf32>
    %596 = vector.multi_reduction <add>, %593, %cst_114 [1] : vector<2x16xf32> to vector<2xf32>
    %597 = vector.shape_cast %596 : vector<2xf32> to vector<2x1xf32>
    %cst_115 = arith.constant 1.600000e+01 : f32
    %598 = vector.broadcast %cst_115 : f32 to vector<2x1xf32>
    %599 = arith.divf %597, %598 : vector<2x1xf32>
    %600 = vector.broadcast %599 : vector<2x1xf32> to vector<2x16xf32>
    %601 = arith.subf %593, %600 : vector<2x16xf32>
    %602 = arith.mulf %601, %601 : vector<2x16xf32>
    %cst_116 = arith.constant dense<0.000000e+00> : vector<2xf32>
    %603 = vector.multi_reduction <add>, %602, %cst_116 [1] : vector<2x16xf32> to vector<2xf32>
    %604 = vector.shape_cast %603 : vector<2xf32> to vector<2x1xf32>
    %cst_117 = arith.constant 1.600000e+01 : f32
    %605 = vector.broadcast %cst_117 : f32 to vector<2x1xf32>
    %606 = arith.divf %604, %605 : vector<2x1xf32>
    %607 = vector.broadcast %599 : vector<2x1xf32> to vector<2x16xf32>
    %608 = arith.subf %593, %607 : vector<2x16xf32>
    %cst_118 = arith.constant 9.99999974E-6 : f32
    %609 = vector.broadcast %cst_118 : f32 to vector<2x1xf32>
    %610 = arith.addf %606, %609 : vector<2x1xf32>
    %611 = math.rsqrt %610 : vector<2x1xf32>
    %612 = vector.broadcast %611 : vector<2x1xf32> to vector<2x16xf32>
    %613 = arith.mulf %608, %612 : vector<2x16xf32>
    %614 = vector.broadcast %594 : vector<1x16xf32> to vector<2x16xf32>
    %615 = arith.mulf %613, %614 : vector<2x16xf32>
    %616 = vector.broadcast %595 : vector<1x16xf32> to vector<2x16xf32>
    %617 = arith.addf %615, %616 : vector<2x16xf32>
    %cst_119 = arith.constant 0.000000e+00 : f32
    %618 = vector.broadcast %cst_119 : f32 to vector<2x16xf32>
    %619 = arith.maximumf %617, %618 : vector<2x16xf32>
    %c616 = arith.constant 616 : index
    %c0_120 = arith.constant 0 : index
    %620 = vector.load %arg1[%c616, %c0_120] : memref<640x128xf32, #tpu.memory_space<vmem>>, vector<16x1xf32>
    %cst_121 = arith.constant dense<0.000000e+00> : vector<2x1xf32>
    %621 = tpu.matmul %619, %620, %cst_121 {dimension_numbers = #tpu.dot_dimension_numbers<[1], [0], [0], [1], [0, 0, 1, 1], [], []>} : vector<2x16xf32>, vector<16x1xf32>, vector<2x1xf32> -> vector<2x1xf32>
    %c632 = arith.constant 632 : index
    %c0_122 = arith.constant 0 : index
    %622 = vector.load %arg1[%c632, %c0_122] : memref<640x128xf32, #tpu.memory_space<vmem>>, vector<1x1xf32>
    %623 = vector.broadcast %622 : vector<1x1xf32> to vector<2x1xf32>
    %624 = arith.addf %621, %623 : vector<2x1xf32>
    %625 = arith.negf %624 : vector<2x1xf32>
    %626 = math.exp %625 : vector<2x1xf32>
    %cst_123 = arith.constant 1.000000e+00 : f32
    %627 = vector.broadcast %cst_123 : f32 to vector<2x1xf32>
    %628 = arith.addf %627, %626 : vector<2x1xf32>
    %629 = arith.divf %627, %628 : vector<2x1xf32>
    %c0_124 = arith.constant 0 : index
    %c0_125 = arith.constant 0 : index
    %630 = vector.load %arg2[%c0_124, %c0_125] : memref<2x1xf32, #tpu.memory_space<vmem>>, vector<2x1xf32>
    tpu.vector_store %arg2[%c0_124, %c0_125], %629 {strides = array<i32>} : memref<2x1xf32, #tpu.memory_space<vmem>>, vector<2x1xf32>,
    return
  }
}

</mosaic_0001>

<llo_original>
// kernel: tpu_custom_call.1
$region0: #{tpu_custom_call.1}
  #allocation0 [shape = 'u32[]', space=smem, size = 0x4, offset = 0x4, fixed_abs, tag = 'smem constant byte address 0x4 - core index']
  #allocation1 [shape = 'u32[144,128]{1,0:T(1,128)}', space=vmem, size = 0x12000, scoped, tag = 'internal scratch']
  %s0 = inlined_call_operand.hbm [shape: f32[2,8,32], index: 0, kind: input, shape index: {}]
  %s1 = inlined_call_operand.hbm [shape: f32[640,128], index: 1, kind: input, shape index: {}]
  %s2 = inlined_call_operand.vmem [shape: f32[2,1], index: 2, kind: output, shape index: {}]
  %s3 = sld [smem:[#allocation0]]
  $region26: #{tpu_custom_call.1} parent=0
    _
  %s5 = ssub.s32 1, %s3
  %s6 = scalar_select 0, %s5, %s3
  $region1: #{tpu_custom_call.1} parent=0
    #allocation2 [shape = 'u8[8192]{0}', space=vmem, size = 0x2000, scoped, tag = 'input window, operand 0, single buffered']
    #allocation3 [shape = 's32[1]{0}', space=sflag, size = 0x4, scoped, tag = 'scoped memory for tpu_custom_call.1']
    #allocation4 [shape = 'u8[327680]{0}', space=vmem, size = 0x50000, scoped, tag = 'input window, operand 1, single buffered']
    #allocation5 [shape = 's32[1]{0}', space=sflag, size = 0x4, scoped, tag = 'scoped memory for tpu_custom_call.1']
    %7 = vsyncpa [#allocation3], 0
    %8 = vsyncpa [#allocation5], 0
    // Predicated region
    $region2: #{tpu_custom_call.1} parent=1 // pred_check
      _
    $region3: #{tpu_custom_call.1} parent=1 // pred_check_branch
      %10 = sbr.rel (0) target = $region5
    $region4: #{tpu_custom_call.1} parent=1 // pred_region
      %s12 = ssub.s32 256, 256
      %13 = vsyncadd [#allocation3], %s12
      %s14 = sshll.u32 [#allocation2], 4
      %s15 = int_to_ptr.vmem [resolvable:$true] %s14
      %20 = dma.hbm_to_vmem [thread:$0]  %s0, 256, %s15, [#allocation3], 128, 128, 8
    $region5: #{tpu_custom_call.1} parent=1 // pred_fallthru
      _
    // Predicated region
    $region6: #{tpu_custom_call.1} parent=1 // pred_check
      _
    $region7: #{tpu_custom_call.1} parent=1 // pred_check_branch
      %22 = sbr.rel (0) target = $region9
    $region8: #{tpu_custom_call.1} parent=1 // pred_region
      %s24 = ssub.s32 10240, 10240
      %25 = vsyncadd [#allocation5], %s24
      %s26 = sshll.u32 [#allocation4], 4
      %s27 = int_to_ptr.vmem [resolvable:$true] %s26
      %32 = dma.hbm_to_vmem [thread:$0]  %s1, 10240, %s27, [#allocation5], 128, 128, 8
    $region9: #{tpu_custom_call.1} parent=1 // pred_fallthru
      _
    // Predicated region
    $region10: #{tpu_custom_call.1} parent=1 // pred_check
      _
    $region11: #{tpu_custom_call.1} parent=1 // pred_check_branch
      %34 = sbr.rel (0) target = $region13
    $region12: #{tpu_custom_call.1} parent=1 // pred_region
      %35 = dma.done [#allocation3], 256
    $region13: #{tpu_custom_call.1} parent=1 // pred_fallthru
      _
    // Predicated region
    $region14: #{tpu_custom_call.1} parent=1 // pred_check
      _
    $region15: #{tpu_custom_call.1} parent=1 // pred_check_branch
      %37 = sbr.rel (0) target = $region17
    $region16: #{tpu_custom_call.1} parent=1 // pred_region
      %38 = dma.done [#allocation5], 10240
    $region17: #{tpu_custom_call.1} parent=1 // pred_fallthru
      _
    %v39 = vld [vmem:[#allocation2] sm:$0xff]
    %v40 = vld [vmem:[#allocation2 + $0x8] sm:$0xff]
    %v41 = vld [vmem:[#allocation4 + $0x8] sm:$0xff]
    %v42 = vld [vmem:[#allocation4 + $0x10] sm:$0xff]
    %v43 = vld [vmem:[#allocation4 + $0x18] sm:$0xff]
    %v44 = vld [vmem:[#allocation4 + $0x20] sm:$0xff]
    %v45 = vld [vmem:[#allocation4 + $0x68] sm:$0x1]
    %v46 = vlaneseq
    %v47 = vshrl.u32 %v46, 7
    %v48 = vsub.s32 0, %v47
    %v49 = vrot.slane %v45, %v48
    %vm50 = vcmask 261120
    %v52 = vsel %vm50, %v39, 0
    %v55 = vsel %vm50, %v40, 0
    %57 = vmatprep.subr.mxu0 0.0
    %58 = vmatpush1.msra.mxu0 0.0
    %59 = vmatprep.subr.mxu0 0.0
    %60 = vmatpush1.msra.mxu0 0.0
    %61 = vmatprep.subr.mxu0 0.0
    %62 = vmatpush1.msra.mxu0 0.0
    %63 = vmatprep.subr.mxu0 0.0
    %64 = vmatpush1.msra.mxu0 0.0
    %65 = vmatprep.subr.mxu0 0.0
    %66 = vmatpush1.msra.mxu0 0.0
    %67 = vmatprep.subr.mxu0 0.0
    %68 = vmatpush1.msra.mxu0 0.0
    %69 = vmatprep.subr.mxu0 0.0
    %70 = vmatpush1.msra.mxu0 0.0
    %71 = vmatprep.subr.mxu0 0.0
    %72 = vmatpush1.msra.mxu0 0.0
    %73 = vmatprep.subr.mxu0 0.0
    %74 = vmatpush1.msra.mxu0 0.0
    %75 = vmatprep.subr.mxu0 0.0
    %76 = vmatpush1.msra.mxu0 0.0
    %77 = vmatprep.subr.mxu0 0.0
    %78 = vmatpush1.msra.mxu0 0.0
    %79 = vmatprep.subr.mxu0 0.0
    %80 = vmatpush1.msra.mxu0 0.0
    %81 = vmatprep.subr.mxu0 0.0
    %82 = vmatpush1.msra.mxu0 %v44
    %83 = vmatprep.subr.mxu0 0.0
    %84 = vmatpush1.msra.mxu0 %v43
    %85 = vmatprep.subr.mxu0 0.0
    %86 = vmatpush1.msra.mxu0 %v42
    %87 = vmatprep.subr.mxu0 0.0
    %88 = vmatpush1.msra.mxu0 %v41
    %89 = vmatprep.subr.mxu0 0.0
    %90 = vmatpush2.msra.mxu0 0.0
    %91 = vmatprep.subr.mxu0 0.0
    %92 = vmatpush2.msra.mxu0 0.0
    %93 = vmatprep.subr.mxu0 0.0
    %94 = vmatpush2.msra.mxu0 0.0
    %95 = vmatprep.subr.mxu0 0.0
    %96 = vmatpush2.msra.mxu0 0.0
    %97 = vmatprep.subr.mxu0 0.0
    %98 = vmatpush2.msra.mxu0 0.0
    %99 = vmatprep.subr.mxu0 0.0
    %100 = vmatpush2.msra.mxu0 0.0
    %101 = vmatprep.subr.mxu0 0.0
    %102 = vmatpush2.msra.mxu0 0.0
    %103 = vmatprep.subr.mxu0 0.0
    %104 = vmatpush2.msra.mxu0 0.0
    %105 = vmatprep.subr.mxu0 0.0
    %106 = vmatpush2.msra.mxu0 0.0
    %107 = vmatprep.subr.mxu0 0.0
    %108 = vmatpush2.msra.mxu0 0.0
    %109 = vmatprep.subr.mxu0 0.0
    %110 = vmatpush2.msra.mxu0 0.0
    %111 = vmatprep.subr.mxu0 0.0
    %112 = vmatpush2.msra.mxu0 0.0
    %113 = vmatprep.subr.mxu0 0.0
    %114 = vmatpush2.msra.mxu0 0.0
    %115 = vmatprep.subr.mxu0 0.0
    %116 = vmatpush2.msra.mxu0 0.0
    %117 = vmatprep.subr.mxu0 0.0
    %118 = vmatpush2.msra.mxu0 0.0
    %119 = vmatprep.subr.mxu0 0.0
    %120 = vmatpush2.msra.mxu0 0.0
    %121 = vmatprep.mubr.f32.mxu0 0.0
    %122 = vmatmul.mubr.f32.gmra.mxu0 %v52
    %v123 = vpop.f32.mrf.mxu0
    %v124 = vadd.f32 %v49, %v123
    %v125 = vpop.f32.mrf.mxu0
    %126 = vmatprep.mubr.f32.mxu0 0.0
    %127 = vmatmul.mubr.f32.gmra.mxu0 %v55
    %v128 = vpop.f32.mrf.mxu0
    %v129 = vadd.f32 %v49, %v128
    %v130 = vpop.f32.mrf.mxu0
    %131 = vdwg.mxu0
    %v132 = vld [vmem:[#allocation4 + $0x28] sm:$0xff]
    %v133 = vld [vmem:[#allocation4 + $0x30] sm:$0xff]
    %v134 = vld [vmem:[#allocation4 + $0x38] sm:$0xff]
    %v135 = vld [vmem:[#allocation4 + $0x40] sm:$0xff]
    %136 = vmatprep.subr.mxu0 0.0
    %137 = vmatpush1.msra.mxu0 0.0
    %138 = vmatprep.subr.mxu0 0.0
    %139 = vmatpush1.msra.mxu0 0.0
    %140 = vmatprep.subr.mxu0 0.0
    %141 = vmatpush1.msra.mxu0 0.0
    %142 = vmatprep.subr.mxu0 0.0
    %143 = vmatpush1.msra.mxu0 0.0
    %144 = vmatprep.subr.mxu0 0.0
    %145 = vmatpush1.msra.mxu0 0.0
    %146 = vmatprep.subr.mxu0 0.0
    %147 = vmatpush1.msra.mxu0 0.0
    %148 = vmatprep.subr.mxu0 0.0
    %149 = vmatpush1.msra.mxu0 0.0
    %150 = vmatprep.subr.mxu0 0.0
    %151 = vmatpush1.msra.mxu0 0.0
    %152 = vmatprep.subr.mxu0 0.0
    %153 = vmatpush1.msra.mxu0 0.0
    %154 = vmatprep.subr.mxu0 0.0
    %155 = vmatpush1.msra.mxu0 0.0
    %156 = vmatprep.subr.mxu0 0.0
    %157 = vmatpush1.msra.mxu0 0.0
    %158 = vmatprep.subr.mxu0 0.0
    %159 = vmatpush1.msra.mxu0 0.0
    %160 = vmatprep.subr.mxu0 0.0
    %161 = vmatpush1.msra.mxu0 %v135
    %162 = vmatprep.subr.mxu0 0.0
    %163 = vmatpush1.msra.mxu0 %v134
    %164 = vmatprep.subr.mxu0 0.0
    %165 = vmatpush1.msra.mxu0 %v133
    %166 = vmatprep.subr.mxu0 0.0
    %167 = vmatpush1.msra.mxu0 %v132
    %168 = vmatprep.subr.mxu0 0.0
    %169 = vmatpush2.msra.mxu0 0.0
    %170 = vmatprep.subr.mxu0 0.0
    %171 = vmatpush2.msra.mxu0 0.0
    %172 = vmatprep.subr.mxu0 0.0
    %173 = vmatpush2.msra.mxu0 0.0
    %174 = vmatprep.subr.mxu0 0.0
    %175 = vmatpush2.msra.mxu0 0.0
    %176 = vmatprep.subr.mxu0 0.0
    %177 = vmatpush2.msra.mxu0 0.0
    %178 = vmatprep.subr.mxu0 0.0
    %179 = vmatpush2.msra.mxu0 0.0
    %180 = vmatprep.subr.mxu0 0.0
    %181 = vmatpush2.msra.mxu0 0.0
    %182 = vmatprep.subr.mxu0 0.0
    %183 = vmatpush2.msra.mxu0 0.0
    %184 = vmatprep.subr.mxu0 0.0
    %185 = vmatpush2.msra.mxu0 0.0
    %186 = vmatprep.subr.mxu0 0.0
    %187 = vmatpush2.msra.mxu0 0.0
    %188 = vmatprep.subr.mxu0 0.0
    %189 = vmatpush2.msra.mxu0 0.0
    %190 = vmatprep.subr.mxu0 0.0
    %191 = vmatpush2.msra.mxu0 0.0
    %192 = vmatprep.subr.mxu0 0.0
    %193 = vmatpush2.msra.mxu0 0.0
    %194 = vmatprep.subr.mxu0 0.0
    %195 = vmatpush2.msra.mxu0 0.0
    %196 = vmatprep.subr.mxu0 0.0
    %197 = vmatpush2.msra.mxu0 0.0
    %198 = vmatprep.subr.mxu0 0.0
    %199 = vmatpush2.msra.mxu0 0.0
    %200 = vmatprep.mubr.f32.mxu0 0.0
    %201 = vmatmul.mubr.f32.gmra.mxu0 %v52
    %v202 = vpop.f32.mrf.mxu0
    %v203 = vadd.f32 0.0, %v202
    %v204 = vpop.f32.mrf.mxu0
    %205 = vmatprep.mubr.f32.mxu0 0.0
    %206 = vmatmul.mubr.f32.gmra.mxu0 %v55
    %v207 = vpop.f32.mrf.mxu0
    %v208 = vadd.f32 0.0, %v207
    %v209 = vpop.f32.mrf.mxu0
    %210 = vdwg.mxu0
    %v213 = vrot.slane %v203, 7
    %v214 = vrot.slane %v208, 7
    %v217 = vadd.f32 %v124, %v213
    %v218 = vadd.f32 %v129, %v214
    %v219 = vrot.slane %v203, 5
    %v220 = vrot.slane %v208, 5
    %v223 = vadd.f32 %v124, %v219
    %v224 = vadd.f32 %v129, %v220
    %v225 = vrot.slane %v203, 3
    %v226 = vrot.slane %v208, 3
    %v229 = vadd.f32 %v124, %v225
    %v230 = vadd.f32 %v129, %v226
    %v231 = vrot.slane %v203, 1
    %v232 = vrot.slane %v208, 1
    %v235 = vadd.f32 %v124, %v231
    %v236 = vadd.f32 %v129, %v232
    %v237 = vld [vmem:[#allocation4 + $0x48] sm:$0xff]
    %v238 = vld [vmem:[#allocation4 + $0x50] sm:$0xff]
    %v239 = vld [vmem:[#allocation4 + $0x58] sm:$0xff]
    %v240 = vld [vmem:[#allocation4 + $0x60] sm:$0xff]
    %v242 = vsel %vm50, 0.0, 0
    %244 = vmatprep.subr.mxu0 0.0
    %245 = vmatpush1.msra.mxu0 0.0
    %246 = vmatprep.subr.mxu0 0.0
    %247 = vmatpush1.msra.mxu0 0.0
    %248 = vmatprep.subr.mxu0 0.0
    %249 = vmatpush1.msra.mxu0 0.0
    %250 = vmatprep.subr.mxu0 0.0
    %251 = vmatpush1.msra.mxu0 0.0
    %252 = vmatprep.subr.mxu0 0.0
    %253 = vmatpush1.msra.mxu0 0.0
    %254 = vmatprep.subr.mxu0 0.0
    %255 = vmatpush1.msra.mxu0 0.0
    %256 = vmatprep.subr.mxu0 0.0
    %257 = vmatpush1.msra.mxu0 0.0
    %258 = vmatprep.subr.mxu0 0.0
    %259 = vmatpush1.msra.mxu0 0.0
    %260 = vmatprep.subr.mxu0 0.0
    %261 = vmatpush1.msra.mxu0 0.0
    %262 = vmatprep.subr.mxu0 0.0
    %263 = vmatpush1.msra.mxu0 0.0
    %264 = vmatprep.subr.mxu0 0.0
    %265 = vmatpush1.msra.mxu0 0.0
    %266 = vmatprep.subr.mxu0 0.0
    %267 = vmatpush1.msra.mxu0 0.0
    %268 = vmatprep.subr.mxu0 0.0
    %269 = vmatpush1.msra.mxu0 %v240
    %270 = vmatprep.subr.mxu0 0.0
    %271 = vmatpush1.msra.mxu0 %v239
    %272 = vmatprep.subr.mxu0 0.0
    %273 = vmatpush1.msra.mxu0 %v238
    %274 = vmatprep.subr.mxu0 0.0
    %275 = vmatpush1.msra.mxu0 %v237
    %276 = vmatprep.subr.mxu0 0.0
    %277 = vmatpush2.msra.mxu0 0.0
    %278 = vmatprep.subr.mxu0 0.0
    %279 = vmatpush2.msra.mxu0 0.0
    %280 = vmatprep.subr.mxu0 0.0
    %281 = vmatpush2.msra.mxu0 0.0
    %282 = vmatprep.subr.mxu0 0.0
    %283 = vmatpush2.msra.mxu0 0.0
    %284 = vmatprep.subr.mxu0 0.0
    %285 = vmatpush2.msra.mxu0 0.0
    %286 = vmatprep.subr.mxu0 0.0
    %287 = vmatpush2.msra.mxu0 0.0
    %288 = vmatprep.subr.mxu0 0.0
    %289 = vmatpush2.msra.mxu0 0.0
    %290 = vmatprep.subr.mxu0 0.0
    %291 = vmatpush2.msra.mxu0 0.0
    %292 = vmatprep.subr.mxu0 0.0
    %293 = vmatpush2.msra.mxu0 0.0
    %294 = vmatprep.subr.mxu0 0.0
    %295 = vmatpush2.msra.mxu0 0.0
    %296 = vmatprep.subr.mxu0 0.0
    %297 = vmatpush2.msra.mxu0 0.0
    %298 = vmatprep.subr.mxu0 0.0
    %299 = vmatpush2.msra.mxu0 0.0
    %300 = vmatprep.subr.mxu0 0.0
    %301 = vmatpush2.msra.mxu0 0.0
    %302 = vmatprep.subr.mxu0 0.0
    %303 = vmatpush2.msra.mxu0 0.0
    %304 = vmatprep.subr.mxu0 0.0
    %305 = vmatpush2.msra.mxu0 0.0
    %306 = vmatprep.subr.mxu0 0.0
    %307 = vmatpush2.msra.mxu0 0.0
    %308 = vmatprep.mubr.f32.mxu0 0.0
    %309 = vmatmul.mubr.f32.gmra.mxu0 %v242
    %v310 = vpop.f32.mrf.mxu0
    %v311 = vadd.f32 0.0, %v310
    %v312 = vpop.f32.mrf.mxu0
    %313 = vdwg.mxu0
    %v315 = vrot.slane %v311, 1
    %v318 = vadd.f32 %v217, %v311
    %v319 = vadd.f32 %v218, %v315
    %v320 = vxor.u32 %v318, 2147483648
    %v321 = vxor.u32 %v319, 2147483648
    %v322 = vmul.f32 %v320, 1.442695
    %v323 = vpow.pop %v322
    %v324 = vmul.f32 %v321, 1.442695
    %v325 = vpow.pop %v324
    %v326 = vadd.f32 %v323, 1.0
    %v327 = vadd.f32 %v325, 1.0
    %v328 = vrcp.pop %v326
    %v329 = vmul.f32 1.0, %v328
    %v330 = vrcp.pop %v327
    %v331 = vmul.f32 1.0, %v330
    %v332 = vtanh.pop %v318
    %v333 = vtanh.pop %v319
    %v334 = vmul.f32 %v329, 0.0
    %v335 = vmul.f32 %v331, 0.0
    %338 = vrot.lane.b32.xlu0 %v332, 64
    %v339 = vpop.permute.xlu0 %338
    %340 = vrot.lane.b32.xlu0 %v333, 64
    %v341 = vpop.permute.xlu0 %340
    %v344 = vmul.f32 %v329, %v339
    %v345 = vmul.f32 %v331, %v341
    %348 = vrot.lane.b32.xlu0 %v344, 32
    %v349 = vpop.permute.xlu0 %348
    %350 = vrot.lane.b32.xlu0 %v345, 32
    %v351 = vpop.permute.xlu0 %350
    %v354 = vadd.f32 %v334, %v349
    %v355 = vadd.f32 %v335, %v351
    %v356 = vtanh.pop %v354
    %v357 = vtanh.pop %v355
    %360 = vrot.lane.b32.xlu0 %v356, 64
    %v361 = vpop.permute.xlu0 %360
    %362 = vrot.lane.b32.xlu0 %v357, 64
    %v363 = vpop.permute.xlu0 %362
    %v366 = vmul.f32 %v329, %v361
    %v367 = vmul.f32 %v331, %v363
    %v370 = vrot.slane %v367, 7
    %vm371 = vcmask 1041409
    %v372 = vsel %vm371, %v370, %v366
    %373 = vrot.lane.b32.xlu0 %v372, 32
    %v374 = vpop.permute.xlu0 %373
    %v375 = vsel %vm50, %v374, 0
    %377 = vmatprep.subr.mxu0 0.0
    %378 = vmatpush1.msra.mxu0 0.0
    %379 = vmatprep.subr.mxu0 0.0
    %380 = vmatpush1.msra.mxu0 0.0
    %381 = vmatprep.subr.mxu0 0.0
    %382 = vmatpush1.msra.mxu0 0.0
    %383 = vmatprep.subr.mxu0 0.0
    %384 = vmatpush1.msra.mxu0 0.0
    %385 = vmatprep.subr.mxu0 0.0
    %386 = vmatpush1.msra.mxu0 0.0
    %387 = vmatprep.subr.mxu0 0.0
    %388 = vmatpush1.msra.mxu0 0.0
    %389 = vmatprep.subr.mxu0 0.0
    %390 = vmatpush1.msra.mxu0 0.0
    %391 = vmatprep.subr.mxu0 0.0
    %392 = vmatpush1.msra.mxu0 0.0
    %393 = vmatprep.subr.mxu0 0.0
    %394 = vmatpush1.msra.mxu0 0.0
    %395 = vmatprep.subr.mxu0 0.0
    %396 = vmatpush1.msra.mxu0 0.0
    %397 = vmatprep.subr.mxu0 0.0
    %398 = vmatpush1.msra.mxu0 0.0
    %399 = vmatprep.subr.mxu0 0.0
    %400 = vmatpush1.msra.mxu0 0.0
    %401 = vmatprep.subr.mxu0 0.0
    %402 = vmatpush1.msra.mxu0 %v240
    %403 = vmatprep.subr.mxu0 0.0
    %404 = vmatpush1.msra.mxu0 %v239
    %405 = vmatprep.subr.mxu0 0.0
    %406 = vmatpush1.msra.mxu0 %v238
    %407 = vmatprep.subr.mxu0 0.0
    %408 = vmatpush1.msra.mxu0 %v237
    %409 = vmatprep.subr.mxu0 0.0
    %410 = vmatpush2.msra.mxu0 0.0
    %411 = vmatprep.subr.mxu0 0.0
    %412 = vmatpush2.msra.mxu0 0.0
    %413 = vmatprep.subr.mxu0 0.0
    %414 = vmatpush2.msra.mxu0 0.0
    %415 = vmatprep.subr.mxu0 0.0
    %416 = vmatpush2.msra.mxu0 0.0
    %417 = vmatprep.subr.mxu0 0.0
    %418 = vmatpush2.msra.mxu0 0.0
    %419 = vmatprep.subr.mxu0 0.0
    %420 = vmatpush2.msra.mxu0 0.0
    %421 = vmatprep.subr.mxu0 0.0
    %422 = vmatpush2.msra.mxu0 0.0
    %423 = vmatprep.subr.mxu0 0.0
    %424 = vmatpush2.msra.mxu0 0.0
    %425 = vmatprep.subr.mxu0 0.0
    %426 = vmatpush2.msra.mxu0 0.0
    %427 = vmatprep.subr.mxu0 0.0
    %428 = vmatpush2.msra.mxu0 0.0
    %429 = vmatprep.subr.mxu0 0.0
    %430 = vmatpush2.msra.mxu0 0.0
    %431 = vmatprep.subr.mxu0 0.0
    %432 = vmatpush2.msra.mxu0 0.0
    %433 = vmatprep.subr.mxu0 0.0
    %434 = vmatpush2.msra.mxu0 0.0
    %435 = vmatprep.subr.mxu0 0.0
    %436 = vmatpush2.msra.mxu0 0.0
    %437 = vmatprep.subr.mxu0 0.0
    %438 = vmatpush2.msra.mxu0 0.0
    %439 = vmatprep.subr.mxu0 0.0
    %440 = vmatpush2.msra.mxu0 0.0
    %441 = vmatprep.mubr.f32.mxu0 0.0
    %442 = vmatmul.mubr.f32.gmra.mxu0 %v375
    %v443 = vpop.f32.mrf.mxu0
    %v444 = vadd.f32 0.0, %v443
    %v445 = vpop.f32.mrf.mxu0
    %446 = vdwg.mxu0
    %v448 = vrot.slane %v444, 7
    %v451 = vadd.f32 %v223, %v448
    %v452 = vadd.f32 %v224, %v444
    %v453 = vxor.u32 %v451, 2147483648
    %v454 = vxor.u32 %v452, 2147483648
    %v455 = vmul.f32 %v453, 1.442695
    %v456 = vpow.pop %v455
    %v457 = vmul.f32 %v454, 1.442695
    %v458 = vpow.pop %v457
    %v459 = vadd.f32 %v456, 1.0
    %v460 = vadd.f32 %v458, 1.0
    %v461 = vrcp.pop %v459
    %v462 = vmul.f32 1.0, %v461
    %v463 = vrcp.pop %v460
    %v464 = vmul.f32 1.0, %v463
    %v465 = vtanh.pop %v451
    %v466 = vtanh.pop %v452
    %v469 = vrot.slane %v354, 7
    %v470 = vrot.slane %v355, 7
    %v473 = vmul.f32 %v462, %v469
    %v474 = vmul.f32 %v464, %v470
    %477 = vrot.lane.b32.xlu0 %v465, 64
    %v478 = vpop.permute.xlu0 %477
    %479 = vrot.lane.b32.xlu0 %v466, 64
    %v480 = vpop.permute.xlu0 %479
    %v483 = vmul.f32 %v462, %v478
    %v484 = vmul.f32 %v464, %v480
    %487 = vrot.lane.b32.xlu0 %v483, 32
    %v488 = vpop.permute.xlu0 %487
    %489 = vrot.lane.b32.xlu0 %v484, 32
    %v490 = vpop.permute.xlu0 %489
    %v493 = vadd.f32 %v473, %v488
    %v494 = vadd.f32 %v474, %v490
    %v495 = vtanh.pop %v493
    %v496 = vtanh.pop %v494
    %499 = vrot.lane.b32.xlu0 %v495, 64
    %v500 = vpop.permute.xlu0 %499
    %501 = vrot.lane.b32.xlu0 %v496, 64
    %v502 = vpop.permute.xlu0 %501
    %v505 = vmul.f32 %v462, %v500
    %v506 = vmul.f32 %v464, %v502
    %v509 = vrot.slane %v505, 1
    %v510 = vsel %vm371, %v506, %v509
    %511 = vrot.lane.b32.xlu0 %v510, 32
    %v512 = vpop.permute.xlu0 %511
    %v513 = vsel %vm50, %v512, 0
    %515 = vmatprep.subr.mxu0 0.0
    %516 = vmatpush1.msra.mxu0 0.0
    %517 = vmatprep.subr.mxu0 0.0
    %518 = vmatpush1.msra.mxu0 0.0
    %519 = vmatprep.subr.mxu0 0.0
    %520 = vmatpush1.msra.mxu0 0.0
    %521 = vmatprep.subr.mxu0 0.0
    %522 = vmatpush1.msra.mxu0 0.0
    %523 = vmatprep.subr.mxu0 0.0
    %524 = vmatpush1.msra.mxu0 0.0
    %525 = vmatprep.subr.mxu0 0.0
    %526 = vmatpush1.msra.mxu0 0.0
    %527 = vmatprep.subr.mxu0 0.0
    %528 = vmatpush1.msra.mxu0 0.0
    %529 = vmatprep.subr.mxu0 0.0
    %530 = vmatpush1.msra.mxu0 0.0
    %531 = vmatprep.subr.mxu0 0.0
    %532 = vmatpush1.msra.mxu0 0.0
    %533 = vmatprep.subr.mxu0 0.0
    %534 = vmatpush1.msra.mxu0 0.0
    %535 = vmatprep.subr.mxu0 0.0
    %536 = vmatpush1.msra.mxu0 0.0
    %537 = vmatprep.subr.mxu0 0.0
    %538 = vmatpush1.msra.mxu0 0.0
    %539 = vmatprep.subr.mxu0 0.0
    %540 = vmatpush1.msra.mxu0 %v240
    %541 = vmatprep.subr.mxu0 0.0
    %542 = vmatpush1.msra.mxu0 %v239
    %543 = vmatprep.subr.mxu0 0.0
    %544 = vmatpush1.msra.mxu0 %v238
    %545 = vmatprep.subr.mxu0 0.0
    %546 = vmatpush1.msra.mxu0 %v237
    %547 = vmatprep.subr.mxu0 0.0
    %548 = vmatpush2.msra.mxu0 0.0
    %549 = vmatprep.subr.mxu0 0.0
    %550 = vmatpush2.msra.mxu0 0.0
    %551 = vmatprep.subr.mxu0 0.0
    %552 = vmatpush2.msra.mxu0 0.0
    %553 = vmatprep.subr.mxu0 0.0
    %554 = vmatpush2.msra.mxu0 0.0
    %555 = vmatprep.subr.mxu0 0.0
    %556 = vmatpush2.msra.mxu0 0.0
    %557 = vmatprep.subr.mxu0 0.0
    %558 = vmatpush2.msra.mxu0 0.0
    %559 = vmatprep.subr.mxu0 0.0
    %560 = vmatpush2.msra.mxu0 0.0
    %561 = vmatprep.subr.mxu0 0.0
    %562 = vmatpush2.msra.mxu0 0.0
    %563 = vmatprep.subr.mxu0 0.0
    %564 = vmatpush2.msra.mxu0 0.0
    %565 = vmatprep.subr.mxu0 0.0
    %566 = vmatpush2.msra.mxu0 0.0
    %567 = vmatprep.subr.mxu0 0.0
    %568 = vmatpush2.msra.mxu0 0.0
    %569 = vmatprep.subr.mxu0 0.0
    %570 = vmatpush2.msra.mxu0 0.0
    %571 = vmatprep.subr.mxu0 0.0
    %572 = vmatpush2.msra.mxu0 0.0
    %573 = vmatprep.subr.mxu0 0.0
    %574 = vmatpush2.msra.mxu0 0.0
    %575 = vmatprep.subr.mxu0 0.0
    %576 = vmatpush2.msra.mxu0 0.0
    %577 = vmatprep.subr.mxu0 0.0
    %578 = vmatpush2.msra.mxu0 0.0
    %579 = vmatprep.mubr.f32.mxu0 0.0
    %580 = vmatmul.mubr.f32.gmra.mxu0 %v513
    %v581 = vpop.f32.mrf.mxu0
    %v582 = vadd.f32 0.0, %v581
    %v583 = vpop.f32.mrf.mxu0
    %584 = vdwg.mxu0
    %v586 = vrot.slane %v582, 6
    %v587 = vrot.slane %v582, 7
    %v590 = vadd.f32 %v229, %v586
    %v591 = vadd.f32 %v230, %v587
    %v592 = vxor.u32 %v590, 2147483648
    %v593 = vxor.u32 %v591, 2147483648
    %v594 = vmul.f32 %v592, 1.442695
    %v595 = vpow.pop %v594
    %v596 = vmul.f32 %v593, 1.442695
    %v597 = vpow.pop %v596
    %v598 = vadd.f32 %v595, 1.0
    %v599 = vadd.f32 %v597, 1.0
    %v600 = vrcp.pop %v598
    %v601 = vmul.f32 1.0, %v600
    %v602 = vrcp.pop %v599
    %v603 = vmul.f32 1.0, %v602
    %v604 = vtanh.pop %v590
    %v605 = vtanh.pop %v591
    %v608 = vrot.slane %v493, 7
    %v609 = vrot.slane %v494, 7
    %v612 = vmul.f32 %v601, %v608
    %v613 = vmul.f32 %v603, %v609
    %616 = vrot.lane.b32.xlu0 %v604, 64
    %v617 = vpop.permute.xlu0 %616
    %618 = vrot.lane.b32.xlu0 %v605, 64
    %v619 = vpop.permute.xlu0 %618
    %v622 = vmul.f32 %v601, %v617
    %v623 = vmul.f32 %v603, %v619
    %626 = vrot.lane.b32.xlu0 %v622, 32
    %v627 = vpop.permute.xlu0 %626
    %628 = vrot.lane.b32.xlu0 %v623, 32
    %v629 = vpop.permute.xlu0 %628
    %v632 = vadd.f32 %v612, %v627
    %v633 = vadd.f32 %v613, %v629
    %v634 = vtanh.pop %v632
    %v635 = vtanh.pop %v633
    %638 = vrot.lane.b32.xlu0 %v634, 64
    %v639 = vpop.permute.xlu0 %638
    %640 = vrot.lane.b32.xlu0 %v635, 64
    %v641 = vpop.permute.xlu0 %640
    %v644 = vmul.f32 %v601, %v639
    %v645 = vmul.f32 %v603, %v641
    %v648 = vrot.slane %v644, 2
    %v649 = vrot.slane %v645, 1
    %v650 = vsel %vm371, %v649, %v648
    %651 = vrot.lane.b32.xlu0 %v650, 32
    %v652 = vpop.permute.xlu0 %651
    %v653 = vsel %vm50, %v652, 0
    %655 = vmatprep.subr.mxu0 0.0
    %656 = vmatpush1.msra.mxu0 0.0
    %657 = vmatprep.subr.mxu0 0.0
    %658 = vmatpush1.msra.mxu0 0.0
    %659 = vmatprep.subr.mxu0 0.0
    %660 = vmatpush1.msra.mxu0 0.0
    %661 = vmatprep.subr.mxu0 0.0
    %662 = vmatpush1.msra.mxu0 0.0
    %663 = vmatprep.subr.mxu0 0.0
    %664 = vmatpush1.msra.mxu0 0.0
    %665 = vmatprep.subr.mxu0 0.0
    %666 = vmatpush1.msra.mxu0 0.0
    %667 = vmatprep.subr.mxu0 0.0
    %668 = vmatpush1.msra.mxu0 0.0
    %669 = vmatprep.subr.mxu0 0.0
    %670 = vmatpush1.msra.mxu0 0.0
    %671 = vmatprep.subr.mxu0 0.0
    %672 = vmatpush1.msra.mxu0 0.0
    %673 = vmatprep.subr.mxu0 0.0
    %674 = vmatpush1.msra.mxu0 0.0
    %675 = vmatprep.subr.mxu0 0.0
    %676 = vmatpush1.msra.mxu0 0.0
    %677 = vmatprep.subr.mxu0 0.0
    %678 = vmatpush1.msra.mxu0 0.0
    %679 = vmatprep.subr.mxu0 0.0
    %680 = vmatpush1.msra.mxu0 %v240
    %681 = vmatprep.subr.mxu0 0.0
    %682 = vmatpush1.msra.mxu0 %v239
    %683 = vmatprep.subr.mxu0 0.0
    %684 = vmatpush1.msra.mxu0 %v238
    %685 = vmatprep.subr.mxu0 0.0
    %686 = vmatpush1.msra.mxu0 %v237
    %687 = vmatprep.subr.mxu0 0.0
    %688 = vmatpush2.msra.mxu0 0.0
    %689 = vmatprep.subr.mxu0 0.0
    %690 = vmatpush2.msra.mxu0 0.0
    %691 = vmatprep.subr.mxu0 0.0
    %692 = vmatpush2.msra.mxu0 0.0
    %693 = vmatprep.subr.mxu0 0.0
    %694 = vmatpush2.msra.mxu0 0.0
    %695 = vmatprep.subr.mxu0 0.0
    %696 = vmatpush2.msra.mxu0 0.0
    %697 = vmatprep.subr.mxu0 0.0
    %698 = vmatpush2.msra.mxu0 0.0
    %699 = vmatprep.subr.mxu0 0.0
    %700 = vmatpush2.msra.mxu0 0.0
    %701 = vmatprep.subr.mxu0 0.0
    %702 = vmatpush2.msra.mxu0 0.0
    %703 = vmatprep.subr.mxu0 0.0
    %704 = vmatpush2.msra.mxu0 0.0
    %705 = vmatprep.subr.mxu0 0.0
    %706 = vmatpush2.msra.mxu0 0.0
    %707 = vmatprep.subr.mxu0 0.0
    %708 = vmatpush2.msra.mxu0 0.0
    %709 = vmatprep.subr.mxu0 0.0
    %710 = vmatpush2.msra.mxu0 0.0
    %711 = vmatprep.subr.mxu0 0.0
    %712 = vmatpush2.msra.mxu0 0.0
    %713 = vmatprep.subr.mxu0 0.0
    %714 = vmatpush2.msra.mxu0 0.0
    %715 = vmatprep.subr.mxu0 0.0
    %716 = vmatpush2.msra.mxu0 0.0
    %717 = vmatprep.subr.mxu0 0.0
    %718 = vmatpush2.msra.mxu0 0.0
    %719 = vmatprep.mubr.f32.mxu0 0.0
    %720 = vmatmul.mubr.f32.gmra.mxu0 %v653
    %v721 = vpop.f32.mrf.mxu0
    %v722 = vadd.f32 0.0, %v721
    %v723 = vpop.f32.mrf.mxu0
    %724 = vdwg.mxu0
    %v726 = vrot.slane %v722, 5
    %v727 = vrot.slane %v722, 6
    %v730 = vadd.f32 %v235, %v726
    %v731 = vadd.f32 %v236, %v727
    %v732 = vxor.u32 %v730, 2147483648
    %v733 = vxor.u32 %v731, 2147483648
    %v734 = vmul.f32 %v732, 1.442695
    %v735 = vpow.pop %v734
    %v736 = vmul.f32 %v733, 1.442695
    %v737 = vpow.pop %v736
    %v738 = vadd.f32 %v735, 1.0
    %v739 = vadd.f32 %v737, 1.0
    %v740 = vrcp.pop %v738
    %v741 = vmul.f32 1.0, %v740
    %v742 = vrcp.pop %v739
    %v743 = vmul.f32 1.0, %v742
    %v744 = vtanh.pop %v730
    %v745 = vtanh.pop %v731
    %v748 = vrot.slane %v632, 7
    %v749 = vrot.slane %v633, 7
    %v752 = vmul.f32 %v741, %v748
    %v753 = vmul.f32 %v743, %v749
    %756 = vrot.lane.b32.xlu0 %v744, 64
    %v757 = vpop.permute.xlu0 %756
    %758 = vrot.lane.b32.xlu0 %v745, 64
    %v759 = vpop.permute.xlu0 %758
    %v762 = vmul.f32 %v741, %v757
    %v763 = vmul.f32 %v743, %v759
    %766 = vrot.lane.b32.xlu0 %v762, 32
    %v767 = vpop.permute.xlu0 %766
    %768 = vrot.lane.b32.xlu0 %v763, 32
    %v769 = vpop.permute.xlu0 %768
    %v772 = vadd.f32 %v752, %v767
    %v773 = vadd.f32 %v753, %v769
    %v774 = vtanh.pop %v772
    %v775 = vtanh.pop %v773
    %778 = vrot.lane.b32.xlu0 %v774, 64
    %v779 = vpop.permute.xlu0 %778
    %780 = vrot.lane.b32.xlu0 %v775, 64
    %v781 = vpop.permute.xlu0 %780
    %v784 = vmul.f32 %v741, %v779
    %v785 = vmul.f32 %v743, %v781
    %v788 = vrot.slane %v784, 3
    %v789 = vrot.slane %v785, 2
    %v790 = vsel %vm371, %v789, %v788
    %791 = vrot.lane.b32.xlu0 %v790, 32
    %v792 = vpop.permute.xlu0 %791
    %v793 = vsel %vm50, %v792, 0
    %795 = vmatprep.subr.mxu0 0.0
    %796 = vmatpush1.msra.mxu0 0.0
    %797 = vmatprep.subr.mxu0 0.0
    %798 = vmatpush1.msra.mxu0 0.0
    %799 = vmatprep.subr.mxu0 0.0
    %800 = vmatpush1.msra.mxu0 0.0
    %801 = vmatprep.subr.mxu0 0.0
    %802 = vmatpush1.msra.mxu0 0.0
    %803 = vmatprep.subr.mxu0 0.0
    %804 = vmatpush1.msra.mxu0 0.0
    %805 = vmatprep.subr.mxu0 0.0
    %806 = vmatpush1.msra.mxu0 0.0
    %807 = vmatprep.subr.mxu0 0.0
    %808 = vmatpush1.msra.mxu0 0.0
    %809 = vmatprep.subr.mxu0 0.0
    %810 = vmatpush1.msra.mxu0 0.0
    %811 = vmatprep.subr.mxu0 0.0
    %812 = vmatpush1.msra.mxu0 0.0
    %813 = vmatprep.subr.mxu0 0.0
    %814 = vmatpush1.msra.mxu0 0.0
    %815 = vmatprep.subr.mxu0 0.0
    %816 = vmatpush1.msra.mxu0 0.0
    %817 = vmatprep.subr.mxu0 0.0
    %818 = vmatpush1.msra.mxu0 0.0
    %819 = vmatprep.subr.mxu0 0.0
    %820 = vmatpush1.msra.mxu0 %v240
    %821 = vmatprep.subr.mxu0 0.0
    %822 = vmatpush1.msra.mxu0 %v239
    %823 = vmatprep.subr.mxu0 0.0
    %824 = vmatpush1.msra.mxu0 %v238
    %825 = vmatprep.subr.mxu0 0.0
    %826 = vmatpush1.msra.mxu0 %v237
    %827 = vmatprep.subr.mxu0 0.0
    %828 = vmatpush2.msra.mxu0 0.0
    %829 = vmatprep.subr.mxu0 0.0
    %830 = vmatpush2.msra.mxu0 0.0
    %831 = vmatprep.subr.mxu0 0.0
    %832 = vmatpush2.msra.mxu0 0.0
    %833 = vmatprep.subr.mxu0 0.0
    %834 = vmatpush2.msra.mxu0 0.0
    %835 = vmatprep.subr.mxu0 0.0
    %836 = vmatpush2.msra.mxu0 0.0
    %837 = vmatprep.subr.mxu0 0.0
    %838 = vmatpush2.msra.mxu0 0.0
    %839 = vmatprep.subr.mxu0 0.0
    %840 = vmatpush2.msra.mxu0 0.0
    %841 = vmatprep.subr.mxu0 0.0
    %842 = vmatpush2.msra.mxu0 0.0
    %843 = vmatprep.subr.mxu0 0.0
    %844 = vmatpush2.msra.mxu0 0.0
    %845 = vmatprep.subr.mxu0 0.0
    %846 = vmatpush2.msra.mxu0 0.0
    %847 = vmatprep.subr.mxu0 0.0
    %848 = vmatpush2.msra.mxu0 0.0
    %849 = vmatprep.subr.mxu0 0.0
    %850 = vmatpush2.msra.mxu0 0.0
    %851 = vmatprep.subr.mxu0 0.0
    %852 = vmatpush2.msra.mxu0 0.0
    %853 = vmatprep.subr.mxu0 0.0
    %854 = vmatpush2.msra.mxu0 0.0
    %855 = vmatprep.subr.mxu0 0.0
    %856 = vmatpush2.msra.mxu0 0.0
    %857 = vmatprep.subr.mxu0 0.0
    %858 = vmatpush2.msra.mxu0 0.0
    %859 = vmatprep.mubr.f32.mxu0 0.0
    %860 = vmatmul.mubr.f32.gmra.mxu0 %v793
    %v861 = vpop.f32.mrf.mxu0
    %v862 = vadd.f32 0.0, %v861
    %v863 = vpop.f32.mrf.mxu0
    %864 = vdwg.mxu0
    %v866 = vrot.slane %v862, 4
    %v867 = vrot.slane %v862, 5
    %v870 = vadd.f32 %v217, %v866
    %v871 = vadd.f32 %v218, %v867
    %v872 = vxor.u32 %v870, 2147483648
    %v873 = vxor.u32 %v871, 2147483648
    %v874 = vmul.f32 %v872, 1.442695
    %v875 = vpow.pop %v874
    %v876 = vmul.f32 %v873, 1.442695
    %v877 = vpow.pop %v876
    %v878 = vadd.f32 %v875, 1.0
    %v879 = vadd.f32 %v877, 1.0
    %v880 = vrcp.pop %v878
    %v881 = vmul.f32 1.0, %v880
    %v882 = vrcp.pop %v879
    %v883 = vmul.f32 1.0, %v882
    %v884 = vtanh.pop %v870
    %v885 = vtanh.pop %v871
    %v888 = vrot.slane %v772, 7
    %v889 = vrot.slane %v773, 7
    %v892 = vmul.f32 %v881, %v888
    %v893 = vmul.f32 %v883, %v889
    %896 = vrot.lane.b32.xlu0 %v884, 64
    %v897 = vpop.permute.xlu0 %896
    %898 = vrot.lane.b32.xlu0 %v885, 64
    %v899 = vpop.permute.xlu0 %898
    %v902 = vmul.f32 %v881, %v897
    %v903 = vmul.f32 %v883, %v899
    %906 = vrot.lane.b32.xlu0 %v902, 32
    %v907 = vpop.permute.xlu0 %906
    %908 = vrot.lane.b32.xlu0 %v903, 32
    %v909 = vpop.permute.xlu0 %908
    %v912 = vadd.f32 %v892, %v907
    %v913 = vadd.f32 %v893, %v909
    %v914 = vtanh.pop %v912
    %v915 = vtanh.pop %v913
    %918 = vrot.lane.b32.xlu0 %v914, 64
    %v919 = vpop.permute.xlu0 %918
    %920 = vrot.lane.b32.xlu0 %v915, 64
    %v921 = vpop.permute.xlu0 %920
    %v924 = vmul.f32 %v881, %v919
    %v925 = vmul.f32 %v883, %v921
    %v928 = vrot.slane %v924, 4
    %v929 = vrot.slane %v925, 3
    %v930 = vsel %vm371, %v929, %v928
    %931 = vrot.lane.b32.xlu0 %v930, 32
    %v932 = vpop.permute.xlu0 %931
    %v933 = vsel %vm50, %v932, 0
    %935 = vmatprep.subr.mxu0 0.0
    %936 = vmatpush1.msra.mxu0 0.0
    %937 = vmatprep.subr.mxu0 0.0
    %938 = vmatpush1.msra.mxu0 0.0
    %939 = vmatprep.subr.mxu0 0.0
    %940 = vmatpush1.msra.mxu0 0.0
    %941 = vmatprep.subr.mxu0 0.0
    %942 = vmatpush1.msra.mxu0 0.0
    %943 = vmatprep.subr.mxu0 0.0
    %944 = vmatpush1.msra.mxu0 0.0
    %945 = vmatprep.subr.mxu0 0.0
    %946 = vmatpush1.msra.mxu0 0.0
    %947 = vmatprep.subr.mxu0 0.0
    %948 = vmatpush1.msra.mxu0 0.0
    %949 = vmatprep.subr.mxu0 0.0
    %950 = vmatpush1.msra.mxu0 0.0
    %951 = vmatprep.subr.mxu0 0.0
    %952 = vmatpush1.msra.mxu0 0.0
    %953 = vmatprep.subr.mxu0 0.0
    %954 = vmatpush1.msra.mxu0 0.0
    %955 = vmatprep.subr.mxu0 0.0
    %956 = vmatpush1.msra.mxu0 0.0
    %957 = vmatprep.subr.mxu0 0.0
    %958 = vmatpush1.msra.mxu0 0.0
    %959 = vmatprep.subr.mxu0 0.0
    %960 = vmatpush1.msra.mxu0 %v240
    %961 = vmatprep.subr.mxu0 0.0
    %962 = vmatpush1.msra.mxu0 %v239
    %963 = vmatprep.subr.mxu0 0.0
    %964 = vmatpush1.msra.mxu0 %v238
    %965 = vmatprep.subr.mxu0 0.0
    %966 = vmatpush1.msra.mxu0 %v237
    %967 = vmatprep.subr.mxu0 0.0
    %968 = vmatpush2.msra.mxu0 0.0
    %969 = vmatprep.subr.mxu0 0.0
    %970 = vmatpush2.msra.mxu0 0.0
    %971 = vmatprep.subr.mxu0 0.0
    %972 = vmatpush2.msra.mxu0 0.0
    %973 = vmatprep.subr.mxu0 0.0
    %974 = vmatpush2.msra.mxu0 0.0
    %975 = vmatprep.subr.mxu0 0.0
    %976 = vmatpush2.msra.mxu0 0.0
    %977 = vmatprep.subr.mxu0 0.0
    %978 = vmatpush2.msra.mxu0 0.0
    %979 = vmatprep.subr.mxu0 0.0
    %980 = vmatpush2.msra.mxu0 0.0
    %981 = vmatprep.subr.mxu0 0.0
    %982 = vmatpush2.msra.mxu0 0.0
    %983 = vmatprep.subr.mxu0 0.0
    %984 = vmatpush2.msra.mxu0 0.0
    %985 = vmatprep.subr.mxu0 0.0
    %986 = vmatpush2.msra.mxu0 0.0
    %987 = vmatprep.subr.mxu0 0.0
    %988 = vmatpush2.msra.mxu0 0.0
    %989 = vmatprep.subr.mxu0 0.0
    %990 = vmatpush2.msra.mxu0 0.0
    %991 = vmatprep.subr.mxu0 0.0
    %992 = vmatpush2.msra.mxu0 0.0
    %993 = vmatprep.subr.mxu0 0.0
    %994 = vmatpush2.msra.mxu0 0.0
    %995 = vmatprep.subr.mxu0 0.0
    %996 = vmatpush2.msra.mxu0 0.0
    %997 = vmatprep.subr.mxu0 0.0
    %998 = vmatpush2.msra.mxu0 0.0
    %999 = vmatprep.mubr.f32.mxu0 0.0
    %1000 = vmatmul.mubr.f32.gmra.mxu0 %v933
    %v1001 = vpop.f32.mrf.mxu0
    %v1002 = vadd.f32 0.0, %v1001
    %v1003 = vpop.f32.mrf.mxu0
    %1004 = vdwg.mxu0
    %v1006 = vrot.slane %v1002, 3
    %v1007 = vrot.slane %v1002, 4
    %v1010 = vadd.f32 %v223, %v1006
    %v1011 = vadd.f32 %v224, %v1007
    %v1012 = vxor.u32 %v1010, 2147483648
    %v1013 = vxor.u32 %v1011, 2147483648
    %v1014 = vmul.f32 %v1012, 1.442695
    %v1015 = vpow.pop %v1014
    %v1016 = vmul.f32 %v1013, 1.442695
    %v1017 = vpow.pop %v1016
    %v1018 = vadd.f32 %v1015, 1.0
    %v1019 = vadd.f32 %v1017, 1.0
    %v1020 = vrcp.pop %v1018
    %v1021 = vmul.f32 1.0, %v1020
    %v1022 = vrcp.pop %v1019
    %v1023 = vmul.f32 1.0, %v1022
    %v1024 = vtanh.pop %v1010
    %v1025 = vtanh.pop %v1011
    %v1028 = vrot.slane %v912, 7
    %v1029 = vrot.slane %v913, 7
    %v1032 = vmul.f32 %v1021, %v1028
    %v1033 = vmul.f32 %v1023, %v1029
    %1036 = vrot.lane.b32.xlu0 %v1024, 64
    %v1037 = vpop.permute.xlu0 %1036
    %1038 = vrot.lane.b32.xlu0 %v1025, 64
    %v1039 = vpop.permute.xlu0 %1038
    %v1042 = vmul.f32 %v1021, %v1037
    %v1043 = vmul.f32 %v1023, %v1039
    %1046 = vrot.lane.b32.xlu0 %v1042, 32
    %v1047 = vpop.permute.xlu0 %1046
    %1048 = vrot.lane.b32.xlu0 %v1043, 32
    %v1049 = vpop.permute.xlu0 %1048
    %v1052 = vadd.f32 %v1032, %v1047
    %v1053 = vadd.f32 %v1033, %v1049
    %v1054 = vtanh.pop %v1052
    %v1055 = vtanh.pop %v1053
    %1058 = vrot.lane.b32.xlu0 %v1054, 64
    %v1059 = vpop.permute.xlu0 %1058
    %1060 = vrot.lane.b32.xlu0 %v1055, 64
    %v1061 = vpop.permute.xlu0 %1060
    %v1064 = vmul.f32 %v1021, %v1059
    %v1065 = vmul.f32 %v1023, %v1061
    %v1068 = vrot.slane %v1064, 5
    %v1069 = vrot.slane %v1065, 4
    %v1070 = vsel %vm371, %v1069, %v1068
    %1071 = vrot.lane.b32.xlu0 %v1070, 32
    %v1072 = vpop.permute.xlu0 %1071
    %v1073 = vsel %vm50, %v1072, 0
    %1075 = vmatprep.subr.mxu0 0.0
    %1076 = vmatpush1.msra.mxu0 0.0
    %1077 = vmatprep.subr.mxu0 0.0
    %1078 = vmatpush1.msra.mxu0 0.0
    %1079 = vmatprep.subr.mxu0 0.0
    %1080 = vmatpush1.msra.mxu0 0.0
    %1081 = vmatprep.subr.mxu0 0.0
    %1082 = vmatpush1.msra.mxu0 0.0
    %1083 = vmatprep.subr.mxu0 0.0
    %1084 = vmatpush1.msra.mxu0 0.0
    %1085 = vmatprep.subr.mxu0 0.0
    %1086 = vmatpush1.msra.mxu0 0.0
    %1087 = vmatprep.subr.mxu0 0.0
    %1088 = vmatpush1.msra.mxu0 0.0
    %1089 = vmatprep.subr.mxu0 0.0
    %1090 = vmatpush1.msra.mxu0 0.0
    %1091 = vmatprep.subr.mxu0 0.0
    %1092 = vmatpush1.msra.mxu0 0.0
    %1093 = vmatprep.subr.mxu0 0.0
    %1094 = vmatpush1.msra.mxu0 0.0
    %1095 = vmatprep.subr.mxu0 0.0
    %1096 = vmatpush1.msra.mxu0 0.0
    %1097 = vmatprep.subr.mxu0 0.0
    %1098 = vmatpush1.msra.mxu0 0.0
    %1099 = vmatprep.subr.mxu0 0.0
    %1100 = vmatpush1.msra.mxu0 %v240
    %1101 = vmatprep.subr.mxu0 0.0
    %1102 = vmatpush1.msra.mxu0 %v239
    %1103 = vmatprep.subr.mxu0 0.0
    %1104 = vmatpush1.msra.mxu0 %v238
    %1105 = vmatprep.subr.mxu0 0.0
    %1106 = vmatpush1.msra.mxu0 %v237
    %1107 = vmatprep.subr.mxu0 0.0
    %1108 = vmatpush2.msra.mxu0 0.0
    %1109 = vmatprep.subr.mxu0 0.0
    %1110 = vmatpush2.msra.mxu0 0.0
    %1111 = vmatprep.subr.mxu0 0.0
    %1112 = vmatpush2.msra.mxu0 0.0
    %1113 = vmatprep.subr.mxu0 0.0
    %1114 = vmatpush2.msra.mxu0 0.0
    %1115 = vmatprep.subr.mxu0 0.0
    %1116 = vmatpush2.msra.mxu0 0.0
    %1117 = vmatprep.subr.mxu0 0.0
    %1118 = vmatpush2.msra.mxu0 0.0
    %1119 = vmatprep.subr.mxu0 0.0
    %1120 = vmatpush2.msra.mxu0 0.0
    %1121 = vmatprep.subr.mxu0 0.0
    %1122 = vmatpush2.msra.mxu0 0.0
    %1123 = vmatprep.subr.mxu0 0.0
    %1124 = vmatpush2.msra.mxu0 0.0
    %1125 = vmatprep.subr.mxu0 0.0
    %1126 = vmatpush2.msra.mxu0 0.0
    %1127 = vmatprep.subr.mxu0 0.0
    %1128 = vmatpush2.msra.mxu0 0.0
    %1129 = vmatprep.subr.mxu0 0.0
    %1130 = vmatpush2.msra.mxu0 0.0
    %1131 = vmatprep.subr.mxu0 0.0
    %1132 = vmatpush2.msra.mxu0 0.0
    %1133 = vmatprep.subr.mxu0 0.0
    %1134 = vmatpush2.msra.mxu0 0.0
    %1135 = vmatprep.subr.mxu0 0.0
    %1136 = vmatpush2.msra.mxu0 0.0
    %1137 = vmatprep.subr.mxu0 0.0
    %1138 = vmatpush2.msra.mxu0 0.0
    %1139 = vmatprep.mubr.f32.mxu0 0.0
    %1140 = vmatmul.mubr.f32.gmra.mxu0 %v1073
    %v1141 = vpop.f32.mrf.mxu0
    %v1142 = vadd.f32 0.0, %v1141
    %v1143 = vpop.f32.mrf.mxu0
    %1144 = vdwg.mxu0
    %v1146 = vrot.slane %v1142, 2
    %v1147 = vrot.slane %v1142, 3
    %v1150 = vadd.f32 %v229, %v1146
    %v1151 = vadd.f32 %v230, %v1147
    %v1152 = vxor.u32 %v1150, 2147483648
    %v1153 = vxor.u32 %v1151, 2147483648
    %v1154 = vmul.f32 %v1152, 1.442695
    %v1155 = vpow.pop %v1154
    %v1156 = vmul.f32 %v1153, 1.442695
    %v1157 = vpow.pop %v1156
    %v1158 = vadd.f32 %v1155, 1.0
    %v1159 = vadd.f32 %v1157, 1.0
    %v1160 = vrcp.pop %v1158
    %v1161 = vmul.f32 1.0, %v1160
    %v1162 = vrcp.pop %v1159
    %v1163 = vmul.f32 1.0, %v1162
    %v1164 = vtanh.pop %v1150
    %v1165 = vtanh.pop %v1151
    %v1168 = vrot.slane %v1052, 7
    %v1169 = vrot.slane %v1053, 7
    %v1172 = vmul.f32 %v1161, %v1168
    %v1173 = vmul.f32 %v1163, %v1169
    %1176 = vrot.lane.b32.xlu0 %v1164, 64
    %v1177 = vpop.permute.xlu0 %1176
    %1178 = vrot.lane.b32.xlu0 %v1165, 64
    %v1179 = vpop.permute.xlu0 %1178
    %v1182 = vmul.f32 %v1161, %v1177
    %v1183 = vmul.f32 %v1163, %v1179
    %1186 = vrot.lane.b32.xlu0 %v1182, 32
    %v1187 = vpop.permute.xlu0 %1186
    %1188 = vrot.lane.b32.xlu0 %v1183, 32
    %v1189 = vpop.permute.xlu0 %1188
    %v1192 = vadd.f32 %v1172, %v1187
    %v1193 = vadd.f32 %v1173, %v1189
    %v1194 = vtanh.pop %v1192
    %v1195 = vtanh.pop %v1193
    %1198 = vrot.lane.b32.xlu0 %v1194, 64
    %v1199 = vpop.permute.xlu0 %1198
    %1200 = vrot.lane.b32.xlu0 %v1195, 64
    %v1201 = vpop.permute.xlu0 %1200
    %v1204 = vmul.f32 %v1161, %v1199
    %v1205 = vmul.f32 %v1163, %v1201
    %v1208 = vrot.slane %v1204, 6
    %v1209 = vrot.slane %v1205, 5
    %v1210 = vsel %vm371, %v1209, %v1208
    %1211 = vrot.lane.b32.xlu0 %v1210, 32
    %v1212 = vpop.permute.xlu0 %1211
    %v1213 = vsel %vm50, %v1212, 0
    %1215 = vmatprep.subr.mxu0 0.0
    %1216 = vmatpush1.msra.mxu0 0.0
    %1217 = vmatprep.subr.mxu0 0.0
    %1218 = vmatpush1.msra.mxu0 0.0
    %1219 = vmatprep.subr.mxu0 0.0
    %1220 = vmatpush1.msra.mxu0 0.0
    %1221 = vmatprep.subr.mxu0 0.0
    %1222 = vmatpush1.msra.mxu0 0.0
    %1223 = vmatprep.subr.mxu0 0.0
    %1224 = vmatpush1.msra.mxu0 0.0
    %1225 = vmatprep.subr.mxu0 0.0
    %1226 = vmatpush1.msra.mxu0 0.0
    %1227 = vmatprep.subr.mxu0 0.0
    %1228 = vmatpush1.msra.mxu0 0.0
    %1229 = vmatprep.subr.mxu0 0.0
    %1230 = vmatpush1.msra.mxu0 0.0
    %1231 = vmatprep.subr.mxu0 0.0
    %1232 = vmatpush1.msra.mxu0 0.0
    %1233 = vmatprep.subr.mxu0 0.0
    %1234 = vmatpush1.msra.mxu0 0.0
    %1235 = vmatprep.subr.mxu0 0.0
    %1236 = vmatpush1.msra.mxu0 0.0
    %1237 = vmatprep.subr.mxu0 0.0
    %1238 = vmatpush1.msra.mxu0 0.0
    %1239 = vmatprep.subr.mxu0 0.0
    %1240 = vmatpush1.msra.mxu0 %v240
    %1241 = vmatprep.subr.mxu0 0.0
    %1242 = vmatpush1.msra.mxu0 %v239
    %1243 = vmatprep.subr.mxu0 0.0
    %1244 = vmatpush1.msra.mxu0 %v238
    %1245 = vmatprep.subr.mxu0 0.0
    %1246 = vmatpush1.msra.mxu0 %v237
    %1247 = vmatprep.subr.mxu0 0.0
    %1248 = vmatpush2.msra.mxu0 0.0
    %1249 = vmatprep.subr.mxu0 0.0
    %1250 = vmatpush2.msra.mxu0 0.0
    %1251 = vmatprep.subr.mxu0 0.0
    %1252 = vmatpush2.msra.mxu0 0.0
    %1253 = vmatprep.subr.mxu0 0.0
    %1254 = vmatpush2.msra.mxu0 0.0
    %1255 = vmatprep.subr.mxu0 0.0
    %1256 = vmatpush2.msra.mxu0 0.0
    %1257 = vmatprep.subr.mxu0 0.0
    %1258 = vmatpush2.msra.mxu0 0.0
    %1259 = vmatprep.subr.mxu0 0.0
    %1260 = vmatpush2.msra.mxu0 0.0
    %1261 = vmatprep.subr.mxu0 0.0
    %1262 = vmatpush2.msra.mxu0 0.0
    %1263 = vmatprep.subr.mxu0 0.0
    %1264 = vmatpush2.msra.mxu0 0.0
    %1265 = vmatprep.subr.mxu0 0.0
    %1266 = vmatpush2.msra.mxu0 0.0
    %1267 = vmatprep.subr.mxu0 0.0
    %1268 = vmatpush2.msra.mxu0 0.0
    %1269 = vmatprep.subr.mxu0 0.0
    %1270 = vmatpush2.msra.mxu0 0.0
    %1271 = vmatprep.subr.mxu0 0.0
    %1272 = vmatpush2.msra.mxu0 0.0
    %1273 = vmatprep.subr.mxu0 0.0
    %1274 = vmatpush2.msra.mxu0 0.0
    %1275 = vmatprep.subr.mxu0 0.0
    %1276 = vmatpush2.msra.mxu0 0.0
    %1277 = vmatprep.subr.mxu0 0.0
    %1278 = vmatpush2.msra.mxu0 0.0
    %1279 = vmatprep.mubr.f32.mxu0 0.0
    %1280 = vmatmul.mubr.f32.gmra.mxu0 %v1213
    %v1281 = vpop.f32.mrf.mxu0
    %v1282 = vadd.f32 0.0, %v1281
    %v1283 = vpop.f32.mrf.mxu0
    %1284 = vdwg.mxu0
    %v1286 = vrot.slane %v1282, 1
    %v1287 = vrot.slane %v1282, 2
    %v1290 = vadd.f32 %v235, %v1286
    %v1291 = vadd.f32 %v236, %v1287
    %v1292 = vxor.u32 %v1290, 2147483648
    %v1293 = vxor.u32 %v1291, 2147483648
    %v1294 = vmul.f32 %v1292, 1.442695
    %v1295 = vpow.pop %v1294
    %v1296 = vmul.f32 %v1293, 1.442695
    %v1297 = vpow.pop %v1296
    %v1298 = vadd.f32 %v1295, 1.0
    %v1299 = vadd.f32 %v1297, 1.0
    %v1300 = vrcp.pop %v1298
    %v1301 = vmul.f32 1.0, %v1300
    %v1302 = vrcp.pop %v1299
    %v1303 = vmul.f32 1.0, %v1302
    %v1304 = vtanh.pop %v1290
    %v1305 = vtanh.pop %v1291
    %v1308 = vrot.slane %v1192, 7
    %v1309 = vrot.slane %v1193, 7
    %v1312 = vmul.f32 %v1301, %v1308
    %v1313 = vmul.f32 %v1303, %v1309
    %1316 = vrot.lane.b32.xlu0 %v1304, 64
    %v1317 = vpop.permute.xlu0 %1316
    %1318 = vrot.lane.b32.xlu0 %v1305, 64
    %v1319 = vpop.permute.xlu0 %1318
    %v1322 = vmul.f32 %v1301, %v1317
    %v1323 = vmul.f32 %v1303, %v1319
    %1326 = vrot.lane.b32.xlu0 %v1322, 32
    %v1327 = vpop.permute.xlu0 %1326
    %1328 = vrot.lane.b32.xlu0 %v1323, 32
    %v1329 = vpop.permute.xlu0 %1328
    %v1332 = vadd.f32 %v1312, %v1327
    %v1333 = vadd.f32 %v1313, %v1329
    %v1334 = vtanh.pop %v1332
    %v1335 = vtanh.pop %v1333
    %1338 = vrot.lane.b32.xlu0 %v1334, 64
    %v1339 = vpop.permute.xlu0 %1338
    %1340 = vrot.lane.b32.xlu0 %v1335, 64
    %v1341 = vpop.permute.xlu0 %1340
    %v1344 = vmul.f32 %v1301, %v1339
    %v1345 = vmul.f32 %v1303, %v1341
    %v1349 = vrot.slane %v1344, 7
    %v1350 = vrot.slane %v1345, 6
    %v1351 = vsel %vm371, %v1350, %v1349
    %1352 = vrot.lane.b32.xlu0 %v1351, 32
    %v1353 = vpop.permute.xlu0 %1352
    %vm1355 = vcmask 130048
    %v1356 = vsel %vm1355, %v374, %v1353
    %v1357 = vrot.slane %v506, 7
    %vm1358 = vcmask 1042434
    %v1359 = vsel %vm1358, %v1357, %v505
    %1360 = vrot.lane.b32.xlu0 %v1359, 32
    %v1361 = vpop.permute.xlu0 %1360
    %v1363 = vrot.slane %v1204, 5
    %v1364 = vrot.slane %v1205, 4
    %v1365 = vsel %vm1358, %v1364, %v1363
    %1366 = vrot.lane.b32.xlu0 %v1365, 32
    %v1367 = vpop.permute.xlu0 %1366
    %v1369 = vsel %vm1355, %v1361, %v1367
    %v1370 = vrot.slane %v645, 7
    %vm1371 = vcmask 1043459
    %v1372 = vsel %vm1371, %v1370, %v644
    %1373 = vrot.lane.b32.xlu0 %v1372, 32
    %v1374 = vpop.permute.xlu0 %1373
    %v1376 = vrot.slane %v1064, 3
    %v1377 = vrot.slane %v1065, 2
    %v1378 = vsel %vm1371, %v1377, %v1376
    %1379 = vrot.lane.b32.xlu0 %v1378, 32
    %v1380 = vpop.permute.xlu0 %1379
    %v1382 = vsel %vm1355, %v1374, %v1380
    %v1383 = vrot.slane %v785, 7
    %vm1384 = vcmask 1044484
    %v1385 = vsel %vm1384, %v1383, %v784
    %1386 = vrot.lane.b32.xlu0 %v1385, 32
    %v1387 = vpop.permute.xlu0 %1386
    %v1389 = vrot.slane %v924, 1
    %v1390 = vsel %vm1384, %v925, %v1389
    %1391 = vrot.lane.b32.xlu0 %v1390, 32
    %v1392 = vpop.permute.xlu0 %1391
    %v1394 = vsel %vm1355, %v1387, %v1392
    %v1395 = vrot.slane %v925, 7
    %vm1396 = vcmask 1045509
    %v1397 = vsel %vm1396, %v1395, %v924
    %1398 = vrot.lane.b32.xlu0 %v1397, 32
    %v1399 = vpop.permute.xlu0 %1398
    %v1401 = vrot.slane %v784, 7
    %v1402 = vrot.slane %v785, 6
    %v1403 = vsel %vm1396, %v1402, %v1401
    %1404 = vrot.lane.b32.xlu0 %v1403, 32
    %v1405 = vpop.permute.xlu0 %1404
    %v1407 = vsel %vm1355, %v1399, %v1405
    %v1408 = vrot.slane %v1065, 7
    %vm1409 = vcmask 1046534
    %v1410 = vsel %vm1409, %v1408, %v1064
    %1411 = vrot.lane.b32.xlu0 %v1410, 32
    %v1412 = vpop.permute.xlu0 %1411
    %v1414 = vrot.slane %v644, 5
    %v1415 = vrot.slane %v645, 4
    %v1416 = vsel %vm1409, %v1415, %v1414
    %1417 = vrot.lane.b32.xlu0 %v1416, 32
    %v1418 = vpop.permute.xlu0 %1417
    %v1420 = vsel %vm1355, %v1412, %v1418
    %v1421 = vrot.slane %v1205, 7
    %vm1422 = vcmask 1047559
    %v1423 = vsel %vm1422, %v1421, %v1204
    %1424 = vrot.lane.b32.xlu0 %v1423, 32
    %v1425 = vpop.permute.xlu0 %1424
    %v1427 = vrot.slane %v505, 3
    %v1428 = vrot.slane %v506, 2
    %v1429 = vsel %vm1422, %v1428, %v1427
    %1430 = vrot.lane.b32.xlu0 %v1429, 32
    %v1431 = vpop.permute.xlu0 %1430
    %v1433 = vsel %vm1355, %v1425, %v1431
    %v1434 = vrot.slane %v1345, 7
    %1435 = vrot.lane.b32.xlu0 %v1344, 32
    %v1436 = vpop.permute.xlu0 %1435
    %1437 = vrot.lane.b32.xlu0 %v1434, 32
    %v1438 = vpop.permute.xlu0 %1437
    %v1441 = vrot.slane %v366, 1
    %1442 = vrot.lane.b32.xlu0 %v1441, 32
    %v1443 = vpop.permute.xlu0 %1442
    %1444 = vrot.lane.b32.xlu0 %v367, 32
    %v1445 = vpop.permute.xlu0 %1444
    %v1448 = vsel %vm1355, %v1436, %v1443
    %v1449 = vsel %vm1355, %v1438, %v1445
    %v1452 = vunpack.c.l.s4 1966171168
    %v1453 = vunpack.c.0.s8 %v1452
    %v1454 = vlaneseq
    %v1455 = vshrl.u32 %v1454, 7
    %v1456 = vsub.s32 %v1453, %v1455
    %v1457 = vrot.slane %v1356, %v1456
    %v1458 = vcombine.high %v1457, %v1457
    %v1460 = vunpack.c.l.s4 1966171168
    %v1461 = vunpack.c.0.s8 %v1460
    %v1462 = vlaneseq
    %v1463 = vshrl.u32 %v1462, 7
    %v1464 = vsub.s32 %v1461, %v1463
    %v1465 = vrot.slane %v1457, %v1464
    %v1467 = vunpack.c.l.s4 1966171168
    %v1468 = vunpack.c.0.s8 %v1467
    %v1469 = vlaneseq
    %v1470 = vshrl.u32 %v1469, 7
    %v1471 = vsub.s32 %v1468, %v1470
    %v1472 = vrot.slane %v1458, %v1471
    %v1477 = vunpack.c.l.s4 1966171168
    %v1478 = vunpack.c.0.s8 %v1477
    %v1479 = vlaneseq
    %v1480 = vshrl.u32 %v1479, 7
    %v1481 = vsub.s32 %v1478, %v1480
    %v1482 = vrot.slane %v1369, %v1481
    %v1483 = vcombine.high %v1482, %v1482
    %v1485 = vunpack.c.l.s4 1966171168
    %v1486 = vunpack.c.0.s8 %v1485
    %v1487 = vlaneseq
    %v1488 = vshrl.u32 %v1487, 7
    %v1489 = vsub.s32 %v1486, %v1488
    %v1490 = vrot.slane %v1482, %v1489
    %v1492 = vunpack.c.l.s4 1966171168
    %v1493 = vunpack.c.0.s8 %v1492
    %v1494 = vlaneseq
    %v1495 = vshrl.u32 %v1494, 7
    %v1496 = vsub.s32 %v1493, %v1495
    %v1497 = vrot.slane %v1483, %v1496
    %v1498 = vcombine.high %v1490, %v1490
    %v1501 = vunpack.c.l.s4 1966171168
    %v1502 = vunpack.c.0.s8 %v1501
    %v1503 = vlaneseq
    %v1504 = vshrl.u32 %v1503, 7
    %v1505 = vsub.s32 %v1502, %v1504
    %v1506 = vrot.slane %v1382, %v1505
    %v1507 = vcombine.high %v1506, %v1506
    %v1509 = vunpack.c.l.s4 1966171168
    %v1510 = vunpack.c.0.s8 %v1509
    %v1511 = vlaneseq
    %v1512 = vshrl.u32 %v1511, 7
    %v1513 = vsub.s32 %v1510, %v1512
    %v1514 = vrot.slane %v1506, %v1513
    %v1516 = vunpack.c.l.s4 1966171168
    %v1517 = vunpack.c.0.s8 %v1516
    %v1518 = vlaneseq
    %v1519 = vshrl.u32 %v1518, 7
    %v1520 = vsub.s32 %v1517, %v1519
    %v1521 = vrot.slane %v1507, %v1520
    %v1522 = vcombine.high %v1514, %v1514
    %v1523 = vcombine.high %v1521, %v1521
    %v1525 = vcombine.high %v1394, %v1394
    %v1527 = vunpack.c.l.s4 1966171168
    %v1528 = vunpack.c.0.s8 %v1527
    %v1529 = vlaneseq
    %v1530 = vshrl.u32 %v1529, 7
    %v1531 = vsub.s32 %v1528, %v1530
    %v1532 = vrot.slane %v1394, %v1531
    %v1534 = vunpack.c.l.s4 1966171168
    %v1535 = vunpack.c.0.s8 %v1534
    %v1536 = vlaneseq
    %v1537 = vshrl.u32 %v1536, 7
    %v1538 = vsub.s32 %v1535, %v1537
    %v1539 = vrot.slane %v1525, %v1538
    %v1540 = vcombine.high %v1532, %v1532
    %v1542 = vunpack.c.l.s4 1966171168
    %v1543 = vunpack.c.0.s8 %v1542
    %v1544 = vlaneseq
    %v1545 = vshrl.u32 %v1544, 7
    %v1546 = vsub.s32 %v1543, %v1545
    %v1547 = vrot.slane %v1539, %v1546
    %v1549 = vunpack.c.l.s4 1966171168
    %v1550 = vunpack.c.0.s8 %v1549
    %v1551 = vlaneseq
    %v1552 = vshrl.u32 %v1551, 7
    %v1553 = vsub.s32 %v1550, %v1552
    %v1554 = vrot.slane %v1540, %v1553
    %v1555 = vcombine.high %v1554, %v1554
    %v1557 = vcombine.high %v1407, %v1407
    %v1559 = vunpack.c.l.s4 1966171168
    %v1560 = vunpack.c.0.s8 %v1559
    %v1561 = vlaneseq
    %v1562 = vshrl.u32 %v1561, 7
    %v1563 = vsub.s32 %v1560, %v1562
    %v1564 = vrot.slane %v1557, %v1563
    %v1565 = vcombine.high %v1564, %v1564
    %v1567 = vunpack.c.l.s4 1966171168
    %v1568 = vunpack.c.0.s8 %v1567
    %v1569 = vlaneseq
    %v1570 = vshrl.u32 %v1569, 7
    %v1571 = vsub.s32 %v1568, %v1570
    %v1572 = vrot.slane %v1564, %v1571
    %v1574 = vunpack.c.l.s4 1966171168
    %v1575 = vunpack.c.0.s8 %v1574
    %v1576 = vlaneseq
    %v1577 = vshrl.u32 %v1576, 7
    %v1578 = vsub.s32 %v1575, %v1577
    %v1579 = vrot.slane %v1565, %v1578
    %v1581 = vcombine.high %v1420, %v1420
    %v1583 = vunpack.c.l.s4 1966171168
    %v1584 = vunpack.c.0.s8 %v1583
    %v1585 = vlaneseq
    %v1586 = vshrl.u32 %v1585, 7
    %v1587 = vsub.s32 %v1584, %v1586
    %v1588 = vrot.slane %v1581, %v1587
    %v1589 = vcombine.high %v1588, %v1588
    %v1591 = vunpack.c.l.s4 1966171168
    %v1592 = vunpack.c.0.s8 %v1591
    %v1593 = vlaneseq
    %v1594 = vshrl.u32 %v1593, 7
    %v1595 = vsub.s32 %v1592, %v1594
    %v1596 = vrot.slane %v1588, %v1595
    %v1598 = vunpack.c.l.s4 1966171168
    %v1599 = vunpack.c.0.s8 %v1598
    %v1600 = vlaneseq
    %v1601 = vshrl.u32 %v1600, 7
    %v1602 = vsub.s32 %v1599, %v1601
    %v1603 = vrot.slane %v1589, %v1602
    %v1604 = vcombine.high %v1596, %v1596
    %v1606 = vcombine.high %v1433, %v1433
    %v1608 = vunpack.c.l.s4 1966171168
    %v1609 = vunpack.c.0.s8 %v1608
    %v1610 = vlaneseq
    %v1611 = vshrl.u32 %v1610, 7
    %v1612 = vsub.s32 %v1609, %v1611
    %v1613 = vrot.slane %v1606, %v1612
    %v1614 = vcombine.high %v1613, %v1613
    %v1616 = vunpack.c.l.s4 1966171168
    %v1617 = vunpack.c.0.s8 %v1616
    %v1618 = vlaneseq
    %v1619 = vshrl.u32 %v1618, 7
    %v1620 = vsub.s32 %v1617, %v1619
    %v1621 = vrot.slane %v1613, %v1620
    %v1623 = vunpack.c.l.s4 1966171168
    %v1624 = vunpack.c.0.s8 %v1623
    %v1625 = vlaneseq
    %v1626 = vshrl.u32 %v1625, 7
    %v1627 = vsub.s32 %v1624, %v1626
    %v1628 = vrot.slane %v1614, %v1627
    %v1629 = vcombine.high %v1621, %v1621
    %v1630 = vcombine.high %v1628, %v1628
    %v1633 = vcombine.high %v1448, %v1448
    %v1635 = vunpack.c.l.s4 1966171168
    %v1636 = vunpack.c.0.s8 %v1635
    %v1637 = vlaneseq
    %v1638 = vshrl.u32 %v1637, 7
    %v1639 = vsub.s32 %v1636, %v1638
    %v1640 = vrot.slane %v1633, %v1639
    %v1641 = vcombine.high %v1640, %v1640
    %v1643 = vunpack.c.l.s4 1966171168
    %v1644 = vunpack.c.0.s8 %v1643
    %v1645 = vlaneseq
    %v1646 = vshrl.u32 %v1645, 7
    %v1647 = vsub.s32 %v1644, %v1646
    %v1648 = vrot.slane %v1641, %v1647
    %v1649 = vcombine.high %v1648, %v1648
    %v1651 = vunpack.c.l.s4 1966171168
    %v1652 = vunpack.c.0.s8 %v1651
    %v1653 = vlaneseq
    %v1654 = vshrl.u32 %v1653, 7
    %v1655 = vsub.s32 %v1652, %v1654
    %v1656 = vrot.slane %v1449, %v1655
    %v1658 = vunpack.c.l.s4 1966171168
    %v1659 = vunpack.c.0.s8 %v1658
    %v1660 = vlaneseq
    %v1661 = vshrl.u32 %v1660, 7
    %v1662 = vsub.s32 %v1659, %v1661
    %v1663 = vrot.slane %v1656, %v1662
    %v1664 = vlaneseq
    %v1665 = vshrl.u32 %v1664, 7
    %v1666 = vsub.s32 0, %v1665
    %v1667 = vrot.slane %v1497, %v1666
    %v1668 = vlaneseq
    %v1669 = vshrl.u32 %v1668, 7
    %v1670 = vsub.s32 0, %v1669
    %v1671 = vrot.slane %v1498, %v1670
    %v1674 = vlaneseq
    %v1675 = vshrl.u32 %v1674, 7
    %v1676 = vsub.s32 0, %v1675
    %v1677 = vrot.slane %v1522, %v1676
    %v1678 = vlaneseq
    %v1679 = vshrl.u32 %v1678, 7
    %v1680 = vsub.s32 0, %v1679
    %v1681 = vrot.slane %v1523, %v1680
    %v1684 = vlaneseq
    %v1685 = vshrl.u32 %v1684, 7
    %v1686 = vsub.s32 0, %v1685
    %v1687 = vrot.slane %v1555, %v1686
    %v1688 = vlaneseq
    %v1689 = vshrl.u32 %v1688, 7
    %v1690 = vsub.s32 0, %v1689
    %v1691 = vrot.slane %v1547, %v1690
    %v1694 = vlaneseq
    %v1695 = vshrl.u32 %v1694, 7
    %v1696 = vsub.s32 0, %v1695
    %v1697 = vrot.slane %v1572, %v1696
    %v1698 = vlaneseq
    %v1699 = vshrl.u32 %v1698, 7
    %v1700 = vsub.s32 0, %v1699
    %v1701 = vrot.slane %v1579, %v1700
    %v1704 = vlaneseq
    %v1705 = vshrl.u32 %v1704, 7
    %v1706 = vsub.s32 0, %v1705
    %v1707 = vrot.slane %v1603, %v1706
    %v1708 = vlaneseq
    %v1709 = vshrl.u32 %v1708, 7
    %v1710 = vsub.s32 0, %v1709
    %v1711 = vrot.slane %v1604, %v1710
    %v1714 = vlaneseq
    %v1715 = vshrl.u32 %v1714, 7
    %v1716 = vsub.s32 0, %v1715
    %v1717 = vrot.slane %v1629, %v1716
    %v1718 = vlaneseq
    %v1719 = vshrl.u32 %v1718, 7
    %v1720 = vsub.s32 0, %v1719
    %v1721 = vrot.slane %v1630, %v1720
    %v1724 = vlaneseq
    %v1725 = vshrl.u32 %v1724, 7
    %v1726 = vsub.s32 0, %v1725
    %v1727 = vrot.slane %v1649, %v1726
    %v1728 = vlaneseq
    %v1729 = vshrl.u32 %v1728, 7
    %v1730 = vsub.s32 0, %v1729
    %v1731 = vrot.slane %v1663, %v1730
    %vm1734 = vcmask 1040384
    %v1735 = vsel %vm1734, %v1465, %v1667
    %v1736 = vsel %vm1734, %v1472, %v1671
    %vm1737 = vcmask 1041408
    %v1738 = vsel %vm1737, %v1735, %v1677
    %v1739 = vsel %vm1737, %v1736, %v1681
    %vm1740 = vcmask 1042432
    %v1741 = vsel %vm1740, %v1738, %v1687
    %v1742 = vsel %vm1740, %v1739, %v1691
    %vm1743 = vcmask 1043456
    %v1744 = vsel %vm1743, %v1741, %v1697
    %v1745 = vsel %vm1743, %v1742, %v1701
    %vm1746 = vcmask 1044480
    %v1747 = vsel %vm1746, %v1744, %v1707
    %v1748 = vsel %vm1746, %v1745, %v1711
    %vm1749 = vcmask 1045504
    %v1750 = vsel %vm1749, %v1747, %v1717
    %v1751 = vsel %vm1749, %v1748, %v1721
    %vm1752 = vcmask 1046528
    %v1753 = vsel %vm1752, %v1750, %v1727
    %v1754 = vsel %vm1752, %v1751, %v1731
    %v1755 = vld [vmem:[#allocation4] sm:$0xff]
    %v1756 = vadd.f32 %v1753, %v1755
    %v1757 = vadd.f32 %v1754, %v1755
    %v1758 = vld [vmem:[#allocation4 + $0x70] sm:$0xff]
    %v1759 = vld [vmem:[#allocation4 + $0x78] sm:$0xff]
    %v1760 = vld [vmem:[#allocation4 + $0x80] sm:$0xff]
    %v1761 = vld [vmem:[#allocation4 + $0x88] sm:$0xff]
    %v1762 = vld [vmem:[#allocation4 + $0x90] sm:$0x1]
    %v1763 = vlaneseq
    %v1764 = vshrl.u32 %v1763, 7
    %v1765 = vsub.s32 0, %v1764
    %v1766 = vrot.slane %v1762, %v1765
    %v1768 = vsel %vm50, %v1756, 0
    %v1771 = vsel %vm50, %v1757, 0
    %1773 = vmatprep.subr.mxu0 0.0
    %1774 = vmatpush1.msra.mxu0 0.0
    %1775 = vmatprep.subr.mxu0 0.0
    %1776 = vmatpush1.msra.mxu0 0.0
    %1777 = vmatprep.subr.mxu0 0.0
    %1778 = vmatpush1.msra.mxu0 0.0
    %1779 = vmatprep.subr.mxu0 0.0
    %1780 = vmatpush1.msra.mxu0 0.0
    %1781 = vmatprep.subr.mxu0 0.0
    %1782 = vmatpush1.msra.mxu0 0.0
    %1783 = vmatprep.subr.mxu0 0.0
    %1784 = vmatpush1.msra.mxu0 0.0
    %1785 = vmatprep.subr.mxu0 0.0
    %1786 = vmatpush1.msra.mxu0 0.0
    %1787 = vmatprep.subr.mxu0 0.0
    %1788 = vmatpush1.msra.mxu0 0.0
    %1789 = vmatprep.subr.mxu0 0.0
    %1790 = vmatpush1.msra.mxu0 0.0
    %1791 = vmatprep.subr.mxu0 0.0
    %1792 = vmatpush1.msra.mxu0 0.0
    %1793 = vmatprep.subr.mxu0 0.0
    %1794 = vmatpush1.msra.mxu0 0.0
    %1795 = vmatprep.subr.mxu0 0.0
    %1796 = vmatpush1.msra.mxu0 0.0
    %1797 = vmatprep.subr.mxu0 0.0
    %1798 = vmatpush1.msra.mxu0 %v1761
    %1799 = vmatprep.subr.mxu0 0.0
    %1800 = vmatpush1.msra.mxu0 %v1760
    %1801 = vmatprep.subr.mxu0 0.0
    %1802 = vmatpush1.msra.mxu0 %v1759
    %1803 = vmatprep.subr.mxu0 0.0
    %1804 = vmatpush1.msra.mxu0 %v1758
    %1805 = vmatprep.subr.mxu0 0.0
    %1806 = vmatpush2.msra.mxu0 0.0
    %1807 = vmatprep.subr.mxu0 0.0
    %1808 = vmatpush2.msra.mxu0 0.0
    %1809 = vmatprep.subr.mxu0 0.0
    %1810 = vmatpush2.msra.mxu0 0.0
    %1811 = vmatprep.subr.mxu0 0.0
    %1812 = vmatpush2.msra.mxu0 0.0
    %1813 = vmatprep.subr.mxu0 0.0
    %1814 = vmatpush2.msra.mxu0 0.0
    %1815 = vmatprep.subr.mxu0 0.0
    %1816 = vmatpush2.msra.mxu0 0.0
    %1817 = vmatprep.subr.mxu0 0.0
    %1818 = vmatpush2.msra.mxu0 0.0
    %1819 = vmatprep.subr.mxu0 0.0
    %1820 = vmatpush2.msra.mxu0 0.0
    %1821 = vmatprep.subr.mxu0 0.0
    %1822 = vmatpush2.msra.mxu0 0.0
    %1823 = vmatprep.subr.mxu0 0.0
    %1824 = vmatpush2.msra.mxu0 0.0
    %1825 = vmatprep.subr.mxu0 0.0
    %1826 = vmatpush2.msra.mxu0 0.0
    %1827 = vmatprep.subr.mxu0 0.0
    %1828 = vmatpush2.msra.mxu0 0.0
    %1829 = vmatprep.subr.mxu0 0.0
    %1830 = vmatpush2.msra.mxu0 0.0
    %1831 = vmatprep.subr.mxu0 0.0
    %1832 = vmatpush2.msra.mxu0 0.0
    %1833 = vmatprep.subr.mxu0 0.0
    %1834 = vmatpush2.msra.mxu0 0.0
    %1835 = vmatprep.subr.mxu0 0.0
    %1836 = vmatpush2.msra.mxu0 0.0
    %1837 = vmatprep.mubr.f32.mxu0 0.0
    %1838 = vmatmul.mubr.f32.gmra.mxu0 %v1768
    %v1839 = vpop.f32.mrf.mxu0
    %v1840 = vadd.f32 %v1766, %v1839
    %v1841 = vpop.f32.mrf.mxu0
    %1842 = vmatprep.mubr.f32.mxu0 0.0
    %1843 = vmatmul.mubr.f32.gmra.mxu0 %v1771
    %v1844 = vpop.f32.mrf.mxu0
    %v1845 = vadd.f32 %v1766, %v1844
    %v1846 = vpop.f32.mrf.mxu0
    %1847 = vdwg.mxu0
    %1850 = vrot.lane.b32.xlu0 %v1840, 120
    %v1851 = vpop.permute.xlu0 %1850
    %1852 = vrot.lane.b32.xlu0 %v1845, 120
    %v1853 = vpop.permute.xlu0 %1852
    %1854 = vrot.lane.b32.xlu0 %v1840, 112
    %v1855 = vpop.permute.xlu0 %1854
    %1856 = vrot.lane.b32.xlu0 %v1845, 112
    %v1857 = vpop.permute.xlu0 %1856
    %1858 = vrot.lane.b32.xlu0 %v1840, 104
    %v1859 = vpop.permute.xlu0 %1858
    %1860 = vrot.lane.b32.xlu0 %v1845, 104
    %v1861 = vpop.permute.xlu0 %1860
    %1862 = vrot.lane.b32.xlu0 %v1840, 96
    %v1863 = vpop.permute.xlu0 %1862
    %vm1864 = vcmask 64512
    %v1865 = vsel %vm1864, %v1840, 0
    %v1867 = vsel %vm1864, %v1863, 0
    %1869 = vmatprep.subr.mxu0 0.0
    %1870 = vmatpush1.xpose.msra.mxu0 0.0
    %1871 = vmatprep.subr.mxu0 0.0
    %1872 = vmatpush1.xpose.msra.mxu0 0.0
    %1873 = vmatprep.subr.mxu0 0.0
    %1874 = vmatpush1.xpose.msra.mxu0 0.0
    %1875 = vmatprep.subr.mxu0 0.0
    %1876 = vmatpush1.xpose.msra.mxu0 0.0
    %1877 = vmatprep.subr.mxu0 0.0
    %1878 = vmatpush1.xpose.msra.mxu0 0.0
    %1879 = vmatprep.subr.mxu0 0.0
    %1880 = vmatpush1.xpose.msra.mxu0 0.0
    %1881 = vmatprep.subr.mxu0 0.0
    %1882 = vmatpush1.xpose.msra.mxu0 0.0
    %1883 = vmatprep.subr.mxu0 0.0
    %1884 = vmatpush1.xpose.msra.mxu0 0.0
    %1885 = vmatprep.subr.mxu0 0.0
    %1886 = vmatpush1.xpose.msra.mxu0 0.0
    %1887 = vmatprep.subr.mxu0 0.0
    %1888 = vmatpush1.xpose.msra.mxu0 0.0
    %1889 = vmatprep.subr.mxu0 0.0
    %1890 = vmatpush1.xpose.msra.mxu0 0.0
    %1891 = vmatprep.subr.mxu0 0.0
    %1892 = vmatpush1.xpose.msra.mxu0 0.0
    %1893 = vmatprep.subr.mxu0 0.0
    %1894 = vmatpush1.xpose.msra.mxu0 0.0
    %1895 = vmatprep.subr.mxu0 0.0
    %1896 = vmatpush1.xpose.msra.mxu0 0.0
    %1897 = vmatprep.subr.mxu0 0.0
    %1898 = vmatpush1.xpose.msra.mxu0 0.0
    %1899 = vmatprep.subr.mxu0 0.0
    %1900 = vmatpush1.xpose.msra.mxu0 %v1867
    %1901 = vmatprep.subr.mxu0 0.0
    %1902 = vmatpush2.xpose.msra.mxu0 0.0
    %1903 = vmatprep.subr.mxu0 0.0
    %1904 = vmatpush2.xpose.msra.mxu0 0.0
    %1905 = vmatprep.subr.mxu0 0.0
    %1906 = vmatpush2.xpose.msra.mxu0 0.0
    %1907 = vmatprep.subr.mxu0 0.0
    %1908 = vmatpush2.xpose.msra.mxu0 0.0
    %1909 = vmatprep.subr.mxu0 0.0
    %1910 = vmatpush2.xpose.msra.mxu0 0.0
    %1911 = vmatprep.subr.mxu0 0.0
    %1912 = vmatpush2.xpose.msra.mxu0 0.0
    %1913 = vmatprep.subr.mxu0 0.0
    %1914 = vmatpush2.xpose.msra.mxu0 0.0
    %1915 = vmatprep.subr.mxu0 0.0
    %1916 = vmatpush2.xpose.msra.mxu0 0.0
    %1917 = vmatprep.subr.mxu0 0.0
    %1918 = vmatpush2.xpose.msra.mxu0 0.0
    %1919 = vmatprep.subr.mxu0 0.0
    %1920 = vmatpush2.xpose.msra.mxu0 0.0
    %1921 = vmatprep.subr.mxu0 0.0
    %1922 = vmatpush2.xpose.msra.mxu0 0.0
    %1923 = vmatprep.subr.mxu0 0.0
    %1924 = vmatpush2.xpose.msra.mxu0 0.0
    %1925 = vmatprep.subr.mxu0 0.0
    %1926 = vmatpush2.xpose.msra.mxu0 0.0
    %1927 = vmatprep.subr.mxu0 0.0
    %1928 = vmatpush2.xpose.msra.mxu0 0.0
    %1929 = vmatprep.subr.mxu0 0.0
    %1930 = vmatpush2.xpose.msra.mxu0 0.0
    %1931 = vmatprep.subr.mxu0 0.0
    %1932 = vmatpush2.xpose.msra.mxu0 0.0
    %1933 = vmatprep.mubr.f32.mxu0 0.0
    %1934 = vmatmul.mubr.f32.gmra.mxu0 %v1865
    %v1935 = vpop.f32.mrf.mxu0
    %v1936 = vadd.f32 0.0, %v1935
    %v1937 = vpop.f32.mrf.mxu0
    %1938 = vdwg.mxu0
    %1939 = vrot.lane.b32.xlu0 %v1845, 96
    %v1940 = vpop.permute.xlu0 %1939
    %v1941 = vsel %vm1864, %v1845, 0
    %v1943 = vsel %vm1864, %v1940, 0
    %1945 = vmatprep.subr.mxu0 0.0
    %1946 = vmatpush1.xpose.msra.mxu0 0.0
    %1947 = vmatprep.subr.mxu0 0.0
    %1948 = vmatpush1.xpose.msra.mxu0 0.0
    %1949 = vmatprep.subr.mxu0 0.0
    %1950 = vmatpush1.xpose.msra.mxu0 0.0
    %1951 = vmatprep.subr.mxu0 0.0
    %1952 = vmatpush1.xpose.msra.mxu0 0.0
    %1953 = vmatprep.subr.mxu0 0.0
    %1954 = vmatpush1.xpose.msra.mxu0 0.0
    %1955 = vmatprep.subr.mxu0 0.0
    %1956 = vmatpush1.xpose.msra.mxu0 0.0
    %1957 = vmatprep.subr.mxu0 0.0
    %1958 = vmatpush1.xpose.msra.mxu0 0.0
    %1959 = vmatprep.subr.mxu0 0.0
    %1960 = vmatpush1.xpose.msra.mxu0 0.0
    %1961 = vmatprep.subr.mxu0 0.0
    %1962 = vmatpush1.xpose.msra.mxu0 0.0
    %1963 = vmatprep.subr.mxu0 0.0
    %1964 = vmatpush1.xpose.msra.mxu0 0.0
    %1965 = vmatprep.subr.mxu0 0.0
    %1966 = vmatpush1.xpose.msra.mxu0 0.0
    %1967 = vmatprep.subr.mxu0 0.0
    %1968 = vmatpush1.xpose.msra.mxu0 0.0
    %1969 = vmatprep.subr.mxu0 0.0
    %1970 = vmatpush1.xpose.msra.mxu0 0.0
    %1971 = vmatprep.subr.mxu0 0.0
    %1972 = vmatpush1.xpose.msra.mxu0 0.0
    %1973 = vmatprep.subr.mxu0 0.0
    %1974 = vmatpush1.xpose.msra.mxu0 0.0
    %1975 = vmatprep.subr.mxu0 0.0
    %1976 = vmatpush1.xpose.msra.mxu0 %v1943
    %1977 = vmatprep.subr.mxu0 0.0
    %1978 = vmatpush2.xpose.msra.mxu0 0.0
    %1979 = vmatprep.subr.mxu0 0.0
    %1980 = vmatpush2.xpose.msra.mxu0 0.0
    %1981 = vmatprep.subr.mxu0 0.0
    %1982 = vmatpush2.xpose.msra.mxu0 0.0
    %1983 = vmatprep.subr.mxu0 0.0
    %1984 = vmatpush2.xpose.msra.mxu0 0.0
    %1985 = vmatprep.subr.mxu0 0.0
    %1986 = vmatpush2.xpose.msra.mxu0 0.0
    %1987 = vmatprep.subr.mxu0 0.0
    %1988 = vmatpush2.xpose.msra.mxu0 0.0
    %1989 = vmatprep.subr.mxu0 0.0
    %1990 = vmatpush2.xpose.msra.mxu0 0.0
    %1991 = vmatprep.subr.mxu0 0.0
    %1992 = vmatpush2.xpose.msra.mxu0 0.0
    %1993 = vmatprep.subr.mxu0 0.0
    %1994 = vmatpush2.xpose.msra.mxu0 0.0
    %1995 = vmatprep.subr.mxu0 0.0
    %1996 = vmatpush2.xpose.msra.mxu0 0.0
    %1997 = vmatprep.subr.mxu0 0.0
    %1998 = vmatpush2.xpose.msra.mxu0 0.0
    %1999 = vmatprep.subr.mxu0 0.0
    %2000 = vmatpush2.xpose.msra.mxu0 0.0
    %2001 = vmatprep.subr.mxu0 0.0
    %2002 = vmatpush2.xpose.msra.mxu0 0.0
    %2003 = vmatprep.subr.mxu0 0.0
    %2004 = vmatpush2.xpose.msra.mxu0 0.0
    %2005 = vmatprep.subr.mxu0 0.0
    %2006 = vmatpush2.xpose.msra.mxu0 0.0
    %2007 = vmatprep.subr.mxu0 0.0
    %2008 = vmatpush2.xpose.msra.mxu0 0.0
    %2009 = vmatprep.mubr.f32.mxu0 0.0
    %2010 = vmatmul.mubr.f32.gmra.mxu0 %v1941
    %v2011 = vpop.f32.mrf.mxu0
    %v2012 = vadd.f32 0.0, %v2011
    %v2013 = vpop.f32.mrf.mxu0
    %2014 = vdwg.mxu0
    %2015 = vrot.lane.b32.xlu0 %v1851, 96
    %v2016 = vpop.permute.xlu0 %2015
    %v2017 = vsel %vm1864, %v1851, 0
    %v2019 = vsel %vm1864, %v2016, 0
    %2021 = vmatprep.subr.mxu0 0.0
    %2022 = vmatpush1.xpose.msra.mxu0 0.0
    %2023 = vmatprep.subr.mxu0 0.0
    %2024 = vmatpush1.xpose.msra.mxu0 0.0
    %2025 = vmatprep.subr.mxu0 0.0
    %2026 = vmatpush1.xpose.msra.mxu0 0.0
    %2027 = vmatprep.subr.mxu0 0.0
    %2028 = vmatpush1.xpose.msra.mxu0 0.0
    %2029 = vmatprep.subr.mxu0 0.0
    %2030 = vmatpush1.xpose.msra.mxu0 0.0
    %2031 = vmatprep.subr.mxu0 0.0
    %2032 = vmatpush1.xpose.msra.mxu0 0.0
    %2033 = vmatprep.subr.mxu0 0.0
    %2034 = vmatpush1.xpose.msra.mxu0 0.0
    %2035 = vmatprep.subr.mxu0 0.0
    %2036 = vmatpush1.xpose.msra.mxu0 0.0
    %2037 = vmatprep.subr.mxu0 0.0
    %2038 = vmatpush1.xpose.msra.mxu0 0.0
    %2039 = vmatprep.subr.mxu0 0.0
    %2040 = vmatpush1.xpose.msra.mxu0 0.0
    %2041 = vmatprep.subr.mxu0 0.0
    %2042 = vmatpush1.xpose.msra.mxu0 0.0
    %2043 = vmatprep.subr.mxu0 0.0
    %2044 = vmatpush1.xpose.msra.mxu0 0.0
    %2045 = vmatprep.subr.mxu0 0.0
    %2046 = vmatpush1.xpose.msra.mxu0 0.0
    %2047 = vmatprep.subr.mxu0 0.0
    %2048 = vmatpush1.xpose.msra.mxu0 0.0
    %2049 = vmatprep.subr.mxu0 0.0
    %2050 = vmatpush1.xpose.msra.mxu0 0.0
    %2051 = vmatprep.subr.mxu0 0.0
    %2052 = vmatpush1.xpose.msra.mxu0 %v2019
    %2053 = vmatprep.subr.mxu0 0.0
    %2054 = vmatpush2.xpose.msra.mxu0 0.0
    %2055 = vmatprep.subr.mxu0 0.0
    %2056 = vmatpush2.xpose.msra.mxu0 0.0
    %2057 = vmatprep.subr.mxu0 0.0
    %2058 = vmatpush2.xpose.msra.mxu0 0.0
    %2059 = vmatprep.subr.mxu0 0.0
    %2060 = vmatpush2.xpose.msra.mxu0 0.0
    %2061 = vmatprep.subr.mxu0 0.0
    %2062 = vmatpush2.xpose.msra.mxu0 0.0
    %2063 = vmatprep.subr.mxu0 0.0
    %2064 = vmatpush2.xpose.msra.mxu0 0.0
    %2065 = vmatprep.subr.mxu0 0.0
    %2066 = vmatpush2.xpose.msra.mxu0 0.0
    %2067 = vmatprep.subr.mxu0 0.0
    %2068 = vmatpush2.xpose.msra.mxu0 0.0
    %2069 = vmatprep.subr.mxu0 0.0
    %2070 = vmatpush2.xpose.msra.mxu0 0.0
    %2071 = vmatprep.subr.mxu0 0.0
    %2072 = vmatpush2.xpose.msra.mxu0 0.0
    %2073 = vmatprep.subr.mxu0 0.0
    %2074 = vmatpush2.xpose.msra.mxu0 0.0
    %2075 = vmatprep.subr.mxu0 0.0
    %2076 = vmatpush2.xpose.msra.mxu0 0.0
    %2077 = vmatprep.subr.mxu0 0.0
    %2078 = vmatpush2.xpose.msra.mxu0 0.0
    %2079 = vmatprep.subr.mxu0 0.0
    %2080 = vmatpush2.xpose.msra.mxu0 0.0
    %2081 = vmatprep.subr.mxu0 0.0
    %2082 = vmatpush2.xpose.msra.mxu0 0.0
    %2083 = vmatprep.subr.mxu0 0.0
    %2084 = vmatpush2.xpose.msra.mxu0 0.0
    %2085 = vmatprep.mubr.f32.mxu0 0.0
    %2086 = vmatmul.mubr.f32.gmra.mxu0 %v2017
    %v2087 = vpop.f32.mrf.mxu0
    %v2088 = vadd.f32 0.0, %v2087
    %v2089 = vpop.f32.mrf.mxu0
    %2090 = vdwg.mxu0
    %2091 = vrot.lane.b32.xlu0 %v1853, 96
    %v2092 = vpop.permute.xlu0 %2091
    %v2093 = vsel %vm1864, %v1853, 0
    %v2095 = vsel %vm1864, %v2092, 0
    %2097 = vmatprep.subr.mxu0 0.0
    %2098 = vmatpush1.xpose.msra.mxu0 0.0
    %2099 = vmatprep.subr.mxu0 0.0
    %2100 = vmatpush1.xpose.msra.mxu0 0.0
    %2101 = vmatprep.subr.mxu0 0.0
    %2102 = vmatpush1.xpose.msra.mxu0 0.0
    %2103 = vmatprep.subr.mxu0 0.0
    %2104 = vmatpush1.xpose.msra.mxu0 0.0
    %2105 = vmatprep.subr.mxu0 0.0
    %2106 = vmatpush1.xpose.msra.mxu0 0.0
    %2107 = vmatprep.subr.mxu0 0.0
    %2108 = vmatpush1.xpose.msra.mxu0 0.0
    %2109 = vmatprep.subr.mxu0 0.0
    %2110 = vmatpush1.xpose.msra.mxu0 0.0
    %2111 = vmatprep.subr.mxu0 0.0
    %2112 = vmatpush1.xpose.msra.mxu0 0.0
    %2113 = vmatprep.subr.mxu0 0.0
    %2114 = vmatpush1.xpose.msra.mxu0 0.0
    %2115 = vmatprep.subr.mxu0 0.0
    %2116 = vmatpush1.xpose.msra.mxu0 0.0
    %2117 = vmatprep.subr.mxu0 0.0
    %2118 = vmatpush1.xpose.msra.mxu0 0.0
    %2119 = vmatprep.subr.mxu0 0.0
    %2120 = vmatpush1.xpose.msra.mxu0 0.0
    %2121 = vmatprep.subr.mxu0 0.0
    %2122 = vmatpush1.xpose.msra.mxu0 0.0
    %2123 = vmatprep.subr.mxu0 0.0
    %2124 = vmatpush1.xpose.msra.mxu0 0.0
    %2125 = vmatprep.subr.mxu0 0.0
    %2126 = vmatpush1.xpose.msra.mxu0 0.0
    %2127 = vmatprep.subr.mxu0 0.0
    %2128 = vmatpush1.xpose.msra.mxu0 %v2095
    %2129 = vmatprep.subr.mxu0 0.0
    %2130 = vmatpush2.xpose.msra.mxu0 0.0
    %2131 = vmatprep.subr.mxu0 0.0
    %2132 = vmatpush2.xpose.msra.mxu0 0.0
    %2133 = vmatprep.subr.mxu0 0.0
    %2134 = vmatpush2.xpose.msra.mxu0 0.0
    %2135 = vmatprep.subr.mxu0 0.0
    %2136 = vmatpush2.xpose.msra.mxu0 0.0
    %2137 = vmatprep.subr.mxu0 0.0
    %2138 = vmatpush2.xpose.msra.mxu0 0.0
    %2139 = vmatprep.subr.mxu0 0.0
    %2140 = vmatpush2.xpose.msra.mxu0 0.0
    %2141 = vmatprep.subr.mxu0 0.0
    %2142 = vmatpush2.xpose.msra.mxu0 0.0
    %2143 = vmatprep.subr.mxu0 0.0
    %2144 = vmatpush2.xpose.msra.mxu0 0.0
    %2145 = vmatprep.subr.mxu0 0.0
    %2146 = vmatpush2.xpose.msra.mxu0 0.0
    %2147 = vmatprep.subr.mxu0 0.0
    %2148 = vmatpush2.xpose.msra.mxu0 0.0
    %2149 = vmatprep.subr.mxu0 0.0
    %2150 = vmatpush2.xpose.msra.mxu0 0.0
    %2151 = vmatprep.subr.mxu0 0.0
    %2152 = vmatpush2.xpose.msra.mxu0 0.0
    %2153 = vmatprep.subr.mxu0 0.0
    %2154 = vmatpush2.xpose.msra.mxu0 0.0
    %2155 = vmatprep.subr.mxu0 0.0
    %2156 = vmatpush2.xpose.msra.mxu0 0.0
    %2157 = vmatprep.subr.mxu0 0.0
    %2158 = vmatpush2.xpose.msra.mxu0 0.0
    %2159 = vmatprep.subr.mxu0 0.0
    %2160 = vmatpush2.xpose.msra.mxu0 0.0
    %2161 = vmatprep.mubr.f32.mxu0 0.0
    %2162 = vmatmul.mubr.f32.gmra.mxu0 %v2093
    %v2163 = vpop.f32.mrf.mxu0
    %v2164 = vadd.f32 0.0, %v2163
    %v2165 = vpop.f32.mrf.mxu0
    %2166 = vdwg.mxu0
    %2167 = vrot.lane.b32.xlu0 %v1855, 96
    %v2168 = vpop.permute.xlu0 %2167
    %v2169 = vsel %vm1864, %v1855, 0
    %v2171 = vsel %vm1864, %v2168, 0
    %2173 = vmatprep.subr.mxu0 0.0
    %2174 = vmatpush1.xpose.msra.mxu0 0.0
    %2175 = vmatprep.subr.mxu0 0.0
    %2176 = vmatpush1.xpose.msra.mxu0 0.0
    %2177 = vmatprep.subr.mxu0 0.0
    %2178 = vmatpush1.xpose.msra.mxu0 0.0
    %2179 = vmatprep.subr.mxu0 0.0
    %2180 = vmatpush1.xpose.msra.mxu0 0.0
    %2181 = vmatprep.subr.mxu0 0.0
    %2182 = vmatpush1.xpose.msra.mxu0 0.0
    %2183 = vmatprep.subr.mxu0 0.0
    %2184 = vmatpush1.xpose.msra.mxu0 0.0
    %2185 = vmatprep.subr.mxu0 0.0
    %2186 = vmatpush1.xpose.msra.mxu0 0.0
    %2187 = vmatprep.subr.mxu0 0.0
    %2188 = vmatpush1.xpose.msra.mxu0 0.0
    %2189 = vmatprep.subr.mxu0 0.0
    %2190 = vmatpush1.xpose.msra.mxu0 0.0
    %2191 = vmatprep.subr.mxu0 0.0
    %2192 = vmatpush1.xpose.msra.mxu0 0.0
    %2193 = vmatprep.subr.mxu0 0.0
    %2194 = vmatpush1.xpose.msra.mxu0 0.0
    %2195 = vmatprep.subr.mxu0 0.0
    %2196 = vmatpush1.xpose.msra.mxu0 0.0
    %2197 = vmatprep.subr.mxu0 0.0
    %2198 = vmatpush1.xpose.msra.mxu0 0.0
    %2199 = vmatprep.subr.mxu0 0.0
    %2200 = vmatpush1.xpose.msra.mxu0 0.0
    %2201 = vmatprep.subr.mxu0 0.0
    %2202 = vmatpush1.xpose.msra.mxu0 0.0
    %2203 = vmatprep.subr.mxu0 0.0
    %2204 = vmatpush1.xpose.msra.mxu0 %v2171
    %2205 = vmatprep.subr.mxu0 0.0
    %2206 = vmatpush2.xpose.msra.mxu0 0.0
    %2207 = vmatprep.subr.mxu0 0.0
    %2208 = vmatpush2.xpose.msra.mxu0 0.0
    %2209 = vmatprep.subr.mxu0 0.0
    %2210 = vmatpush2.xpose.msra.mxu0 0.0
    %2211 = vmatprep.subr.mxu0 0.0
    %2212 = vmatpush2.xpose.msra.mxu0 0.0
    %2213 = vmatprep.subr.mxu0 0.0
    %2214 = vmatpush2.xpose.msra.mxu0 0.0
    %2215 = vmatprep.subr.mxu0 0.0
    %2216 = vmatpush2.xpose.msra.mxu0 0.0
    %2217 = vmatprep.subr.mxu0 0.0
    %2218 = vmatpush2.xpose.msra.mxu0 0.0
    %2219 = vmatprep.subr.mxu0 0.0
    %2220 = vmatpush2.xpose.msra.mxu0 0.0
    %2221 = vmatprep.subr.mxu0 0.0
    %2222 = vmatpush2.xpose.msra.mxu0 0.0
    %2223 = vmatprep.subr.mxu0 0.0
    %2224 = vmatpush2.xpose.msra.mxu0 0.0
    %2225 = vmatprep.subr.mxu0 0.0
    %2226 = vmatpush2.xpose.msra.mxu0 0.0
    %2227 = vmatprep.subr.mxu0 0.0
    %2228 = vmatpush2.xpose.msra.mxu0 0.0
    %2229 = vmatprep.subr.mxu0 0.0
    %2230 = vmatpush2.xpose.msra.mxu0 0.0
    %2231 = vmatprep.subr.mxu0 0.0
    %2232 = vmatpush2.xpose.msra.mxu0 0.0
    %2233 = vmatprep.subr.mxu0 0.0
    %2234 = vmatpush2.xpose.msra.mxu0 0.0
    %2235 = vmatprep.subr.mxu0 0.0
    %2236 = vmatpush2.xpose.msra.mxu0 0.0
    %2237 = vmatprep.mubr.f32.mxu0 0.0
    %2238 = vmatmul.mubr.f32.gmra.mxu0 %v2169
    %v2239 = vpop.f32.mrf.mxu0
    %v2240 = vadd.f32 0.0, %v2239
    %v2241 = vpop.f32.mrf.mxu0
    %2242 = vdwg.mxu0
    %2243 = vrot.lane.b32.xlu0 %v1857, 96
    %v2244 = vpop.permute.xlu0 %2243
    %v2245 = vsel %vm1864, %v1857, 0
    %v2247 = vsel %vm1864, %v2244, 0
    %2249 = vmatprep.subr.mxu0 0.0
    %2250 = vmatpush1.xpose.msra.mxu0 0.0
    %2251 = vmatprep.subr.mxu0 0.0
    %2252 = vmatpush1.xpose.msra.mxu0 0.0
    %2253 = vmatprep.subr.mxu0 0.0
    %2254 = vmatpush1.xpose.msra.mxu0 0.0
    %2255 = vmatprep.subr.mxu0 0.0
    %2256 = vmatpush1.xpose.msra.mxu0 0.0
    %2257 = vmatprep.subr.mxu0 0.0
    %2258 = vmatpush1.xpose.msra.mxu0 0.0
    %2259 = vmatprep.subr.mxu0 0.0
    %2260 = vmatpush1.xpose.msra.mxu0 0.0
    %2261 = vmatprep.subr.mxu0 0.0
    %2262 = vmatpush1.xpose.msra.mxu0 0.0
    %2263 = vmatprep.subr.mxu0 0.0
    %2264 = vmatpush1.xpose.msra.mxu0 0.0
    %2265 = vmatprep.subr.mxu0 0.0
    %2266 = vmatpush1.xpose.msra.mxu0 0.0
    %2267 = vmatprep.subr.mxu0 0.0
    %2268 = vmatpush1.xpose.msra.mxu0 0.0
    %2269 = vmatprep.subr.mxu0 0.0
    %2270 = vmatpush1.xpose.msra.mxu0 0.0
    %2271 = vmatprep.subr.mxu0 0.0
    %2272 = vmatpush1.xpose.msra.mxu0 0.0
    %2273 = vmatprep.subr.mxu0 0.0
    %2274 = vmatpush1.xpose.msra.mxu0 0.0
    %2275 = vmatprep.subr.mxu0 0.0
    %2276 = vmatpush1.xpose.msra.mxu0 0.0
    %2277 = vmatprep.subr.mxu0 0.0
    %2278 = vmatpush1.xpose.msra.mxu0 0.0
    %2279 = vmatprep.subr.mxu0 0.0
    %2280 = vmatpush1.xpose.msra.mxu0 %v2247
    %2281 = vmatprep.subr.mxu0 0.0
    %2282 = vmatpush2.xpose.msra.mxu0 0.0
    %2283 = vmatprep.subr.mxu0 0.0
    %2284 = vmatpush2.xpose.msra.mxu0 0.0
    %2285 = vmatprep.subr.mxu0 0.0
    %2286 = vmatpush2.xpose.msra.mxu0 0.0
    %2287 = vmatprep.subr.mxu0 0.0
    %2288 = vmatpush2.xpose.msra.mxu0 0.0
    %2289 = vmatprep.subr.mxu0 0.0
    %2290 = vmatpush2.xpose.msra.mxu0 0.0
    %2291 = vmatprep.subr.mxu0 0.0
    %2292 = vmatpush2.xpose.msra.mxu0 0.0
    %2293 = vmatprep.subr.mxu0 0.0
    %2294 = vmatpush2.xpose.msra.mxu0 0.0
    %2295 = vmatprep.subr.mxu0 0.0
    %2296 = vmatpush2.xpose.msra.mxu0 0.0
    %2297 = vmatprep.subr.mxu0 0.0
    %2298 = vmatpush2.xpose.msra.mxu0 0.0
    %2299 = vmatprep.subr.mxu0 0.0
    %2300 = vmatpush2.xpose.msra.mxu0 0.0
    %2301 = vmatprep.subr.mxu0 0.0
    %2302 = vmatpush2.xpose.msra.mxu0 0.0
    %2303 = vmatprep.subr.mxu0 0.0
    %2304 = vmatpush2.xpose.msra.mxu0 0.0
    %2305 = vmatprep.subr.mxu0 0.0
    %2306 = vmatpush2.xpose.msra.mxu0 0.0
    %2307 = vmatprep.subr.mxu0 0.0
    %2308 = vmatpush2.xpose.msra.mxu0 0.0
    %2309 = vmatprep.subr.mxu0 0.0
    %2310 = vmatpush2.xpose.msra.mxu0 0.0
    %2311 = vmatprep.subr.mxu0 0.0
    %2312 = vmatpush2.xpose.msra.mxu0 0.0
    %2313 = vmatprep.mubr.f32.mxu0 0.0
    %2314 = vmatmul.mubr.f32.gmra.mxu0 %v2245
    %v2315 = vpop.f32.mrf.mxu0
    %v2316 = vadd.f32 0.0, %v2315
    %v2317 = vpop.f32.mrf.mxu0
    %2318 = vdwg.mxu0
    %2319 = vrot.lane.b32.xlu0 %v1859, 96
    %v2320 = vpop.permute.xlu0 %2319
    %v2321 = vsel %vm1864, %v1859, 0
    %v2323 = vsel %vm1864, %v2320, 0
    %2325 = vmatprep.subr.mxu0 0.0
    %2326 = vmatpush1.xpose.msra.mxu0 0.0
    %2327 = vmatprep.subr.mxu0 0.0
    %2328 = vmatpush1.xpose.msra.mxu0 0.0
    %2329 = vmatprep.subr.mxu0 0.0
    %2330 = vmatpush1.xpose.msra.mxu0 0.0
    %2331 = vmatprep.subr.mxu0 0.0
    %2332 = vmatpush1.xpose.msra.mxu0 0.0
    %2333 = vmatprep.subr.mxu0 0.0
    %2334 = vmatpush1.xpose.msra.mxu0 0.0
    %2335 = vmatprep.subr.mxu0 0.0
    %2336 = vmatpush1.xpose.msra.mxu0 0.0
    %2337 = vmatprep.subr.mxu0 0.0
    %2338 = vmatpush1.xpose.msra.mxu0 0.0
    %2339 = vmatprep.subr.mxu0 0.0
    %2340 = vmatpush1.xpose.msra.mxu0 0.0
    %2341 = vmatprep.subr.mxu0 0.0
    %2342 = vmatpush1.xpose.msra.mxu0 0.0
    %2343 = vmatprep.subr.mxu0 0.0
    %2344 = vmatpush1.xpose.msra.mxu0 0.0
    %2345 = vmatprep.subr.mxu0 0.0
    %2346 = vmatpush1.xpose.msra.mxu0 0.0
    %2347 = vmatprep.subr.mxu0 0.0
    %2348 = vmatpush1.xpose.msra.mxu0 0.0
    %2349 = vmatprep.subr.mxu0 0.0
    %2350 = vmatpush1.xpose.msra.mxu0 0.0
    %2351 = vmatprep.subr.mxu0 0.0
    %2352 = vmatpush1.xpose.msra.mxu0 0.0
    %2353 = vmatprep.subr.mxu0 0.0
    %2354 = vmatpush1.xpose.msra.mxu0 0.0
    %2355 = vmatprep.subr.mxu0 0.0
    %2356 = vmatpush1.xpose.msra.mxu0 %v2323
    %2357 = vmatprep.subr.mxu0 0.0
    %2358 = vmatpush2.xpose.msra.mxu0 0.0
    %2359 = vmatprep.subr.mxu0 0.0
    %2360 = vmatpush2.xpose.msra.mxu0 0.0
    %2361 = vmatprep.subr.mxu0 0.0
    %2362 = vmatpush2.xpose.msra.mxu0 0.0
    %2363 = vmatprep.subr.mxu0 0.0
    %2364 = vmatpush2.xpose.msra.mxu0 0.0
    %2365 = vmatprep.subr.mxu0 0.0
    %2366 = vmatpush2.xpose.msra.mxu0 0.0
    %2367 = vmatprep.subr.mxu0 0.0
    %2368 = vmatpush2.xpose.msra.mxu0 0.0
    %2369 = vmatprep.subr.mxu0 0.0
    %2370 = vmatpush2.xpose.msra.mxu0 0.0
    %2371 = vmatprep.subr.mxu0 0.0
    %2372 = vmatpush2.xpose.msra.mxu0 0.0
    %2373 = vmatprep.subr.mxu0 0.0
    %2374 = vmatpush2.xpose.msra.mxu0 0.0
    %2375 = vmatprep.subr.mxu0 0.0
    %2376 = vmatpush2.xpose.msra.mxu0 0.0
    %2377 = vmatprep.subr.mxu0 0.0
    %2378 = vmatpush2.xpose.msra.mxu0 0.0
    %2379 = vmatprep.subr.mxu0 0.0
    %2380 = vmatpush2.xpose.msra.mxu0 0.0
    %2381 = vmatprep.subr.mxu0 0.0
    %2382 = vmatpush2.xpose.msra.mxu0 0.0
    %2383 = vmatprep.subr.mxu0 0.0
    %2384 = vmatpush2.xpose.msra.mxu0 0.0
    %2385 = vmatprep.subr.mxu0 0.0
    %2386 = vmatpush2.xpose.msra.mxu0 0.0
    %2387 = vmatprep.subr.mxu0 0.0
    %2388 = vmatpush2.xpose.msra.mxu0 0.0
    %2389 = vmatprep.mubr.f32.mxu0 0.0
    %2390 = vmatmul.mubr.f32.gmra.mxu0 %v2321
    %v2391 = vpop.f32.mrf.mxu0
    %v2392 = vadd.f32 0.0, %v2391
    %v2393 = vpop.f32.mrf.mxu0
    %2394 = vdwg.mxu0
    %2395 = vrot.lane.b32.xlu0 %v1861, 96
    %v2396 = vpop.permute.xlu0 %2395
    %v2397 = vsel %vm1864, %v1861, 0
    %v2399 = vsel %vm1864, %v2396, 0
    %2401 = vmatprep.subr.mxu0 0.0
    %2402 = vmatpush1.xpose.msra.mxu0 0.0
    %2403 = vmatprep.subr.mxu0 0.0
    %2404 = vmatpush1.xpose.msra.mxu0 0.0
    %2405 = vmatprep.subr.mxu0 0.0
    %2406 = vmatpush1.xpose.msra.mxu0 0.0
    %2407 = vmatprep.subr.mxu0 0.0
    %2408 = vmatpush1.xpose.msra.mxu0 0.0
    %2409 = vmatprep.subr.mxu0 0.0
    %2410 = vmatpush1.xpose.msra.mxu0 0.0
    %2411 = vmatprep.subr.mxu0 0.0
    %2412 = vmatpush1.xpose.msra.mxu0 0.0
    %2413 = vmatprep.subr.mxu0 0.0
    %2414 = vmatpush1.xpose.msra.mxu0 0.0
    %2415 = vmatprep.subr.mxu0 0.0
    %2416 = vmatpush1.xpose.msra.mxu0 0.0
    %2417 = vmatprep.subr.mxu0 0.0
    %2418 = vmatpush1.xpose.msra.mxu0 0.0
    %2419 = vmatprep.subr.mxu0 0.0
    %2420 = vmatpush1.xpose.msra.mxu0 0.0
    %2421 = vmatprep.subr.mxu0 0.0
    %2422 = vmatpush1.xpose.msra.mxu0 0.0
    %2423 = vmatprep.subr.mxu0 0.0
    %2424 = vmatpush1.xpose.msra.mxu0 0.0
    %2425 = vmatprep.subr.mxu0 0.0
    %2426 = vmatpush1.xpose.msra.mxu0 0.0
    %2427 = vmatprep.subr.mxu0 0.0
    %2428 = vmatpush1.xpose.msra.mxu0 0.0
    %2429 = vmatprep.subr.mxu0 0.0
    %2430 = vmatpush1.xpose.msra.mxu0 0.0
    %2431 = vmatprep.subr.mxu0 0.0
    %2432 = vmatpush1.xpose.msra.mxu0 %v2399
    %2433 = vmatprep.subr.mxu0 0.0
    %2434 = vmatpush2.xpose.msra.mxu0 0.0
    %2435 = vmatprep.subr.mxu0 0.0
    %2436 = vmatpush2.xpose.msra.mxu0 0.0
    %2437 = vmatprep.subr.mxu0 0.0
    %2438 = vmatpush2.xpose.msra.mxu0 0.0
    %2439 = vmatprep.subr.mxu0 0.0
    %2440 = vmatpush2.xpose.msra.mxu0 0.0
    %2441 = vmatprep.subr.mxu0 0.0
    %2442 = vmatpush2.xpose.msra.mxu0 0.0
    %2443 = vmatprep.subr.mxu0 0.0
    %2444 = vmatpush2.xpose.msra.mxu0 0.0
    %2445 = vmatprep.subr.mxu0 0.0
    %2446 = vmatpush2.xpose.msra.mxu0 0.0
    %2447 = vmatprep.subr.mxu0 0.0
    %2448 = vmatpush2.xpose.msra.mxu0 0.0
    %2449 = vmatprep.subr.mxu0 0.0
    %2450 = vmatpush2.xpose.msra.mxu0 0.0
    %2451 = vmatprep.subr.mxu0 0.0
    %2452 = vmatpush2.xpose.msra.mxu0 0.0
    %2453 = vmatprep.subr.mxu0 0.0
    %2454 = vmatpush2.xpose.msra.mxu0 0.0
    %2455 = vmatprep.subr.mxu0 0.0
    %2456 = vmatpush2.xpose.msra.mxu0 0.0
    %2457 = vmatprep.subr.mxu0 0.0
    %2458 = vmatpush2.xpose.msra.mxu0 0.0
    %2459 = vmatprep.subr.mxu0 0.0
    %2460 = vmatpush2.xpose.msra.mxu0 0.0
    %2461 = vmatprep.subr.mxu0 0.0
    %2462 = vmatpush2.xpose.msra.mxu0 0.0
    %2463 = vmatprep.subr.mxu0 0.0
    %2464 = vmatpush2.xpose.msra.mxu0 0.0
    %2465 = vmatprep.mubr.f32.mxu0 0.0
    %2466 = vmatmul.mubr.f32.gmra.mxu0 %v2397
    %v2467 = vpop.f32.mrf.mxu0
    %v2468 = vadd.f32 0.0, %v2467
    %v2469 = vpop.f32.mrf.mxu0
    %2470 = vdwg.mxu0
    %v2471 = vsel %vm1864, %v1936, -inf
    %2472 = vmax.xlane.f32.xlu0 %v2471
    %v2473 = vpop.xlane.xlu0 %2472
    %v2474 = vsel %vm1864, %v2012, -inf
    %2475 = vmax.xlane.f32.xlu0 %v2474
    %v2476 = vpop.xlane.xlu0 %2475
    %v2477 = vsel %vm1864, %v2088, -inf
    %2478 = vmax.xlane.f32.xlu0 %v2477
    %v2479 = vpop.xlane.xlu0 %2478
    %v2480 = vsel %vm1864, %v2164, -inf
    %2481 = vmax.xlane.f32.xlu0 %v2480
    %v2482 = vpop.xlane.xlu0 %2481
    %v2483 = vsel %vm1864, %v2240, -inf
    %2484 = vmax.xlane.f32.xlu0 %v2483
    %v2485 = vpop.xlane.xlu0 %2484
    %v2486 = vsel %vm1864, %v2316, -inf
    %2487 = vmax.xlane.f32.xlu0 %v2486
    %v2488 = vpop.xlane.xlu0 %2487
    %v2489 = vsel %vm1864, %v2392, -inf
    %2490 = vmax.xlane.f32.xlu0 %v2489
    %v2491 = vpop.xlane.xlu0 %2490
    %v2492 = vsel %vm1864, %v2468, -inf
    %2493 = vmax.xlane.f32.xlu0 %v2492
    %v2494 = vpop.xlane.xlu0 %2493
    %v2495 = vsub.f32 %v1936, %v2473
    %v2496 = vsub.f32 %v2012, %v2476
    %v2497 = vsub.f32 %v2088, %v2479
    %v2498 = vsub.f32 %v2164, %v2482
    %v2499 = vsub.f32 %v2240, %v2485
    %v2500 = vsub.f32 %v2316, %v2488
    %v2501 = vsub.f32 %v2392, %v2491
    %v2502 = vsub.f32 %v2468, %v2494
    %v2503 = vmul.f32 %v2495, 1.442695
    %v2504 = vpow.pop %v2503
    %v2505 = vmul.f32 %v2496, 1.442695
    %v2506 = vpow.pop %v2505
    %v2507 = vmul.f32 %v2497, 1.442695
    %v2508 = vpow.pop %v2507
    %v2509 = vmul.f32 %v2498, 1.442695
    %v2510 = vpow.pop %v2509
    %v2511 = vmul.f32 %v2499, 1.442695
    %v2512 = vpow.pop %v2511
    %v2513 = vmul.f32 %v2500, 1.442695
    %v2514 = vpow.pop %v2513
    %v2515 = vmul.f32 %v2501, 1.442695
    %v2516 = vpow.pop %v2515
    %v2517 = vmul.f32 %v2502, 1.442695
    %v2518 = vpow.pop %v2517
    %v2519 = vsel %vm1864, %v2504, 0.0
    %2520 = vadd.xlane.f32.xlu0 %v2519
    %v2521 = vpop.xlane.xlu0 %2520
    %v2522 = vsel %vm1864, %v2506, 0.0
    %2523 = vadd.xlane.f32.xlu0 %v2522
    %v2524 = vpop.xlane.xlu0 %2523
    %v2525 = vsel %vm1864, %v2508, 0.0
    %2526 = vadd.xlane.f32.xlu0 %v2525
    %v2527 = vpop.xlane.xlu0 %2526
    %v2528 = vsel %vm1864, %v2510, 0.0
    %2529 = vadd.xlane.f32.xlu0 %v2528
    %v2530 = vpop.xlane.xlu0 %2529
    %v2531 = vsel %vm1864, %v2512, 0.0
    %2532 = vadd.xlane.f32.xlu0 %v2531
    %v2533 = vpop.xlane.xlu0 %2532
    %v2534 = vsel %vm1864, %v2514, 0.0
    %2535 = vadd.xlane.f32.xlu0 %v2534
    %v2536 = vpop.xlane.xlu0 %2535
    %v2537 = vsel %vm1864, %v2516, 0.0
    %2538 = vadd.xlane.f32.xlu0 %v2537
    %v2539 = vpop.xlane.xlu0 %2538
    %v2540 = vsel %vm1864, %v2518, 0.0
    %2541 = vadd.xlane.f32.xlu0 %v2540
    %v2542 = vpop.xlane.xlu0 %2541
    %v2543 = vrcp.pop %v2521
    %v2544 = vrcp.pop %v2524
    %v2545 = vrcp.pop %v2527
    %v2546 = vrcp.pop %v2530
    %v2547 = vrcp.pop %v2533
    %v2548 = vrcp.pop %v2536
    %v2549 = vrcp.pop %v2539
    %v2550 = vrcp.pop %v2542
    %v2551 = vmul.f32 %v2504, %v2543
    %v2552 = vmul.f32 %v2506, %v2544
    %v2553 = vmul.f32 %v2508, %v2545
    %v2554 = vmul.f32 %v2510, %v2546
    %v2555 = vmul.f32 %v2512, %v2547
    %v2556 = vmul.f32 %v2514, %v2548
    %v2557 = vmul.f32 %v2516, %v2549
    %v2558 = vmul.f32 %v2518, %v2550
    %2559 = vrot.lane.b32.xlu0 %v1840, 64
    %v2560 = vpop.permute.xlu0 %2559
    %v2563 = vsel %vm1864, %v2551, 0
    %2565 = vmatprep.subr.mxu0 0.0
    %2566 = vmatpush1.msra.mxu0 0.0
    %2567 = vmatprep.subr.mxu0 0.0
    %2568 = vmatpush1.msra.mxu0 0.0
    %2569 = vmatprep.subr.mxu0 0.0
    %2570 = vmatpush1.msra.mxu0 0.0
    %2571 = vmatprep.subr.mxu0 0.0
    %2572 = vmatpush1.msra.mxu0 0.0
    %2573 = vmatprep.subr.mxu0 0.0
    %2574 = vmatpush1.msra.mxu0 0.0
    %2575 = vmatprep.subr.mxu0 0.0
    %2576 = vmatpush1.msra.mxu0 0.0
    %2577 = vmatprep.subr.mxu0 0.0
    %2578 = vmatpush1.msra.mxu0 0.0
    %2579 = vmatprep.subr.mxu0 0.0
    %2580 = vmatpush1.msra.mxu0 0.0
    %2581 = vmatprep.subr.mxu0 0.0
    %2582 = vmatpush1.msra.mxu0 0.0
    %2583 = vmatprep.subr.mxu0 0.0
    %2584 = vmatpush1.msra.mxu0 0.0
    %2585 = vmatprep.subr.mxu0 0.0
    %2586 = vmatpush1.msra.mxu0 0.0
    %2587 = vmatprep.subr.mxu0 0.0
    %2588 = vmatpush1.msra.mxu0 0.0
    %2589 = vmatprep.subr.mxu0 0.0
    %2590 = vmatpush1.msra.mxu0 0.0
    %2591 = vmatprep.subr.mxu0 0.0
    %2592 = vmatpush1.msra.mxu0 0.0
    %2593 = vmatprep.subr.mxu0 0.0
    %2594 = vmatpush1.msra.mxu0 0.0
    %2595 = vmatprep.subr.mxu0 0.0
    %2596 = vmatpush1.msra.mxu0 %v2560
    %2597 = vmatprep.subr.mxu0 0.0
    %2598 = vmatpush2.msra.mxu0 0.0
    %2599 = vmatprep.subr.mxu0 0.0
    %2600 = vmatpush2.msra.mxu0 0.0
    %2601 = vmatprep.subr.mxu0 0.0
    %2602 = vmatpush2.msra.mxu0 0.0
    %2603 = vmatprep.subr.mxu0 0.0
    %2604 = vmatpush2.msra.mxu0 0.0
    %2605 = vmatprep.subr.mxu0 0.0
    %2606 = vmatpush2.msra.mxu0 0.0
    %2607 = vmatprep.subr.mxu0 0.0
    %2608 = vmatpush2.msra.mxu0 0.0
    %2609 = vmatprep.subr.mxu0 0.0
    %2610 = vmatpush2.msra.mxu0 0.0
    %2611 = vmatprep.subr.mxu0 0.0
    %2612 = vmatpush2.msra.mxu0 0.0
    %2613 = vmatprep.subr.mxu0 0.0
    %2614 = vmatpush2.msra.mxu0 0.0
    %2615 = vmatprep.subr.mxu0 0.0
    %2616 = vmatpush2.msra.mxu0 0.0
    %2617 = vmatprep.subr.mxu0 0.0
    %2618 = vmatpush2.msra.mxu0 0.0
    %2619 = vmatprep.subr.mxu0 0.0
    %2620 = vmatpush2.msra.mxu0 0.0
    %2621 = vmatprep.subr.mxu0 0.0
    %2622 = vmatpush2.msra.mxu0 0.0
    %2623 = vmatprep.subr.mxu0 0.0
    %2624 = vmatpush2.msra.mxu0 0.0
    %2625 = vmatprep.subr.mxu0 0.0
    %2626 = vmatpush2.msra.mxu0 0.0
    %2627 = vmatprep.subr.mxu0 0.0
    %2628 = vmatpush2.msra.mxu0 0.0
    %2629 = vmatprep.mubr.f32.mxu0 0.0
    %2630 = vmatmul.mubr.f32.gmra.mxu0 %v2563
    %v2631 = vpop.f32.mrf.mxu0
    %v2632 = vadd.f32 0.0, %v2631
    %v2633 = vpop.f32.mrf.mxu0
    %2634 = vdwg.mxu0
    %2635 = vrot.lane.b32.xlu0 %v1845, 64
    %v2636 = vpop.permute.xlu0 %2635
    %v2639 = vsel %vm1864, %v2552, 0
    %2641 = vmatprep.subr.mxu0 0.0
    %2642 = vmatpush1.msra.mxu0 0.0
    %2643 = vmatprep.subr.mxu0 0.0
    %2644 = vmatpush1.msra.mxu0 0.0
    %2645 = vmatprep.subr.mxu0 0.0
    %2646 = vmatpush1.msra.mxu0 0.0
    %2647 = vmatprep.subr.mxu0 0.0
    %2648 = vmatpush1.msra.mxu0 0.0
    %2649 = vmatprep.subr.mxu0 0.0
    %2650 = vmatpush1.msra.mxu0 0.0
    %2651 = vmatprep.subr.mxu0 0.0
    %2652 = vmatpush1.msra.mxu0 0.0
    %2653 = vmatprep.subr.mxu0 0.0
    %2654 = vmatpush1.msra.mxu0 0.0
    %2655 = vmatprep.subr.mxu0 0.0
    %2656 = vmatpush1.msra.mxu0 0.0
    %2657 = vmatprep.subr.mxu0 0.0
    %2658 = vmatpush1.msra.mxu0 0.0
    %2659 = vmatprep.subr.mxu0 0.0
    %2660 = vmatpush1.msra.mxu0 0.0
    %2661 = vmatprep.subr.mxu0 0.0
    %2662 = vmatpush1.msra.mxu0 0.0
    %2663 = vmatprep.subr.mxu0 0.0
    %2664 = vmatpush1.msra.mxu0 0.0
    %2665 = vmatprep.subr.mxu0 0.0
    %2666 = vmatpush1.msra.mxu0 0.0
    %2667 = vmatprep.subr.mxu0 0.0
    %2668 = vmatpush1.msra.mxu0 0.0
    %2669 = vmatprep.subr.mxu0 0.0
    %2670 = vmatpush1.msra.mxu0 0.0
    %2671 = vmatprep.subr.mxu0 0.0
    %2672 = vmatpush1.msra.mxu0 %v2636
    %2673 = vmatprep.subr.mxu0 0.0
    %2674 = vmatpush2.msra.mxu0 0.0
    %2675 = vmatprep.subr.mxu0 0.0
    %2676 = vmatpush2.msra.mxu0 0.0
    %2677 = vmatprep.subr.mxu0 0.0
    %2678 = vmatpush2.msra.mxu0 0.0
    %2679 = vmatprep.subr.mxu0 0.0
    %2680 = vmatpush2.msra.mxu0 0.0
    %2681 = vmatprep.subr.mxu0 0.0
    %2682 = vmatpush2.msra.mxu0 0.0
    %2683 = vmatprep.subr.mxu0 0.0
    %2684 = vmatpush2.msra.mxu0 0.0
    %2685 = vmatprep.subr.mxu0 0.0
    %2686 = vmatpush2.msra.mxu0 0.0
    %2687 = vmatprep.subr.mxu0 0.0
    %2688 = vmatpush2.msra.mxu0 0.0
    %2689 = vmatprep.subr.mxu0 0.0
    %2690 = vmatpush2.msra.mxu0 0.0
    %2691 = vmatprep.subr.mxu0 0.0
    %2692 = vmatpush2.msra.mxu0 0.0
    %2693 = vmatprep.subr.mxu0 0.0
    %2694 = vmatpush2.msra.mxu0 0.0
    %2695 = vmatprep.subr.mxu0 0.0
    %2696 = vmatpush2.msra.mxu0 0.0
    %2697 = vmatprep.subr.mxu0 0.0
    %2698 = vmatpush2.msra.mxu0 0.0
    %2699 = vmatprep.subr.mxu0 0.0
    %2700 = vmatpush2.msra.mxu0 0.0
    %2701 = vmatprep.subr.mxu0 0.0
    %2702 = vmatpush2.msra.mxu0 0.0
    %2703 = vmatprep.subr.mxu0 0.0
    %2704 = vmatpush2.msra.mxu0 0.0
    %2705 = vmatprep.mubr.f32.mxu0 0.0
    %2706 = vmatmul.mubr.f32.gmra.mxu0 %v2639
    %v2707 = vpop.f32.mrf.mxu0
    %v2708 = vadd.f32 0.0, %v2707
    %v2709 = vpop.f32.mrf.mxu0
    %2710 = vdwg.mxu0
    %2711 = vrot.lane.b32.xlu0 %v1851, 64
    %v2712 = vpop.permute.xlu0 %2711
    %v2715 = vsel %vm1864, %v2553, 0
    %2717 = vmatprep.subr.mxu0 0.0
    %2718 = vmatpush1.msra.mxu0 0.0
    %2719 = vmatprep.subr.mxu0 0.0
    %2720 = vmatpush1.msra.mxu0 0.0
    %2721 = vmatprep.subr.mxu0 0.0
    %2722 = vmatpush1.msra.mxu0 0.0
    %2723 = vmatprep.subr.mxu0 0.0
    %2724 = vmatpush1.msra.mxu0 0.0
    %2725 = vmatprep.subr.mxu0 0.0
    %2726 = vmatpush1.msra.mxu0 0.0
    %2727 = vmatprep.subr.mxu0 0.0
    %2728 = vmatpush1.msra.mxu0 0.0
    %2729 = vmatprep.subr.mxu0 0.0
    %2730 = vmatpush1.msra.mxu0 0.0
    %2731 = vmatprep.subr.mxu0 0.0
    %2732 = vmatpush1.msra.mxu0 0.0
    %2733 = vmatprep.subr.mxu0 0.0
    %2734 = vmatpush1.msra.mxu0 0.0
    %2735 = vmatprep.subr.mxu0 0.0
    %2736 = vmatpush1.msra.mxu0 0.0
    %2737 = vmatprep.subr.mxu0 0.0
    %2738 = vmatpush1.msra.mxu0 0.0
    %2739 = vmatprep.subr.mxu0 0.0
    %2740 = vmatpush1.msra.mxu0 0.0
    %2741 = vmatprep.subr.mxu0 0.0
    %2742 = vmatpush1.msra.mxu0 0.0
    %2743 = vmatprep.subr.mxu0 0.0
    %2744 = vmatpush1.msra.mxu0 0.0
    %2745 = vmatprep.subr.mxu0 0.0
    %2746 = vmatpush1.msra.mxu0 0.0
    %2747 = vmatprep.subr.mxu0 0.0
    %2748 = vmatpush1.msra.mxu0 %v2712
    %2749 = vmatprep.subr.mxu0 0.0
    %2750 = vmatpush2.msra.mxu0 0.0
    %2751 = vmatprep.subr.mxu0 0.0
    %2752 = vmatpush2.msra.mxu0 0.0
    %2753 = vmatprep.subr.mxu0 0.0
    %2754 = vmatpush2.msra.mxu0 0.0
    %2755 = vmatprep.subr.mxu0 0.0
    %2756 = vmatpush2.msra.mxu0 0.0
    %2757 = vmatprep.subr.mxu0 0.0
    %2758 = vmatpush2.msra.mxu0 0.0
    %2759 = vmatprep.subr.mxu0 0.0
    %2760 = vmatpush2.msra.mxu0 0.0
    %2761 = vmatprep.subr.mxu0 0.0
    %2762 = vmatpush2.msra.mxu0 0.0
    %2763 = vmatprep.subr.mxu0 0.0
    %2764 = vmatpush2.msra.mxu0 0.0
    %2765 = vmatprep.subr.mxu0 0.0
    %2766 = vmatpush2.msra.mxu0 0.0
    %2767 = vmatprep.subr.mxu0 0.0
    %2768 = vmatpush2.msra.mxu0 0.0
    %2769 = vmatprep.subr.mxu0 0.0
    %2770 = vmatpush2.msra.mxu0 0.0
    %2771 = vmatprep.subr.mxu0 0.0
    %2772 = vmatpush2.msra.mxu0 0.0
    %2773 = vmatprep.subr.mxu0 0.0
    %2774 = vmatpush2.msra.mxu0 0.0
    %2775 = vmatprep.subr.mxu0 0.0
    %2776 = vmatpush2.msra.mxu0 0.0
    %2777 = vmatprep.subr.mxu0 0.0
    %2778 = vmatpush2.msra.mxu0 0.0
    %2779 = vmatprep.subr.mxu0 0.0
    %2780 = vmatpush2.msra.mxu0 0.0
    %2781 = vmatprep.mubr.f32.mxu0 0.0
    %2782 = vmatmul.mubr.f32.gmra.mxu0 %v2715
    %v2783 = vpop.f32.mrf.mxu0
    %v2784 = vadd.f32 0.0, %v2783
    %v2785 = vpop.f32.mrf.mxu0
    %2786 = vdwg.mxu0
    %2787 = vrot.lane.b32.xlu0 %v1853, 64
    %v2788 = vpop.permute.xlu0 %2787
    %v2791 = vsel %vm1864, %v2554, 0
    %2793 = vmatprep.subr.mxu0 0.0
    %2794 = vmatpush1.msra.mxu0 0.0
    %2795 = vmatprep.subr.mxu0 0.0
    %2796 = vmatpush1.msra.mxu0 0.0
    %2797 = vmatprep.subr.mxu0 0.0
    %2798 = vmatpush1.msra.mxu0 0.0
    %2799 = vmatprep.subr.mxu0 0.0
    %2800 = vmatpush1.msra.mxu0 0.0
    %2801 = vmatprep.subr.mxu0 0.0
    %2802 = vmatpush1.msra.mxu0 0.0
    %2803 = vmatprep.subr.mxu0 0.0
    %2804 = vmatpush1.msra.mxu0 0.0
    %2805 = vmatprep.subr.mxu0 0.0
    %2806 = vmatpush1.msra.mxu0 0.0
    %2807 = vmatprep.subr.mxu0 0.0
    %2808 = vmatpush1.msra.mxu0 0.0
    %2809 = vmatprep.subr.mxu0 0.0
    %2810 = vmatpush1.msra.mxu0 0.0
    %2811 = vmatprep.subr.mxu0 0.0
    %2812 = vmatpush1.msra.mxu0 0.0
    %2813 = vmatprep.subr.mxu0 0.0
    %2814 = vmatpush1.msra.mxu0 0.0
    %2815 = vmatprep.subr.mxu0 0.0
    %2816 = vmatpush1.msra.mxu0 0.0
    %2817 = vmatprep.subr.mxu0 0.0
    %2818 = vmatpush1.msra.mxu0 0.0
    %2819 = vmatprep.subr.mxu0 0.0
    %2820 = vmatpush1.msra.mxu0 0.0
    %2821 = vmatprep.subr.mxu0 0.0
    %2822 = vmatpush1.msra.mxu0 0.0
    %2823 = vmatprep.subr.mxu0 0.0
    %2824 = vmatpush1.msra.mxu0 %v2788
    %2825 = vmatprep.subr.mxu0 0.0
    %2826 = vmatpush2.msra.mxu0 0.0
    %2827 = vmatprep.subr.mxu0 0.0
    %2828 = vmatpush2.msra.mxu0 0.0
    %2829 = vmatprep.subr.mxu0 0.0
    %2830 = vmatpush2.msra.mxu0 0.0
    %2831 = vmatprep.subr.mxu0 0.0
    %2832 = vmatpush2.msra.mxu0 0.0
    %2833 = vmatprep.subr.mxu0 0.0
    %2834 = vmatpush2.msra.mxu0 0.0
    %2835 = vmatprep.subr.mxu0 0.0
    %2836 = vmatpush2.msra.mxu0 0.0
    %2837 = vmatprep.subr.mxu0 0.0
    %2838 = vmatpush2.msra.mxu0 0.0
    %2839 = vmatprep.subr.mxu0 0.0
    %2840 = vmatpush2.msra.mxu0 0.0
    %2841 = vmatprep.subr.mxu0 0.0
    %2842 = vmatpush2.msra.mxu0 0.0
    %2843 = vmatprep.subr.mxu0 0.0
    %2844 = vmatpush2.msra.mxu0 0.0
    %2845 = vmatprep.subr.mxu0 0.0
    %2846 = vmatpush2.msra.mxu0 0.0
    %2847 = vmatprep.subr.mxu0 0.0
    %2848 = vmatpush2.msra.mxu0 0.0
    %2849 = vmatprep.subr.mxu0 0.0
    %2850 = vmatpush2.msra.mxu0 0.0
    %2851 = vmatprep.subr.mxu0 0.0
    %2852 = vmatpush2.msra.mxu0 0.0
    %2853 = vmatprep.subr.mxu0 0.0
    %2854 = vmatpush2.msra.mxu0 0.0
    %2855 = vmatprep.subr.mxu0 0.0
    %2856 = vmatpush2.msra.mxu0 0.0
    %2857 = vmatprep.mubr.f32.mxu0 0.0
    %2858 = vmatmul.mubr.f32.gmra.mxu0 %v2791
    %v2859 = vpop.f32.mrf.mxu0
    %v2860 = vadd.f32 0.0, %v2859
    %v2861 = vpop.f32.mrf.mxu0
    %2862 = vdwg.mxu0
    %2863 = vrot.lane.b32.xlu0 %v1855, 64
    %v2864 = vpop.permute.xlu0 %2863
    %v2867 = vsel %vm1864, %v2555, 0
    %2869 = vmatprep.subr.mxu0 0.0
    %2870 = vmatpush1.msra.mxu0 0.0
    %2871 = vmatprep.subr.mxu0 0.0
    %2872 = vmatpush1.msra.mxu0 0.0
    %2873 = vmatprep.subr.mxu0 0.0
    %2874 = vmatpush1.msra.mxu0 0.0
    %2875 = vmatprep.subr.mxu0 0.0
    %2876 = vmatpush1.msra.mxu0 0.0
    %2877 = vmatprep.subr.mxu0 0.0
    %2878 = vmatpush1.msra.mxu0 0.0
    %2879 = vmatprep.subr.mxu0 0.0
    %2880 = vmatpush1.msra.mxu0 0.0
    %2881 = vmatprep.subr.mxu0 0.0
    %2882 = vmatpush1.msra.mxu0 0.0
    %2883 = vmatprep.subr.mxu0 0.0
    %2884 = vmatpush1.msra.mxu0 0.0
    %2885 = vmatprep.subr.mxu0 0.0
    %2886 = vmatpush1.msra.mxu0 0.0
    %2887 = vmatprep.subr.mxu0 0.0
    %2888 = vmatpush1.msra.mxu0 0.0
    %2889 = vmatprep.subr.mxu0 0.0
    %2890 = vmatpush1.msra.mxu0 0.0
    %2891 = vmatprep.subr.mxu0 0.0
    %2892 = vmatpush1.msra.mxu0 0.0
    %2893 = vmatprep.subr.mxu0 0.0
    %2894 = vmatpush1.msra.mxu0 0.0
    %2895 = vmatprep.subr.mxu0 0.0
    %2896 = vmatpush1.msra.mxu0 0.0
    %2897 = vmatprep.subr.mxu0 0.0
    %2898 = vmatpush1.msra.mxu0 0.0
    %2899 = vmatprep.subr.mxu0 0.0
    %2900 = vmatpush1.msra.mxu0 %v2864
    %2901 = vmatprep.subr.mxu0 0.0
    %2902 = vmatpush2.msra.mxu0 0.0
    %2903 = vmatprep.subr.mxu0 0.0
    %2904 = vmatpush2.msra.mxu0 0.0
    %2905 = vmatprep.subr.mxu0 0.0
    %2906 = vmatpush2.msra.mxu0 0.0
    %2907 = vmatprep.subr.mxu0 0.0
    %2908 = vmatpush2.msra.mxu0 0.0
    %2909 = vmatprep.subr.mxu0 0.0
    %2910 = vmatpush2.msra.mxu0 0.0
    %2911 = vmatprep.subr.mxu0 0.0
    %2912 = vmatpush2.msra.mxu0 0.0
    %2913 = vmatprep.subr.mxu0 0.0
    %2914 = vmatpush2.msra.mxu0 0.0
    %2915 = vmatprep.subr.mxu0 0.0
    %2916 = vmatpush2.msra.mxu0 0.0
    %2917 = vmatprep.subr.mxu0 0.0
    %2918 = vmatpush2.msra.mxu0 0.0
    %2919 = vmatprep.subr.mxu0 0.0
    %2920 = vmatpush2.msra.mxu0 0.0
    %2921 = vmatprep.subr.mxu0 0.0
    %2922 = vmatpush2.msra.mxu0 0.0
    %2923 = vmatprep.subr.mxu0 0.0
    %2924 = vmatpush2.msra.mxu0 0.0
    %2925 = vmatprep.subr.mxu0 0.0
    %2926 = vmatpush2.msra.mxu0 0.0
    %2927 = vmatprep.subr.mxu0 0.0
    %2928 = vmatpush2.msra.mxu0 0.0
    %2929 = vmatprep.subr.mxu0 0.0
    %2930 = vmatpush2.msra.mxu0 0.0
    %2931 = vmatprep.subr.mxu0 0.0
    %2932 = vmatpush2.msra.mxu0 0.0
    %2933 = vmatprep.mubr.f32.mxu0 0.0
    %2934 = vmatmul.mubr.f32.gmra.mxu0 %v2867
    %v2935 = vpop.f32.mrf.mxu0
    %v2936 = vadd.f32 0.0, %v2935
    %v2937 = vpop.f32.mrf.mxu0
    %2938 = vdwg.mxu0
    %2939 = vrot.lane.b32.xlu0 %v1857, 64
    %v2940 = vpop.permute.xlu0 %2939
    %v2943 = vsel %vm1864, %v2556, 0
    %2945 = vmatprep.subr.mxu0 0.0
    %2946 = vmatpush1.msra.mxu0 0.0
    %2947 = vmatprep.subr.mxu0 0.0
    %2948 = vmatpush1.msra.mxu0 0.0
    %2949 = vmatprep.subr.mxu0 0.0
    %2950 = vmatpush1.msra.mxu0 0.0
    %2951 = vmatprep.subr.mxu0 0.0
    %2952 = vmatpush1.msra.mxu0 0.0
    %2953 = vmatprep.subr.mxu0 0.0
    %2954 = vmatpush1.msra.mxu0 0.0
    %2955 = vmatprep.subr.mxu0 0.0
    %2956 = vmatpush1.msra.mxu0 0.0
    %2957 = vmatprep.subr.mxu0 0.0
    %2958 = vmatpush1.msra.mxu0 0.0
    %2959 = vmatprep.subr.mxu0 0.0
    %2960 = vmatpush1.msra.mxu0 0.0
    %2961 = vmatprep.subr.mxu0 0.0
    %2962 = vmatpush1.msra.mxu0 0.0
    %2963 = vmatprep.subr.mxu0 0.0
    %2964 = vmatpush1.msra.mxu0 0.0
    %2965 = vmatprep.subr.mxu0 0.0
    %2966 = vmatpush1.msra.mxu0 0.0
    %2967 = vmatprep.subr.mxu0 0.0
    %2968 = vmatpush1.msra.mxu0 0.0
    %2969 = vmatprep.subr.mxu0 0.0
    %2970 = vmatpush1.msra.mxu0 0.0
    %2971 = vmatprep.subr.mxu0 0.0
    %2972 = vmatpush1.msra.mxu0 0.0
    %2973 = vmatprep.subr.mxu0 0.0
    %2974 = vmatpush1.msra.mxu0 0.0
    %2975 = vmatprep.subr.mxu0 0.0
    %2976 = vmatpush1.msra.mxu0 %v2940
    %2977 = vmatprep.subr.mxu0 0.0
    %2978 = vmatpush2.msra.mxu0 0.0
    %2979 = vmatprep.subr.mxu0 0.0
    %2980 = vmatpush2.msra.mxu0 0.0
    %2981 = vmatprep.subr.mxu0 0.0
    %2982 = vmatpush2.msra.mxu0 0.0
    %2983 = vmatprep.subr.mxu0 0.0
    %2984 = vmatpush2.msra.mxu0 0.0
    %2985 = vmatprep.subr.mxu0 0.0
    %2986 = vmatpush2.msra.mxu0 0.0
    %2987 = vmatprep.subr.mxu0 0.0
    %2988 = vmatpush2.msra.mxu0 0.0
    %2989 = vmatprep.subr.mxu0 0.0
    %2990 = vmatpush2.msra.mxu0 0.0
    %2991 = vmatprep.subr.mxu0 0.0
    %2992 = vmatpush2.msra.mxu0 0.0
    %2993 = vmatprep.subr.mxu0 0.0
    %2994 = vmatpush2.msra.mxu0 0.0
    %2995 = vmatprep.subr.mxu0 0.0
    %2996 = vmatpush2.msra.mxu0 0.0
    %2997 = vmatprep.subr.mxu0 0.0
    %2998 = vmatpush2.msra.mxu0 0.0
    %2999 = vmatprep.subr.mxu0 0.0
    %3000 = vmatpush2.msra.mxu0 0.0
    %3001 = vmatprep.subr.mxu0 0.0
    %3002 = vmatpush2.msra.mxu0 0.0
    %3003 = vmatprep.subr.mxu0 0.0
    %3004 = vmatpush2.msra.mxu0 0.0
    %3005 = vmatprep.subr.mxu0 0.0
    %3006 = vmatpush2.msra.mxu0 0.0
    %3007 = vmatprep.subr.mxu0 0.0
    %3008 = vmatpush2.msra.mxu0 0.0
    %3009 = vmatprep.mubr.f32.mxu0 0.0
    %3010 = vmatmul.mubr.f32.gmra.mxu0 %v2943
    %v3011 = vpop.f32.mrf.mxu0
    %v3012 = vadd.f32 0.0, %v3011
    %v3013 = vpop.f32.mrf.mxu0
    %3014 = vdwg.mxu0
    %3015 = vrot.lane.b32.xlu0 %v1859, 64
    %v3016 = vpop.permute.xlu0 %3015
    %v3019 = vsel %vm1864, %v2557, 0
    %3021 = vmatprep.subr.mxu0 0.0
    %3022 = vmatpush1.msra.mxu0 0.0
    %3023 = vmatprep.subr.mxu0 0.0
    %3024 = vmatpush1.msra.mxu0 0.0
    %3025 = vmatprep.subr.mxu0 0.0
    %3026 = vmatpush1.msra.mxu0 0.0
    %3027 = vmatprep.subr.mxu0 0.0
    %3028 = vmatpush1.msra.mxu0 0.0
    %3029 = vmatprep.subr.mxu0 0.0
    %3030 = vmatpush1.msra.mxu0 0.0
    %3031 = vmatprep.subr.mxu0 0.0
    %3032 = vmatpush1.msra.mxu0 0.0
    %3033 = vmatprep.subr.mxu0 0.0
    %3034 = vmatpush1.msra.mxu0 0.0
    %3035 = vmatprep.subr.mxu0 0.0
    %3036 = vmatpush1.msra.mxu0 0.0
    %3037 = vmatprep.subr.mxu0 0.0
    %3038 = vmatpush1.msra.mxu0 0.0
    %3039 = vmatprep.subr.mxu0 0.0
    %3040 = vmatpush1.msra.mxu0 0.0
    %3041 = vmatprep.subr.mxu0 0.0
    %3042 = vmatpush1.msra.mxu0 0.0
    %3043 = vmatprep.subr.mxu0 0.0
    %3044 = vmatpush1.msra.mxu0 0.0
    %3045 = vmatprep.subr.mxu0 0.0
    %3046 = vmatpush1.msra.mxu0 0.0
    %3047 = vmatprep.subr.mxu0 0.0
    %3048 = vmatpush1.msra.mxu0 0.0
    %3049 = vmatprep.subr.mxu0 0.0
    %3050 = vmatpush1.msra.mxu0 0.0
    %3051 = vmatprep.subr.mxu0 0.0
    %3052 = vmatpush1.msra.mxu0 %v3016
    %3053 = vmatprep.subr.mxu0 0.0
    %3054 = vmatpush2.msra.mxu0 0.0
    %3055 = vmatprep.subr.mxu0 0.0
    %3056 = vmatpush2.msra.mxu0 0.0
    %3057 = vmatprep.subr.mxu0 0.0
    %3058 = vmatpush2.msra.mxu0 0.0
    %3059 = vmatprep.subr.mxu0 0.0
    %3060 = vmatpush2.msra.mxu0 0.0
    %3061 = vmatprep.subr.mxu0 0.0
    %3062 = vmatpush2.msra.mxu0 0.0
    %3063 = vmatprep.subr.mxu0 0.0
    %3064 = vmatpush2.msra.mxu0 0.0
    %3065 = vmatprep.subr.mxu0 0.0
    %3066 = vmatpush2.msra.mxu0 0.0
    %3067 = vmatprep.subr.mxu0 0.0
    %3068 = vmatpush2.msra.mxu0 0.0
    %3069 = vmatprep.subr.mxu0 0.0
    %3070 = vmatpush2.msra.mxu0 0.0
    %3071 = vmatprep.subr.mxu0 0.0
    %3072 = vmatpush2.msra.mxu0 0.0
    %3073 = vmatprep.subr.mxu0 0.0
    %3074 = vmatpush2.msra.mxu0 0.0
    %3075 = vmatprep.subr.mxu0 0.0
    %3076 = vmatpush2.msra.mxu0 0.0
    %3077 = vmatprep.subr.mxu0 0.0
    %3078 = vmatpush2.msra.mxu0 0.0
    %3079 = vmatprep.subr.mxu0 0.0
    %3080 = vmatpush2.msra.mxu0 0.0
    %3081 = vmatprep.subr.mxu0 0.0
    %3082 = vmatpush2.msra.mxu0 0.0
    %3083 = vmatprep.subr.mxu0 0.0
    %3084 = vmatpush2.msra.mxu0 0.0
    %3085 = vmatprep.mubr.f32.mxu0 0.0
    %3086 = vmatmul.mubr.f32.gmra.mxu0 %v3019
    %v3087 = vpop.f32.mrf.mxu0
    %v3088 = vadd.f32 0.0, %v3087
    %v3089 = vpop.f32.mrf.mxu0
    %3090 = vdwg.mxu0
    %3091 = vrot.lane.b32.xlu0 %v1861, 64
    %v3092 = vpop.permute.xlu0 %3091
    %v3095 = vsel %vm1864, %v2558, 0
    %3097 = vmatprep.subr.mxu0 0.0
    %3098 = vmatpush1.msra.mxu0 0.0
    %3099 = vmatprep.subr.mxu0 0.0
    %3100 = vmatpush1.msra.mxu0 0.0
    %3101 = vmatprep.subr.mxu0 0.0
    %3102 = vmatpush1.msra.mxu0 0.0
    %3103 = vmatprep.subr.mxu0 0.0
    %3104 = vmatpush1.msra.mxu0 0.0
    %3105 = vmatprep.subr.mxu0 0.0
    %3106 = vmatpush1.msra.mxu0 0.0
    %3107 = vmatprep.subr.mxu0 0.0
    %3108 = vmatpush1.msra.mxu0 0.0
    %3109 = vmatprep.subr.mxu0 0.0
    %3110 = vmatpush1.msra.mxu0 0.0
    %3111 = vmatprep.subr.mxu0 0.0
    %3112 = vmatpush1.msra.mxu0 0.0
    %3113 = vmatprep.subr.mxu0 0.0
    %3114 = vmatpush1.msra.mxu0 0.0
    %3115 = vmatprep.subr.mxu0 0.0
    %3116 = vmatpush1.msra.mxu0 0.0
    %3117 = vmatprep.subr.mxu0 0.0
    %3118 = vmatpush1.msra.mxu0 0.0
    %3119 = vmatprep.subr.mxu0 0.0
    %3120 = vmatpush1.msra.mxu0 0.0
    %3121 = vmatprep.subr.mxu0 0.0
    %3122 = vmatpush1.msra.mxu0 0.0
    %3123 = vmatprep.subr.mxu0 0.0
    %3124 = vmatpush1.msra.mxu0 0.0
    %3125 = vmatprep.subr.mxu0 0.0
    %3126 = vmatpush1.msra.mxu0 0.0
    %3127 = vmatprep.subr.mxu0 0.0
    %3128 = vmatpush1.msra.mxu0 %v3092
    %3129 = vmatprep.subr.mxu0 0.0
    %3130 = vmatpush2.msra.mxu0 0.0
    %3131 = vmatprep.subr.mxu0 0.0
    %3132 = vmatpush2.msra.mxu0 0.0
    %3133 = vmatprep.subr.mxu0 0.0
    %3134 = vmatpush2.msra.mxu0 0.0
    %3135 = vmatprep.subr.mxu0 0.0
    %3136 = vmatpush2.msra.mxu0 0.0
    %3137 = vmatprep.subr.mxu0 0.0
    %3138 = vmatpush2.msra.mxu0 0.0
    %3139 = vmatprep.subr.mxu0 0.0
    %3140 = vmatpush2.msra.mxu0 0.0
    %3141 = vmatprep.subr.mxu0 0.0
    %3142 = vmatpush2.msra.mxu0 0.0
    %3143 = vmatprep.subr.mxu0 0.0
    %3144 = vmatpush2.msra.mxu0 0.0
    %3145 = vmatprep.subr.mxu0 0.0
    %3146 = vmatpush2.msra.mxu0 0.0
    %3147 = vmatprep.subr.mxu0 0.0
    %3148 = vmatpush2.msra.mxu0 0.0
    %3149 = vmatprep.subr.mxu0 0.0
    %3150 = vmatpush2.msra.mxu0 0.0
    %3151 = vmatprep.subr.mxu0 0.0
    %3152 = vmatpush2.msra.mxu0 0.0
    %3153 = vmatprep.subr.mxu0 0.0
    %3154 = vmatpush2.msra.mxu0 0.0
    %3155 = vmatprep.subr.mxu0 0.0
    %3156 = vmatpush2.msra.mxu0 0.0
    %3157 = vmatprep.subr.mxu0 0.0
    %3158 = vmatpush2.msra.mxu0 0.0
    %3159 = vmatprep.subr.mxu0 0.0
    %3160 = vmatpush2.msra.mxu0 0.0
    %3161 = vmatprep.mubr.f32.mxu0 0.0
    %3162 = vmatmul.mubr.f32.gmra.mxu0 %v3095
    %v3163 = vpop.f32.mrf.mxu0
    %v3164 = vadd.f32 0.0, %v3163
    %v3165 = vpop.f32.mrf.mxu0
    %3166 = vdwg.mxu0
    %3169 = vrot.lane.b32.xlu0 %v2784, 8
    %v3170 = vpop.permute.xlu0 %3169
    %3171 = vrot.lane.b32.xlu0 %v2860, 8
    %v3172 = vpop.permute.xlu0 %3171
    %3177 = vrot.lane.b32.xlu0 %v2936, 16
    %v3178 = vpop.permute.xlu0 %3177
    %3179 = vrot.lane.b32.xlu0 %v3012, 16
    %v3180 = vpop.permute.xlu0 %3179
    %3185 = vrot.lane.b32.xlu0 %v3088, 24
    %v3186 = vpop.permute.xlu0 %3185
    %3187 = vrot.lane.b32.xlu0 %v3164, 24
    %v3188 = vpop.permute.xlu0 %3187
    %v3191 = vsel %vm1864, %v2632, %v3170
    %v3192 = vsel %vm1864, %v2708, %v3172
    %v3193 = vsel %vm1355, %v3191, %v3178
    %v3194 = vsel %vm1355, %v3192, %v3180
    %vm3195 = vcmask 195584
    %v3196 = vsel %vm3195, %v3193, %v3186
    %v3197 = vsel %vm3195, %v3194, %v3188
    %v3198 = vld [vmem:[#allocation4 + $0x98] sm:$0xff]
    %v3199 = vld [vmem:[#allocation4 + $0xa0] sm:$0xff]
    %v3200 = vld [vmem:[#allocation4 + $0xa8] sm:$0xff]
    %v3201 = vld [vmem:[#allocation4 + $0xb0] sm:$0xff]
    %v3202 = vld [vmem:[#allocation4 + $0xb8] sm:$0x1]
    %v3203 = vlaneseq
    %v3204 = vshrl.u32 %v3203, 7
    %v3205 = vsub.s32 0, %v3204
    %v3206 = vrot.slane %v3202, %v3205
    %v3208 = vsel %vm50, %v3196, 0
    %v3211 = vsel %vm50, %v3197, 0
    %3213 = vmatprep.subr.mxu0 0.0
    %3214 = vmatpush1.msra.mxu0 0.0
    %3215 = vmatprep.subr.mxu0 0.0
    %3216 = vmatpush1.msra.mxu0 0.0
    %3217 = vmatprep.subr.mxu0 0.0
    %3218 = vmatpush1.msra.mxu0 0.0
    %3219 = vmatprep.subr.mxu0 0.0
    %3220 = vmatpush1.msra.mxu0 0.0
    %3221 = vmatprep.subr.mxu0 0.0
    %3222 = vmatpush1.msra.mxu0 0.0
    %3223 = vmatprep.subr.mxu0 0.0
    %3224 = vmatpush1.msra.mxu0 0.0
    %3225 = vmatprep.subr.mxu0 0.0
    %3226 = vmatpush1.msra.mxu0 0.0
    %3227 = vmatprep.subr.mxu0 0.0
    %3228 = vmatpush1.msra.mxu0 0.0
    %3229 = vmatprep.subr.mxu0 0.0
    %3230 = vmatpush1.msra.mxu0 0.0
    %3231 = vmatprep.subr.mxu0 0.0
    %3232 = vmatpush1.msra.mxu0 0.0
    %3233 = vmatprep.subr.mxu0 0.0
    %3234 = vmatpush1.msra.mxu0 0.0
    %3235 = vmatprep.subr.mxu0 0.0
    %3236 = vmatpush1.msra.mxu0 0.0
    %3237 = vmatprep.subr.mxu0 0.0
    %3238 = vmatpush1.msra.mxu0 %v3201
    %3239 = vmatprep.subr.mxu0 0.0
    %3240 = vmatpush1.msra.mxu0 %v3200
    %3241 = vmatprep.subr.mxu0 0.0
    %3242 = vmatpush1.msra.mxu0 %v3199
    %3243 = vmatprep.subr.mxu0 0.0
    %3244 = vmatpush1.msra.mxu0 %v3198
    %3245 = vmatprep.subr.mxu0 0.0
    %3246 = vmatpush2.msra.mxu0 0.0
    %3247 = vmatprep.subr.mxu0 0.0
    %3248 = vmatpush2.msra.mxu0 0.0
    %3249 = vmatprep.subr.mxu0 0.0
    %3250 = vmatpush2.msra.mxu0 0.0
    %3251 = vmatprep.subr.mxu0 0.0
    %3252 = vmatpush2.msra.mxu0 0.0
    %3253 = vmatprep.subr.mxu0 0.0
    %3254 = vmatpush2.msra.mxu0 0.0
    %3255 = vmatprep.subr.mxu0 0.0
    %3256 = vmatpush2.msra.mxu0 0.0
    %3257 = vmatprep.subr.mxu0 0.0
    %3258 = vmatpush2.msra.mxu0 0.0
    %3259 = vmatprep.subr.mxu0 0.0
    %3260 = vmatpush2.msra.mxu0 0.0
    %3261 = vmatprep.subr.mxu0 0.0
    %3262 = vmatpush2.msra.mxu0 0.0
    %3263 = vmatprep.subr.mxu0 0.0
    %3264 = vmatpush2.msra.mxu0 0.0
    %3265 = vmatprep.subr.mxu0 0.0
    %3266 = vmatpush2.msra.mxu0 0.0
    %3267 = vmatprep.subr.mxu0 0.0
    %3268 = vmatpush2.msra.mxu0 0.0
    %3269 = vmatprep.subr.mxu0 0.0
    %3270 = vmatpush2.msra.mxu0 0.0
    %3271 = vmatprep.subr.mxu0 0.0
    %3272 = vmatpush2.msra.mxu0 0.0
    %3273 = vmatprep.subr.mxu0 0.0
    %3274 = vmatpush2.msra.mxu0 0.0
    %3275 = vmatprep.subr.mxu0 0.0
    %3276 = vmatpush2.msra.mxu0 0.0
    %3277 = vmatprep.mubr.f32.mxu0 0.0
    %3278 = vmatmul.mubr.f32.gmra.mxu0 %v3208
    %v3279 = vpop.f32.mrf.mxu0
    %v3280 = vadd.f32 %v3206, %v3279
    %v3281 = vpop.f32.mrf.mxu0
    %3282 = vmatprep.mubr.f32.mxu0 0.0
    %3283 = vmatmul.mubr.f32.gmra.mxu0 %v3211
    %v3284 = vpop.f32.mrf.mxu0
    %v3285 = vadd.f32 %v3206, %v3284
    %v3286 = vpop.f32.mrf.mxu0
    %3287 = vdwg.mxu0
    %v3288 = vadd.f32 %v1756, %v3280
    %v3289 = vadd.f32 %v1757, %v3285
    %v3290 = vld [vmem:[#allocation4 + $0xc0] sm:$0x1]
    %v3291 = vld [vmem:[#allocation4 + $0xc8] sm:$0x1]
    %v3292 = vsel %vm50, %v3288, 0.0
    %3293 = vadd.xlane.f32.xlu0 %v3292
    %v3294 = vpop.xlane.xlu0 %3293
    %v3295 = vsel %vm50, %v3289, 0.0
    %3296 = vadd.xlane.f32.xlu0 %v3295
    %v3297 = vpop.xlane.xlu0 %3296
    %v3298 = vrcp.pop 32.0
    %v3299 = vmul.f32 %v3294, %v3298
    %v3300 = vmul.f32 %v3297, %v3298
    %v3301 = vsub.f32 %v3288, %v3299
    %v3302 = vsub.f32 %v3289, %v3300
    %v3303 = vmul.f32 %v3301, %v3301
    %v3304 = vmul.f32 %v3302, %v3302
    %v3305 = vsel %vm50, %v3303, 0.0
    %3306 = vadd.xlane.f32.xlu0 %v3305
    %v3307 = vpop.xlane.xlu0 %3306
    %v3308 = vsel %vm50, %v3304, 0.0
    %3309 = vadd.xlane.f32.xlu0 %v3308
    %v3310 = vpop.xlane.xlu0 %3309
    %v3311 = vmul.f32 %v3307, %v3298
    %v3312 = vmul.f32 %v3310, %v3298
    %v3313 = vadd.f32 %v3311, 1e-05
    %v3314 = vadd.f32 %v3312, 1e-05
    %v3315 = vrsqrt.pop %v3313
    %v3316 = vrsqrt.pop %v3314
    %v3317 = vmul.f32 %v3301, %v3315
    %v3318 = vmul.f32 %v3302, %v3316
    %v3319 = vlaneseq
    %v3320 = vshrl.u32 %v3319, 7
    %v3321 = vsub.s32 0, %v3320
    %v3322 = vrot.slane %v3290, %v3321
    %v3323 = vmul.f32 %v3317, %v3322
    %v3324 = vmul.f32 %v3318, %v3322
    %v3325 = vlaneseq
    %v3326 = vshrl.u32 %v3325, 7
    %v3327 = vsub.s32 0, %v3326
    %v3328 = vrot.slane %v3291, %v3327
    %v3329 = vadd.f32 %v3323, %v3328
    %v3330 = vadd.f32 %v3324, %v3328
    %v3331 = vld [vmem:[#allocation4 + $0xd0] sm:$0xff]
    %v3332 = vld [vmem:[#allocation4 + $0xd8] sm:$0xff]
    %v3333 = vld [vmem:[#allocation4 + $0xe0] sm:$0xff]
    %v3334 = vld [vmem:[#allocation4 + $0xe8] sm:$0xff]
    %v3335 = vld [vmem:[#allocation4 + $0xf0] sm:$0x1]
    %v3336 = vlaneseq
    %v3337 = vshrl.u32 %v3336, 7
    %v3338 = vsub.s32 0, %v3337
    %v3339 = vrot.slane %v3335, %v3338
    %v3341 = vsel %vm50, %v3329, 0
    %v3344 = vsel %vm50, %v3330, 0
    %3346 = vmatprep.subr.mxu0 0.0
    %3347 = vmatpush1.msra.mxu0 0.0
    %3348 = vmatprep.subr.mxu0 0.0
    %3349 = vmatpush1.msra.mxu0 0.0
    %3350 = vmatprep.subr.mxu0 0.0
    %3351 = vmatpush1.msra.mxu0 0.0
    %3352 = vmatprep.subr.mxu0 0.0
    %3353 = vmatpush1.msra.mxu0 0.0
    %3354 = vmatprep.subr.mxu0 0.0
    %3355 = vmatpush1.msra.mxu0 0.0
    %3356 = vmatprep.subr.mxu0 0.0
    %3357 = vmatpush1.msra.mxu0 0.0
    %3358 = vmatprep.subr.mxu0 0.0
    %3359 = vmatpush1.msra.mxu0 0.0
    %3360 = vmatprep.subr.mxu0 0.0
    %3361 = vmatpush1.msra.mxu0 0.0
    %3362 = vmatprep.subr.mxu0 0.0
    %3363 = vmatpush1.msra.mxu0 0.0
    %3364 = vmatprep.subr.mxu0 0.0
    %3365 = vmatpush1.msra.mxu0 0.0
    %3366 = vmatprep.subr.mxu0 0.0
    %3367 = vmatpush1.msra.mxu0 0.0
    %3368 = vmatprep.subr.mxu0 0.0
    %3369 = vmatpush1.msra.mxu0 0.0
    %3370 = vmatprep.subr.mxu0 0.0
    %3371 = vmatpush1.msra.mxu0 %v3334
    %3372 = vmatprep.subr.mxu0 0.0
    %3373 = vmatpush1.msra.mxu0 %v3333
    %3374 = vmatprep.subr.mxu0 0.0
    %3375 = vmatpush1.msra.mxu0 %v3332
    %3376 = vmatprep.subr.mxu0 0.0
    %3377 = vmatpush1.msra.mxu0 %v3331
    %3378 = vmatprep.subr.mxu0 0.0
    %3379 = vmatpush2.msra.mxu0 0.0
    %3380 = vmatprep.subr.mxu0 0.0
    %3381 = vmatpush2.msra.mxu0 0.0
    %3382 = vmatprep.subr.mxu0 0.0
    %3383 = vmatpush2.msra.mxu0 0.0
    %3384 = vmatprep.subr.mxu0 0.0
    %3385 = vmatpush2.msra.mxu0 0.0
    %3386 = vmatprep.subr.mxu0 0.0
    %3387 = vmatpush2.msra.mxu0 0.0
    %3388 = vmatprep.subr.mxu0 0.0
    %3389 = vmatpush2.msra.mxu0 0.0
    %3390 = vmatprep.subr.mxu0 0.0
    %3391 = vmatpush2.msra.mxu0 0.0
    %3392 = vmatprep.subr.mxu0 0.0
    %3393 = vmatpush2.msra.mxu0 0.0
    %3394 = vmatprep.subr.mxu0 0.0
    %3395 = vmatpush2.msra.mxu0 0.0
    %3396 = vmatprep.subr.mxu0 0.0
    %3397 = vmatpush2.msra.mxu0 0.0
    %3398 = vmatprep.subr.mxu0 0.0
    %3399 = vmatpush2.msra.mxu0 0.0
    %3400 = vmatprep.subr.mxu0 0.0
    %3401 = vmatpush2.msra.mxu0 0.0
    %3402 = vmatprep.subr.mxu0 0.0
    %3403 = vmatpush2.msra.mxu0 0.0
    %3404 = vmatprep.subr.mxu0 0.0
    %3405 = vmatpush2.msra.mxu0 0.0
    %3406 = vmatprep.subr.mxu0 0.0
    %3407 = vmatpush2.msra.mxu0 0.0
    %3408 = vmatprep.subr.mxu0 0.0
    %3409 = vmatpush2.msra.mxu0 0.0
    %3410 = vmatprep.mubr.f32.mxu0 0.0
    %3411 = vmatmul.mubr.f32.gmra.mxu0 %v3341
    %v3412 = vpop.f32.mrf.mxu0
    %v3413 = vadd.f32 %v3339, %v3412
    %v3414 = vpop.f32.mrf.mxu0
    %3415 = vmatprep.mubr.f32.mxu0 0.0
    %3416 = vmatmul.mubr.f32.gmra.mxu0 %v3344
    %v3417 = vpop.f32.mrf.mxu0
    %v3418 = vadd.f32 %v3339, %v3417
    %v3419 = vpop.f32.mrf.mxu0
    %3420 = vdwg.mxu0
    %v3421 = vmax.f32 %v3413, 0.0
    %v3422 = vmax.f32 %v3418, 0.0
    %v3423 = vld [vmem:[#allocation4 + $0xf8] sm:$0xff]
    %v3424 = vld [vmem:[#allocation4 + $0x100] sm:$0xff]
    %v3425 = vld [vmem:[#allocation4 + $0x108] sm:$0xff]
    %v3426 = vld [vmem:[#allocation4 + $0x110] sm:$0xff]
    %v3427 = vld [vmem:[#allocation4 + $0x118] sm:$0xff]
    %v3428 = vld [vmem:[#allocation4 + $0x120] sm:$0xff]
    %v3429 = vld [vmem:[#allocation4 + $0x128] sm:$0xff]
    %v3430 = vld [vmem:[#allocation4 + $0x130] sm:$0xff]
    %v3431 = vld [vmem:[#allocation4 + $0x138] sm:$0x1]
    %v3432 = vlaneseq
    %v3433 = vshrl.u32 %v3432, 7
    %v3434 = vsub.s32 0, %v3433
    %v3435 = vrot.slane %v3431, %v3434
    %vm3436 = vcmask 523264
    %v3438 = vsel %vm3436, %v3421, 0
    %v3441 = vsel %vm3436, %v3422, 0
    %3443 = vmatprep.subr.mxu0 0.0
    %3444 = vmatpush1.msra.mxu0 0.0
    %3445 = vmatprep.subr.mxu0 0.0
    %3446 = vmatpush1.msra.mxu0 0.0
    %3447 = vmatprep.subr.mxu0 0.0
    %3448 = vmatpush1.msra.mxu0 0.0
    %3449 = vmatprep.subr.mxu0 0.0
    %3450 = vmatpush1.msra.mxu0 0.0
    %3451 = vmatprep.subr.mxu0 0.0
    %3452 = vmatpush1.msra.mxu0 0.0
    %3453 = vmatprep.subr.mxu0 0.0
    %3454 = vmatpush1.msra.mxu0 0.0
    %3455 = vmatprep.subr.mxu0 0.0
    %3456 = vmatpush1.msra.mxu0 0.0
    %3457 = vmatprep.subr.mxu0 0.0
    %3458 = vmatpush1.msra.mxu0 0.0
    %3459 = vmatprep.subr.mxu0 0.0
    %3460 = vmatpush1.msra.mxu0 %v3430
    %3461 = vmatprep.subr.mxu0 0.0
    %3462 = vmatpush1.msra.mxu0 %v3429
    %3463 = vmatprep.subr.mxu0 0.0
    %3464 = vmatpush1.msra.mxu0 %v3428
    %3465 = vmatprep.subr.mxu0 0.0
    %3466 = vmatpush1.msra.mxu0 %v3427
    %3467 = vmatprep.subr.mxu0 0.0
    %3468 = vmatpush1.msra.mxu0 %v3426
    %3469 = vmatprep.subr.mxu0 0.0
    %3470 = vmatpush1.msra.mxu0 %v3425
    %3471 = vmatprep.subr.mxu0 0.0
    %3472 = vmatpush1.msra.mxu0 %v3424
    %3473 = vmatprep.subr.mxu0 0.0
    %3474 = vmatpush1.msra.mxu0 %v3423
    %3475 = vmatprep.subr.mxu0 0.0
    %3476 = vmatpush2.msra.mxu0 0.0
    %3477 = vmatprep.subr.mxu0 0.0
    %3478 = vmatpush2.msra.mxu0 0.0
    %3479 = vmatprep.subr.mxu0 0.0
    %3480 = vmatpush2.msra.mxu0 0.0
    %3481 = vmatprep.subr.mxu0 0.0
    %3482 = vmatpush2.msra.mxu0 0.0
    %3483 = vmatprep.subr.mxu0 0.0
    %3484 = vmatpush2.msra.mxu0 0.0
    %3485 = vmatprep.subr.mxu0 0.0
    %3486 = vmatpush2.msra.mxu0 0.0
    %3487 = vmatprep.subr.mxu0 0.0
    %3488 = vmatpush2.msra.mxu0 0.0
    %3489 = vmatprep.subr.mxu0 0.0
    %3490 = vmatpush2.msra.mxu0 0.0
    %3491 = vmatprep.subr.mxu0 0.0
    %3492 = vmatpush2.msra.mxu0 0.0
    %3493 = vmatprep.subr.mxu0 0.0
    %3494 = vmatpush2.msra.mxu0 0.0
    %3495 = vmatprep.subr.mxu0 0.0
    %3496 = vmatpush2.msra.mxu0 0.0
    %3497 = vmatprep.subr.mxu0 0.0
    %3498 = vmatpush2.msra.mxu0 0.0
    %3499 = vmatprep.subr.mxu0 0.0
    %3500 = vmatpush2.msra.mxu0 0.0
    %3501 = vmatprep.subr.mxu0 0.0
    %3502 = vmatpush2.msra.mxu0 0.0
    %3503 = vmatprep.subr.mxu0 0.0
    %3504 = vmatpush2.msra.mxu0 0.0
    %3505 = vmatprep.subr.mxu0 0.0
    %3506 = vmatpush2.msra.mxu0 0.0
    %3507 = vmatprep.mubr.f32.mxu0 0.0
    %3508 = vmatmul.mubr.f32.gmra.mxu0 %v3438
    %v3509 = vpop.f32.mrf.mxu0
    %v3510 = vadd.f32 %v3435, %v3509
    %v3511 = vpop.f32.mrf.mxu0
    %3512 = vmatprep.mubr.f32.mxu0 0.0
    %3513 = vmatmul.mubr.f32.gmra.mxu0 %v3441
    %v3514 = vpop.f32.mrf.mxu0
    %v3515 = vadd.f32 %v3435, %v3514
    %v3516 = vpop.f32.mrf.mxu0
    %3517 = vdwg.mxu0
    %v3518 = vadd.f32 %v3329, %v3510
    %v3519 = vadd.f32 %v3330, %v3515
    %v3520 = vld [vmem:[#allocation4 + $0x140] sm:$0x1]
    %v3521 = vld [vmem:[#allocation4 + $0x148] sm:$0x1]
    %v3522 = vsel %vm50, %v3518, 0.0
    %3523 = vadd.xlane.f32.xlu0 %v3522
    %v3524 = vpop.xlane.xlu0 %3523
    %v3525 = vsel %vm50, %v3519, 0.0
    %3526 = vadd.xlane.f32.xlu0 %v3525
    %v3527 = vpop.xlane.xlu0 %3526
    %v3528 = vmul.f32 %v3524, %v3298
    %v3529 = vmul.f32 %v3527, %v3298
    %v3530 = vsub.f32 %v3518, %v3528
    %v3531 = vsub.f32 %v3519, %v3529
    %v3532 = vmul.f32 %v3530, %v3530
    %v3533 = vmul.f32 %v3531, %v3531
    %v3534 = vsel %vm50, %v3532, 0.0
    %3535 = vadd.xlane.f32.xlu0 %v3534
    %v3536 = vpop.xlane.xlu0 %3535
    %v3537 = vsel %vm50, %v3533, 0.0
    %3538 = vadd.xlane.f32.xlu0 %v3537
    %v3539 = vpop.xlane.xlu0 %3538
    %v3540 = vmul.f32 %v3536, %v3298
    %v3541 = vmul.f32 %v3539, %v3298
    %v3542 = vadd.f32 %v3540, 1e-05
    %v3543 = vadd.f32 %v3541, 1e-05
    %v3544 = vrsqrt.pop %v3542
    %v3545 = vrsqrt.pop %v3543
    %v3546 = vmul.f32 %v3530, %v3544
    %v3547 = vmul.f32 %v3531, %v3545
    %v3548 = vlaneseq
    %v3549 = vshrl.u32 %v3548, 7
    %v3550 = vsub.s32 0, %v3549
    %v3551 = vrot.slane %v3520, %v3550
    %v3552 = vmul.f32 %v3546, %v3551
    %v3553 = vmul.f32 %v3547, %v3551
    %v3554 = vlaneseq
    %v3555 = vshrl.u32 %v3554, 7
    %v3556 = vsub.s32 0, %v3555
    %v3557 = vrot.slane %v3521, %v3556
    %v3558 = vadd.f32 %v3552, %v3557
    %v3559 = vadd.f32 %v3553, %v3557
    %v3560 = vld [vmem:[#allocation4 + $0x150] sm:$0xff]
    %v3561 = vld [vmem:[#allocation4 + $0x158] sm:$0xff]
    %v3562 = vld [vmem:[#allocation4 + $0x160] sm:$0xff]
    %v3563 = vld [vmem:[#allocation4 + $0x168] sm:$0xff]
    %v3564 = vld [vmem:[#allocation4 + $0x170] sm:$0x1]
    %v3565 = vlaneseq
    %v3566 = vshrl.u32 %v3565, 7
    %v3567 = vsub.s32 0, %v3566
    %v3568 = vrot.slane %v3564, %v3567
    %v3570 = vsel %vm50, %v3558, 0
    %v3573 = vsel %vm50, %v3559, 0
    %3575 = vmatprep.subr.mxu0 0.0
    %3576 = vmatpush1.msra.mxu0 0.0
    %3577 = vmatprep.subr.mxu0 0.0
    %3578 = vmatpush1.msra.mxu0 0.0
    %3579 = vmatprep.subr.mxu0 0.0
    %3580 = vmatpush1.msra.mxu0 0.0
    %3581 = vmatprep.subr.mxu0 0.0
    %3582 = vmatpush1.msra.mxu0 0.0
    %3583 = vmatprep.subr.mxu0 0.0
    %3584 = vmatpush1.msra.mxu0 0.0
    %3585 = vmatprep.subr.mxu0 0.0
    %3586 = vmatpush1.msra.mxu0 0.0
    %3587 = vmatprep.subr.mxu0 0.0
    %3588 = vmatpush1.msra.mxu0 0.0
    %3589 = vmatprep.subr.mxu0 0.0
    %3590 = vmatpush1.msra.mxu0 0.0
    %3591 = vmatprep.subr.mxu0 0.0
    %3592 = vmatpush1.msra.mxu0 0.0
    %3593 = vmatprep.subr.mxu0 0.0
    %3594 = vmatpush1.msra.mxu0 0.0
    %3595 = vmatprep.subr.mxu0 0.0
    %3596 = vmatpush1.msra.mxu0 0.0
    %3597 = vmatprep.subr.mxu0 0.0
    %3598 = vmatpush1.msra.mxu0 0.0
    %3599 = vmatprep.subr.mxu0 0.0
    %3600 = vmatpush1.msra.mxu0 %v3563
    %3601 = vmatprep.subr.mxu0 0.0
    %3602 = vmatpush1.msra.mxu0 %v3562
    %3603 = vmatprep.subr.mxu0 0.0
    %3604 = vmatpush1.msra.mxu0 %v3561
    %3605 = vmatprep.subr.mxu0 0.0
    %3606 = vmatpush1.msra.mxu0 %v3560
    %3607 = vmatprep.subr.mxu0 0.0
    %3608 = vmatpush2.msra.mxu0 0.0
    %3609 = vmatprep.subr.mxu0 0.0
    %3610 = vmatpush2.msra.mxu0 0.0
    %3611 = vmatprep.subr.mxu0 0.0
    %3612 = vmatpush2.msra.mxu0 0.0
    %3613 = vmatprep.subr.mxu0 0.0
    %3614 = vmatpush2.msra.mxu0 0.0
    %3615 = vmatprep.subr.mxu0 0.0
    %3616 = vmatpush2.msra.mxu0 0.0
    %3617 = vmatprep.subr.mxu0 0.0
    %3618 = vmatpush2.msra.mxu0 0.0
    %3619 = vmatprep.subr.mxu0 0.0
    %3620 = vmatpush2.msra.mxu0 0.0
    %3621 = vmatprep.subr.mxu0 0.0
    %3622 = vmatpush2.msra.mxu0 0.0
    %3623 = vmatprep.subr.mxu0 0.0
    %3624 = vmatpush2.msra.mxu0 0.0
    %3625 = vmatprep.subr.mxu0 0.0
    %3626 = vmatpush2.msra.mxu0 0.0
    %3627 = vmatprep.subr.mxu0 0.0
    %3628 = vmatpush2.msra.mxu0 0.0
    %3629 = vmatprep.subr.mxu0 0.0
    %3630 = vmatpush2.msra.mxu0 0.0
    %3631 = vmatprep.subr.mxu0 0.0
    %3632 = vmatpush2.msra.mxu0 0.0
    %3633 = vmatprep.subr.mxu0 0.0
    %3634 = vmatpush2.msra.mxu0 0.0
    %3635 = vmatprep.subr.mxu0 0.0
    %3636 = vmatpush2.msra.mxu0 0.0
    %3637 = vmatprep.subr.mxu0 0.0
    %3638 = vmatpush2.msra.mxu0 0.0
    %3639 = vmatprep.mubr.f32.mxu0 0.0
    %3640 = vmatmul.mubr.f32.gmra.mxu0 %v3570
    %v3641 = vpop.f32.mrf.mxu0
    %v3642 = vadd.f32 %v3568, %v3641
    %v3643 = vpop.f32.mrf.mxu0
    %3644 = vmatprep.mubr.f32.mxu0 0.0
    %3645 = vmatmul.mubr.f32.gmra.mxu0 %v3573
    %v3646 = vpop.f32.mrf.mxu0
    %v3647 = vadd.f32 %v3568, %v3646
    %v3648 = vpop.f32.mrf.mxu0
    %3649 = vdwg.mxu0
    %3652 = vrot.lane.b32.xlu0 %v3642, 120
    %v3653 = vpop.permute.xlu0 %3652
    %3654 = vrot.lane.b32.xlu0 %v3647, 120
    %v3655 = vpop.permute.xlu0 %3654
    %3656 = vrot.lane.b32.xlu0 %v3642, 112
    %v3657 = vpop.permute.xlu0 %3656
    %3658 = vrot.lane.b32.xlu0 %v3647, 112
    %v3659 = vpop.permute.xlu0 %3658
    %3660 = vrot.lane.b32.xlu0 %v3642, 104
    %v3661 = vpop.permute.xlu0 %3660
    %3662 = vrot.lane.b32.xlu0 %v3647, 104
    %v3663 = vpop.permute.xlu0 %3662
    %3664 = vrot.lane.b32.xlu0 %v3642, 96
    %v3665 = vpop.permute.xlu0 %3664
    %v3666 = vsel %vm1864, %v3642, 0
    %v3668 = vsel %vm1864, %v3665, 0
    %3670 = vmatprep.subr.mxu0 0.0
    %3671 = vmatpush1.xpose.msra.mxu0 0.0
    %3672 = vmatprep.subr.mxu0 0.0
    %3673 = vmatpush1.xpose.msra.mxu0 0.0
    %3674 = vmatprep.subr.mxu0 0.0
    %3675 = vmatpush1.xpose.msra.mxu0 0.0
    %3676 = vmatprep.subr.mxu0 0.0
    %3677 = vmatpush1.xpose.msra.mxu0 0.0
    %3678 = vmatprep.subr.mxu0 0.0
    %3679 = vmatpush1.xpose.msra.mxu0 0.0
    %3680 = vmatprep.subr.mxu0 0.0
    %3681 = vmatpush1.xpose.msra.mxu0 0.0
    %3682 = vmatprep.subr.mxu0 0.0
    %3683 = vmatpush1.xpose.msra.mxu0 0.0
    %3684 = vmatprep.subr.mxu0 0.0
    %3685 = vmatpush1.xpose.msra.mxu0 0.0
    %3686 = vmatprep.subr.mxu0 0.0
    %3687 = vmatpush1.xpose.msra.mxu0 0.0
    %3688 = vmatprep.subr.mxu0 0.0
    %3689 = vmatpush1.xpose.msra.mxu0 0.0
    %3690 = vmatprep.subr.mxu0 0.0
    %3691 = vmatpush1.xpose.msra.mxu0 0.0
    %3692 = vmatprep.subr.mxu0 0.0
    %3693 = vmatpush1.xpose.msra.mxu0 0.0
    %3694 = vmatprep.subr.mxu0 0.0
    %3695 = vmatpush1.xpose.msra.mxu0 0.0
    %3696 = vmatprep.subr.mxu0 0.0
    %3697 = vmatpush1.xpose.msra.mxu0 0.0
    %3698 = vmatprep.subr.mxu0 0.0
    %3699 = vmatpush1.xpose.msra.mxu0 0.0
    %3700 = vmatprep.subr.mxu0 0.0
    %3701 = vmatpush1.xpose.msra.mxu0 %v3668
    %3702 = vmatprep.subr.mxu0 0.0
    %3703 = vmatpush2.xpose.msra.mxu0 0.0
    %3704 = vmatprep.subr.mxu0 0.0
    %3705 = vmatpush2.xpose.msra.mxu0 0.0
    %3706 = vmatprep.subr.mxu0 0.0
    %3707 = vmatpush2.xpose.msra.mxu0 0.0
    %3708 = vmatprep.subr.mxu0 0.0
    %3709 = vmatpush2.xpose.msra.mxu0 0.0
    %3710 = vmatprep.subr.mxu0 0.0
    %3711 = vmatpush2.xpose.msra.mxu0 0.0
    %3712 = vmatprep.subr.mxu0 0.0
    %3713 = vmatpush2.xpose.msra.mxu0 0.0
    %3714 = vmatprep.subr.mxu0 0.0
    %3715 = vmatpush2.xpose.msra.mxu0 0.0
    %3716 = vmatprep.subr.mxu0 0.0
    %3717 = vmatpush2.xpose.msra.mxu0 0.0
    %3718 = vmatprep.subr.mxu0 0.0
    %3719 = vmatpush2.xpose.msra.mxu0 0.0
    %3720 = vmatprep.subr.mxu0 0.0
    %3721 = vmatpush2.xpose.msra.mxu0 0.0
    %3722 = vmatprep.subr.mxu0 0.0
    %3723 = vmatpush2.xpose.msra.mxu0 0.0
    %3724 = vmatprep.subr.mxu0 0.0
    %3725 = vmatpush2.xpose.msra.mxu0 0.0
    %3726 = vmatprep.subr.mxu0 0.0
    %3727 = vmatpush2.xpose.msra.mxu0 0.0
    %3728 = vmatprep.subr.mxu0 0.0
    %3729 = vmatpush2.xpose.msra.mxu0 0.0
    %3730 = vmatprep.subr.mxu0 0.0
    %3731 = vmatpush2.xpose.msra.mxu0 0.0
    %3732 = vmatprep.subr.mxu0 0.0
    %3733 = vmatpush2.xpose.msra.mxu0 0.0
    %3734 = vmatprep.mubr.f32.mxu0 0.0
    %3735 = vmatmul.mubr.f32.gmra.mxu0 %v3666
    %v3736 = vpop.f32.mrf.mxu0
    %v3737 = vadd.f32 0.0, %v3736
    %v3738 = vpop.f32.mrf.mxu0
    %3739 = vdwg.mxu0
    %3740 = vrot.lane.b32.xlu0 %v3647, 96
    %v3741 = vpop.permute.xlu0 %3740
    %v3742 = vsel %vm1864, %v3647, 0
    %v3744 = vsel %vm1864, %v3741, 0
    %3746 = vmatprep.subr.mxu0 0.0
    %3747 = vmatpush1.xpose.msra.mxu0 0.0
    %3748 = vmatprep.subr.mxu0 0.0
    %3749 = vmatpush1.xpose.msra.mxu0 0.0
    %3750 = vmatprep.subr.mxu0 0.0
    %3751 = vmatpush1.xpose.msra.mxu0 0.0
    %3752 = vmatprep.subr.mxu0 0.0
    %3753 = vmatpush1.xpose.msra.mxu0 0.0
    %3754 = vmatprep.subr.mxu0 0.0
    %3755 = vmatpush1.xpose.msra.mxu0 0.0
    %3756 = vmatprep.subr.mxu0 0.0
    %3757 = vmatpush1.xpose.msra.mxu0 0.0
    %3758 = vmatprep.subr.mxu0 0.0
    %3759 = vmatpush1.xpose.msra.mxu0 0.0
    %3760 = vmatprep.subr.mxu0 0.0
    %3761 = vmatpush1.xpose.msra.mxu0 0.0
    %3762 = vmatprep.subr.mxu0 0.0
    %3763 = vmatpush1.xpose.msra.mxu0 0.0
    %3764 = vmatprep.subr.mxu0 0.0
    %3765 = vmatpush1.xpose.msra.mxu0 0.0
    %3766 = vmatprep.subr.mxu0 0.0
    %3767 = vmatpush1.xpose.msra.mxu0 0.0
    %3768 = vmatprep.subr.mxu0 0.0
    %3769 = vmatpush1.xpose.msra.mxu0 0.0
    %3770 = vmatprep.subr.mxu0 0.0
    %3771 = vmatpush1.xpose.msra.mxu0 0.0
    %3772 = vmatprep.subr.mxu0 0.0
    %3773 = vmatpush1.xpose.msra.mxu0 0.0
    %3774 = vmatprep.subr.mxu0 0.0
    %3775 = vmatpush1.xpose.msra.mxu0 0.0
    %3776 = vmatprep.subr.mxu0 0.0
    %3777 = vmatpush1.xpose.msra.mxu0 %v3744
    %3778 = vmatprep.subr.mxu0 0.0
    %3779 = vmatpush2.xpose.msra.mxu0 0.0
    %3780 = vmatprep.subr.mxu0 0.0
    %3781 = vmatpush2.xpose.msra.mxu0 0.0
    %3782 = vmatprep.subr.mxu0 0.0
    %3783 = vmatpush2.xpose.msra.mxu0 0.0
    %3784 = vmatprep.subr.mxu0 0.0
    %3785 = vmatpush2.xpose.msra.mxu0 0.0
    %3786 = vmatprep.subr.mxu0 0.0
    %3787 = vmatpush2.xpose.msra.mxu0 0.0
    %3788 = vmatprep.subr.mxu0 0.0
    %3789 = vmatpush2.xpose.msra.mxu0 0.0
    %3790 = vmatprep.subr.mxu0 0.0
    %3791 = vmatpush2.xpose.msra.mxu0 0.0
    %3792 = vmatprep.subr.mxu0 0.0
    %3793 = vmatpush2.xpose.msra.mxu0 0.0
    %3794 = vmatprep.subr.mxu0 0.0
    %3795 = vmatpush2.xpose.msra.mxu0 0.0
    %3796 = vmatprep.subr.mxu0 0.0
    %3797 = vmatpush2.xpose.msra.mxu0 0.0
    %3798 = vmatprep.subr.mxu0 0.0
    %3799 = vmatpush2.xpose.msra.mxu0 0.0
    %3800 = vmatprep.subr.mxu0 0.0
    %3801 = vmatpush2.xpose.msra.mxu0 0.0
    %3802 = vmatprep.subr.mxu0 0.0
    %3803 = vmatpush2.xpose.msra.mxu0 0.0
    %3804 = vmatprep.subr.mxu0 0.0
    %3805 = vmatpush2.xpose.msra.mxu0 0.0
    %3806 = vmatprep.subr.mxu0 0.0
    %3807 = vmatpush2.xpose.msra.mxu0 0.0
    %3808 = vmatprep.subr.mxu0 0.0
    %3809 = vmatpush2.xpose.msra.mxu0 0.0
    %3810 = vmatprep.mubr.f32.mxu0 0.0
    %3811 = vmatmul.mubr.f32.gmra.mxu0 %v3742
    %v3812 = vpop.f32.mrf.mxu0
    %v3813 = vadd.f32 0.0, %v3812
    %v3814 = vpop.f32.mrf.mxu0
    %3815 = vdwg.mxu0
    %3816 = vrot.lane.b32.xlu0 %v3653, 96
    %v3817 = vpop.permute.xlu0 %3816
    %v3818 = vsel %vm1864, %v3653, 0
    %v3820 = vsel %vm1864, %v3817, 0
    %3822 = vmatprep.subr.mxu0 0.0
    %3823 = vmatpush1.xpose.msra.mxu0 0.0
    %3824 = vmatprep.subr.mxu0 0.0
    %3825 = vmatpush1.xpose.msra.mxu0 0.0
    %3826 = vmatprep.subr.mxu0 0.0
    %3827 = vmatpush1.xpose.msra.mxu0 0.0
    %3828 = vmatprep.subr.mxu0 0.0
    %3829 = vmatpush1.xpose.msra.mxu0 0.0
    %3830 = vmatprep.subr.mxu0 0.0
    %3831 = vmatpush1.xpose.msra.mxu0 0.0
    %3832 = vmatprep.subr.mxu0 0.0
    %3833 = vmatpush1.xpose.msra.mxu0 0.0
    %3834 = vmatprep.subr.mxu0 0.0
    %3835 = vmatpush1.xpose.msra.mxu0 0.0
    %3836 = vmatprep.subr.mxu0 0.0
    %3837 = vmatpush1.xpose.msra.mxu0 0.0
    %3838 = vmatprep.subr.mxu0 0.0
    %3839 = vmatpush1.xpose.msra.mxu0 0.0
    %3840 = vmatprep.subr.mxu0 0.0
    %3841 = vmatpush1.xpose.msra.mxu0 0.0
    %3842 = vmatprep.subr.mxu0 0.0
    %3843 = vmatpush1.xpose.msra.mxu0 0.0
    %3844 = vmatprep.subr.mxu0 0.0
    %3845 = vmatpush1.xpose.msra.mxu0 0.0
    %3846 = vmatprep.subr.mxu0 0.0
    %3847 = vmatpush1.xpose.msra.mxu0 0.0
    %3848 = vmatprep.subr.mxu0 0.0
    %3849 = vmatpush1.xpose.msra.mxu0 0.0
    %3850 = vmatprep.subr.mxu0 0.0
    %3851 = vmatpush1.xpose.msra.mxu0 0.0
    %3852 = vmatprep.subr.mxu0 0.0
    %3853 = vmatpush1.xpose.msra.mxu0 %v3820
    %3854 = vmatprep.subr.mxu0 0.0
    %3855 = vmatpush2.xpose.msra.mxu0 0.0
    %3856 = vmatprep.subr.mxu0 0.0
    %3857 = vmatpush2.xpose.msra.mxu0 0.0
    %3858 = vmatprep.subr.mxu0 0.0
    %3859 = vmatpush2.xpose.msra.mxu0 0.0
    %3860 = vmatprep.subr.mxu0 0.0
    %3861 = vmatpush2.xpose.msra.mxu0 0.0
    %3862 = vmatprep.subr.mxu0 0.0
    %3863 = vmatpush2.xpose.msra.mxu0 0.0
    %3864 = vmatprep.subr.mxu0 0.0
    %3865 = vmatpush2.xpose.msra.mxu0 0.0
    %3866 = vmatprep.subr.mxu0 0.0
    %3867 = vmatpush2.xpose.msra.mxu0 0.0
    %3868 = vmatprep.subr.mxu0 0.0
    %3869 = vmatpush2.xpose.msra.mxu0 0.0
    %3870 = vmatprep.subr.mxu0 0.0
    %3871 = vmatpush2.xpose.msra.mxu0 0.0
    %3872 = vmatprep.subr.mxu0 0.0
    %3873 = vmatpush2.xpose.msra.mxu0 0.0
    %3874 = vmatprep.subr.mxu0 0.0
    %3875 = vmatpush2.xpose.msra.mxu0 0.0
    %3876 = vmatprep.subr.mxu0 0.0
    %3877 = vmatpush2.xpose.msra.mxu0 0.0
    %3878 = vmatprep.subr.mxu0 0.0
    %3879 = vmatpush2.xpose.msra.mxu0 0.0
    %3880 = vmatprep.subr.mxu0 0.0
    %3881 = vmatpush2.xpose.msra.mxu0 0.0
    %3882 = vmatprep.subr.mxu0 0.0
    %3883 = vmatpush2.xpose.msra.mxu0 0.0
    %3884 = vmatprep.subr.mxu0 0.0
    %3885 = vmatpush2.xpose.msra.mxu0 0.0
    %3886 = vmatprep.mubr.f32.mxu0 0.0
    %3887 = vmatmul.mubr.f32.gmra.mxu0 %v3818
    %v3888 = vpop.f32.mrf.mxu0
    %v3889 = vadd.f32 0.0, %v3888
    %v3890 = vpop.f32.mrf.mxu0
    %3891 = vdwg.mxu0
    %3892 = vrot.lane.b32.xlu0 %v3655, 96
    %v3893 = vpop.permute.xlu0 %3892
    %v3894 = vsel %vm1864, %v3655, 0
    %v3896 = vsel %vm1864, %v3893, 0
    %3898 = vmatprep.subr.mxu0 0.0
    %3899 = vmatpush1.xpose.msra.mxu0 0.0
    %3900 = vmatprep.subr.mxu0 0.0
    %3901 = vmatpush1.xpose.msra.mxu0 0.0
    %3902 = vmatprep.subr.mxu0 0.0
    %3903 = vmatpush1.xpose.msra.mxu0 0.0
    %3904 = vmatprep.subr.mxu0 0.0
    %3905 = vmatpush1.xpose.msra.mxu0 0.0
    %3906 = vmatprep.subr.mxu0 0.0
    %3907 = vmatpush1.xpose.msra.mxu0 0.0
    %3908 = vmatprep.subr.mxu0 0.0
    %3909 = vmatpush1.xpose.msra.mxu0 0.0
    %3910 = vmatprep.subr.mxu0 0.0
    %3911 = vmatpush1.xpose.msra.mxu0 0.0
    %3912 = vmatprep.subr.mxu0 0.0
    %3913 = vmatpush1.xpose.msra.mxu0 0.0
    %3914 = vmatprep.subr.mxu0 0.0
    %3915 = vmatpush1.xpose.msra.mxu0 0.0
    %3916 = vmatprep.subr.mxu0 0.0
    %3917 = vmatpush1.xpose.msra.mxu0 0.0
    %3918 = vmatprep.subr.mxu0 0.0
    %3919 = vmatpush1.xpose.msra.mxu0 0.0
    %3920 = vmatprep.subr.mxu0 0.0
    %3921 = vmatpush1.xpose.msra.mxu0 0.0
    %3922 = vmatprep.subr.mxu0 0.0
    %3923 = vmatpush1.xpose.msra.mxu0 0.0
    %3924 = vmatprep.subr.mxu0 0.0
    %3925 = vmatpush1.xpose.msra.mxu0 0.0
    %3926 = vmatprep.subr.mxu0 0.0
    %3927 = vmatpush1.xpose.msra.mxu0 0.0
    %3928 = vmatprep.subr.mxu0 0.0
    %3929 = vmatpush1.xpose.msra.mxu0 %v3896
    %3930 = vmatprep.subr.mxu0 0.0
    %3931 = vmatpush2.xpose.msra.mxu0 0.0
    %3932 = vmatprep.subr.mxu0 0.0
    %3933 = vmatpush2.xpose.msra.mxu0 0.0
    %3934 = vmatprep.subr.mxu0 0.0
    %3935 = vmatpush2.xpose.msra.mxu0 0.0
    %3936 = vmatprep.subr.mxu0 0.0
    %3937 = vmatpush2.xpose.msra.mxu0 0.0
    %3938 = vmatprep.subr.mxu0 0.0
    %3939 = vmatpush2.xpose.msra.mxu0 0.0
    %3940 = vmatprep.subr.mxu0 0.0
    %3941 = vmatpush2.xpose.msra.mxu0 0.0
    %3942 = vmatprep.subr.mxu0 0.0
    %3943 = vmatpush2.xpose.msra.mxu0 0.0
    %3944 = vmatprep.subr.mxu0 0.0
    %3945 = vmatpush2.xpose.msra.mxu0 0.0
    %3946 = vmatprep.subr.mxu0 0.0
    %3947 = vmatpush2.xpose.msra.mxu0 0.0
    %3948 = vmatprep.subr.mxu0 0.0
    %3949 = vmatpush2.xpose.msra.mxu0 0.0
    %3950 = vmatprep.subr.mxu0 0.0
    %3951 = vmatpush2.xpose.msra.mxu0 0.0
    %3952 = vmatprep.subr.mxu0 0.0
    %3953 = vmatpush2.xpose.msra.mxu0 0.0
    %3954 = vmatprep.subr.mxu0 0.0
    %3955 = vmatpush2.xpose.msra.mxu0 0.0
    %3956 = vmatprep.subr.mxu0 0.0
    %3957 = vmatpush2.xpose.msra.mxu0 0.0
    %3958 = vmatprep.subr.mxu0 0.0
    %3959 = vmatpush2.xpose.msra.mxu0 0.0
    %3960 = vmatprep.subr.mxu0 0.0
    %3961 = vmatpush2.xpose.msra.mxu0 0.0
    %3962 = vmatprep.mubr.f32.mxu0 0.0
    %3963 = vmatmul.mubr.f32.gmra.mxu0 %v3894
    %v3964 = vpop.f32.mrf.mxu0
    %v3965 = vadd.f32 0.0, %v3964
    %v3966 = vpop.f32.mrf.mxu0
    %3967 = vdwg.mxu0
    %3968 = vrot.lane.b32.xlu0 %v3657, 96
    %v3969 = vpop.permute.xlu0 %3968
    %v3970 = vsel %vm1864, %v3657, 0
    %v3972 = vsel %vm1864, %v3969, 0
    %3974 = vmatprep.subr.mxu0 0.0
    %3975 = vmatpush1.xpose.msra.mxu0 0.0
    %3976 = vmatprep.subr.mxu0 0.0
    %3977 = vmatpush1.xpose.msra.mxu0 0.0
    %3978 = vmatprep.subr.mxu0 0.0
    %3979 = vmatpush1.xpose.msra.mxu0 0.0
    %3980 = vmatprep.subr.mxu0 0.0
    %3981 = vmatpush1.xpose.msra.mxu0 0.0
    %3982 = vmatprep.subr.mxu0 0.0
    %3983 = vmatpush1.xpose.msra.mxu0 0.0
    %3984 = vmatprep.subr.mxu0 0.0
    %3985 = vmatpush1.xpose.msra.mxu0 0.0
    %3986 = vmatprep.subr.mxu0 0.0
    %3987 = vmatpush1.xpose.msra.mxu0 0.0
    %3988 = vmatprep.subr.mxu0 0.0
    %3989 = vmatpush1.xpose.msra.mxu0 0.0
    %3990 = vmatprep.subr.mxu0 0.0
    %3991 = vmatpush1.xpose.msra.mxu0 0.0
    %3992 = vmatprep.subr.mxu0 0.0
    %3993 = vmatpush1.xpose.msra.mxu0 0.0
    %3994 = vmatprep.subr.mxu0 0.0
    %3995 = vmatpush1.xpose.msra.mxu0 0.0
    %3996 = vmatprep.subr.mxu0 0.0
    %3997 = vmatpush1.xpose.msra.mxu0 0.0
    %3998 = vmatprep.subr.mxu0 0.0
    %3999 = vmatpush1.xpose.msra.mxu0 0.0
    %4000 = vmatprep.subr.mxu0 0.0
    %4001 = vmatpush1.xpose.msra.mxu0 0.0
    %4002 = vmatprep.subr.mxu0 0.0
    %4003 = vmatpush1.xpose.msra.mxu0 0.0
    %4004 = vmatprep.subr.mxu0 0.0
    %4005 = vmatpush1.xpose.msra.mxu0 %v3972
    %4006 = vmatprep.subr.mxu0 0.0
    %4007 = vmatpush2.xpose.msra.mxu0 0.0
    %4008 = vmatprep.subr.mxu0 0.0
    %4009 = vmatpush2.xpose.msra.mxu0 0.0
    %4010 = vmatprep.subr.mxu0 0.0
    %4011 = vmatpush2.xpose.msra.mxu0 0.0
    %4012 = vmatprep.subr.mxu0 0.0
    %4013 = vmatpush2.xpose.msra.mxu0 0.0
    %4014 = vmatprep.subr.mxu0 0.0
    %4015 = vmatpush2.xpose.msra.mxu0 0.0
    %4016 = vmatprep.subr.mxu0 0.0
    %4017 = vmatpush2.xpose.msra.mxu0 0.0
    %4018 = vmatprep.subr.mxu0 0.0
    %4019 = vmatpush2.xpose.msra.mxu0 0.0
    %4020 = vmatprep.subr.mxu0 0.0
    %4021 = vmatpush2.xpose.msra.mxu0 0.0
    %4022 = vmatprep.subr.mxu0 0.0
    %4023 = vmatpush2.xpose.msra.mxu0 0.0
    %4024 = vmatprep.subr.mxu0 0.0
    %4025 = vmatpush2.xpose.msra.mxu0 0.0
    %4026 = vmatprep.subr.mxu0 0.0
    %4027 = vmatpush2.xpose.msra.mxu0 0.0
    %4028 = vmatprep.subr.mxu0 0.0
    %4029 = vmatpush2.xpose.msra.mxu0 0.0
    %4030 = vmatprep.subr.mxu0 0.0
    %4031 = vmatpush2.xpose.msra.mxu0 0.0
    %4032 = vmatprep.subr.mxu0 0.0
    %4033 = vmatpush2.xpose.msra.mxu0 0.0
    %4034 = vmatprep.subr.mxu0 0.0
    %4035 = vmatpush2.xpose.msra.mxu0 0.0
    %4036 = vmatprep.subr.mxu0 0.0
    %4037 = vmatpush2.xpose.msra.mxu0 0.0
    %4038 = vmatprep.mubr.f32.mxu0 0.0
    %4039 = vmatmul.mubr.f32.gmra.mxu0 %v3970
    %v4040 = vpop.f32.mrf.mxu0
    %v4041 = vadd.f32 0.0, %v4040
    %v4042 = vpop.f32.mrf.mxu0
    %4043 = vdwg.mxu0
    %4044 = vrot.lane.b32.xlu0 %v3659, 96
    %v4045 = vpop.permute.xlu0 %4044
    %v4046 = vsel %vm1864, %v3659, 0
    %v4048 = vsel %vm1864, %v4045, 0
    %4050 = vmatprep.subr.mxu0 0.0
    %4051 = vmatpush1.xpose.msra.mxu0 0.0
    %4052 = vmatprep.subr.mxu0 0.0
    %4053 = vmatpush1.xpose.msra.mxu0 0.0
    %4054 = vmatprep.subr.mxu0 0.0
    %4055 = vmatpush1.xpose.msra.mxu0 0.0
    %4056 = vmatprep.subr.mxu0 0.0
    %4057 = vmatpush1.xpose.msra.mxu0 0.0
    %4058 = vmatprep.subr.mxu0 0.0
    %4059 = vmatpush1.xpose.msra.mxu0 0.0
    %4060 = vmatprep.subr.mxu0 0.0
    %4061 = vmatpush1.xpose.msra.mxu0 0.0
    %4062 = vmatprep.subr.mxu0 0.0
    %4063 = vmatpush1.xpose.msra.mxu0 0.0
    %4064 = vmatprep.subr.mxu0 0.0
    %4065 = vmatpush1.xpose.msra.mxu0 0.0
    %4066 = vmatprep.subr.mxu0 0.0
    %4067 = vmatpush1.xpose.msra.mxu0 0.0
    %4068 = vmatprep.subr.mxu0 0.0
    %4069 = vmatpush1.xpose.msra.mxu0 0.0
    %4070 = vmatprep.subr.mxu0 0.0
    %4071 = vmatpush1.xpose.msra.mxu0 0.0
    %4072 = vmatprep.subr.mxu0 0.0
    %4073 = vmatpush1.xpose.msra.mxu0 0.0
    %4074 = vmatprep.subr.mxu0 0.0
    %4075 = vmatpush1.xpose.msra.mxu0 0.0
    %4076 = vmatprep.subr.mxu0 0.0
    %4077 = vmatpush1.xpose.msra.mxu0 0.0
    %4078 = vmatprep.subr.mxu0 0.0
    %4079 = vmatpush1.xpose.msra.mxu0 0.0
    %4080 = vmatprep.subr.mxu0 0.0
    %4081 = vmatpush1.xpose.msra.mxu0 %v4048
    %4082 = vmatprep.subr.mxu0 0.0
    %4083 = vmatpush2.xpose.msra.mxu0 0.0
    %4084 = vmatprep.subr.mxu0 0.0
    %4085 = vmatpush2.xpose.msra.mxu0 0.0
    %4086 = vmatprep.subr.mxu0 0.0
    %4087 = vmatpush2.xpose.msra.mxu0 0.0
    %4088 = vmatprep.subr.mxu0 0.0
    %4089 = vmatpush2.xpose.msra.mxu0 0.0
    %4090 = vmatprep.subr.mxu0 0.0
    %4091 = vmatpush2.xpose.msra.mxu0 0.0
    %4092 = vmatprep.subr.mxu0 0.0
    %4093 = vmatpush2.xpose.msra.mxu0 0.0
    %4094 = vmatprep.subr.mxu0 0.0
    %4095 = vmatpush2.xpose.msra.mxu0 0.0
    %4096 = vmatprep.subr.mxu0 0.0
    %4097 = vmatpush2.xpose.msra.mxu0 0.0
    %4098 = vmatprep.subr.mxu0 0.0
    %4099 = vmatpush2.xpose.msra.mxu0 0.0
    %4100 = vmatprep.subr.mxu0 0.0
    %4101 = vmatpush2.xpose.msra.mxu0 0.0
    %4102 = vmatprep.subr.mxu0 0.0
    %4103 = vmatpush2.xpose.msra.mxu0 0.0
    %4104 = vmatprep.subr.mxu0 0.0
    %4105 = vmatpush2.xpose.msra.mxu0 0.0
    %4106 = vmatprep.subr.mxu0 0.0
    %4107 = vmatpush2.xpose.msra.mxu0 0.0
    %4108 = vmatprep.subr.mxu0 0.0
    %4109 = vmatpush2.xpose.msra.mxu0 0.0
    %4110 = vmatprep.subr.mxu0 0.0
    %4111 = vmatpush2.xpose.msra.mxu0 0.0
    %4112 = vmatprep.subr.mxu0 0.0
    %4113 = vmatpush2.xpose.msra.mxu0 0.0
    %4114 = vmatprep.mubr.f32.mxu0 0.0
    %4115 = vmatmul.mubr.f32.gmra.mxu0 %v4046
    %v4116 = vpop.f32.mrf.mxu0
    %v4117 = vadd.f32 0.0, %v4116
    %v4118 = vpop.f32.mrf.mxu0
    %4119 = vdwg.mxu0
    %4120 = vrot.lane.b32.xlu0 %v3661, 96
    %v4121 = vpop.permute.xlu0 %4120
    %v4122 = vsel %vm1864, %v3661, 0
    %v4124 = vsel %vm1864, %v4121, 0
    %4126 = vmatprep.subr.mxu0 0.0
    %4127 = vmatpush1.xpose.msra.mxu0 0.0
    %4128 = vmatprep.subr.mxu0 0.0
    %4129 = vmatpush1.xpose.msra.mxu0 0.0
    %4130 = vmatprep.subr.mxu0 0.0
    %4131 = vmatpush1.xpose.msra.mxu0 0.0
    %4132 = vmatprep.subr.mxu0 0.0
    %4133 = vmatpush1.xpose.msra.mxu0 0.0
    %4134 = vmatprep.subr.mxu0 0.0
    %4135 = vmatpush1.xpose.msra.mxu0 0.0
    %4136 = vmatprep.subr.mxu0 0.0
    %4137 = vmatpush1.xpose.msra.mxu0 0.0
    %4138 = vmatprep.subr.mxu0 0.0
    %4139 = vmatpush1.xpose.msra.mxu0 0.0
    %4140 = vmatprep.subr.mxu0 0.0
    %4141 = vmatpush1.xpose.msra.mxu0 0.0
    %4142 = vmatprep.subr.mxu0 0.0
    %4143 = vmatpush1.xpose.msra.mxu0 0.0
    %4144 = vmatprep.subr.mxu0 0.0
    %4145 = vmatpush1.xpose.msra.mxu0 0.0
    %4146 = vmatprep.subr.mxu0 0.0
    %4147 = vmatpush1.xpose.msra.mxu0 0.0
    %4148 = vmatprep.subr.mxu0 0.0
    %4149 = vmatpush1.xpose.msra.mxu0 0.0
    %4150 = vmatprep.subr.mxu0 0.0
    %4151 = vmatpush1.xpose.msra.mxu0 0.0
    %4152 = vmatprep.subr.mxu0 0.0
    %4153 = vmatpush1.xpose.msra.mxu0 0.0
    %4154 = vmatprep.subr.mxu0 0.0
    %4155 = vmatpush1.xpose.msra.mxu0 0.0
    %4156 = vmatprep.subr.mxu0 0.0
    %4157 = vmatpush1.xpose.msra.mxu0 %v4124
    %4158 = vmatprep.subr.mxu0 0.0
    %4159 = vmatpush2.xpose.msra.mxu0 0.0
    %4160 = vmatprep.subr.mxu0 0.0
    %4161 = vmatpush2.xpose.msra.mxu0 0.0
    %4162 = vmatprep.subr.mxu0 0.0
    %4163 = vmatpush2.xpose.msra.mxu0 0.0
    %4164 = vmatprep.subr.mxu0 0.0
    %4165 = vmatpush2.xpose.msra.mxu0 0.0
    %4166 = vmatprep.subr.mxu0 0.0
    %4167 = vmatpush2.xpose.msra.mxu0 0.0
    %4168 = vmatprep.subr.mxu0 0.0
    %4169 = vmatpush2.xpose.msra.mxu0 0.0
    %4170 = vmatprep.subr.mxu0 0.0
    %4171 = vmatpush2.xpose.msra.mxu0 0.0
    %4172 = vmatprep.subr.mxu0 0.0
    %4173 = vmatpush2.xpose.msra.mxu0 0.0
    %4174 = vmatprep.subr.mxu0 0.0
    %4175 = vmatpush2.xpose.msra.mxu0 0.0
    %4176 = vmatprep.subr.mxu0 0.0
    %4177 = vmatpush2.xpose.msra.mxu0 0.0
    %4178 = vmatprep.subr.mxu0 0.0
    %4179 = vmatpush2.xpose.msra.mxu0 0.0
    %4180 = vmatprep.subr.mxu0 0.0
    %4181 = vmatpush2.xpose.msra.mxu0 0.0
    %4182 = vmatprep.subr.mxu0 0.0
    %4183 = vmatpush2.xpose.msra.mxu0 0.0
    %4184 = vmatprep.subr.mxu0 0.0
    %4185 = vmatpush2.xpose.msra.mxu0 0.0
    %4186 = vmatprep.subr.mxu0 0.0
    %4187 = vmatpush2.xpose.msra.mxu0 0.0
    %4188 = vmatprep.subr.mxu0 0.0
    %4189 = vmatpush2.xpose.msra.mxu0 0.0
    %4190 = vmatprep.mubr.f32.mxu0 0.0
    %4191 = vmatmul.mubr.f32.gmra.mxu0 %v4122
    %v4192 = vpop.f32.mrf.mxu0
    %v4193 = vadd.f32 0.0, %v4192
    %v4194 = vpop.f32.mrf.mxu0
    %4195 = vdwg.mxu0
    %4196 = vrot.lane.b32.xlu0 %v3663, 96
    %v4197 = vpop.permute.xlu0 %4196
    %v4198 = vsel %vm1864, %v3663, 0
    %v4200 = vsel %vm1864, %v4197, 0
    %4202 = vmatprep.subr.mxu0 0.0
    %4203 = vmatpush1.xpose.msra.mxu0 0.0
    %4204 = vmatprep.subr.mxu0 0.0
    %4205 = vmatpush1.xpose.msra.mxu0 0.0
    %4206 = vmatprep.subr.mxu0 0.0
    %4207 = vmatpush1.xpose.msra.mxu0 0.0
    %4208 = vmatprep.subr.mxu0 0.0
    %4209 = vmatpush1.xpose.msra.mxu0 0.0
    %4210 = vmatprep.subr.mxu0 0.0
    %4211 = vmatpush1.xpose.msra.mxu0 0.0
    %4212 = vmatprep.subr.mxu0 0.0
    %4213 = vmatpush1.xpose.msra.mxu0 0.0
    %4214 = vmatprep.subr.mxu0 0.0
    %4215 = vmatpush1.xpose.msra.mxu0 0.0
    %4216 = vmatprep.subr.mxu0 0.0
    %4217 = vmatpush1.xpose.msra.mxu0 0.0
    %4218 = vmatprep.subr.mxu0 0.0
    %4219 = vmatpush1.xpose.msra.mxu0 0.0
    %4220 = vmatprep.subr.mxu0 0.0
    %4221 = vmatpush1.xpose.msra.mxu0 0.0
    %4222 = vmatprep.subr.mxu0 0.0
    %4223 = vmatpush1.xpose.msra.mxu0 0.0
    %4224 = vmatprep.subr.mxu0 0.0
    %4225 = vmatpush1.xpose.msra.mxu0 0.0
    %4226 = vmatprep.subr.mxu0 0.0
    %4227 = vmatpush1.xpose.msra.mxu0 0.0
    %4228 = vmatprep.subr.mxu0 0.0
    %4229 = vmatpush1.xpose.msra.mxu0 0.0
    %4230 = vmatprep.subr.mxu0 0.0
    %4231 = vmatpush1.xpose.msra.mxu0 0.0
    %4232 = vmatprep.subr.mxu0 0.0
    %4233 = vmatpush1.xpose.msra.mxu0 %v4200
    %4234 = vmatprep.subr.mxu0 0.0
    %4235 = vmatpush2.xpose.msra.mxu0 0.0
    %4236 = vmatprep.subr.mxu0 0.0
    %4237 = vmatpush2.xpose.msra.mxu0 0.0
    %4238 = vmatprep.subr.mxu0 0.0
    %4239 = vmatpush2.xpose.msra.mxu0 0.0
    %4240 = vmatprep.subr.mxu0 0.0
    %4241 = vmatpush2.xpose.msra.mxu0 0.0
    %4242 = vmatprep.subr.mxu0 0.0
    %4243 = vmatpush2.xpose.msra.mxu0 0.0
    %4244 = vmatprep.subr.mxu0 0.0
    %4245 = vmatpush2.xpose.msra.mxu0 0.0
    %4246 = vmatprep.subr.mxu0 0.0
    %4247 = vmatpush2.xpose.msra.mxu0 0.0
    %4248 = vmatprep.subr.mxu0 0.0
    %4249 = vmatpush2.xpose.msra.mxu0 0.0
    %4250 = vmatprep.subr.mxu0 0.0
    %4251 = vmatpush2.xpose.msra.mxu0 0.0
    %4252 = vmatprep.subr.mxu0 0.0
    %4253 = vmatpush2.xpose.msra.mxu0 0.0
    %4254 = vmatprep.subr.mxu0 0.0
    %4255 = vmatpush2.xpose.msra.mxu0 0.0
    %4256 = vmatprep.subr.mxu0 0.0
    %4257 = vmatpush2.xpose.msra.mxu0 0.0
    %4258 = vmatprep.subr.mxu0 0.0
    %4259 = vmatpush2.xpose.msra.mxu0 0.0
    %4260 = vmatprep.subr.mxu0 0.0
    %4261 = vmatpush2.xpose.msra.mxu0 0.0
    %4262 = vmatprep.subr.mxu0 0.0
    %4263 = vmatpush2.xpose.msra.mxu0 0.0
    %4264 = vmatprep.subr.mxu0 0.0
    %4265 = vmatpush2.xpose.msra.mxu0 0.0
    %4266 = vmatprep.mubr.f32.mxu0 0.0
    %4267 = vmatmul.mubr.f32.gmra.mxu0 %v4198
    %v4268 = vpop.f32.mrf.mxu0
    %v4269 = vadd.f32 0.0, %v4268
    %v4270 = vpop.f32.mrf.mxu0
    %4271 = vdwg.mxu0
    %v4272 = vsel %vm1864, %v3737, -inf
    %4273 = vmax.xlane.f32.xlu0 %v4272
    %v4274 = vpop.xlane.xlu0 %4273
    %v4275 = vsel %vm1864, %v3813, -inf
    %4276 = vmax.xlane.f32.xlu0 %v4275
    %v4277 = vpop.xlane.xlu0 %4276
    %v4278 = vsel %vm1864, %v3889, -inf
    %4279 = vmax.xlane.f32.xlu0 %v4278
    %v4280 = vpop.xlane.xlu0 %4279
    %v4281 = vsel %vm1864, %v3965, -inf
    %4282 = vmax.xlane.f32.xlu0 %v4281
    %v4283 = vpop.xlane.xlu0 %4282
    %v4284 = vsel %vm1864, %v4041, -inf
    %4285 = vmax.xlane.f32.xlu0 %v4284
    %v4286 = vpop.xlane.xlu0 %4285
    %v4287 = vsel %vm1864, %v4117, -inf
    %4288 = vmax.xlane.f32.xlu0 %v4287
    %v4289 = vpop.xlane.xlu0 %4288
    %v4290 = vsel %vm1864, %v4193, -inf
    %4291 = vmax.xlane.f32.xlu0 %v4290
    %v4292 = vpop.xlane.xlu0 %4291
    %v4293 = vsel %vm1864, %v4269, -inf
    %4294 = vmax.xlane.f32.xlu0 %v4293
    %v4295 = vpop.xlane.xlu0 %4294
    %v4296 = vsub.f32 %v3737, %v4274
    %v4297 = vsub.f32 %v3813, %v4277
    %v4298 = vsub.f32 %v3889, %v4280
    %v4299 = vsub.f32 %v3965, %v4283
    %v4300 = vsub.f32 %v4041, %v4286
    %v4301 = vsub.f32 %v4117, %v4289
    %v4302 = vsub.f32 %v4193, %v4292
    %v4303 = vsub.f32 %v4269, %v4295
    %v4304 = vmul.f32 %v4296, 1.442695
    %v4305 = vpow.pop %v4304
    %v4306 = vmul.f32 %v4297, 1.442695
    %v4307 = vpow.pop %v4306
    %v4308 = vmul.f32 %v4298, 1.442695
    %v4309 = vpow.pop %v4308
    %v4310 = vmul.f32 %v4299, 1.442695
    %v4311 = vpow.pop %v4310
    %v4312 = vmul.f32 %v4300, 1.442695
    %v4313 = vpow.pop %v4312
    %v4314 = vmul.f32 %v4301, 1.442695
    %v4315 = vpow.pop %v4314
    %v4316 = vmul.f32 %v4302, 1.442695
    %v4317 = vpow.pop %v4316
    %v4318 = vmul.f32 %v4303, 1.442695
    %v4319 = vpow.pop %v4318
    %v4320 = vsel %vm1864, %v4305, 0.0
    %4321 = vadd.xlane.f32.xlu0 %v4320
    %v4322 = vpop.xlane.xlu0 %4321
    %v4323 = vsel %vm1864, %v4307, 0.0
    %4324 = vadd.xlane.f32.xlu0 %v4323
    %v4325 = vpop.xlane.xlu0 %4324
    %v4326 = vsel %vm1864, %v4309, 0.0
    %4327 = vadd.xlane.f32.xlu0 %v4326
    %v4328 = vpop.xlane.xlu0 %4327
    %v4329 = vsel %vm1864, %v4311, 0.0
    %4330 = vadd.xlane.f32.xlu0 %v4329
    %v4331 = vpop.xlane.xlu0 %4330
    %v4332 = vsel %vm1864, %v4313, 0.0
    %4333 = vadd.xlane.f32.xlu0 %v4332
    %v4334 = vpop.xlane.xlu0 %4333
    %v4335 = vsel %vm1864, %v4315, 0.0
    %4336 = vadd.xlane.f32.xlu0 %v4335
    %v4337 = vpop.xlane.xlu0 %4336
    %v4338 = vsel %vm1864, %v4317, 0.0
    %4339 = vadd.xlane.f32.xlu0 %v4338
    %v4340 = vpop.xlane.xlu0 %4339
    %v4341 = vsel %vm1864, %v4319, 0.0
    %4342 = vadd.xlane.f32.xlu0 %v4341
    %v4343 = vpop.xlane.xlu0 %4342
    %v4344 = vrcp.pop %v4322
    %v4345 = vrcp.pop %v4325
    %v4346 = vrcp.pop %v4328
    %v4347 = vrcp.pop %v4331
    %v4348 = vrcp.pop %v4334
    %v4349 = vrcp.pop %v4337
    %v4350 = vrcp.pop %v4340
    %v4351 = vrcp.pop %v4343
    %v4352 = vmul.f32 %v4305, %v4344
    %v4353 = vmul.f32 %v4307, %v4345
    %v4354 = vmul.f32 %v4309, %v4346
    %v4355 = vmul.f32 %v4311, %v4347
    %v4356 = vmul.f32 %v4313, %v4348
    %v4357 = vmul.f32 %v4315, %v4349
    %v4358 = vmul.f32 %v4317, %v4350
    %v4359 = vmul.f32 %v4319, %v4351
    %4360 = vrot.lane.b32.xlu0 %v3642, 64
    %v4361 = vpop.permute.xlu0 %4360
    %v4364 = vsel %vm1864, %v4352, 0
    %4366 = vmatprep.subr.mxu0 0.0
    %4367 = vmatpush1.msra.mxu0 0.0
    %4368 = vmatprep.subr.mxu0 0.0
    %4369 = vmatpush1.msra.mxu0 0.0
    %4370 = vmatprep.subr.mxu0 0.0
    %4371 = vmatpush1.msra.mxu0 0.0
    %4372 = vmatprep.subr.mxu0 0.0
    %4373 = vmatpush1.msra.mxu0 0.0
    %4374 = vmatprep.subr.mxu0 0.0
    %4375 = vmatpush1.msra.mxu0 0.0
    %4376 = vmatprep.subr.mxu0 0.0
    %4377 = vmatpush1.msra.mxu0 0.0
    %4378 = vmatprep.subr.mxu0 0.0
    %4379 = vmatpush1.msra.mxu0 0.0
    %4380 = vmatprep.subr.mxu0 0.0
    %4381 = vmatpush1.msra.mxu0 0.0
    %4382 = vmatprep.subr.mxu0 0.0
    %4383 = vmatpush1.msra.mxu0 0.0
    %4384 = vmatprep.subr.mxu0 0.0
    %4385 = vmatpush1.msra.mxu0 0.0
    %4386 = vmatprep.subr.mxu0 0.0
    %4387 = vmatpush1.msra.mxu0 0.0
    %4388 = vmatprep.subr.mxu0 0.0
    %4389 = vmatpush1.msra.mxu0 0.0
    %4390 = vmatprep.subr.mxu0 0.0
    %4391 = vmatpush1.msra.mxu0 0.0
    %4392 = vmatprep.subr.mxu0 0.0
    %4393 = vmatpush1.msra.mxu0 0.0
    %4394 = vmatprep.subr.mxu0 0.0
    %4395 = vmatpush1.msra.mxu0 0.0
    %4396 = vmatprep.subr.mxu0 0.0
    %4397 = vmatpush1.msra.mxu0 %v4361
    %4398 = vmatprep.subr.mxu0 0.0
    %4399 = vmatpush2.msra.mxu0 0.0
    %4400 = vmatprep.subr.mxu0 0.0
    %4401 = vmatpush2.msra.mxu0 0.0
    %4402 = vmatprep.subr.mxu0 0.0
    %4403 = vmatpush2.msra.mxu0 0.0
    %4404 = vmatprep.subr.mxu0 0.0
    %4405 = vmatpush2.msra.mxu0 0.0
    %4406 = vmatprep.subr.mxu0 0.0
    %4407 = vmatpush2.msra.mxu0 0.0
    %4408 = vmatprep.subr.mxu0 0.0
    %4409 = vmatpush2.msra.mxu0 0.0
    %4410 = vmatprep.subr.mxu0 0.0
    %4411 = vmatpush2.msra.mxu0 0.0
    %4412 = vmatprep.subr.mxu0 0.0
    %4413 = vmatpush2.msra.mxu0 0.0
    %4414 = vmatprep.subr.mxu0 0.0
    %4415 = vmatpush2.msra.mxu0 0.0
    %4416 = vmatprep.subr.mxu0 0.0
    %4417 = vmatpush2.msra.mxu0 0.0
    %4418 = vmatprep.subr.mxu0 0.0
    %4419 = vmatpush2.msra.mxu0 0.0
    %4420 = vmatprep.subr.mxu0 0.0
    %4421 = vmatpush2.msra.mxu0 0.0
    %4422 = vmatprep.subr.mxu0 0.0
    %4423 = vmatpush2.msra.mxu0 0.0
    %4424 = vmatprep.subr.mxu0 0.0
    %4425 = vmatpush2.msra.mxu0 0.0
    %4426 = vmatprep.subr.mxu0 0.0
    %4427 = vmatpush2.msra.mxu0 0.0
    %4428 = vmatprep.subr.mxu0 0.0
    %4429 = vmatpush2.msra.mxu0 0.0
    %4430 = vmatprep.mubr.f32.mxu0 0.0
    %4431 = vmatmul.mubr.f32.gmra.mxu0 %v4364
    %v4432 = vpop.f32.mrf.mxu0
    %v4433 = vadd.f32 0.0, %v4432
    %v4434 = vpop.f32.mrf.mxu0
    %4435 = vdwg.mxu0
    %4436 = vrot.lane.b32.xlu0 %v3647, 64
    %v4437 = vpop.permute.xlu0 %4436
    %v4440 = vsel %vm1864, %v4353, 0
    %4442 = vmatprep.subr.mxu0 0.0
    %4443 = vmatpush1.msra.mxu0 0.0
    %4444 = vmatprep.subr.mxu0 0.0
    %4445 = vmatpush1.msra.mxu0 0.0
    %4446 = vmatprep.subr.mxu0 0.0
    %4447 = vmatpush1.msra.mxu0 0.0
    %4448 = vmatprep.subr.mxu0 0.0
    %4449 = vmatpush1.msra.mxu0 0.0
    %4450 = vmatprep.subr.mxu0 0.0
    %4451 = vmatpush1.msra.mxu0 0.0
    %4452 = vmatprep.subr.mxu0 0.0
    %4453 = vmatpush1.msra.mxu0 0.0
    %4454 = vmatprep.subr.mxu0 0.0
    %4455 = vmatpush1.msra.mxu0 0.0
    %4456 = vmatprep.subr.mxu0 0.0
    %4457 = vmatpush1.msra.mxu0 0.0
    %4458 = vmatprep.subr.mxu0 0.0
    %4459 = vmatpush1.msra.mxu0 0.0
    %4460 = vmatprep.subr.mxu0 0.0
    %4461 = vmatpush1.msra.mxu0 0.0
    %4462 = vmatprep.subr.mxu0 0.0
    %4463 = vmatpush1.msra.mxu0 0.0
    %4464 = vmatprep.subr.mxu0 0.0
    %4465 = vmatpush1.msra.mxu0 0.0
    %4466 = vmatprep.subr.mxu0 0.0
    %4467 = vmatpush1.msra.mxu0 0.0
    %4468 = vmatprep.subr.mxu0 0.0
    %4469 = vmatpush1.msra.mxu0 0.0
    %4470 = vmatprep.subr.mxu0 0.0
    %4471 = vmatpush1.msra.mxu0 0.0
    %4472 = vmatprep.subr.mxu0 0.0
    %4473 = vmatpush1.msra.mxu0 %v4437
    %4474 = vmatprep.subr.mxu0 0.0
    %4475 = vmatpush2.msra.mxu0 0.0
    %4476 = vmatprep.subr.mxu0 0.0
    %4477 = vmatpush2.msra.mxu0 0.0
    %4478 = vmatprep.subr.mxu0 0.0
    %4479 = vmatpush2.msra.mxu0 0.0
    %4480 = vmatprep.subr.mxu0 0.0
    %4481 = vmatpush2.msra.mxu0 0.0
    %4482 = vmatprep.subr.mxu0 0.0
    %4483 = vmatpush2.msra.mxu0 0.0
    %4484 = vmatprep.subr.mxu0 0.0
    %4485 = vmatpush2.msra.mxu0 0.0
    %4486 = vmatprep.subr.mxu0 0.0
    %4487 = vmatpush2.msra.mxu0 0.0
    %4488 = vmatprep.subr.mxu0 0.0
    %4489 = vmatpush2.msra.mxu0 0.0
    %4490 = vmatprep.subr.mxu0 0.0
    %4491 = vmatpush2.msra.mxu0 0.0
    %4492 = vmatprep.subr.mxu0 0.0
    %4493 = vmatpush2.msra.mxu0 0.0
    %4494 = vmatprep.subr.mxu0 0.0
    %4495 = vmatpush2.msra.mxu0 0.0
    %4496 = vmatprep.subr.mxu0 0.0
    %4497 = vmatpush2.msra.mxu0 0.0
    %4498 = vmatprep.subr.mxu0 0.0
    %4499 = vmatpush2.msra.mxu0 0.0
    %4500 = vmatprep.subr.mxu0 0.0
    %4501 = vmatpush2.msra.mxu0 0.0
    %4502 = vmatprep.subr.mxu0 0.0
    %4503 = vmatpush2.msra.mxu0 0.0
    %4504 = vmatprep.subr.mxu0 0.0
    %4505 = vmatpush2.msra.mxu0 0.0
    %4506 = vmatprep.mubr.f32.mxu0 0.0
    %4507 = vmatmul.mubr.f32.gmra.mxu0 %v4440
    %v4508 = vpop.f32.mrf.mxu0
    %v4509 = vadd.f32 0.0, %v4508
    %v4510 = vpop.f32.mrf.mxu0
    %4511 = vdwg.mxu0
    %4512 = vrot.lane.b32.xlu0 %v3653, 64
    %v4513 = vpop.permute.xlu0 %4512
    %v4516 = vsel %vm1864, %v4354, 0
    %4518 = vmatprep.subr.mxu0 0.0
    %4519 = vmatpush1.msra.mxu0 0.0
    %4520 = vmatprep.subr.mxu0 0.0
    %4521 = vmatpush1.msra.mxu0 0.0
    %4522 = vmatprep.subr.mxu0 0.0
    %4523 = vmatpush1.msra.mxu0 0.0
    %4524 = vmatprep.subr.mxu0 0.0
    %4525 = vmatpush1.msra.mxu0 0.0
    %4526 = vmatprep.subr.mxu0 0.0
    %4527 = vmatpush1.msra.mxu0 0.0
    %4528 = vmatprep.subr.mxu0 0.0
    %4529 = vmatpush1.msra.mxu0 0.0
    %4530 = vmatprep.subr.mxu0 0.0
    %4531 = vmatpush1.msra.mxu0 0.0
    %4532 = vmatprep.subr.mxu0 0.0
    %4533 = vmatpush1.msra.mxu0 0.0
    %4534 = vmatprep.subr.mxu0 0.0
    %4535 = vmatpush1.msra.mxu0 0.0
    %4536 = vmatprep.subr.mxu0 0.0
    %4537 = vmatpush1.msra.mxu0 0.0
    %4538 = vmatprep.subr.mxu0 0.0
    %4539 = vmatpush1.msra.mxu0 0.0
    %4540 = vmatprep.subr.mxu0 0.0
    %4541 = vmatpush1.msra.mxu0 0.0
    %4542 = vmatprep.subr.mxu0 0.0
    %4543 = vmatpush1.msra.mxu0 0.0
    %4544 = vmatprep.subr.mxu0 0.0
    %4545 = vmatpush1.msra.mxu0 0.0
    %4546 = vmatprep.subr.mxu0 0.0
    %4547 = vmatpush1.msra.mxu0 0.0
    %4548 = vmatprep.subr.mxu0 0.0
    %4549 = vmatpush1.msra.mxu0 %v4513
    %4550 = vmatprep.subr.mxu0 0.0
    %4551 = vmatpush2.msra.mxu0 0.0
    %4552 = vmatprep.subr.mxu0 0.0
    %4553 = vmatpush2.msra.mxu0 0.0
    %4554 = vmatprep.subr.mxu0 0.0
    %4555 = vmatpush2.msra.mxu0 0.0
    %4556 = vmatprep.subr.mxu0 0.0
    %4557 = vmatpush2.msra.mxu0 0.0
    %4558 = vmatprep.subr.mxu0 0.0
    %4559 = vmatpush2.msra.mxu0 0.0
    %4560 = vmatprep.subr.mxu0 0.0
    %4561 = vmatpush2.msra.mxu0 0.0
    %4562 = vmatprep.subr.mxu0 0.0
    %4563 = vmatpush2.msra.mxu0 0.0
    %4564 = vmatprep.subr.mxu0 0.0
    %4565 = vmatpush2.msra.mxu0 0.0
    %4566 = vmatprep.subr.mxu0 0.0
    %4567 = vmatpush2.msra.mxu0 0.0
    %4568 = vmatprep.subr.mxu0 0.0
    %4569 = vmatpush2.msra.mxu0 0.0
    %4570 = vmatprep.subr.mxu0 0.0
    %4571 = vmatpush2.msra.mxu0 0.0
    %4572 = vmatprep.subr.mxu0 0.0
    %4573 = vmatpush2.msra.mxu0 0.0
    %4574 = vmatprep.subr.mxu0 0.0
    %4575 = vmatpush2.msra.mxu0 0.0
    %4576 = vmatprep.subr.mxu0 0.0
    %4577 = vmatpush2.msra.mxu0 0.0
    %4578 = vmatprep.subr.mxu0 0.0
    %4579 = vmatpush2.msra.mxu0 0.0
    %4580 = vmatprep.subr.mxu0 0.0
    %4581 = vmatpush2.msra.mxu0 0.0
    %4582 = vmatprep.mubr.f32.mxu0 0.0
    %4583 = vmatmul.mubr.f32.gmra.mxu0 %v4516
    %v4584 = vpop.f32.mrf.mxu0
    %v4585 = vadd.f32 0.0, %v4584
    %v4586 = vpop.f32.mrf.mxu0
    %4587 = vdwg.mxu0
    %4588 = vrot.lane.b32.xlu0 %v3655, 64
    %v4589 = vpop.permute.xlu0 %4588
    %v4592 = vsel %vm1864, %v4355, 0
    %4594 = vmatprep.subr.mxu0 0.0
    %4595 = vmatpush1.msra.mxu0 0.0
    %4596 = vmatprep.subr.mxu0 0.0
    %4597 = vmatpush1.msra.mxu0 0.0
    %4598 = vmatprep.subr.mxu0 0.0
    %4599 = vmatpush1.msra.mxu0 0.0
    %4600 = vmatprep.subr.mxu0 0.0
    %4601 = vmatpush1.msra.mxu0 0.0
    %4602 = vmatprep.subr.mxu0 0.0
    %4603 = vmatpush1.msra.mxu0 0.0
    %4604 = vmatprep.subr.mxu0 0.0
    %4605 = vmatpush1.msra.mxu0 0.0
    %4606 = vmatprep.subr.mxu0 0.0
    %4607 = vmatpush1.msra.mxu0 0.0
    %4608 = vmatprep.subr.mxu0 0.0
    %4609 = vmatpush1.msra.mxu0 0.0
    %4610 = vmatprep.subr.mxu0 0.0
    %4611 = vmatpush1.msra.mxu0 0.0
    %4612 = vmatprep.subr.mxu0 0.0
    %4613 = vmatpush1.msra.mxu0 0.0
    %4614 = vmatprep.subr.mxu0 0.0
    %4615 = vmatpush1.msra.mxu0 0.0
    %4616 = vmatprep.subr.mxu0 0.0
    %4617 = vmatpush1.msra.mxu0 0.0
    %4618 = vmatprep.subr.mxu0 0.0
    %4619 = vmatpush1.msra.mxu0 0.0
    %4620 = vmatprep.subr.mxu0 0.0
    %4621 = vmatpush1.msra.mxu0 0.0
    %4622 = vmatprep.subr.mxu0 0.0
    %4623 = vmatpush1.msra.mxu0 0.0
    %4624 = vmatprep.subr.mxu0 0.0
    %4625 = vmatpush1.msra.mxu0 %v4589
    %4626 = vmatprep.subr.mxu0 0.0
    %4627 = vmatpush2.msra.mxu0 0.0
    %4628 = vmatprep.subr.mxu0 0.0
    %4629 = vmatpush2.msra.mxu0 0.0
    %4630 = vmatprep.subr.mxu0 0.0
    %4631 = vmatpush2.msra.mxu0 0.0
    %4632 = vmatprep.subr.mxu0 0.0
    %4633 = vmatpush2.msra.mxu0 0.0
    %4634 = vmatprep.subr.mxu0 0.0
    %4635 = vmatpush2.msra.mxu0 0.0
    %4636 = vmatprep.subr.mxu0 0.0
    %4637 = vmatpush2.msra.mxu0 0.0
    %4638 = vmatprep.subr.mxu0 0.0
    %4639 = vmatpush2.msra.mxu0 0.0
    %4640 = vmatprep.subr.mxu0 0.0
    %4641 = vmatpush2.msra.mxu0 0.0
    %4642 = vmatprep.subr.mxu0 0.0
    %4643 = vmatpush2.msra.mxu0 0.0
    %4644 = vmatprep.subr.mxu0 0.0
    %4645 = vmatpush2.msra.mxu0 0.0
    %4646 = vmatprep.subr.mxu0 0.0
    %4647 = vmatpush2.msra.mxu0 0.0
    %4648 = vmatprep.subr.mxu0 0.0
    %4649 = vmatpush2.msra.mxu0 0.0
    %4650 = vmatprep.subr.mxu0 0.0
    %4651 = vmatpush2.msra.mxu0 0.0
    %4652 = vmatprep.subr.mxu0 0.0
    %4653 = vmatpush2.msra.mxu0 0.0
    %4654 = vmatprep.subr.mxu0 0.0
    %4655 = vmatpush2.msra.mxu0 0.0
    %4656 = vmatprep.subr.mxu0 0.0
    %4657 = vmatpush2.msra.mxu0 0.0
    %4658 = vmatprep.mubr.f32.mxu0 0.0
    %4659 = vmatmul.mubr.f32.gmra.mxu0 %v4592
    %v4660 = vpop.f32.mrf.mxu0
    %v4661 = vadd.f32 0.0, %v4660
    %v4662 = vpop.f32.mrf.mxu0
    %4663 = vdwg.mxu0
    %4664 = vrot.lane.b32.xlu0 %v3657, 64
    %v4665 = vpop.permute.xlu0 %4664
    %v4668 = vsel %vm1864, %v4356, 0
    %4670 = vmatprep.subr.mxu0 0.0
    %4671 = vmatpush1.msra.mxu0 0.0
    %4672 = vmatprep.subr.mxu0 0.0
    %4673 = vmatpush1.msra.mxu0 0.0
    %4674 = vmatprep.subr.mxu0 0.0
    %4675 = vmatpush1.msra.mxu0 0.0
    %4676 = vmatprep.subr.mxu0 0.0
    %4677 = vmatpush1.msra.mxu0 0.0
    %4678 = vmatprep.subr.mxu0 0.0
    %4679 = vmatpush1.msra.mxu0 0.0
    %4680 = vmatprep.subr.mxu0 0.0
    %4681 = vmatpush1.msra.mxu0 0.0
    %4682 = vmatprep.subr.mxu0 0.0
    %4683 = vmatpush1.msra.mxu0 0.0
    %4684 = vmatprep.subr.mxu0 0.0
    %4685 = vmatpush1.msra.mxu0 0.0
    %4686 = vmatprep.subr.mxu0 0.0
    %4687 = vmatpush1.msra.mxu0 0.0
    %4688 = vmatprep.subr.mxu0 0.0
    %4689 = vmatpush1.msra.mxu0 0.0
    %4690 = vmatprep.subr.mxu0 0.0
    %4691 = vmatpush1.msra.mxu0 0.0
    %4692 = vmatprep.subr.mxu0 0.0
    %4693 = vmatpush1.msra.mxu0 0.0
    %4694 = vmatprep.subr.mxu0 0.0
    %4695 = vmatpush1.msra.mxu0 0.0
    %4696 = vmatprep.subr.mxu0 0.0
    %4697 = vmatpush1.msra.mxu0 0.0
    %4698 = vmatprep.subr.mxu0 0.0
    %4699 = vmatpush1.msra.mxu0 0.0
    %4700 = vmatprep.subr.mxu0 0.0
    %4701 = vmatpush1.msra.mxu0 %v4665
    %4702 = vmatprep.subr.mxu0 0.0
    %4703 = vmatpush2.msra.mxu0 0.0
    %4704 = vmatprep.subr.mxu0 0.0
    %4705 = vmatpush2.msra.mxu0 0.0
    %4706 = vmatprep.subr.mxu0 0.0
    %4707 = vmatpush2.msra.mxu0 0.0
    %4708 = vmatprep.subr.mxu0 0.0
    %4709 = vmatpush2.msra.mxu0 0.0
    %4710 = vmatprep.subr.mxu0 0.0
    %4711 = vmatpush2.msra.mxu0 0.0
    %4712 = vmatprep.subr.mxu0 0.0
    %4713 = vmatpush2.msra.mxu0 0.0
    %4714 = vmatprep.subr.mxu0 0.0
    %4715 = vmatpush2.msra.mxu0 0.0
    %4716 = vmatprep.subr.mxu0 0.0
    %4717 = vmatpush2.msra.mxu0 0.0
    %4718 = vmatprep.subr.mxu0 0.0
    %4719 = vmatpush2.msra.mxu0 0.0
    %4720 = vmatprep.subr.mxu0 0.0
    %4721 = vmatpush2.msra.mxu0 0.0
    %4722 = vmatprep.subr.mxu0 0.0
    %4723 = vmatpush2.msra.mxu0 0.0
    %4724 = vmatprep.subr.mxu0 0.0
    %4725 = vmatpush2.msra.mxu0 0.0
    %4726 = vmatprep.subr.mxu0 0.0
    %4727 = vmatpush2.msra.mxu0 0.0
    %4728 = vmatprep.subr.mxu0 0.0
    %4729 = vmatpush2.msra.mxu0 0.0
    %4730 = vmatprep.subr.mxu0 0.0
    %4731 = vmatpush2.msra.mxu0 0.0
    %4732 = vmatprep.subr.mxu0 0.0
    %4733 = vmatpush2.msra.mxu0 0.0
    %4734 = vmatprep.mubr.f32.mxu0 0.0
    %4735 = vmatmul.mubr.f32.gmra.mxu0 %v4668
    %v4736 = vpop.f32.mrf.mxu0
    %v4737 = vadd.f32 0.0, %v4736
    %v4738 = vpop.f32.mrf.mxu0
    %4739 = vdwg.mxu0
    %4740 = vrot.lane.b32.xlu0 %v3659, 64
    %v4741 = vpop.permute.xlu0 %4740
    %v4744 = vsel %vm1864, %v4357, 0
    %4746 = vmatprep.subr.mxu0 0.0
    %4747 = vmatpush1.msra.mxu0 0.0
    %4748 = vmatprep.subr.mxu0 0.0
    %4749 = vmatpush1.msra.mxu0 0.0
    %4750 = vmatprep.subr.mxu0 0.0
    %4751 = vmatpush1.msra.mxu0 0.0
    %4752 = vmatprep.subr.mxu0 0.0
    %4753 = vmatpush1.msra.mxu0 0.0
    %4754 = vmatprep.subr.mxu0 0.0
    %4755 = vmatpush1.msra.mxu0 0.0
    %4756 = vmatprep.subr.mxu0 0.0
    %4757 = vmatpush1.msra.mxu0 0.0
    %4758 = vmatprep.subr.mxu0 0.0
    %4759 = vmatpush1.msra.mxu0 0.0
    %4760 = vmatprep.subr.mxu0 0.0
    %4761 = vmatpush1.msra.mxu0 0.0
    %4762 = vmatprep.subr.mxu0 0.0
    %4763 = vmatpush1.msra.mxu0 0.0
    %4764 = vmatprep.subr.mxu0 0.0
    %4765 = vmatpush1.msra.mxu0 0.0
    %4766 = vmatprep.subr.mxu0 0.0
    %4767 = vmatpush1.msra.mxu0 0.0
    %4768 = vmatprep.subr.mxu0 0.0
    %4769 = vmatpush1.msra.mxu0 0.0
    %4770 = vmatprep.subr.mxu0 0.0
    %4771 = vmatpush1.msra.mxu0 0.0
    %4772 = vmatprep.subr.mxu0 0.0
    %4773 = vmatpush1.msra.mxu0 0.0
    %4774 = vmatprep.subr.mxu0 0.0
    %4775 = vmatpush1.msra.mxu0 0.0
    %4776 = vmatprep.subr.mxu0 0.0
    %4777 = vmatpush1.msra.mxu0 %v4741
    %4778 = vmatprep.subr.mxu0 0.0
    %4779 = vmatpush2.msra.mxu0 0.0
    %4780 = vmatprep.subr.mxu0 0.0
    %4781 = vmatpush2.msra.mxu0 0.0
    %4782 = vmatprep.subr.mxu0 0.0
    %4783 = vmatpush2.msra.mxu0 0.0
    %4784 = vmatprep.subr.mxu0 0.0
    %4785 = vmatpush2.msra.mxu0 0.0
    %4786 = vmatprep.subr.mxu0 0.0
    %4787 = vmatpush2.msra.mxu0 0.0
    %4788 = vmatprep.subr.mxu0 0.0
    %4789 = vmatpush2.msra.mxu0 0.0
    %4790 = vmatprep.subr.mxu0 0.0
    %4791 = vmatpush2.msra.mxu0 0.0
    %4792 = vmatprep.subr.mxu0 0.0
    %4793 = vmatpush2.msra.mxu0 0.0
    %4794 = vmatprep.subr.mxu0 0.0
    %4795 = vmatpush2.msra.mxu0 0.0
    %4796 = vmatprep.subr.mxu0 0.0
    %4797 = vmatpush2.msra.mxu0 0.0
    %4798 = vmatprep.subr.mxu0 0.0
    %4799 = vmatpush2.msra.mxu0 0.0
    %4800 = vmatprep.subr.mxu0 0.0
    %4801 = vmatpush2.msra.mxu0 0.0
    %4802 = vmatprep.subr.mxu0 0.0
    %4803 = vmatpush2.msra.mxu0 0.0
    %4804 = vmatprep.subr.mxu0 0.0
    %4805 = vmatpush2.msra.mxu0 0.0
    %4806 = vmatprep.subr.mxu0 0.0
    %4807 = vmatpush2.msra.mxu0 0.0
    %4808 = vmatprep.subr.mxu0 0.0
    %4809 = vmatpush2.msra.mxu0 0.0
    %4810 = vmatprep.mubr.f32.mxu0 0.0
    %4811 = vmatmul.mubr.f32.gmra.mxu0 %v4744
    %v4812 = vpop.f32.mrf.mxu0
    %v4813 = vadd.f32 0.0, %v4812
    %v4814 = vpop.f32.mrf.mxu0
    %4815 = vdwg.mxu0
    %4816 = vrot.lane.b32.xlu0 %v3661, 64
    %v4817 = vpop.permute.xlu0 %4816
    %v4820 = vsel %vm1864, %v4358, 0
    %4822 = vmatprep.subr.mxu0 0.0
    %4823 = vmatpush1.msra.mxu0 0.0
    %4824 = vmatprep.subr.mxu0 0.0
    %4825 = vmatpush1.msra.mxu0 0.0
    %4826 = vmatprep.subr.mxu0 0.0
    %4827 = vmatpush1.msra.mxu0 0.0
    %4828 = vmatprep.subr.mxu0 0.0
    %4829 = vmatpush1.msra.mxu0 0.0
    %4830 = vmatprep.subr.mxu0 0.0
    %4831 = vmatpush1.msra.mxu0 0.0
    %4832 = vmatprep.subr.mxu0 0.0
    %4833 = vmatpush1.msra.mxu0 0.0
    %4834 = vmatprep.subr.mxu0 0.0
    %4835 = vmatpush1.msra.mxu0 0.0
    %4836 = vmatprep.subr.mxu0 0.0
    %4837 = vmatpush1.msra.mxu0 0.0
    %4838 = vmatprep.subr.mxu0 0.0
    %4839 = vmatpush1.msra.mxu0 0.0
    %4840 = vmatprep.subr.mxu0 0.0
    %4841 = vmatpush1.msra.mxu0 0.0
    %4842 = vmatprep.subr.mxu0 0.0
    %4843 = vmatpush1.msra.mxu0 0.0
    %4844 = vmatprep.subr.mxu0 0.0
    %4845 = vmatpush1.msra.mxu0 0.0
    %4846 = vmatprep.subr.mxu0 0.0
    %4847 = vmatpush1.msra.mxu0 0.0
    %4848 = vmatprep.subr.mxu0 0.0
    %4849 = vmatpush1.msra.mxu0 0.0
    %4850 = vmatprep.subr.mxu0 0.0
    %4851 = vmatpush1.msra.mxu0 0.0
    %4852 = vmatprep.subr.mxu0 0.0
    %4853 = vmatpush1.msra.mxu0 %v4817
    %4854 = vmatprep.subr.mxu0 0.0
    %4855 = vmatpush2.msra.mxu0 0.0
    %4856 = vmatprep.subr.mxu0 0.0
    %4857 = vmatpush2.msra.mxu0 0.0
    %4858 = vmatprep.subr.mxu0 0.0
    %4859 = vmatpush2.msra.mxu0 0.0
    %4860 = vmatprep.subr.mxu0 0.0
    %4861 = vmatpush2.msra.mxu0 0.0
    %4862 = vmatprep.subr.mxu0 0.0
    %4863 = vmatpush2.msra.mxu0 0.0
    %4864 = vmatprep.subr.mxu0 0.0
    %4865 = vmatpush2.msra.mxu0 0.0
    %4866 = vmatprep.subr.mxu0 0.0
    %4867 = vmatpush2.msra.mxu0 0.0
    %4868 = vmatprep.subr.mxu0 0.0
    %4869 = vmatpush2.msra.mxu0 0.0
    %4870 = vmatprep.subr.mxu0 0.0
    %4871 = vmatpush2.msra.mxu0 0.0
    %4872 = vmatprep.subr.mxu0 0.0
    %4873 = vmatpush2.msra.mxu0 0.0
    %4874 = vmatprep.subr.mxu0 0.0
    %4875 = vmatpush2.msra.mxu0 0.0
    %4876 = vmatprep.subr.mxu0 0.0
    %4877 = vmatpush2.msra.mxu0 0.0
    %4878 = vmatprep.subr.mxu0 0.0
    %4879 = vmatpush2.msra.mxu0 0.0
    %4880 = vmatprep.subr.mxu0 0.0
    %4881 = vmatpush2.msra.mxu0 0.0
    %4882 = vmatprep.subr.mxu0 0.0
    %4883 = vmatpush2.msra.mxu0 0.0
    %4884 = vmatprep.subr.mxu0 0.0
    %4885 = vmatpush2.msra.mxu0 0.0
    %4886 = vmatprep.mubr.f32.mxu0 0.0
    %4887 = vmatmul.mubr.f32.gmra.mxu0 %v4820
    %v4888 = vpop.f32.mrf.mxu0
    %v4889 = vadd.f32 0.0, %v4888
    %v4890 = vpop.f32.mrf.mxu0
    %4891 = vdwg.mxu0
    %4892 = vrot.lane.b32.xlu0 %v3663, 64
    %v4893 = vpop.permute.xlu0 %4892
    %v4896 = vsel %vm1864, %v4359, 0
    %4898 = vmatprep.subr.mxu0 0.0
    %4899 = vmatpush1.msra.mxu0 0.0
    %4900 = vmatprep.subr.mxu0 0.0
    %4901 = vmatpush1.msra.mxu0 0.0
    %4902 = vmatprep.subr.mxu0 0.0
    %4903 = vmatpush1.msra.mxu0 0.0
    %4904 = vmatprep.subr.mxu0 0.0
    %4905 = vmatpush1.msra.mxu0 0.0
    %4906 = vmatprep.subr.mxu0 0.0
    %4907 = vmatpush1.msra.mxu0 0.0
    %4908 = vmatprep.subr.mxu0 0.0
    %4909 = vmatpush1.msra.mxu0 0.0
    %4910 = vmatprep.subr.mxu0 0.0
    %4911 = vmatpush1.msra.mxu0 0.0
    %4912 = vmatprep.subr.mxu0 0.0
    %4913 = vmatpush1.msra.mxu0 0.0
    %4914 = vmatprep.subr.mxu0 0.0
    %4915 = vmatpush1.msra.mxu0 0.0
    %4916 = vmatprep.subr.mxu0 0.0
    %4917 = vmatpush1.msra.mxu0 0.0
    %4918 = vmatprep.subr.mxu0 0.0
    %4919 = vmatpush1.msra.mxu0 0.0
    %4920 = vmatprep.subr.mxu0 0.0
    %4921 = vmatpush1.msra.mxu0 0.0
    %4922 = vmatprep.subr.mxu0 0.0
    %4923 = vmatpush1.msra.mxu0 0.0
    %4924 = vmatprep.subr.mxu0 0.0
    %4925 = vmatpush1.msra.mxu0 0.0
    %4926 = vmatprep.subr.mxu0 0.0
    %4927 = vmatpush1.msra.mxu0 0.0
    %4928 = vmatprep.subr.mxu0 0.0
    %4929 = vmatpush1.msra.mxu0 %v4893
    %4930 = vmatprep.subr.mxu0 0.0
    %4931 = vmatpush2.msra.mxu0 0.0
    %4932 = vmatprep.subr.mxu0 0.0
    %4933 = vmatpush2.msra.mxu0 0.0
    %4934 = vmatprep.subr.mxu0 0.0
    %4935 = vmatpush2.msra.mxu0 0.0
    %4936 = vmatprep.subr.mxu0 0.0
    %4937 = vmatpush2.msra.mxu0 0.0
    %4938 = vmatprep.subr.mxu0 0.0
    %4939 = vmatpush2.msra.mxu0 0.0
    %4940 = vmatprep.subr.mxu0 0.0
    %4941 = vmatpush2.msra.mxu0 0.0
    %4942 = vmatprep.subr.mxu0 0.0
    %4943 = vmatpush2.msra.mxu0 0.0
    %4944 = vmatprep.subr.mxu0 0.0
    %4945 = vmatpush2.msra.mxu0 0.0
    %4946 = vmatprep.subr.mxu0 0.0
    %4947 = vmatpush2.msra.mxu0 0.0
    %4948 = vmatprep.subr.mxu0 0.0
    %4949 = vmatpush2.msra.mxu0 0.0
    %4950 = vmatprep.subr.mxu0 0.0
    %4951 = vmatpush2.msra.mxu0 0.0
    %4952 = vmatprep.subr.mxu0 0.0
    %4953 = vmatpush2.msra.mxu0 0.0
    %4954 = vmatprep.subr.mxu0 0.0
    %4955 = vmatpush2.msra.mxu0 0.0
    %4956 = vmatprep.subr.mxu0 0.0
    %4957 = vmatpush2.msra.mxu0 0.0
    %4958 = vmatprep.subr.mxu0 0.0
    %4959 = vmatpush2.msra.mxu0 0.0
    %4960 = vmatprep.subr.mxu0 0.0
    %4961 = vmatpush2.msra.mxu0 0.0
    %4962 = vmatprep.mubr.f32.mxu0 0.0
    %4963 = vmatmul.mubr.f32.gmra.mxu0 %v4896
    %v4964 = vpop.f32.mrf.mxu0
    %v4965 = vadd.f32 0.0, %v4964
    %v4966 = vpop.f32.mrf.mxu0
    %4967 = vdwg.mxu0
    %4970 = vrot.lane.b32.xlu0 %v4585, 8
    %v4971 = vpop.permute.xlu0 %4970
    %4972 = vrot.lane.b32.xlu0 %v4661, 8
    %v4973 = vpop.permute.xlu0 %4972
    %4978 = vrot.lane.b32.xlu0 %v4737, 16
    %v4979 = vpop.permute.xlu0 %4978
    %4980 = vrot.lane.b32.xlu0 %v4813, 16
    %v4981 = vpop.permute.xlu0 %4980
    %4986 = vrot.lane.b32.xlu0 %v4889, 24
    %v4987 = vpop.permute.xlu0 %4986
    %4988 = vrot.lane.b32.xlu0 %v4965, 24
    %v4989 = vpop.permute.xlu0 %4988
    %v4992 = vsel %vm1864, %v4433, %v4971
    %v4993 = vsel %vm1864, %v4509, %v4973
    %v4994 = vsel %vm1355, %v4992, %v4979
    %v4995 = vsel %vm1355, %v4993, %v4981
    %v4996 = vsel %vm3195, %v4994, %v4987
    %v4997 = vsel %vm3195, %v4995, %v4989
    %v4998 = vld [vmem:[#allocation4 + $0x178] sm:$0xff]
    %v4999 = vld [vmem:[#allocation4 + $0x180] sm:$0xff]
    %v5000 = vld [vmem:[#allocation4 + $0x188] sm:$0xff]
    %v5001 = vld [vmem:[#allocation4 + $0x190] sm:$0xff]
    %v5002 = vld [vmem:[#allocation4 + $0x198] sm:$0x1]
    %v5003 = vlaneseq
    %v5004 = vshrl.u32 %v5003, 7
    %v5005 = vsub.s32 0, %v5004
    %v5006 = vrot.slane %v5002, %v5005
    %v5008 = vsel %vm50, %v4996, 0
    %v5011 = vsel %vm50, %v4997, 0
    %5013 = vmatprep.subr.mxu0 0.0
    %5014 = vmatpush1.msra.mxu0 0.0
    %5015 = vmatprep.subr.mxu0 0.0
    %5016 = vmatpush1.msra.mxu0 0.0
    %5017 = vmatprep.subr.mxu0 0.0
    %5018 = vmatpush1.msra.mxu0 0.0
    %5019 = vmatprep.subr.mxu0 0.0
    %5020 = vmatpush1.msra.mxu0 0.0
    %5021 = vmatprep.subr.mxu0 0.0
    %5022 = vmatpush1.msra.mxu0 0.0
    %5023 = vmatprep.subr.mxu0 0.0
    %5024 = vmatpush1.msra.mxu0 0.0
    %5025 = vmatprep.subr.mxu0 0.0
    %5026 = vmatpush1.msra.mxu0 0.0
    %5027 = vmatprep.subr.mxu0 0.0
    %5028 = vmatpush1.msra.mxu0 0.0
    %5029 = vmatprep.subr.mxu0 0.0
    %5030 = vmatpush1.msra.mxu0 0.0
    %5031 = vmatprep.subr.mxu0 0.0
    %5032 = vmatpush1.msra.mxu0 0.0
    %5033 = vmatprep.subr.mxu0 0.0
    %5034 = vmatpush1.msra.mxu0 0.0
    %5035 = vmatprep.subr.mxu0 0.0
    %5036 = vmatpush1.msra.mxu0 0.0
    %5037 = vmatprep.subr.mxu0 0.0
    %5038 = vmatpush1.msra.mxu0 %v5001
    %5039 = vmatprep.subr.mxu0 0.0
    %5040 = vmatpush1.msra.mxu0 %v5000
    %5041 = vmatprep.subr.mxu0 0.0
    %5042 = vmatpush1.msra.mxu0 %v4999
    %5043 = vmatprep.subr.mxu0 0.0
    %5044 = vmatpush1.msra.mxu0 %v4998
    %5045 = vmatprep.subr.mxu0 0.0
    %5046 = vmatpush2.msra.mxu0 0.0
    %5047 = vmatprep.subr.mxu0 0.0
    %5048 = vmatpush2.msra.mxu0 0.0
    %5049 = vmatprep.subr.mxu0 0.0
    %5050 = vmatpush2.msra.mxu0 0.0
    %5051 = vmatprep.subr.mxu0 0.0
    %5052 = vmatpush2.msra.mxu0 0.0
    %5053 = vmatprep.subr.mxu0 0.0
    %5054 = vmatpush2.msra.mxu0 0.0
    %5055 = vmatprep.subr.mxu0 0.0
    %5056 = vmatpush2.msra.mxu0 0.0
    %5057 = vmatprep.subr.mxu0 0.0
    %5058 = vmatpush2.msra.mxu0 0.0
    %5059 = vmatprep.subr.mxu0 0.0
    %5060 = vmatpush2.msra.mxu0 0.0
    %5061 = vmatprep.subr.mxu0 0.0
    %5062 = vmatpush2.msra.mxu0 0.0
    %5063 = vmatprep.subr.mxu0 0.0
    %5064 = vmatpush2.msra.mxu0 0.0
    %5065 = vmatprep.subr.mxu0 0.0
    %5066 = vmatpush2.msra.mxu0 0.0
    %5067 = vmatprep.subr.mxu0 0.0
    %5068 = vmatpush2.msra.mxu0 0.0
    %5069 = vmatprep.subr.mxu0 0.0
    %5070 = vmatpush2.msra.mxu0 0.0
    %5071 = vmatprep.subr.mxu0 0.0
    %5072 = vmatpush2.msra.mxu0 0.0
    %5073 = vmatprep.subr.mxu0 0.0
    %5074 = vmatpush2.msra.mxu0 0.0
    %5075 = vmatprep.subr.mxu0 0.0
    %5076 = vmatpush2.msra.mxu0 0.0
    %5077 = vmatprep.mubr.f32.mxu0 0.0
    %5078 = vmatmul.mubr.f32.gmra.mxu0 %v5008
    %v5079 = vpop.f32.mrf.mxu0
    %v5080 = vadd.f32 %v5006, %v5079
    %v5081 = vpop.f32.mrf.mxu0
    %5082 = vmatprep.mubr.f32.mxu0 0.0
    %5083 = vmatmul.mubr.f32.gmra.mxu0 %v5011
    %v5084 = vpop.f32.mrf.mxu0
    %v5085 = vadd.f32 %v5006, %v5084
    %v5086 = vpop.f32.mrf.mxu0
    %5087 = vdwg.mxu0
    %v5088 = vadd.f32 %v3558, %v5080
    %v5089 = vadd.f32 %v3559, %v5085
    %v5090 = vld [vmem:[#allocation4 + $0x1a0] sm:$0x1]
    %v5091 = vld [vmem:[#allocation4 + $0x1a8] sm:$0x1]
    %v5092 = vsel %vm50, %v5088, 0.0
    %5093 = vadd.xlane.f32.xlu0 %v5092
    %v5094 = vpop.xlane.xlu0 %5093
    %v5095 = vsel %vm50, %v5089, 0.0
    %5096 = vadd.xlane.f32.xlu0 %v5095
    %v5097 = vpop.xlane.xlu0 %5096
    %v5098 = vmul.f32 %v5094, %v3298
    %v5099 = vmul.f32 %v5097, %v3298
    %v5100 = vsub.f32 %v5088, %v5098
    %v5101 = vsub.f32 %v5089, %v5099
    %v5102 = vmul.f32 %v5100, %v5100
    %v5103 = vmul.f32 %v5101, %v5101
    %v5104 = vsel %vm50, %v5102, 0.0
    %5105 = vadd.xlane.f32.xlu0 %v5104
    %v5106 = vpop.xlane.xlu0 %5105
    %v5107 = vsel %vm50, %v5103, 0.0
    %5108 = vadd.xlane.f32.xlu0 %v5107
    %v5109 = vpop.xlane.xlu0 %5108
    %v5110 = vmul.f32 %v5106, %v3298
    %v5111 = vmul.f32 %v5109, %v3298
    %v5112 = vadd.f32 %v5110, 1e-05
    %v5113 = vadd.f32 %v5111, 1e-05
    %v5114 = vrsqrt.pop %v5112
    %v5115 = vrsqrt.pop %v5113
    %v5116 = vmul.f32 %v5100, %v5114
    %v5117 = vmul.f32 %v5101, %v5115
    %v5118 = vlaneseq
    %v5119 = vshrl.u32 %v5118, 7
    %v5120 = vsub.s32 0, %v5119
    %v5121 = vrot.slane %v5090, %v5120
    %v5122 = vmul.f32 %v5116, %v5121
    %v5123 = vmul.f32 %v5117, %v5121
    %v5124 = vlaneseq
    %v5125 = vshrl.u32 %v5124, 7
    %v5126 = vsub.s32 0, %v5125
    %v5127 = vrot.slane %v5091, %v5126
    %v5128 = vadd.f32 %v5122, %v5127
    %v5129 = vadd.f32 %v5123, %v5127
    %v5130 = vld [vmem:[#allocation4 + $0x1b0] sm:$0xff]
    %v5131 = vld [vmem:[#allocation4 + $0x1b8] sm:$0xff]
    %v5132 = vld [vmem:[#allocation4 + $0x1c0] sm:$0xff]
    %v5133 = vld [vmem:[#allocation4 + $0x1c8] sm:$0xff]
    %v5134 = vld [vmem:[#allocation4 + $0x1d0] sm:$0x1]
    %v5135 = vlaneseq
    %v5136 = vshrl.u32 %v5135, 7
    %v5137 = vsub.s32 0, %v5136
    %v5138 = vrot.slane %v5134, %v5137
    %v5140 = vsel %vm50, %v5128, 0
    %v5143 = vsel %vm50, %v5129, 0
    %5145 = vmatprep.subr.mxu0 0.0
    %5146 = vmatpush1.msra.mxu0 0.0
    %5147 = vmatprep.subr.mxu0 0.0
    %5148 = vmatpush1.msra.mxu0 0.0
    %5149 = vmatprep.subr.mxu0 0.0
    %5150 = vmatpush1.msra.mxu0 0.0
    %5151 = vmatprep.subr.mxu0 0.0
    %5152 = vmatpush1.msra.mxu0 0.0
    %5153 = vmatprep.subr.mxu0 0.0
    %5154 = vmatpush1.msra.mxu0 0.0
    %5155 = vmatprep.subr.mxu0 0.0
    %5156 = vmatpush1.msra.mxu0 0.0
    %5157 = vmatprep.subr.mxu0 0.0
    %5158 = vmatpush1.msra.mxu0 0.0
    %5159 = vmatprep.subr.mxu0 0.0
    %5160 = vmatpush1.msra.mxu0 0.0
    %5161 = vmatprep.subr.mxu0 0.0
    %5162 = vmatpush1.msra.mxu0 0.0
    %5163 = vmatprep.subr.mxu0 0.0
    %5164 = vmatpush1.msra.mxu0 0.0
    %5165 = vmatprep.subr.mxu0 0.0
    %5166 = vmatpush1.msra.mxu0 0.0
    %5167 = vmatprep.subr.mxu0 0.0
    %5168 = vmatpush1.msra.mxu0 0.0
    %5169 = vmatprep.subr.mxu0 0.0
    %5170 = vmatpush1.msra.mxu0 %v5133
    %5171 = vmatprep.subr.mxu0 0.0
    %5172 = vmatpush1.msra.mxu0 %v5132
    %5173 = vmatprep.subr.mxu0 0.0
    %5174 = vmatpush1.msra.mxu0 %v5131
    %5175 = vmatprep.subr.mxu0 0.0
    %5176 = vmatpush1.msra.mxu0 %v5130
    %5177 = vmatprep.subr.mxu0 0.0
    %5178 = vmatpush2.msra.mxu0 0.0
    %5179 = vmatprep.subr.mxu0 0.0
    %5180 = vmatpush2.msra.mxu0 0.0
    %5181 = vmatprep.subr.mxu0 0.0
    %5182 = vmatpush2.msra.mxu0 0.0
    %5183 = vmatprep.subr.mxu0 0.0
    %5184 = vmatpush2.msra.mxu0 0.0
    %5185 = vmatprep.subr.mxu0 0.0
    %5186 = vmatpush2.msra.mxu0 0.0
    %5187 = vmatprep.subr.mxu0 0.0
    %5188 = vmatpush2.msra.mxu0 0.0
    %5189 = vmatprep.subr.mxu0 0.0
    %5190 = vmatpush2.msra.mxu0 0.0
    %5191 = vmatprep.subr.mxu0 0.0
    %5192 = vmatpush2.msra.mxu0 0.0
    %5193 = vmatprep.subr.mxu0 0.0
    %5194 = vmatpush2.msra.mxu0 0.0
    %5195 = vmatprep.subr.mxu0 0.0
    %5196 = vmatpush2.msra.mxu0 0.0
    %5197 = vmatprep.subr.mxu0 0.0
    %5198 = vmatpush2.msra.mxu0 0.0
    %5199 = vmatprep.subr.mxu0 0.0
    %5200 = vmatpush2.msra.mxu0 0.0
    %5201 = vmatprep.subr.mxu0 0.0
    %5202 = vmatpush2.msra.mxu0 0.0
    %5203 = vmatprep.subr.mxu0 0.0
    %5204 = vmatpush2.msra.mxu0 0.0
    %5205 = vmatprep.subr.mxu0 0.0
    %5206 = vmatpush2.msra.mxu0 0.0
    %5207 = vmatprep.subr.mxu0 0.0
    %5208 = vmatpush2.msra.mxu0 0.0
    %5209 = vmatprep.mubr.f32.mxu0 0.0
    %5210 = vmatmul.mubr.f32.gmra.mxu0 %v5140
    %v5211 = vpop.f32.mrf.mxu0
    %v5212 = vadd.f32 %v5138, %v5211
    %v5213 = vpop.f32.mrf.mxu0
    %5214 = vmatprep.mubr.f32.mxu0 0.0
    %5215 = vmatmul.mubr.f32.gmra.mxu0 %v5143
    %v5216 = vpop.f32.mrf.mxu0
    %v5217 = vadd.f32 %v5138, %v5216
    %v5218 = vpop.f32.mrf.mxu0
    %5219 = vdwg.mxu0
    %v5220 = vmax.f32 %v5212, 0.0
    %v5221 = vmax.f32 %v5217, 0.0
    %v5222 = vld [vmem:[#allocation4 + $0x1d8] sm:$0xff]
    %v5223 = vld [vmem:[#allocation4 + $0x1e0] sm:$0xff]
    %v5224 = vld [vmem:[#allocation4 + $0x1e8] sm:$0xff]
    %v5225 = vld [vmem:[#allocation4 + $0x1f0] sm:$0xff]
    %v5226 = vld [vmem:[#allocation4 + $0x1f8] sm:$0xff]
    %v5227 = vld [vmem:[#allocation4 + $0x200] sm:$0xff]
    %v5228 = vld [vmem:[#allocation4 + $0x208] sm:$0xff]
    %v5229 = vld [vmem:[#allocation4 + $0x210] sm:$0xff]
    %v5230 = vld [vmem:[#allocation4 + $0x218] sm:$0x1]
    %v5231 = vlaneseq
    %v5232 = vshrl.u32 %v5231, 7
    %v5233 = vsub.s32 0, %v5232
    %v5234 = vrot.slane %v5230, %v5233
    %v5236 = vsel %vm3436, %v5220, 0
    %v5239 = vsel %vm3436, %v5221, 0
    %5241 = vmatprep.subr.mxu0 0.0
    %5242 = vmatpush1.msra.mxu0 0.0
    %5243 = vmatprep.subr.mxu0 0.0
    %5244 = vmatpush1.msra.mxu0 0.0
    %5245 = vmatprep.subr.mxu0 0.0
    %5246 = vmatpush1.msra.mxu0 0.0
    %5247 = vmatprep.subr.mxu0 0.0
    %5248 = vmatpush1.msra.mxu0 0.0
    %5249 = vmatprep.subr.mxu0 0.0
    %5250 = vmatpush1.msra.mxu0 0.0
    %5251 = vmatprep.subr.mxu0 0.0
    %5252 = vmatpush1.msra.mxu0 0.0
    %5253 = vmatprep.subr.mxu0 0.0
    %5254 = vmatpush1.msra.mxu0 0.0
    %5255 = vmatprep.subr.mxu0 0.0
    %5256 = vmatpush1.msra.mxu0 0.0
    %5257 = vmatprep.subr.mxu0 0.0
    %5258 = vmatpush1.msra.mxu0 %v5229
    %5259 = vmatprep.subr.mxu0 0.0
    %5260 = vmatpush1.msra.mxu0 %v5228
    %5261 = vmatprep.subr.mxu0 0.0
    %5262 = vmatpush1.msra.mxu0 %v5227
    %5263 = vmatprep.subr.mxu0 0.0
    %5264 = vmatpush1.msra.mxu0 %v5226
    %5265 = vmatprep.subr.mxu0 0.0
    %5266 = vmatpush1.msra.mxu0 %v5225
    %5267 = vmatprep.subr.mxu0 0.0
    %5268 = vmatpush1.msra.mxu0 %v5224
    %5269 = vmatprep.subr.mxu0 0.0
    %5270 = vmatpush1.msra.mxu0 %v5223
    %5271 = vmatprep.subr.mxu0 0.0
    %5272 = vmatpush1.msra.mxu0 %v5222
    %5273 = vmatprep.subr.mxu0 0.0
    %5274 = vmatpush2.msra.mxu0 0.0
    %5275 = vmatprep.subr.mxu0 0.0
    %5276 = vmatpush2.msra.mxu0 0.0
    %5277 = vmatprep.subr.mxu0 0.0
    %5278 = vmatpush2.msra.mxu0 0.0
    %5279 = vmatprep.subr.mxu0 0.0
    %5280 = vmatpush2.msra.mxu0 0.0
    %5281 = vmatprep.subr.mxu0 0.0
    %5282 = vmatpush2.msra.mxu0 0.0
    %5283 = vmatprep.subr.mxu0 0.0
    %5284 = vmatpush2.msra.mxu0 0.0
    %5285 = vmatprep.subr.mxu0 0.0
    %5286 = vmatpush2.msra.mxu0 0.0
    %5287 = vmatprep.subr.mxu0 0.0
    %5288 = vmatpush2.msra.mxu0 0.0
    %5289 = vmatprep.subr.mxu0 0.0
    %5290 = vmatpush2.msra.mxu0 0.0
    %5291 = vmatprep.subr.mxu0 0.0
    %5292 = vmatpush2.msra.mxu0 0.0
    %5293 = vmatprep.subr.mxu0 0.0
    %5294 = vmatpush2.msra.mxu0 0.0
    %5295 = vmatprep.subr.mxu0 0.0
    %5296 = vmatpush2.msra.mxu0 0.0
    %5297 = vmatprep.subr.mxu0 0.0
    %5298 = vmatpush2.msra.mxu0 0.0
    %5299 = vmatprep.subr.mxu0 0.0
    %5300 = vmatpush2.msra.mxu0 0.0
    %5301 = vmatprep.subr.mxu0 0.0
    %5302 = vmatpush2.msra.mxu0 0.0
    %5303 = vmatprep.subr.mxu0 0.0
    %5304 = vmatpush2.msra.mxu0 0.0
    %5305 = vmatprep.mubr.f32.mxu0 0.0
    %5306 = vmatmul.mubr.f32.gmra.mxu0 %v5236
    %v5307 = vpop.f32.mrf.mxu0
    %v5308 = vadd.f32 %v5234, %v5307
    %v5309 = vpop.f32.mrf.mxu0
    %5310 = vmatprep.mubr.f32.mxu0 0.0
    %5311 = vmatmul.mubr.f32.gmra.mxu0 %v5239
    %v5312 = vpop.f32.mrf.mxu0
    %v5313 = vadd.f32 %v5234, %v5312
    %v5314 = vpop.f32.mrf.mxu0
    %5315 = vdwg.mxu0
    %v5316 = vadd.f32 %v5128, %v5308
    %v5317 = vadd.f32 %v5129, %v5313
    %v5318 = vld [vmem:[#allocation4 + $0x220] sm:$0x1]
    %v5319 = vld [vmem:[#allocation4 + $0x228] sm:$0x1]
    %v5320 = vsel %vm50, %v5316, 0.0
    %5321 = vadd.xlane.f32.xlu0 %v5320
    %v5322 = vpop.xlane.xlu0 %5321
    %v5323 = vsel %vm50, %v5317, 0.0
    %5324 = vadd.xlane.f32.xlu0 %v5323
    %v5325 = vpop.xlane.xlu0 %5324
    %v5326 = vmul.f32 %v5322, %v3298
    %v5327 = vmul.f32 %v5325, %v3298
    %v5328 = vsub.f32 %v5316, %v5326
    %v5329 = vsub.f32 %v5317, %v5327
    %v5330 = vmul.f32 %v5328, %v5328
    %v5331 = vmul.f32 %v5329, %v5329
    %v5332 = vsel %vm50, %v5330, 0.0
    %5333 = vadd.xlane.f32.xlu0 %v5332
    %v5334 = vpop.xlane.xlu0 %5333
    %v5335 = vsel %vm50, %v5331, 0.0
    %5336 = vadd.xlane.f32.xlu0 %v5335
    %v5337 = vpop.xlane.xlu0 %5336
    %v5338 = vmul.f32 %v5334, %v3298
    %v5339 = vmul.f32 %v5337, %v3298
    %v5340 = vadd.f32 %v5338, 1e-05
    %v5341 = vadd.f32 %v5339, 1e-05
    %v5342 = vrsqrt.pop %v5340
    %v5343 = vrsqrt.pop %v5341
    %v5344 = vmul.f32 %v5328, %v5342
    %v5345 = vmul.f32 %v5329, %v5343
    %v5346 = vlaneseq
    %v5347 = vshrl.u32 %v5346, 7
    %v5348 = vsub.s32 0, %v5347
    %v5349 = vrot.slane %v5318, %v5348
    %v5350 = vmul.f32 %v5344, %v5349
    %v5351 = vmul.f32 %v5345, %v5349
    %v5352 = vlaneseq
    %v5353 = vshrl.u32 %v5352, 7
    %v5354 = vsub.s32 0, %v5353
    %v5355 = vrot.slane %v5319, %v5354
    %v5356 = vadd.f32 %v5350, %v5355
    %v5357 = vadd.f32 %v5351, %v5355
    %v5358 = vlaneseq
    %v5359 = vshrl.u32 %v5358, 7
    %v5360 = vsub.s32 7, %v5359
    %v5361 = vrot.slane %v5356, %v5360
    %v5362 = vlaneseq
    %v5363 = vshrl.u32 %v5362, 7
    %v5364 = vsub.s32 7, %v5363
    %v5365 = vrot.slane %v5357, %v5364
    %v5366 = vmul.f32 %v5361, %v5356
    %v5367 = vmul.f32 %v5365, %v5357
    %v5368 = vsel %vm50, %v5366, 0.0
    %5369 = vadd.xlane.f32.xlu0 %v5368
    %v5370 = vpop.xlane.xlu0 %5369
    %v5371 = vsel %vm50, %v5367, 0.0
    %5372 = vadd.xlane.f32.xlu0 %v5371
    %v5373 = vpop.xlane.xlu0 %5372
    %v5376 = vlaneseq
    %v5377 = vand.u32 %v5376, 127
    %v5378 = vlaneseq
    %v5379 = vshrl.u32 %v5378, 7
    %v5380 = vsub.s32 %v5377, %v5379
    %v5381 = vrot.slane %v5370, %v5380
    %v5382 = vlaneseq
    %v5383 = vshrl.u32 %v5382, 7
    %v5384 = vsub.s32 %v5377, %v5383
    %v5385 = vrot.slane %v5373, %v5384
    %v5386 = vsel %vm371, %v5385, %v5381
    %vm5388 = vcmask 58368
    %v5389 = vsel %vm5388, %v5386, -inf
    %5390 = vmax.xlane.f32.xlu0 %v5389
    %v5391 = vpop.xlane.xlu0 %5390
    %v5393 = vlaneseq
    %v5394 = vshrl.u32 %v5393, 7
    %v5395 = vsub.s32 0, %v5394
    %v5396 = vrot.slane %v5391, %v5395
    %v5397 = vlaneseq
    %v5398 = vshrl.u32 %v5397, 7
    %v5399 = vsub.s32 1, %v5398
    %v5400 = vrot.slane %v5391, %v5399
    %v5403 = vsub.f32 %v5370, %v5396
    %v5404 = vsub.f32 %v5373, %v5400
    %v5405 = vmul.f32 %v5403, 1.442695
    %v5406 = vpow.pop %v5405
    %v5407 = vmul.f32 %v5404, 1.442695
    %v5408 = vpow.pop %v5407
    %5411 = vset.pattern.permute.xlu0 0
    %5412 = vperm.xlu0 %5411, %v5406
    %v5413 = vpop.permute.xlu0 %5412
    %5414 = vset.pattern.permute.xlu0 0
    %5415 = vperm.xlu0 %5414, %v5408
    %v5416 = vpop.permute.xlu0 %5415
    %v5417 = vlaneseq
    %v5418 = vshrl.u32 %v5417, 7
    %v5419 = vsub.s32 %v5377, %v5418
    %v5420 = vrot.slane %v5413, %v5419
    %v5421 = vlaneseq
    %v5422 = vshrl.u32 %v5421, 7
    %v5423 = vsub.s32 %v5377, %v5422
    %v5424 = vrot.slane %v5416, %v5423
    %v5425 = vsel %vm371, %v5424, %v5420
    %v5427 = vsel %vm5388, %v5425, 0.0
    %5428 = vadd.xlane.f32.xlu0 %v5427
    %v5429 = vpop.xlane.xlu0 %5428
    %v5430 = vrcp.pop %v5429
    %v5432 = vlaneseq
    %v5433 = vshrl.u32 %v5432, 7
    %v5434 = vsub.s32 0, %v5433
    %v5435 = vrot.slane %v5430, %v5434
    %v5436 = vlaneseq
    %v5437 = vshrl.u32 %v5436, 7
    %v5438 = vsub.s32 1, %v5437
    %v5439 = vrot.slane %v5430, %v5438
    %v5442 = vmul.f32 %v5406, %v5435
    %v5443 = vmul.f32 %v5408, %v5439
    %5445 = vset.pattern.permute.xlu0 0
    %5446 = vperm.xlu0 %5445, %v5442
    %v5447 = vpop.permute.xlu0 %5446
    %5450 = vset.pattern.permute.xlu0 0
    %5451 = vperm.xlu0 %5450, %v5443
    %v5452 = vpop.permute.xlu0 %5451
    %v5454 = vmul.f32 %v5447, %v5356
    %v5455 = vmul.f32 %v5452, %v5357
    %v5456 = vsel %vm50, %v5454, 0.0
    %v5457 = vrot.slane %v5456, 4
    %v5458 = vadd.f32 %v5456, %v5457
    %v5459 = vrot.slane %v5458, 2
    %v5460 = vadd.f32 %v5458, %v5459
    %v5461 = vrot.slane %v5460, 1
    %v5462 = vadd.f32 %v5460, %v5461
    %v5463 = vsel %vm50, %v5455, 0.0
    %v5464 = vrot.slane %v5463, 4
    %v5465 = vadd.f32 %v5463, %v5464
    %v5466 = vrot.slane %v5465, 2
    %v5467 = vadd.f32 %v5465, %v5466
    %v5468 = vrot.slane %v5467, 1
    %v5469 = vadd.f32 %v5467, %v5468
    %v5470 = vld [vmem:[#allocation4 + $0x230] sm:$0xff]
    %v5471 = vld [vmem:[#allocation4 + $0x238] sm:$0xff]
    %v5472 = vld [vmem:[#allocation4 + $0x240] sm:$0xff]
    %v5473 = vld [vmem:[#allocation4 + $0x248] sm:$0xff]
    %v5474 = vld [vmem:[#allocation4 + $0x250] sm:$0x1]
    %v5475 = vlaneseq
    %v5476 = vshrl.u32 %v5475, 7
    %v5477 = vsub.s32 0, %v5476
    %v5478 = vrot.slane %v5474, %v5477
    %v5481 = vsel %vm371, %v5469, %v5462
    %v5482 = vsel %vm50, %v5481, 0
    %5484 = vmatprep.subr.mxu0 0.0
    %5485 = vmatpush1.msra.mxu0 0.0
    %5486 = vmatprep.subr.mxu0 0.0
    %5487 = vmatpush1.msra.mxu0 0.0
    %5488 = vmatprep.subr.mxu0 0.0
    %5489 = vmatpush1.msra.mxu0 0.0
    %5490 = vmatprep.subr.mxu0 0.0
    %5491 = vmatpush1.msra.mxu0 0.0
    %5492 = vmatprep.subr.mxu0 0.0
    %5493 = vmatpush1.msra.mxu0 0.0
    %5494 = vmatprep.subr.mxu0 0.0
    %5495 = vmatpush1.msra.mxu0 0.0
    %5496 = vmatprep.subr.mxu0 0.0
    %5497 = vmatpush1.msra.mxu0 0.0
    %5498 = vmatprep.subr.mxu0 0.0
    %5499 = vmatpush1.msra.mxu0 0.0
    %5500 = vmatprep.subr.mxu0 0.0
    %5501 = vmatpush1.msra.mxu0 0.0
    %5502 = vmatprep.subr.mxu0 0.0
    %5503 = vmatpush1.msra.mxu0 0.0
    %5504 = vmatprep.subr.mxu0 0.0
    %5505 = vmatpush1.msra.mxu0 0.0
    %5506 = vmatprep.subr.mxu0 0.0
    %5507 = vmatpush1.msra.mxu0 0.0
    %5508 = vmatprep.subr.mxu0 0.0
    %5509 = vmatpush1.msra.mxu0 %v5473
    %5510 = vmatprep.subr.mxu0 0.0
    %5511 = vmatpush1.msra.mxu0 %v5472
    %5512 = vmatprep.subr.mxu0 0.0
    %5513 = vmatpush1.msra.mxu0 %v5471
    %5514 = vmatprep.subr.mxu0 0.0
    %5515 = vmatpush1.msra.mxu0 %v5470
    %5516 = vmatprep.subr.mxu0 0.0
    %5517 = vmatpush2.msra.mxu0 0.0
    %5518 = vmatprep.subr.mxu0 0.0
    %5519 = vmatpush2.msra.mxu0 0.0
    %5520 = vmatprep.subr.mxu0 0.0
    %5521 = vmatpush2.msra.mxu0 0.0
    %5522 = vmatprep.subr.mxu0 0.0
    %5523 = vmatpush2.msra.mxu0 0.0
    %5524 = vmatprep.subr.mxu0 0.0
    %5525 = vmatpush2.msra.mxu0 0.0
    %5526 = vmatprep.subr.mxu0 0.0
    %5527 = vmatpush2.msra.mxu0 0.0
    %5528 = vmatprep.subr.mxu0 0.0
    %5529 = vmatpush2.msra.mxu0 0.0
    %5530 = vmatprep.subr.mxu0 0.0
    %5531 = vmatpush2.msra.mxu0 0.0
    %5532 = vmatprep.subr.mxu0 0.0
    %5533 = vmatpush2.msra.mxu0 0.0
    %5534 = vmatprep.subr.mxu0 0.0
    %5535 = vmatpush2.msra.mxu0 0.0
    %5536 = vmatprep.subr.mxu0 0.0
    %5537 = vmatpush2.msra.mxu0 0.0
    %5538 = vmatprep.subr.mxu0 0.0
    %5539 = vmatpush2.msra.mxu0 0.0
    %5540 = vmatprep.subr.mxu0 0.0
    %5541 = vmatpush2.msra.mxu0 0.0
    %5542 = vmatprep.subr.mxu0 0.0
    %5543 = vmatpush2.msra.mxu0 0.0
    %5544 = vmatprep.subr.mxu0 0.0
    %5545 = vmatpush2.msra.mxu0 0.0
    %5546 = vmatprep.subr.mxu0 0.0
    %5547 = vmatpush2.msra.mxu0 0.0
    %5548 = vmatprep.mubr.f32.mxu0 0.0
    %5549 = vmatmul.mubr.f32.gmra.mxu0 %v5482
    %v5550 = vpop.f32.mrf.mxu0
    %v5551 = vadd.f32 %v5478, %v5550
    %v5552 = vpop.f32.mrf.mxu0
    %5553 = vdwg.mxu0
    %v5554 = vld [vmem:[#allocation4 + $0x258] sm:$0x1]
    %v5555 = vld [vmem:[#allocation4 + $0x260] sm:$0x1]
    %vm5556 = vcmask 123904
    %v5557 = vsel %vm5556, %v5551, 0.0
    %5558 = vadd.xlane.f32.xlu0 %v5557
    %v5559 = vpop.xlane.xlu0 %5558
    %v5560 = vrcp.pop 16.0
    %v5561 = vmul.f32 %v5559, %v5560
    %v5562 = vsub.f32 %v5551, %v5561
    %v5563 = vmul.f32 %v5562, %v5562
    %v5564 = vsel %vm5556, %v5563, 0.0
    %5565 = vadd.xlane.f32.xlu0 %v5564
    %v5566 = vpop.xlane.xlu0 %5565
    %v5567 = vmul.f32 %v5566, %v5560
    %v5568 = vadd.f32 %v5567, 1e-05
    %v5569 = vrsqrt.pop %v5568
    %v5570 = vmul.f32 %v5562, %v5569
    %v5571 = vlaneseq
    %v5572 = vshrl.u32 %v5571, 7
    %v5573 = vsub.s32 0, %v5572
    %v5574 = vrot.slane %v5554, %v5573
    %v5575 = vmul.f32 %v5570, %v5574
    %v5576 = vlaneseq
    %v5577 = vshrl.u32 %v5576, 7
    %v5578 = vsub.s32 0, %v5577
    %v5579 = vrot.slane %v5555, %v5578
    %v5580 = vadd.f32 %v5575, %v5579
    %v5581 = vmax.f32 %v5580, 0.0
    %v5582 = vld [vmem:[#allocation4 + $0x268] sm:$0xff]
    %v5583 = vld [vmem:[#allocation4 + $0x270] sm:$0xff]
    %v5584 = vld [vmem:[#allocation4 + $0x278] sm:$0x1]
    %v5585 = vlaneseq
    %v5586 = vshrl.u32 %v5585, 7
    %v5587 = vsub.s32 0, %v5586
    %v5588 = vrot.slane %v5584, %v5587
    %v5590 = vsel %vm1355, %v5581, 0
    %5592 = vmatprep.subr.mxu0 0.0
    %5593 = vmatpush1.msra.mxu0 0.0
    %5594 = vmatprep.subr.mxu0 0.0
    %5595 = vmatpush1.msra.mxu0 0.0
    %5596 = vmatprep.subr.mxu0 0.0
    %5597 = vmatpush1.msra.mxu0 0.0
    %5598 = vmatprep.subr.mxu0 0.0
    %5599 = vmatpush1.msra.mxu0 0.0
    %5600 = vmatprep.subr.mxu0 0.0
    %5601 = vmatpush1.msra.mxu0 0.0
    %5602 = vmatprep.subr.mxu0 0.0
    %5603 = vmatpush1.msra.mxu0 0.0
    %5604 = vmatprep.subr.mxu0 0.0
    %5605 = vmatpush1.msra.mxu0 0.0
    %5606 = vmatprep.subr.mxu0 0.0
    %5607 = vmatpush1.msra.mxu0 0.0
    %5608 = vmatprep.subr.mxu0 0.0
    %5609 = vmatpush1.msra.mxu0 0.0
    %5610 = vmatprep.subr.mxu0 0.0
    %5611 = vmatpush1.msra.mxu0 0.0
    %5612 = vmatprep.subr.mxu0 0.0
    %5613 = vmatpush1.msra.mxu0 0.0
    %5614 = vmatprep.subr.mxu0 0.0
    %5615 = vmatpush1.msra.mxu0 0.0
    %5616 = vmatprep.subr.mxu0 0.0
    %5617 = vmatpush1.msra.mxu0 0.0
    %5618 = vmatprep.subr.mxu0 0.0
    %5619 = vmatpush1.msra.mxu0 0.0
    %5620 = vmatprep.subr.mxu0 0.0
    %5621 = vmatpush1.msra.mxu0 %v5583
    %5622 = vmatprep.subr.mxu0 0.0
    %5623 = vmatpush1.msra.mxu0 %v5582
    %5624 = vmatprep.subr.mxu0 0.0
    %5625 = vmatpush2.msra.mxu0 0.0
    %5626 = vmatprep.subr.mxu0 0.0
    %5627 = vmatpush2.msra.mxu0 0.0
    %5628 = vmatprep.subr.mxu0 0.0
    %5629 = vmatpush2.msra.mxu0 0.0
    %5630 = vmatprep.subr.mxu0 0.0
    %5631 = vmatpush2.msra.mxu0 0.0
    %5632 = vmatprep.subr.mxu0 0.0
    %5633 = vmatpush2.msra.mxu0 0.0
    %5634 = vmatprep.subr.mxu0 0.0
    %5635 = vmatpush2.msra.mxu0 0.0
    %5636 = vmatprep.subr.mxu0 0.0
    %5637 = vmatpush2.msra.mxu0 0.0
    %5638 = vmatprep.subr.mxu0 0.0
    %5639 = vmatpush2.msra.mxu0 0.0
    %5640 = vmatprep.subr.mxu0 0.0
    %5641 = vmatpush2.msra.mxu0 0.0
    %5642 = vmatprep.subr.mxu0 0.0
    %5643 = vmatpush2.msra.mxu0 0.0
    %5644 = vmatprep.subr.mxu0 0.0
    %5645 = vmatpush2.msra.mxu0 0.0
    %5646 = vmatprep.subr.mxu0 0.0
    %5647 = vmatpush2.msra.mxu0 0.0
    %5648 = vmatprep.subr.mxu0 0.0
    %5649 = vmatpush2.msra.mxu0 0.0
    %5650 = vmatprep.subr.mxu0 0.0
    %5651 = vmatpush2.msra.mxu0 0.0
    %5652 = vmatprep.subr.mxu0 0.0
    %5653 = vmatpush2.msra.mxu0 0.0
    %5654 = vmatprep.subr.mxu0 0.0
    %5655 = vmatpush2.msra.mxu0 0.0
    %5656 = vmatprep.mubr.f32.mxu0 0.0
    %5657 = vmatmul.mubr.f32.gmra.mxu0 %v5590
    %v5658 = vpop.f32.mrf.mxu0
    %v5659 = vadd.f32 %v5588, %v5658
    %v5660 = vpop.f32.mrf.mxu0
    %5661 = vdwg.mxu0
    %v5662 = vxor.u32 %v5659, 2147483648
    %v5663 = vmul.f32 %v5662, 1.442695
    %v5664 = vpow.pop %v5663
    %v5665 = vadd.f32 %v5664, 1.0
    %v5666 = vrcp.pop %v5665
    %v5667 = vmul.f32 1.0, %v5666
    %vm5668 = vcmask 1024
    %5669 = vst.msk [vmem:[%s2] sm:$0x3] %vm5668, %v5667
    // Predicated region
    $region18: #{tpu_custom_call.1} parent=1 // pred_check
      _
    $region19: #{tpu_custom_call.1} parent=1 // pred_check_branch
      %5671 = sbr.rel (0) target = $region21
    $region20: #{tpu_custom_call.1} parent=1 // pred_region
      _
    $region21: #{tpu_custom_call.1} parent=1 // pred_fallthru
      _
    // Predicated region
    $region22: #{tpu_custom_call.1} parent=1 // pred_check
      _
    $region23: #{tpu_custom_call.1} parent=1 // pred_check_branch
      %5673 = sbr.rel (0) target = $region25
    $region24: #{tpu_custom_call.1} parent=1 // pred_region
      _
    $region25: #{tpu_custom_call.1} parent=1 // pred_fallthru
      _
    %5674 = vsyncpa [#allocation3], 1
    %5675 = vsyncpa [#allocation5], 1

</llo_original>
